<compile_context>
chip_gen: v5e
topology: v5e:2x2
jax: 0.10.0
libtpu: 0.0.40
codegen_flags: <defaults>
</compile_context>

<pallas_src>
import functools

import jax
import jax.numpy as jnp
from jax.experimental import pallas as pl
from jax.experimental.pallas import tpu as pltpu

LANE = 128                            # lane-dense channel padding (multiple of 128)
VMEM_LIMIT_BYTES = 48 * 1024 * 1024   # fits v7x (64 MiB) as well as v5e/v6e (128 MiB)


def _round_up(x, m):
    return (x + m - 1) // m * m


def _choose_tile_m(m, target=512):
    """Pick an M tile (target 512, multiple of 8) and the padded M extent."""
    if m <= target:
        return m, m
    for t in (target, 256, 128, 64, 32, 16, 8):
        if m % t == 0:
            return t, m
    # TODO(synk): non-composite voxel counts fall back to padding A (extra copy).
    return target, _round_up(m, target)


# ----------------------------------------------------------------------------
# Kernel 1: matmul + bias  (ConvTranspose3d k=2, s=2 lowered to a single GEMM).
# bf16 operands, f32 accumulation, bias added on the f32 accumulator.
# ----------------------------------------------------------------------------
def _mm_bias_kernel(a_ref, b_ref, shift_ref, o_ref):
    acc = jnp.dot(a_ref[...], b_ref[...], preferred_element_type=jnp.float32)
    o_ref[...] = (acc + shift_ref[...]).astype(o_ref.dtype)


def conv_transpose3d_k2s2(x, weight, bias, out_dtype=jnp.bfloat16):
    """ConvTranspose3d(kernel=2, stride=2, padding=0), channels-last.

    x:      [N, D, H, W, Ci]   (NDHWC)
    weight: [Ci, Co, 2, 2, 2]  (PyTorch ConvTranspose layout)
    bias:   [Co]
    returns [N, 2D, 2H, 2W, Co]
    """
    n, d, h, wd, ci = x.shape
    co = weight.shape[1]
    m = n * d * h * wd
    ncols = 8 * co
    npad = _round_up(ncols, LANE)                       # lane-dense stores

    a = x.reshape(m, ci).astype(jnp.bfloat16)           # bitcast, no transpose
    b = jnp.transpose(weight, (0, 2, 3, 4, 1)).reshape(ci, ncols)  # (kd,kh,kw,co)
    b = jnp.pad(b, ((0, 0), (0, npad - ncols))).astype(jnp.bfloat16)
    shift = jnp.pad(jnp.tile(bias, 8), (0, npad - ncols))
    shift = shift.reshape(1, npad).astype(jnp.float32)

    tm, mp = _choose_tile_m(m)
    if mp != m:
        a = jnp.pad(a, ((0, mp - m), (0, 0)))

    out = pl.pallas_call(
        _mm_bias_kernel,
        out_shape=jax.ShapeDtypeStruct((mp, npad), out_dtype),
        grid_spec=pltpu.PrefetchScalarGridSpec(
            num_scalar_prefetch=0,
            grid=(mp // tm,),
            in_specs=[
                pl.BlockSpec((tm, ci), lambda i: (i, 0)),
                pl.BlockSpec((ci, npad), lambda i: (0, 0)),
                pl.BlockSpec((1, npad), lambda i: (0, 0)),
            ],
            out_specs=pl.BlockSpec((tm, npad), lambda i: (i, 0)),
        ),
        compiler_params=pltpu.CompilerParams(
            dimension_semantics=("parallel",),
            vmem_limit_bytes=VMEM_LIMIT_BYTES),
    )(a, b, shift)

    # [M, 8*Co] -> [N, 2D, 2H, 2W, Co]; interleave keeps Co in the lanes.
    out = out[:m, :ncols].reshape(n, d, h, wd, 2, 2, 2, co)
    out = out.transpose(0, 1, 4, 2, 5, 3, 6, 7)         # N, D, 2, H, 2, W, 2, Co
    return out.reshape(n, 2 * d, 2 * h, 2 * wd, co)


# ----------------------------------------------------------------------------
# Kernel 2: fused Conv3d(3x3x3, pad=1) + folded BatchNorm(eval) + ReLU.
#
# No im2col in HBM.  Each padded depth slice is flattened row-major to a
# [(H+3)*(W+2), Cin] slab; the 27 taps then become 27 *contiguous*
# [H*(W+2), Cin] windows (same-row-stride trick), accumulated with bf16 MXU
# dots into an f32 accumulator.  The two junk columns per row produced by the
# trick are sliced off in the wrapper (bitcast reshape + slice).
# ----------------------------------------------------------------------------
def _conv3_kernel(xa_ref, xb_ref, xc_ref, w_ref, shift_ref, o_ref, *, h, w):
    wp2 = w + 2
    hw = h * wp2
    cop = o_ref.shape[-1]
    acc = jnp.zeros((hw, cop), jnp.float32)
    for kd, xr in enumerate((xa_ref, xb_ref, xc_ref)):      # depth taps d-1, d, d+1
        for kh in range(3):
            for kw in range(3):
                off = kh * wp2 + kw                         # contiguous window start
                patch = xr[0, 0, off:off + hw, :]           # [H*(W+2), Cin]
                acc = acc + jnp.dot(patch, w_ref[kd * 9 + kh * 3 + kw],
                                    preferred_element_type=jnp.float32)
    y = jnp.maximum(acc + shift_ref[...], 0.0)              # folded BN + ReLU (f32)
    o_ref[0, 0] = y.astype(o_ref.dtype)


def conv3x3_bn_relu(x, weight, bias, *, gamma, beta, mean, var, eps=1e-5,
                    out_dtype=jnp.bfloat16):
    """Conv3d(3, padding=1) + BatchNorm3d (eval) + ReLU, channels-last.

    x:      [N, D, H, W, Cin]  (Cin may include trailing zero lane-padding)
    weight: [Co, Cw, 3, 3, 3]  with Cw <= Cin (extra input channels get 0 weight)
    returns [N, D, H, W, Co_pad]  with Co_pad = round_up(Co, 128); channels
            beyond Co are exactly zero (safe to feed to the next layer).
    """
    n, d, h, w, cin = x.shape
    co, cw = weight.shape[0], weight.shape[1]
    cop = _round_up(co, LANE)
    wp2 = w + 2
    hw = h * wp2                        # flattened output rows per depth slice
    s = (h + 3) * wp2                   # flattened padded spatial per depth slice

    # Fold BN scale into the weights; shift applied on the f32 accumulator.
    scale = gamma / jnp.sqrt(var + eps)
    shift = (bias - mean) * scale + beta
    wt = jnp.transpose(weight, (2, 3, 4, 1, 0)) * scale              # (3,3,3,Cw,Co)
    wt = jnp.pad(wt, ((0, 0), (0, 0), (0, 0), (0, cin - cw), (0, cop - co)))
    wt = wt.reshape(27, cin, cop).astype(jnp.bfloat16)
    shift = jnp.pad(shift, (0, cop - co)).reshape(1, cop).astype(jnp.float32)

    # Spatial zero-pad: D (1,1), H (1,2) -- one slack row for the stride trick,
    # W (1,1); then flatten (H+3, W+2) so taps are contiguous windows.
    xp = jnp.pad(x.astype(jnp.bfloat16),
                 ((0, 0), (1, 1), (1, 2), (1, 1), (0, 0)))
    xp = xp.reshape(n, d + 2, s, cin)

    out = pl.pallas_call(
        functools.partial(_conv3_kernel, h=h, w=w),
        out_shape=jax.ShapeDtypeStruct((n, d, hw, cop), out_dtype),
        grid_spec=pltpu.PrefetchScalarGridSpec(
            num_scalar_prefetch=0,
            grid=(n, d),
            in_specs=[
                pl.BlockSpec((1, 1, s, cin), lambda i, j: (i, j, 0, 0)),
                pl.BlockSpec((1, 1, s, cin), lambda i, j: (i, j + 1, 0, 0)),
                pl.BlockSpec((1, 1, s, cin), lambda i, j: (i, j + 2, 0, 0)),
                pl.BlockSpec((27, cin, cop), lambda i, j: (0, 0, 0)),
                pl.BlockSpec((1, cop), lambda i, j: (0, 0)),
            ],
            out_specs=pl.BlockSpec((1, 1, hw, cop), lambda i, j: (i, j, 0, 0)),
        ),
        compiler_params=pltpu.CompilerParams(
            dimension_semantics=("parallel", "parallel"),
            vmem_limit_bytes=VMEM_LIMIT_BYTES),
    )(xp, xp, xp, wt, shift)

    # Drop the 2 junk columns per row introduced by the same-row-stride trick.
    out = out.reshape(n, d, h, wp2, cop)[:, :, :, :w, :]
    return out


# ----------------------------------------------------------------------------
# The `deconv` module forward (inputs/outputs in PyTorch NCDHW layout).
# ----------------------------------------------------------------------------
def init_deconv_params(key, ci, co):
    ks = jax.random.split(key, 8)

    def normal(k, shape, s=0.1):
        return s * jax.random.normal(k, shape, dtype=jnp.float32)

    def bn(k, c):
        k1, k2, k3, k4 = jax.random.split(k, 4)
        return dict(
            gamma=1.0 + 0.1 * jax.random.normal(k1, (c,), dtype=jnp.float32),
            beta=0.1 * jax.random.normal(k2, (c,), dtype=jnp.float32),
            mean=0.1 * jax.random.normal(k3, (c,), dtype=jnp.float32),
            var=0.5 + jax.random.uniform(k4, (c,), dtype=jnp.float32),
        )

    return dict(
        up_w=normal(ks[0], (ci, co, 2, 2, 2)),
        up_b=normal(ks[1], (co,)),
        c1_w=normal(ks[2], (co, ci, 3, 3, 3)),
        c1_b=normal(ks[3], (co,)),
        bn1=bn(ks[4], co),
        c2_w=normal(ks[5], (co, co, 3, 3, 3)),
        c2_b=normal(ks[6], (co,)),
        bn2=bn(ks[7], co),
    )


def deconv_forward(params, x1, x2):
    # x1: [N, ci, D, H, W]; x2: [N, ci - co, 2D, 2H, 2W]   (NCDHW)
    co = params["c2_w"].shape[0]
    # Channels-last internally (one transpose per module input/output).
    x1 = jnp.transpose(x1, (0, 2, 3, 4, 1))
    x2 = jnp.transpose(x2, (0, 2, 3, 4, 1)).astype(jnp.bfloat16)

    up = conv_transpose3d_k2s2(x1, params["up_w"], params["up_b"])
    x = jnp.concatenate([x2, up], axis=-1)                      # channels -> ci
    x = conv3x3_bn_relu(x, params["c1_w"], params["c1_b"], **params["bn1"],
                        out_dtype=jnp.bfloat16)
    x = conv3x3_bn_relu(x, params["c2_w"], params["c2_b"], **params["bn2"],
                        out_dtype=jnp.float32)
    x = x[..., :co]                                             # drop lane padding
    return jnp.transpose(x, (0, 4, 1, 2, 3))                    # back to NCDHW


if __name__ == "__main__":
    # Small shapes consistent with the module: ci = 2*co (U-Net style skip).
    N, CI, CO = 2, 8, 4
    D = H = W = 4

    key = jax.random.PRNGKey(0)
    k_p, k_x1, k_x2 = jax.random.split(key, 3)
    params = init_deconv_params(k_p, CI, CO)

    x1 = jax.random.normal(k_x1, (N, CI, D, H, W), dtype=jnp.float32)
    x2 = jax.random.normal(k_x2, (N, CI - CO, 2 * D, 2 * H, 2 * W),
                           dtype=jnp.float32)

    out = jax.jit(deconv_forward)(params, x1, x2)
    out = jax.block_until_ready(out)

    assert out.shape == (N, CO, 2 * D, 2 * H, 2 * W), out.shape
    assert bool(jnp.all(jnp.isfinite(out)))
    print("KERNEL_OK")
</pallas_src>

<mosaic_0001>
module attributes {stable_mosaic.version = 11 : i64} {
  func.func @_mm_bias_kernel(%arg0: i32, %arg1: memref<128x8xbf16, #tpu.memory_space<vmem>>, %arg2: memref<8x128xbf16, #tpu.memory_space<vmem>>, %arg3: memref<1x128xf32, #tpu.memory_space<vmem>>, %arg4: memref<128x128xbf16, #tpu.memory_space<vmem>>) attributes {dimension_semantics = [#tpu.dimension_semantics<parallel>], iteration_bounds = array<i64: 1>, scalar_prefetch = 0 : i64, scratch_operands = 0 : i64, tpu.core_type = #tpu.core_type<tc>, window_params = [{transform_indices = @transform_0, window_bounds = array<i64: 128, 8>}, {pipeline_mode = #tpu.pipeline_mode<synchronous>, transform_indices = @transform_1, window_bounds = array<i64: 8, 128>}, {pipeline_mode = #tpu.pipeline_mode<synchronous>, transform_indices = @transform_2, window_bounds = array<i64: 1, 128>}, {transform_indices = @transform_3, window_bounds = array<i64: 128, 128>}]} {
    %c0 = arith.constant 0 : index
    %c0_0 = arith.constant 0 : index
    %0 = vector.load %arg1[%c0, %c0_0] : memref<128x8xbf16, #tpu.memory_space<vmem>>, vector<128x8xbf16>
    %c0_1 = arith.constant 0 : index
    %c0_2 = arith.constant 0 : index
    %1 = vector.load %arg2[%c0_1, %c0_2] : memref<8x128xbf16, #tpu.memory_space<vmem>>, vector<8x128xbf16>
    %cst = arith.constant dense<0.000000e+00> : vector<128x128xf32>
    %2 = tpu.matmul %0, %1, %cst {dimension_numbers = #tpu.dot_dimension_numbers<[1], [0], [0], [1], [0, 0, 1, 1], [], []>} : vector<128x8xbf16>, vector<8x128xbf16>, vector<128x128xf32> -> vector<128x128xf32>
    %c0_3 = arith.constant 0 : index
    %c0_4 = arith.constant 0 : index
    %3 = vector.load %arg3[%c0_3, %c0_4] : memref<1x128xf32, #tpu.memory_space<vmem>>, vector<1x128xf32>
    %4 = vector.broadcast %3 : vector<1x128xf32> to vector<128x128xf32>
    %5 = arith.addf %2, %4 : vector<128x128xf32>
    %6 = arith.truncf %5 : vector<128x128xf32> to vector<128x128xbf16>
    %c0_5 = arith.constant 0 : index
    %c0_6 = arith.constant 0 : index
    %7 = vector.load %arg4[%c0_5, %c0_6] : memref<128x128xbf16, #tpu.memory_space<vmem>>, vector<128x128xbf16>
    tpu.vector_store %arg4[%c0_5, %c0_6], %6 {strides = array<i32>} : memref<128x128xbf16, #tpu.memory_space<vmem>>, vector<128x128xbf16>,
    return
  }
  func.func @transform_0(%arg0: i32) -> (i32, i32) {
    %c0_i32 = arith.constant 0 : i32
    %c0_i32_0 = arith.constant 0 : i32
    return %arg0, %c0_i32 : i32, i32
  }
  func.func @transform_1(%arg0: i32) -> (i32, i32) {
    %c0_i32 = arith.constant 0 : i32
    %c0_i32_0 = arith.constant 0 : i32
    %c0_i32_1 = arith.constant 0 : i32
    return %c0_i32, %c0_i32_0 : i32, i32
  }
  func.func @transform_2(%arg0: i32) -> (i32, i32) {
    %c0_i32 = arith.constant 0 : i32
    %c0_i32_0 = arith.constant 0 : i32
    %c0_i32_1 = arith.constant 0 : i32
    return %c0_i32, %c0_i32_0 : i32, i32
  }
  func.func @transform_3(%arg0: i32) -> (i32, i32) {
    %c0_i32 = arith.constant 0 : i32
    %c0_i32_0 = arith.constant 0 : i32
    return %arg0, %c0_i32 : i32, i32
  }
}

module attributes {stable_mosaic.version = 11 : i64} {
  func.func @_conv3_kernel(%arg0: i32, %arg1: i32, %arg2: memref<1x1x110x8xbf16, #tpu.memory_space<vmem>>, %arg3: memref<1x1x110x8xbf16, #tpu.memory_space<vmem>>, %arg4: memref<1x1x110x8xbf16, #tpu.memory_space<vmem>>, %arg5: memref<27x8x128xbf16, #tpu.memory_space<vmem>>, %arg6: memref<1x128xf32, #tpu.memory_space<vmem>>, %arg7: memref<1x1x80x128xbf16, #tpu.memory_space<vmem>>) attributes {dimension_semantics = [#tpu.dimension_semantics<parallel>, #tpu.dimension_semantics<parallel>], iteration_bounds = array<i64: 2, 8>, scalar_prefetch = 0 : i64, scratch_operands = 0 : i64, tpu.core_type = #tpu.core_type<tc>, window_params = [{transform_indices = @transform_0, window_bounds = array<i64: 1, 1, 110, 8>}, {transform_indices = @transform_1, window_bounds = array<i64: 1, 1, 110, 8>}, {transform_indices = @transform_2, window_bounds = array<i64: 1, 1, 110, 8>}, {pipeline_mode = #tpu.pipeline_mode<synchronous>, transform_indices = @transform_3, window_bounds = array<i64: 27, 8, 128>}, {pipeline_mode = #tpu.pipeline_mode<synchronous>, transform_indices = @transform_4, window_bounds = array<i64: 1, 128>}, {transform_indices = @transform_5, window_bounds = array<i64: 1, 1, 80, 128>}]} {
    %cst = arith.constant 0.000000e+00 : f32
    %0 = vector.broadcast %cst : f32 to vector<80x128xf32>
    %c0 = arith.constant 0 : index
    %c0_0 = arith.constant 0 : index
    %c0_1 = arith.constant 0 : index
    %c0_2 = arith.constant 0 : index
    %1 = vector.load %arg2[%c0, %c0_0, %c0_1, %c0_2] : memref<1x1x110x8xbf16, #tpu.memory_space<vmem>>, vector<1x1x80x8xbf16>
    %2 = vector.shape_cast %1 : vector<1x1x80x8xbf16> to vector<80x8xbf16>
    %c0_3 = arith.constant 0 : index
    %c0_4 = arith.constant 0 : index
    %c0_5 = arith.constant 0 : index
    %3 = vector.load %arg5[%c0_3, %c0_4, %c0_5] : memref<27x8x128xbf16, #tpu.memory_space<vmem>>, vector<1x8x128xbf16>
    %4 = vector.shape_cast %3 : vector<1x8x128xbf16> to vector<8x128xbf16>
    %cst_6 = arith.constant dense<0.000000e+00> : vector<80x128xf32>
    %5 = tpu.matmul %2, %4, %cst_6 {dimension_numbers = #tpu.dot_dimension_numbers<[1], [0], [0], [1], [0, 0, 1, 1], [], []>} : vector<80x8xbf16>, vector<8x128xbf16>, vector<80x128xf32> -> vector<80x128xf32>
    %6 = arith.addf %0, %5 : vector<80x128xf32>
    %c0_7 = arith.constant 0 : index
    %c0_8 = arith.constant 0 : index
    %c1 = arith.constant 1 : index
    %c0_9 = arith.constant 0 : index
    %7 = vector.load %arg2[%c0_7, %c0_8, %c1, %c0_9] : memref<1x1x110x8xbf16, #tpu.memory_space<vmem>>, vector<1x1x80x8xbf16>
    %8 = vector.shape_cast %7 : vector<1x1x80x8xbf16> to vector<80x8xbf16>
    %c1_10 = arith.constant 1 : index
    %c0_11 = arith.constant 0 : index
    %c0_12 = arith.constant 0 : index
    %9 = vector.load %arg5[%c1_10, %c0_11, %c0_12] : memref<27x8x128xbf16, #tpu.memory_space<vmem>>, vector<1x8x128xbf16>
    %10 = vector.shape_cast %9 : vector<1x8x128xbf16> to vector<8x128xbf16>
    %cst_13 = arith.constant dense<0.000000e+00> : vector<80x128xf32>
    %11 = tpu.matmul %8, %10, %cst_13 {dimension_numbers = #tpu.dot_dimension_numbers<[1], [0], [0], [1], [0, 0, 1, 1], [], []>} : vector<80x8xbf16>, vector<8x128xbf16>, vector<80x128xf32> -> vector<80x128xf32>
    %12 = arith.addf %6, %11 : vector<80x128xf32>
    %c0_14 = arith.constant 0 : index
    %c0_15 = arith.constant 0 : index
    %c2 = arith.constant 2 : index
    %c0_16 = arith.constant 0 : index
    %13 = vector.load %arg2[%c0_14, %c0_15, %c2, %c0_16] : memref<1x1x110x8xbf16, #tpu.memory_space<vmem>>, vector<1x1x80x8xbf16>
    %14 = vector.shape_cast %13 : vector<1x1x80x8xbf16> to vector<80x8xbf16>
    %c2_17 = arith.constant 2 : index
    %c0_18 = arith.constant 0 : index
    %c0_19 = arith.constant 0 : index
    %15 = vector.load %arg5[%c2_17, %c0_18, %c0_19] : memref<27x8x128xbf16, #tpu.memory_space<vmem>>, vector<1x8x128xbf16>
    %16 = vector.shape_cast %15 : vector<1x8x128xbf16> to vector<8x128xbf16>
    %cst_20 = arith.constant dense<0.000000e+00> : vector<80x128xf32>
    %17 = tpu.matmul %14, %16, %cst_20 {dimension_numbers = #tpu.dot_dimension_numbers<[1], [0], [0], [1], [0, 0, 1, 1], [], []>} : vector<80x8xbf16>, vector<8x128xbf16>, vector<80x128xf32> -> vector<80x128xf32>
    %18 = arith.addf %12, %17 : vector<80x128xf32>
    %c0_21 = arith.constant 0 : index
    %c0_22 = arith.constant 0 : index
    %c10 = arith.constant 10 : index
    %c0_23 = arith.constant 0 : index
    %19 = vector.load %arg2[%c0_21, %c0_22, %c10, %c0_23] : memref<1x1x110x8xbf16, #tpu.memory_space<vmem>>, vector<1x1x80x8xbf16>
    %20 = vector.shape_cast %19 : vector<1x1x80x8xbf16> to vector<80x8xbf16>
    %c3 = arith.constant 3 : index
    %c0_24 = arith.constant 0 : index
    %c0_25 = arith.constant 0 : index
    %21 = vector.load %arg5[%c3, %c0_24, %c0_25] : memref<27x8x128xbf16, #tpu.memory_space<vmem>>, vector<1x8x128xbf16>
    %22 = vector.shape_cast %21 : vector<1x8x128xbf16> to vector<8x128xbf16>
    %cst_26 = arith.constant dense<0.000000e+00> : vector<80x128xf32>
    %23 = tpu.matmul %20, %22, %cst_26 {dimension_numbers = #tpu.dot_dimension_numbers<[1], [0], [0], [1], [0, 0, 1, 1], [], []>} : vector<80x8xbf16>, vector<8x128xbf16>, vector<80x128xf32> -> vector<80x128xf32>
    %24 = arith.addf %18, %23 : vector<80x128xf32>
    %c0_27 = arith.constant 0 : index
    %c0_28 = arith.constant 0 : index
    %c11 = arith.constant 11 : index
    %c0_29 = arith.constant 0 : index
    %25 = vector.load %arg2[%c0_27, %c0_28, %c11, %c0_29] : memref<1x1x110x8xbf16, #tpu.memory_space<vmem>>, vector<1x1x80x8xbf16>
    %26 = vector.shape_cast %25 : vector<1x1x80x8xbf16> to vector<80x8xbf16>
    %c4 = arith.constant 4 : index
    %c0_30 = arith.constant 0 : index
    %c0_31 = arith.constant 0 : index
    %27 = vector.load %arg5[%c4, %c0_30, %c0_31] : memref<27x8x128xbf16, #tpu.memory_space<vmem>>, vector<1x8x128xbf16>
    %28 = vector.shape_cast %27 : vector<1x8x128xbf16> to vector<8x128xbf16>
    %cst_32 = arith.constant dense<0.000000e+00> : vector<80x128xf32>
    %29 = tpu.matmul %26, %28, %cst_32 {dimension_numbers = #tpu.dot_dimension_numbers<[1], [0], [0], [1], [0, 0, 1, 1], [], []>} : vector<80x8xbf16>, vector<8x128xbf16>, vector<80x128xf32> -> vector<80x128xf32>
    %30 = arith.addf %24, %29 : vector<80x128xf32>
    %c0_33 = arith.constant 0 : index
    %c0_34 = arith.constant 0 : index
    %c12 = arith.constant 12 : index
    %c0_35 = arith.constant 0 : index
    %31 = vector.load %arg2[%c0_33, %c0_34, %c12, %c0_35] : memref<1x1x110x8xbf16, #tpu.memory_space<vmem>>, vector<1x1x80x8xbf16>
    %32 = vector.shape_cast %31 : vector<1x1x80x8xbf16> to vector<80x8xbf16>
    %c5 = arith.constant 5 : index
    %c0_36 = arith.constant 0 : index
    %c0_37 = arith.constant 0 : index
    %33 = vector.load %arg5[%c5, %c0_36, %c0_37] : memref<27x8x128xbf16, #tpu.memory_space<vmem>>, vector<1x8x128xbf16>
    %34 = vector.shape_cast %33 : vector<1x8x128xbf16> to vector<8x128xbf16>
    %cst_38 = arith.constant dense<0.000000e+00> : vector<80x128xf32>
    %35 = tpu.matmul %32, %34, %cst_38 {dimension_numbers = #tpu.dot_dimension_numbers<[1], [0], [0], [1], [0, 0, 1, 1], [], []>} : vector<80x8xbf16>, vector<8x128xbf16>, vector<80x128xf32> -> vector<80x128xf32>
    %36 = arith.addf %30, %35 : vector<80x128xf32>
    %c0_39 = arith.constant 0 : index
    %c0_40 = arith.constant 0 : index
    %c20 = arith.constant 20 : index
    %c0_41 = arith.constant 0 : index
    %37 = vector.load %arg2[%c0_39, %c0_40, %c20, %c0_41] : memref<1x1x110x8xbf16, #tpu.memory_space<vmem>>, vector<1x1x80x8xbf16>
    %38 = vector.shape_cast %37 : vector<1x1x80x8xbf16> to vector<80x8xbf16>
    %c6 = arith.constant 6 : index
    %c0_42 = arith.constant 0 : index
    %c0_43 = arith.constant 0 : index
    %39 = vector.load %arg5[%c6, %c0_42, %c0_43] : memref<27x8x128xbf16, #tpu.memory_space<vmem>>, vector<1x8x128xbf16>
    %40 = vector.shape_cast %39 : vector<1x8x128xbf16> to vector<8x128xbf16>
    %cst_44 = arith.constant dense<0.000000e+00> : vector<80x128xf32>
    %41 = tpu.matmul %38, %40, %cst_44 {dimension_numbers = #tpu.dot_dimension_numbers<[1], [0], [0], [1], [0, 0, 1, 1], [], []>} : vector<80x8xbf16>, vector<8x128xbf16>, vector<80x128xf32> -> vector<80x128xf32>
    %42 = arith.addf %36, %41 : vector<80x128xf32>
    %c0_45 = arith.constant 0 : index
    %c0_46 = arith.constant 0 : index
    %c21 = arith.constant 21 : index
    %c0_47 = arith.constant 0 : index
    %43 = vector.load %arg2[%c0_45, %c0_46, %c21, %c0_47] : memref<1x1x110x8xbf16, #tpu.memory_space<vmem>>, vector<1x1x80x8xbf16>
    %44 = vector.shape_cast %43 : vector<1x1x80x8xbf16> to vector<80x8xbf16>
    %c7 = arith.constant 7 : index
    %c0_48 = arith.constant 0 : index
    %c0_49 = arith.constant 0 : index
    %45 = vector.load %arg5[%c7, %c0_48, %c0_49] : memref<27x8x128xbf16, #tpu.memory_space<vmem>>, vector<1x8x128xbf16>
    %46 = vector.shape_cast %45 : vector<1x8x128xbf16> to vector<8x128xbf16>
    %cst_50 = arith.constant dense<0.000000e+00> : vector<80x128xf32>
    %47 = tpu.matmul %44, %46, %cst_50 {dimension_numbers = #tpu.dot_dimension_numbers<[1], [0], [0], [1], [0, 0, 1, 1], [], []>} : vector<80x8xbf16>, vector<8x128xbf16>, vector<80x128xf32> -> vector<80x128xf32>
    %48 = arith.addf %42, %47 : vector<80x128xf32>
    %c0_51 = arith.constant 0 : index
    %c0_52 = arith.constant 0 : index
    %c22 = arith.constant 22 : index
    %c0_53 = arith.constant 0 : index
    %49 = vector.load %arg2[%c0_51, %c0_52, %c22, %c0_53] : memref<1x1x110x8xbf16, #tpu.memory_space<vmem>>, vector<1x1x80x8xbf16>
    %50 = vector.shape_cast %49 : vector<1x1x80x8xbf16> to vector<80x8xbf16>
    %c8 = arith.constant 8 : index
    %c0_54 = arith.constant 0 : index
    %c0_55 = arith.constant 0 : index
    %51 = vector.load %arg5[%c8, %c0_54, %c0_55] : memref<27x8x128xbf16, #tpu.memory_space<vmem>>, vector<1x8x128xbf16>
    %52 = vector.shape_cast %51 : vector<1x8x128xbf16> to vector<8x128xbf16>
    %cst_56 = arith.constant dense<0.000000e+00> : vector<80x128xf32>
    %53 = tpu.matmul %50, %52, %cst_56 {dimension_numbers = #tpu.dot_dimension_numbers<[1], [0], [0], [1], [0, 0, 1, 1], [], []>} : vector<80x8xbf16>, vector<8x128xbf16>, vector<80x128xf32> -> vector<80x128xf32>
    %54 = arith.addf %48, %53 : vector<80x128xf32>
    %c0_57 = arith.constant 0 : index
    %c0_58 = arith.constant 0 : index
    %c0_59 = arith.constant 0 : index
    %c0_60 = arith.constant 0 : index
    %55 = vector.load %arg3[%c0_57, %c0_58, %c0_59, %c0_60] : memref<1x1x110x8xbf16, #tpu.memory_space<vmem>>, vector<1x1x80x8xbf16>
    %56 = vector.shape_cast %55 : vector<1x1x80x8xbf16> to vector<80x8xbf16>
    %c9 = arith.constant 9 : index
    %c0_61 = arith.constant 0 : index
    %c0_62 = arith.constant 0 : index
    %57 = vector.load %arg5[%c9, %c0_61, %c0_62] : memref<27x8x128xbf16, #tpu.memory_space<vmem>>, vector<1x8x128xbf16>
    %58 = vector.shape_cast %57 : vector<1x8x128xbf16> to vector<8x128xbf16>
    %cst_63 = arith.constant dense<0.000000e+00> : vector<80x128xf32>
    %59 = tpu.matmul %56, %58, %cst_63 {dimension_numbers = #tpu.dot_dimension_numbers<[1], [0], [0], [1], [0, 0, 1, 1], [], []>} : vector<80x8xbf16>, vector<8x128xbf16>, vector<80x128xf32> -> vector<80x128xf32>
    %60 = arith.addf %54, %59 : vector<80x128xf32>
    %c0_64 = arith.constant 0 : index
    %c0_65 = arith.constant 0 : index
    %c1_66 = arith.constant 1 : index
    %c0_67 = arith.constant 0 : index
    %61 = vector.load %arg3[%c0_64, %c0_65, %c1_66, %c0_67] : memref<1x1x110x8xbf16, #tpu.memory_space<vmem>>, vector<1x1x80x8xbf16>
    %62 = vector.shape_cast %61 : vector<1x1x80x8xbf16> to vector<80x8xbf16>
    %c10_68 = arith.constant 10 : index
    %c0_69 = arith.constant 0 : index
    %c0_70 = arith.constant 0 : index
    %63 = vector.load %arg5[%c10_68, %c0_69, %c0_70] : memref<27x8x128xbf16, #tpu.memory_space<vmem>>, vector<1x8x128xbf16>
    %64 = vector.shape_cast %63 : vector<1x8x128xbf16> to vector<8x128xbf16>
    %cst_71 = arith.constant dense<0.000000e+00> : vector<80x128xf32>
    %65 = tpu.matmul %62, %64, %cst_71 {dimension_numbers = #tpu.dot_dimension_numbers<[1], [0], [0], [1], [0, 0, 1, 1], [], []>} : vector<80x8xbf16>, vector<8x128xbf16>, vector<80x128xf32> -> vector<80x128xf32>
    %66 = arith.addf %60, %65 : vector<80x128xf32>
    %c0_72 = arith.constant 0 : index
    %c0_73 = arith.constant 0 : index
    %c2_74 = arith.constant 2 : index
    %c0_75 = arith.constant 0 : index
    %67 = vector.load %arg3[%c0_72, %c0_73, %c2_74, %c0_75] : memref<1x1x110x8xbf16, #tpu.memory_space<vmem>>, vector<1x1x80x8xbf16>
    %68 = vector.shape_cast %67 : vector<1x1x80x8xbf16> to vector<80x8xbf16>
    %c11_76 = arith.constant 11 : index
    %c0_77 = arith.constant 0 : index
    %c0_78 = arith.constant 0 : index
    %69 = vector.load %arg5[%c11_76, %c0_77, %c0_78] : memref<27x8x128xbf16, #tpu.memory_space<vmem>>, vector<1x8x128xbf16>
    %70 = vector.shape_cast %69 : vector<1x8x128xbf16> to vector<8x128xbf16>
    %cst_79 = arith.constant dense<0.000000e+00> : vector<80x128xf32>
    %71 = tpu.matmul %68, %70, %cst_79 {dimension_numbers = #tpu.dot_dimension_numbers<[1], [0], [0], [1], [0, 0, 1, 1], [], []>} : vector<80x8xbf16>, vector<8x128xbf16>, vector<80x128xf32> -> vector<80x128xf32>
    %72 = arith.addf %66, %71 : vector<80x128xf32>
    %c0_80 = arith.constant 0 : index
    %c0_81 = arith.constant 0 : index
    %c10_82 = arith.constant 10 : index
    %c0_83 = arith.constant 0 : index
    %73 = vector.load %arg3[%c0_80, %c0_81, %c10_82, %c0_83] : memref<1x1x110x8xbf16, #tpu.memory_space<vmem>>, vector<1x1x80x8xbf16>
    %74 = vector.shape_cast %73 : vector<1x1x80x8xbf16> to vector<80x8xbf16>
    %c12_84 = arith.constant 12 : index
    %c0_85 = arith.constant 0 : index
    %c0_86 = arith.constant 0 : index
    %75 = vector.load %arg5[%c12_84, %c0_85, %c0_86] : memref<27x8x128xbf16, #tpu.memory_space<vmem>>, vector<1x8x128xbf16>
    %76 = vector.shape_cast %75 : vector<1x8x128xbf16> to vector<8x128xbf16>
    %cst_87 = arith.constant dense<0.000000e+00> : vector<80x128xf32>
    %77 = tpu.matmul %74, %76, %cst_87 {dimension_numbers = #tpu.dot_dimension_numbers<[1], [0], [0], [1], [0, 0, 1, 1], [], []>} : vector<80x8xbf16>, vector<8x128xbf16>, vector<80x128xf32> -> vector<80x128xf32>
    %78 = arith.addf %72, %77 : vector<80x128xf32>
    %c0_88 = arith.constant 0 : index
    %c0_89 = arith.constant 0 : index
    %c11_90 = arith.constant 11 : index
    %c0_91 = arith.constant 0 : index
    %79 = vector.load %arg3[%c0_88, %c0_89, %c11_90, %c0_91] : memref<1x1x110x8xbf16, #tpu.memory_space<vmem>>, vector<1x1x80x8xbf16>
    %80 = vector.shape_cast %79 : vector<1x1x80x8xbf16> to vector<80x8xbf16>
    %c13 = arith.constant 13 : index
    %c0_92 = arith.constant 0 : index
    %c0_93 = arith.constant 0 : index
    %81 = vector.load %arg5[%c13, %c0_92, %c0_93] : memref<27x8x128xbf16, #tpu.memory_space<vmem>>, vector<1x8x128xbf16>
    %82 = vector.shape_cast %81 : vector<1x8x128xbf16> to vector<8x128xbf16>
    %cst_94 = arith.constant dense<0.000000e+00> : vector<80x128xf32>
    %83 = tpu.matmul %80, %82, %cst_94 {dimension_numbers = #tpu.dot_dimension_numbers<[1], [0], [0], [1], [0, 0, 1, 1], [], []>} : vector<80x8xbf16>, vector<8x128xbf16>, vector<80x128xf32> -> vector<80x128xf32>
    %84 = arith.addf %78, %83 : vector<80x128xf32>
    %c0_95 = arith.constant 0 : index
    %c0_96 = arith.constant 0 : index
    %c12_97 = arith.constant 12 : index
    %c0_98 = arith.constant 0 : index
    %85 = vector.load %arg3[%c0_95, %c0_96, %c12_97, %c0_98] : memref<1x1x110x8xbf16, #tpu.memory_space<vmem>>, vector<1x1x80x8xbf16>
    %86 = vector.shape_cast %85 : vector<1x1x80x8xbf16> to vector<80x8xbf16>
    %c14 = arith.constant 14 : index
    %c0_99 = arith.constant 0 : index
    %c0_100 = arith.constant 0 : index
    %87 = vector.load %arg5[%c14, %c0_99, %c0_100] : memref<27x8x128xbf16, #tpu.memory_space<vmem>>, vector<1x8x128xbf16>
    %88 = vector.shape_cast %87 : vector<1x8x128xbf16> to vector<8x128xbf16>
    %cst_101 = arith.constant dense<0.000000e+00> : vector<80x128xf32>
    %89 = tpu.matmul %86, %88, %cst_101 {dimension_numbers = #tpu.dot_dimension_numbers<[1], [0], [0], [1], [0, 0, 1, 1], [], []>} : vector<80x8xbf16>, vector<8x128xbf16>, vector<80x128xf32> -> vector<80x128xf32>
    %90 = arith.addf %84, %89 : vector<80x128xf32>
    %c0_102 = arith.constant 0 : index
    %c0_103 = arith.constant 0 : index
    %c20_104 = arith.constant 20 : index
    %c0_105 = arith.constant 0 : index
    %91 = vector.load %arg3[%c0_102, %c0_103, %c20_104, %c0_105] : memref<1x1x110x8xbf16, #tpu.memory_space<vmem>>, vector<1x1x80x8xbf16>
    %92 = vector.shape_cast %91 : vector<1x1x80x8xbf16> to vector<80x8xbf16>
    %c15 = arith.constant 15 : index
    %c0_106 = arith.constant 0 : index
    %c0_107 = arith.constant 0 : index
    %93 = vector.load %arg5[%c15, %c0_106, %c0_107] : memref<27x8x128xbf16, #tpu.memory_space<vmem>>, vector<1x8x128xbf16>
    %94 = vector.shape_cast %93 : vector<1x8x128xbf16> to vector<8x128xbf16>
    %cst_108 = arith.constant dense<0.000000e+00> : vector<80x128xf32>
    %95 = tpu.matmul %92, %94, %cst_108 {dimension_numbers = #tpu.dot_dimension_numbers<[1], [0], [0], [1], [0, 0, 1, 1], [], []>} : vector<80x8xbf16>, vector<8x128xbf16>, vector<80x128xf32> -> vector<80x128xf32>
    %96 = arith.addf %90, %95 : vector<80x128xf32>
    %c0_109 = arith.constant 0 : index
    %c0_110 = arith.constant 0 : index
    %c21_111 = arith.constant 21 : index
    %c0_112 = arith.constant 0 : index
    %97 = vector.load %arg3[%c0_109, %c0_110, %c21_111, %c0_112] : memref<1x1x110x8xbf16, #tpu.memory_space<vmem>>, vector<1x1x80x8xbf16>
    %98 = vector.shape_cast %97 : vector<1x1x80x8xbf16> to vector<80x8xbf16>
    %c16 = arith.constant 16 : index
    %c0_113 = arith.constant 0 : index
    %c0_114 = arith.constant 0 : index
    %99 = vector.load %arg5[%c16, %c0_113, %c0_114] : memref<27x8x128xbf16, #tpu.memory_space<vmem>>, vector<1x8x128xbf16>
    %100 = vector.shape_cast %99 : vector<1x8x128xbf16> to vector<8x128xbf16>
    %cst_115 = arith.constant dense<0.000000e+00> : vector<80x128xf32>
    %101 = tpu.matmul %98, %100, %cst_115 {dimension_numbers = #tpu.dot_dimension_numbers<[1], [0], [0], [1], [0, 0, 1, 1], [], []>} : vector<80x8xbf16>, vector<8x128xbf16>, vector<80x128xf32> -> vector<80x128xf32>
    %102 = arith.addf %96, %101 : vector<80x128xf32>
    %c0_116 = arith.constant 0 : index
    %c0_117 = arith.constant 0 : index
    %c22_118 = arith.constant 22 : index
    %c0_119 = arith.constant 0 : index
    %103 = vector.load %arg3[%c0_116, %c0_117, %c22_118, %c0_119] : memref<1x1x110x8xbf16, #tpu.memory_space<vmem>>, vector<1x1x80x8xbf16>
    %104 = vector.shape_cast %103 : vector<1x1x80x8xbf16> to vector<80x8xbf16>
    %c17 = arith.constant 17 : index
    %c0_120 = arith.constant 0 : index
    %c0_121 = arith.constant 0 : index
    %105 = vector.load %arg5[%c17, %c0_120, %c0_121] : memref<27x8x128xbf16, #tpu.memory_space<vmem>>, vector<1x8x128xbf16>
    %106 = vector.shape_cast %105 : vector<1x8x128xbf16> to vector<8x128xbf16>
    %cst_122 = arith.constant dense<0.000000e+00> : vector<80x128xf32>
    %107 = tpu.matmul %104, %106, %cst_122 {dimension_numbers = #tpu.dot_dimension_numbers<[1], [0], [0], [1], [0, 0, 1, 1], [], []>} : vector<80x8xbf16>, vector<8x128xbf16>, vector<80x128xf32> -> vector<80x128xf32>
    %108 = arith.addf %102, %107 : vector<80x128xf32>
    %c0_123 = arith.constant 0 : index
    %c0_124 = arith.constant 0 : index
    %c0_125 = arith.constant 0 : index
    %c0_126 = arith.constant 0 : index
    %109 = vector.load %arg4[%c0_123, %c0_124, %c0_125, %c0_126] : memref<1x1x110x8xbf16, #tpu.memory_space<vmem>>, vector<1x1x80x8xbf16>
    %110 = vector.shape_cast %109 : vector<1x1x80x8xbf16> to vector<80x8xbf16>
    %c18 = arith.constant 18 : index
    %c0_127 = arith.constant 0 : index
    %c0_128 = arith.constant 0 : index
    %111 = vector.load %arg5[%c18, %c0_127, %c0_128] : memref<27x8x128xbf16, #tpu.memory_space<vmem>>, vector<1x8x128xbf16>
    %112 = vector.shape_cast %111 : vector<1x8x128xbf16> to vector<8x128xbf16>
    %cst_129 = arith.constant dense<0.000000e+00> : vector<80x128xf32>
    %113 = tpu.matmul %110, %112, %cst_129 {dimension_numbers = #tpu.dot_dimension_numbers<[1], [0], [0], [1], [0, 0, 1, 1], [], []>} : vector<80x8xbf16>, vector<8x128xbf16>, vector<80x128xf32> -> vector<80x128xf32>
    %114 = arith.addf %108, %113 : vector<80x128xf32>
    %c0_130 = arith.constant 0 : index
    %c0_131 = arith.constant 0 : index
    %c1_132 = arith.constant 1 : index
    %c0_133 = arith.constant 0 : index
    %115 = vector.load %arg4[%c0_130, %c0_131, %c1_132, %c0_133] : memref<1x1x110x8xbf16, #tpu.memory_space<vmem>>, vector<1x1x80x8xbf16>
    %116 = vector.shape_cast %115 : vector<1x1x80x8xbf16> to vector<80x8xbf16>
    %c19 = arith.constant 19 : index
    %c0_134 = arith.constant 0 : index
    %c0_135 = arith.constant 0 : index
    %117 = vector.load %arg5[%c19, %c0_134, %c0_135] : memref<27x8x128xbf16, #tpu.memory_space<vmem>>, vector<1x8x128xbf16>
    %118 = vector.shape_cast %117 : vector<1x8x128xbf16> to vector<8x128xbf16>
    %cst_136 = arith.constant dense<0.000000e+00> : vector<80x128xf32>
    %119 = tpu.matmul %116, %118, %cst_136 {dimension_numbers = #tpu.dot_dimension_numbers<[1], [0], [0], [1], [0, 0, 1, 1], [], []>} : vector<80x8xbf16>, vector<8x128xbf16>, vector<80x128xf32> -> vector<80x128xf32>
    %120 = arith.addf %114, %119 : vector<80x128xf32>
    %c0_137 = arith.constant 0 : index
    %c0_138 = arith.constant 0 : index
    %c2_139 = arith.constant 2 : index
    %c0_140 = arith.constant 0 : index
    %121 = vector.load %arg4[%c0_137, %c0_138, %c2_139, %c0_140] : memref<1x1x110x8xbf16, #tpu.memory_space<vmem>>, vector<1x1x80x8xbf16>
    %122 = vector.shape_cast %121 : vector<1x1x80x8xbf16> to vector<80x8xbf16>
    %c20_141 = arith.constant 20 : index
    %c0_142 = arith.constant 0 : index
    %c0_143 = arith.constant 0 : index
    %123 = vector.load %arg5[%c20_141, %c0_142, %c0_143] : memref<27x8x128xbf16, #tpu.memory_space<vmem>>, vector<1x8x128xbf16>
    %124 = vector.shape_cast %123 : vector<1x8x128xbf16> to vector<8x128xbf16>
    %cst_144 = arith.constant dense<0.000000e+00> : vector<80x128xf32>
    %125 = tpu.matmul %122, %124, %cst_144 {dimension_numbers = #tpu.dot_dimension_numbers<[1], [0], [0], [1], [0, 0, 1, 1], [], []>} : vector<80x8xbf16>, vector<8x128xbf16>, vector<80x128xf32> -> vector<80x128xf32>
    %126 = arith.addf %120, %125 : vector<80x128xf32>
    %c0_145 = arith.constant 0 : index
    %c0_146 = arith.constant 0 : index
    %c10_147 = arith.constant 10 : index
    %c0_148 = arith.constant 0 : index
    %127 = vector.load %arg4[%c0_145, %c0_146, %c10_147, %c0_148] : memref<1x1x110x8xbf16, #tpu.memory_space<vmem>>, vector<1x1x80x8xbf16>
    %128 = vector.shape_cast %127 : vector<1x1x80x8xbf16> to vector<80x8xbf16>
    %c21_149 = arith.constant 21 : index
    %c0_150 = arith.constant 0 : index
    %c0_151 = arith.constant 0 : index
    %129 = vector.load %arg5[%c21_149, %c0_150, %c0_151] : memref<27x8x128xbf16, #tpu.memory_space<vmem>>, vector<1x8x128xbf16>
    %130 = vector.shape_cast %129 : vector<1x8x128xbf16> to vector<8x128xbf16>
    %cst_152 = arith.constant dense<0.000000e+00> : vector<80x128xf32>
    %131 = tpu.matmul %128, %130, %cst_152 {dimension_numbers = #tpu.dot_dimension_numbers<[1], [0], [0], [1], [0, 0, 1, 1], [], []>} : vector<80x8xbf16>, vector<8x128xbf16>, vector<80x128xf32> -> vector<80x128xf32>
    %132 = arith.addf %126, %131 : vector<80x128xf32>
    %c0_153 = arith.constant 0 : index
    %c0_154 = arith.constant 0 : index
    %c11_155 = arith.constant 11 : index
    %c0_156 = arith.constant 0 : index
    %133 = vector.load %arg4[%c0_153, %c0_154, %c11_155, %c0_156] : memref<1x1x110x8xbf16, #tpu.memory_space<vmem>>, vector<1x1x80x8xbf16>
    %134 = vector.shape_cast %133 : vector<1x1x80x8xbf16> to vector<80x8xbf16>
    %c22_157 = arith.constant 22 : index
    %c0_158 = arith.constant 0 : index
    %c0_159 = arith.constant 0 : index
    %135 = vector.load %arg5[%c22_157, %c0_158, %c0_159] : memref<27x8x128xbf16, #tpu.memory_space<vmem>>, vector<1x8x128xbf16>
    %136 = vector.shape_cast %135 : vector<1x8x128xbf16> to vector<8x128xbf16>
    %cst_160 = arith.constant dense<0.000000e+00> : vector<80x128xf32>
    %137 = tpu.matmul %134, %136, %cst_160 {dimension_numbers = #tpu.dot_dimension_numbers<[1], [0], [0], [1], [0, 0, 1, 1], [], []>} : vector<80x8xbf16>, vector<8x128xbf16>, vector<80x128xf32> -> vector<80x128xf32>
    %138 = arith.addf %132, %137 : vector<80x128xf32>
    %c0_161 = arith.constant 0 : index
    %c0_162 = arith.constant 0 : index
    %c12_163 = arith.constant 12 : index
    %c0_164 = arith.constant 0 : index
    %139 = vector.load %arg4[%c0_161, %c0_162, %c12_163, %c0_164] : memref<1x1x110x8xbf16, #tpu.memory_space<vmem>>, vector<1x1x80x8xbf16>
    %140 = vector.shape_cast %139 : vector<1x1x80x8xbf16> to vector<80x8xbf16>
    %c23 = arith.constant 23 : index
    %c0_165 = arith.constant 0 : index
    %c0_166 = arith.constant 0 : index
    %141 = vector.load %arg5[%c23, %c0_165, %c0_166] : memref<27x8x128xbf16, #tpu.memory_space<vmem>>, vector<1x8x128xbf16>
    %142 = vector.shape_cast %141 : vector<1x8x128xbf16> to vector<8x128xbf16>
    %cst_167 = arith.constant dense<0.000000e+00> : vector<80x128xf32>
    %143 = tpu.matmul %140, %142, %cst_167 {dimension_numbers = #tpu.dot_dimension_numbers<[1], [0], [0], [1], [0, 0, 1, 1], [], []>} : vector<80x8xbf16>, vector<8x128xbf16>, vector<80x128xf32> -> vector<80x128xf32>
    %144 = arith.addf %138, %143 : vector<80x128xf32>
    %c0_168 = arith.constant 0 : index
    %c0_169 = arith.constant 0 : index
    %c20_170 = arith.constant 20 : index
    %c0_171 = arith.constant 0 : index
    %145 = vector.load %arg4[%c0_168, %c0_169, %c20_170, %c0_171] : memref<1x1x110x8xbf16, #tpu.memory_space<vmem>>, vector<1x1x80x8xbf16>
    %146 = vector.shape_cast %145 : vector<1x1x80x8xbf16> to vector<80x8xbf16>
    %c24 = arith.constant 24 : index
    %c0_172 = arith.constant 0 : index
    %c0_173 = arith.constant 0 : index
    %147 = vector.load %arg5[%c24, %c0_172, %c0_173] : memref<27x8x128xbf16, #tpu.memory_space<vmem>>, vector<1x8x128xbf16>
    %148 = vector.shape_cast %147 : vector<1x8x128xbf16> to vector<8x128xbf16>
    %cst_174 = arith.constant dense<0.000000e+00> : vector<80x128xf32>
    %149 = tpu.matmul %146, %148, %cst_174 {dimension_numbers = #tpu.dot_dimension_numbers<[1], [0], [0], [1], [0, 0, 1, 1], [], []>} : vector<80x8xbf16>, vector<8x128xbf16>, vector<80x128xf32> -> vector<80x128xf32>
    %150 = arith.addf %144, %149 : vector<80x128xf32>
    %c0_175 = arith.constant 0 : index
    %c0_176 = arith.constant 0 : index
    %c21_177 = arith.constant 21 : index
    %c0_178 = arith.constant 0 : index
    %151 = vector.load %arg4[%c0_175, %c0_176, %c21_177, %c0_178] : memref<1x1x110x8xbf16, #tpu.memory_space<vmem>>, vector<1x1x80x8xbf16>
    %152 = vector.shape_cast %151 : vector<1x1x80x8xbf16> to vector<80x8xbf16>
    %c25 = arith.constant 25 : index
    %c0_179 = arith.constant 0 : index
    %c0_180 = arith.constant 0 : index
    %153 = vector.load %arg5[%c25, %c0_179, %c0_180] : memref<27x8x128xbf16, #tpu.memory_space<vmem>>, vector<1x8x128xbf16>
    %154 = vector.shape_cast %153 : vector<1x8x128xbf16> to vector<8x128xbf16>
    %cst_181 = arith.constant dense<0.000000e+00> : vector<80x128xf32>
    %155 = tpu.matmul %152, %154, %cst_181 {dimension_numbers = #tpu.dot_dimension_numbers<[1], [0], [0], [1], [0, 0, 1, 1], [], []>} : vector<80x8xbf16>, vector<8x128xbf16>, vector<80x128xf32> -> vector<80x128xf32>
    %156 = arith.addf %150, %155 : vector<80x128xf32>
    %c0_182 = arith.constant 0 : index
    %c0_183 = arith.constant 0 : index
    %c22_184 = arith.constant 22 : index
    %c0_185 = arith.constant 0 : index
    %157 = vector.load %arg4[%c0_182, %c0_183, %c22_184, %c0_185] : memref<1x1x110x8xbf16, #tpu.memory_space<vmem>>, vector<1x1x80x8xbf16>
    %158 = vector.shape_cast %157 : vector<1x1x80x8xbf16> to vector<80x8xbf16>
    %c26 = arith.constant 26 : index
    %c0_186 = arith.constant 0 : index
    %c0_187 = arith.constant 0 : index
    %159 = vector.load %arg5[%c26, %c0_186, %c0_187] : memref<27x8x128xbf16, #tpu.memory_space<vmem>>, vector<1x8x128xbf16>
    %160 = vector.shape_cast %159 : vector<1x8x128xbf16> to vector<8x128xbf16>
    %cst_188 = arith.constant dense<0.000000e+00> : vector<80x128xf32>
    %161 = tpu.matmul %158, %160, %cst_188 {dimension_numbers = #tpu.dot_dimension_numbers<[1], [0], [0], [1], [0, 0, 1, 1], [], []>} : vector<80x8xbf16>, vector<8x128xbf16>, vector<80x128xf32> -> vector<80x128xf32>
    %162 = arith.addf %156, %161 : vector<80x128xf32>
    %c0_189 = arith.constant 0 : index
    %c0_190 = arith.constant 0 : index
    %163 = vector.load %arg6[%c0_189, %c0_190] : memref<1x128xf32, #tpu.memory_space<vmem>>, vector<1x128xf32>
    %164 = vector.broadcast %163 : vector<1x128xf32> to vector<80x128xf32>
    %165 = arith.addf %162, %164 : vector<80x128xf32>
    %cst_191 = arith.constant 0.000000e+00 : f32
    %166 = vector.broadcast %cst_191 : f32 to vector<80x128xf32>
    %167 = arith.maximumf %165, %166 : vector<80x128xf32>
    %168 = arith.truncf %167 : vector<80x128xf32> to vector<80x128xbf16>
    %c0_192 = arith.constant 0 : index
    %c0_193 = arith.constant 0 : index
    %c0_194 = arith.constant 0 : index
    %c0_195 = arith.constant 0 : index
    %169 = vector.load %arg7[%c0_192, %c0_193, %c0_194, %c0_195] : memref<1x1x80x128xbf16, #tpu.memory_space<vmem>>, vector<1x1x80x128xbf16>
    %170 = vector.shape_cast %169 : vector<1x1x80x128xbf16> to vector<80x128xbf16>
    %171 = vector.shape_cast %168 : vector<80x128xbf16> to vector<1x1x80x128xbf16>
    tpu.vector_store %arg7[%c0_192, %c0_193, %c0_194, %c0_195], %171 {strides = array<i32>} : memref<1x1x80x128xbf16, #tpu.memory_space<vmem>>, vector<1x1x80x128xbf16>,
    return
  }
  func.func @transform_0(%arg0: i32, %arg1: i32) -> (i32, i32, i32, i32) {
    %c0_i32 = arith.constant 0 : i32
    %c0_i32_0 = arith.constant 0 : i32
    %c0_i32_1 = arith.constant 0 : i32
    return %arg0, %arg1, %c0_i32, %c0_i32_0 : i32, i32, i32, i32
  }
  func.func @transform_1(%arg0: i32, %arg1: i32) -> (i32, i32, i32, i32) {
    %c1_i32 = arith.constant 1 : i32
    %0 = arith.addi %arg1, %c1_i32 : i32
    %c0_i32 = arith.constant 0 : i32
    %c0_i32_0 = arith.constant 0 : i32
    %c0_i32_1 = arith.constant 0 : i32
    return %arg0, %0, %c0_i32, %c0_i32_0 : i32, i32, i32, i32
  }
  func.func @transform_2(%arg0: i32, %arg1: i32) -> (i32, i32, i32, i32) {
    %c2_i32 = arith.constant 2 : i32
    %0 = arith.addi %arg1, %c2_i32 : i32
    %c0_i32 = arith.constant 0 : i32
    %c0_i32_0 = arith.constant 0 : i32
    %c0_i32_1 = arith.constant 0 : i32
    return %arg0, %0, %c0_i32, %c0_i32_0 : i32, i32, i32, i32
  }
  func.func @transform_3(%arg0: i32, %arg1: i32) -> (i32, i32, i32) {
    %c0_i32 = arith.constant 0 : i32
    %c0_i32_0 = arith.constant 0 : i32
    %c0_i32_1 = arith.constant 0 : i32
    %c0_i32_2 = arith.constant 0 : i32
    return %c0_i32, %c0_i32_0, %c0_i32_1 : i32, i32, i32
  }
  func.func @transform_4(%arg0: i32, %arg1: i32) -> (i32, i32) {
    %c0_i32 = arith.constant 0 : i32
    %c0_i32_0 = arith.constant 0 : i32
    %c0_i32_1 = arith.constant 0 : i32
    return %c0_i32, %c0_i32_0 : i32, i32
  }
  func.func @transform_5(%arg0: i32, %arg1: i32) -> (i32, i32, i32, i32) {
    %c0_i32 = arith.constant 0 : i32
    %c0_i32_0 = arith.constant 0 : i32
    %c0_i32_1 = arith.constant 0 : i32
    return %arg0, %arg1, %c0_i32, %c0_i32_0 : i32, i32, i32, i32
  }
}

module attributes {stable_mosaic.version = 11 : i64} {
  func.func @_conv3_kernel(%arg0: i32, %arg1: i32, %arg2: memref<1x1x110x128xbf16, #tpu.memory_space<vmem>>, %arg3: memref<1x1x110x128xbf16, #tpu.memory_space<vmem>>, %arg4: memref<1x1x110x128xbf16, #tpu.memory_space<vmem>>, %arg5: memref<27x128x128xbf16, #tpu.memory_space<vmem>>, %arg6: memref<1x128xf32, #tpu.memory_space<vmem>>, %arg7: memref<1x1x80x128xf32, #tpu.memory_space<vmem>>) attributes {dimension_semantics = [#tpu.dimension_semantics<parallel>, #tpu.dimension_semantics<parallel>], iteration_bounds = array<i64: 2, 8>, scalar_prefetch = 0 : i64, scratch_operands = 0 : i64, tpu.core_type = #tpu.core_type<tc>, window_params = [{transform_indices = @transform_0, window_bounds = array<i64: 1, 1, 110, 128>}, {transform_indices = @transform_1, window_bounds = array<i64: 1, 1, 110, 128>}, {transform_indices = @transform_2, window_bounds = array<i64: 1, 1, 110, 128>}, {pipeline_mode = #tpu.pipeline_mode<synchronous>, transform_indices = @transform_3, window_bounds = array<i64: 27, 128, 128>}, {pipeline_mode = #tpu.pipeline_mode<synchronous>, transform_indices = @transform_4, window_bounds = array<i64: 1, 128>}, {transform_indices = @transform_5, window_bounds = array<i64: 1, 1, 80, 128>}]} {
    %cst = arith.constant 0.000000e+00 : f32
    %0 = vector.broadcast %cst : f32 to vector<80x128xf32>
    %c0 = arith.constant 0 : index
    %c0_0 = arith.constant 0 : index
    %c0_1 = arith.constant 0 : index
    %c0_2 = arith.constant 0 : index
    %1 = vector.load %arg2[%c0, %c0_0, %c0_1, %c0_2] : memref<1x1x110x128xbf16, #tpu.memory_space<vmem>>, vector<1x1x80x128xbf16>
    %2 = vector.shape_cast %1 : vector<1x1x80x128xbf16> to vector<80x128xbf16>
    %c0_3 = arith.constant 0 : index
    %c0_4 = arith.constant 0 : index
    %c0_5 = arith.constant 0 : index
    %3 = vector.load %arg5[%c0_3, %c0_4, %c0_5] : memref<27x128x128xbf16, #tpu.memory_space<vmem>>, vector<1x128x128xbf16>
    %4 = vector.shape_cast %3 : vector<1x128x128xbf16> to vector<128x128xbf16>
    %cst_6 = arith.constant dense<0.000000e+00> : vector<80x128xf32>
    %5 = tpu.matmul %2, %4, %cst_6 {dimension_numbers = #tpu.dot_dimension_numbers<[1], [0], [0], [1], [0, 0, 1, 1], [], []>} : vector<80x128xbf16>, vector<128x128xbf16>, vector<80x128xf32> -> vector<80x128xf32>
    %6 = arith.addf %0, %5 : vector<80x128xf32>
    %c0_7 = arith.constant 0 : index
    %c0_8 = arith.constant 0 : index
    %c1 = arith.constant 1 : index
    %c0_9 = arith.constant 0 : index
    %7 = vector.load %arg2[%c0_7, %c0_8, %c1, %c0_9] : memref<1x1x110x128xbf16, #tpu.memory_space<vmem>>, vector<1x1x80x128xbf16>
    %8 = vector.shape_cast %7 : vector<1x1x80x128xbf16> to vector<80x128xbf16>
    %c1_10 = arith.constant 1 : index
    %c0_11 = arith.constant 0 : index
    %c0_12 = arith.constant 0 : index
    %9 = vector.load %arg5[%c1_10, %c0_11, %c0_12] : memref<27x128x128xbf16, #tpu.memory_space<vmem>>, vector<1x128x128xbf16>
    %10 = vector.shape_cast %9 : vector<1x128x128xbf16> to vector<128x128xbf16>
    %cst_13 = arith.constant dense<0.000000e+00> : vector<80x128xf32>
    %11 = tpu.matmul %8, %10, %cst_13 {dimension_numbers = #tpu.dot_dimension_numbers<[1], [0], [0], [1], [0, 0, 1, 1], [], []>} : vector<80x128xbf16>, vector<128x128xbf16>, vector<80x128xf32> -> vector<80x128xf32>
    %12 = arith.addf %6, %11 : vector<80x128xf32>
    %c0_14 = arith.constant 0 : index
    %c0_15 = arith.constant 0 : index
    %c2 = arith.constant 2 : index
    %c0_16 = arith.constant 0 : index
    %13 = vector.load %arg2[%c0_14, %c0_15, %c2, %c0_16] : memref<1x1x110x128xbf16, #tpu.memory_space<vmem>>, vector<1x1x80x128xbf16>
    %14 = vector.shape_cast %13 : vector<1x1x80x128xbf16> to vector<80x128xbf16>
    %c2_17 = arith.constant 2 : index
    %c0_18 = arith.constant 0 : index
    %c0_19 = arith.constant 0 : index
    %15 = vector.load %arg5[%c2_17, %c0_18, %c0_19] : memref<27x128x128xbf16, #tpu.memory_space<vmem>>, vector<1x128x128xbf16>
    %16 = vector.shape_cast %15 : vector<1x128x128xbf16> to vector<128x128xbf16>
    %cst_20 = arith.constant dense<0.000000e+00> : vector<80x128xf32>
    %17 = tpu.matmul %14, %16, %cst_20 {dimension_numbers = #tpu.dot_dimension_numbers<[1], [0], [0], [1], [0, 0, 1, 1], [], []>} : vector<80x128xbf16>, vector<128x128xbf16>, vector<80x128xf32> -> vector<80x128xf32>
    %18 = arith.addf %12, %17 : vector<80x128xf32>
    %c0_21 = arith.constant 0 : index
    %c0_22 = arith.constant 0 : index
    %c10 = arith.constant 10 : index
    %c0_23 = arith.constant 0 : index
    %19 = vector.load %arg2[%c0_21, %c0_22, %c10, %c0_23] : memref<1x1x110x128xbf16, #tpu.memory_space<vmem>>, vector<1x1x80x128xbf16>
    %20 = vector.shape_cast %19 : vector<1x1x80x128xbf16> to vector<80x128xbf16>
    %c3 = arith.constant 3 : index
    %c0_24 = arith.constant 0 : index
    %c0_25 = arith.constant 0 : index
    %21 = vector.load %arg5[%c3, %c0_24, %c0_25] : memref<27x128x128xbf16, #tpu.memory_space<vmem>>, vector<1x128x128xbf16>
    %22 = vector.shape_cast %21 : vector<1x128x128xbf16> to vector<128x128xbf16>
    %cst_26 = arith.constant dense<0.000000e+00> : vector<80x128xf32>
    %23 = tpu.matmul %20, %22, %cst_26 {dimension_numbers = #tpu.dot_dimension_numbers<[1], [0], [0], [1], [0, 0, 1, 1], [], []>} : vector<80x128xbf16>, vector<128x128xbf16>, vector<80x128xf32> -> vector<80x128xf32>
    %24 = arith.addf %18, %23 : vector<80x128xf32>
    %c0_27 = arith.constant 0 : index
    %c0_28 = arith.constant 0 : index
    %c11 = arith.constant 11 : index
    %c0_29 = arith.constant 0 : index
    %25 = vector.load %arg2[%c0_27, %c0_28, %c11, %c0_29] : memref<1x1x110x128xbf16, #tpu.memory_space<vmem>>, vector<1x1x80x128xbf16>
    %26 = vector.shape_cast %25 : vector<1x1x80x128xbf16> to vector<80x128xbf16>
    %c4 = arith.constant 4 : index
    %c0_30 = arith.constant 0 : index
    %c0_31 = arith.constant 0 : index
    %27 = vector.load %arg5[%c4, %c0_30, %c0_31] : memref<27x128x128xbf16, #tpu.memory_space<vmem>>, vector<1x128x128xbf16>
    %28 = vector.shape_cast %27 : vector<1x128x128xbf16> to vector<128x128xbf16>
    %cst_32 = arith.constant dense<0.000000e+00> : vector<80x128xf32>
    %29 = tpu.matmul %26, %28, %cst_32 {dimension_numbers = #tpu.dot_dimension_numbers<[1], [0], [0], [1], [0, 0, 1, 1], [], []>} : vector<80x128xbf16>, vector<128x128xbf16>, vector<80x128xf32> -> vector<80x128xf32>
    %30 = arith.addf %24, %29 : vector<80x128xf32>
    %c0_33 = arith.constant 0 : index
    %c0_34 = arith.constant 0 : index
    %c12 = arith.constant 12 : index
    %c0_35 = arith.constant 0 : index
    %31 = vector.load %arg2[%c0_33, %c0_34, %c12, %c0_35] : memref<1x1x110x128xbf16, #tpu.memory_space<vmem>>, vector<1x1x80x128xbf16>
    %32 = vector.shape_cast %31 : vector<1x1x80x128xbf16> to vector<80x128xbf16>
    %c5 = arith.constant 5 : index
    %c0_36 = arith.constant 0 : index
    %c0_37 = arith.constant 0 : index
    %33 = vector.load %arg5[%c5, %c0_36, %c0_37] : memref<27x128x128xbf16, #tpu.memory_space<vmem>>, vector<1x128x128xbf16>
    %34 = vector.shape_cast %33 : vector<1x128x128xbf16> to vector<128x128xbf16>
    %cst_38 = arith.constant dense<0.000000e+00> : vector<80x128xf32>
    %35 = tpu.matmul %32, %34, %cst_38 {dimension_numbers = #tpu.dot_dimension_numbers<[1], [0], [0], [1], [0, 0, 1, 1], [], []>} : vector<80x128xbf16>, vector<128x128xbf16>, vector<80x128xf32> -> vector<80x128xf32>
    %36 = arith.addf %30, %35 : vector<80x128xf32>
    %c0_39 = arith.constant 0 : index
    %c0_40 = arith.constant 0 : index
    %c20 = arith.constant 20 : index
    %c0_41 = arith.constant 0 : index
    %37 = vector.load %arg2[%c0_39, %c0_40, %c20, %c0_41] : memref<1x1x110x128xbf16, #tpu.memory_space<vmem>>, vector<1x1x80x128xbf16>
    %38 = vector.shape_cast %37 : vector<1x1x80x128xbf16> to vector<80x128xbf16>
    %c6 = arith.constant 6 : index
    %c0_42 = arith.constant 0 : index
    %c0_43 = arith.constant 0 : index
    %39 = vector.load %arg5[%c6, %c0_42, %c0_43] : memref<27x128x128xbf16, #tpu.memory_space<vmem>>, vector<1x128x128xbf16>
    %40 = vector.shape_cast %39 : vector<1x128x128xbf16> to vector<128x128xbf16>
    %cst_44 = arith.constant dense<0.000000e+00> : vector<80x128xf32>
    %41 = tpu.matmul %38, %40, %cst_44 {dimension_numbers = #tpu.dot_dimension_numbers<[1], [0], [0], [1], [0, 0, 1, 1], [], []>} : vector<80x128xbf16>, vector<128x128xbf16>, vector<80x128xf32> -> vector<80x128xf32>
    %42 = arith.addf %36, %41 : vector<80x128xf32>
    %c0_45 = arith.constant 0 : index
    %c0_46 = arith.constant 0 : index
    %c21 = arith.constant 21 : index
    %c0_47 = arith.constant 0 : index
    %43 = vector.load %arg2[%c0_45, %c0_46, %c21, %c0_47] : memref<1x1x110x128xbf16, #tpu.memory_space<vmem>>, vector<1x1x80x128xbf16>
    %44 = vector.shape_cast %43 : vector<1x1x80x128xbf16> to vector<80x128xbf16>
    %c7 = arith.constant 7 : index
    %c0_48 = arith.constant 0 : index
    %c0_49 = arith.constant 0 : index
    %45 = vector.load %arg5[%c7, %c0_48, %c0_49] : memref<27x128x128xbf16, #tpu.memory_space<vmem>>, vector<1x128x128xbf16>
    %46 = vector.shape_cast %45 : vector<1x128x128xbf16> to vector<128x128xbf16>
    %cst_50 = arith.constant dense<0.000000e+00> : vector<80x128xf32>
    %47 = tpu.matmul %44, %46, %cst_50 {dimension_numbers = #tpu.dot_dimension_numbers<[1], [0], [0], [1], [0, 0, 1, 1], [], []>} : vector<80x128xbf16>, vector<128x128xbf16>, vector<80x128xf32> -> vector<80x128xf32>
    %48 = arith.addf %42, %47 : vector<80x128xf32>
    %c0_51 = arith.constant 0 : index
    %c0_52 = arith.constant 0 : index
    %c22 = arith.constant 22 : index
    %c0_53 = arith.constant 0 : index
    %49 = vector.load %arg2[%c0_51, %c0_52, %c22, %c0_53] : memref<1x1x110x128xbf16, #tpu.memory_space<vmem>>, vector<1x1x80x128xbf16>
    %50 = vector.shape_cast %49 : vector<1x1x80x128xbf16> to vector<80x128xbf16>
    %c8 = arith.constant 8 : index
    %c0_54 = arith.constant 0 : index
    %c0_55 = arith.constant 0 : index
    %51 = vector.load %arg5[%c8, %c0_54, %c0_55] : memref<27x128x128xbf16, #tpu.memory_space<vmem>>, vector<1x128x128xbf16>
    %52 = vector.shape_cast %51 : vector<1x128x128xbf16> to vector<128x128xbf16>
    %cst_56 = arith.constant dense<0.000000e+00> : vector<80x128xf32>
    %53 = tpu.matmul %50, %52, %cst_56 {dimension_numbers = #tpu.dot_dimension_numbers<[1], [0], [0], [1], [0, 0, 1, 1], [], []>} : vector<80x128xbf16>, vector<128x128xbf16>, vector<80x128xf32> -> vector<80x128xf32>
    %54 = arith.addf %48, %53 : vector<80x128xf32>
    %c0_57 = arith.constant 0 : index
    %c0_58 = arith.constant 0 : index
    %c0_59 = arith.constant 0 : index
    %c0_60 = arith.constant 0 : index
    %55 = vector.load %arg3[%c0_57, %c0_58, %c0_59, %c0_60] : memref<1x1x110x128xbf16, #tpu.memory_space<vmem>>, vector<1x1x80x128xbf16>
    %56 = vector.shape_cast %55 : vector<1x1x80x128xbf16> to vector<80x128xbf16>
    %c9 = arith.constant 9 : index
    %c0_61 = arith.constant 0 : index
    %c0_62 = arith.constant 0 : index
    %57 = vector.load %arg5[%c9, %c0_61, %c0_62] : memref<27x128x128xbf16, #tpu.memory_space<vmem>>, vector<1x128x128xbf16>
    %58 = vector.shape_cast %57 : vector<1x128x128xbf16> to vector<128x128xbf16>
    %cst_63 = arith.constant dense<0.000000e+00> : vector<80x128xf32>
    %59 = tpu.matmul %56, %58, %cst_63 {dimension_numbers = #tpu.dot_dimension_numbers<[1], [0], [0], [1], [0, 0, 1, 1], [], []>} : vector<80x128xbf16>, vector<128x128xbf16>, vector<80x128xf32> -> vector<80x128xf32>
    %60 = arith.addf %54, %59 : vector<80x128xf32>
    %c0_64 = arith.constant 0 : index
    %c0_65 = arith.constant 0 : index
    %c1_66 = arith.constant 1 : index
    %c0_67 = arith.constant 0 : index
    %61 = vector.load %arg3[%c0_64, %c0_65, %c1_66, %c0_67] : memref<1x1x110x128xbf16, #tpu.memory_space<vmem>>, vector<1x1x80x128xbf16>
    %62 = vector.shape_cast %61 : vector<1x1x80x128xbf16> to vector<80x128xbf16>
    %c10_68 = arith.constant 10 : index
    %c0_69 = arith.constant 0 : index
    %c0_70 = arith.constant 0 : index
    %63 = vector.load %arg5[%c10_68, %c0_69, %c0_70] : memref<27x128x128xbf16, #tpu.memory_space<vmem>>, vector<1x128x128xbf16>
    %64 = vector.shape_cast %63 : vector<1x128x128xbf16> to vector<128x128xbf16>
    %cst_71 = arith.constant dense<0.000000e+00> : vector<80x128xf32>
    %65 = tpu.matmul %62, %64, %cst_71 {dimension_numbers = #tpu.dot_dimension_numbers<[1], [0], [0], [1], [0, 0, 1, 1], [], []>} : vector<80x128xbf16>, vector<128x128xbf16>, vector<80x128xf32> -> vector<80x128xf32>
    %66 = arith.addf %60, %65 : vector<80x128xf32>
    %c0_72 = arith.constant 0 : index
    %c0_73 = arith.constant 0 : index
    %c2_74 = arith.constant 2 : index
    %c0_75 = arith.constant 0 : index
    %67 = vector.load %arg3[%c0_72, %c0_73, %c2_74, %c0_75] : memref<1x1x110x128xbf16, #tpu.memory_space<vmem>>, vector<1x1x80x128xbf16>
    %68 = vector.shape_cast %67 : vector<1x1x80x128xbf16> to vector<80x128xbf16>
    %c11_76 = arith.constant 11 : index
    %c0_77 = arith.constant 0 : index
    %c0_78 = arith.constant 0 : index
    %69 = vector.load %arg5[%c11_76, %c0_77, %c0_78] : memref<27x128x128xbf16, #tpu.memory_space<vmem>>, vector<1x128x128xbf16>
    %70 = vector.shape_cast %69 : vector<1x128x128xbf16> to vector<128x128xbf16>
    %cst_79 = arith.constant dense<0.000000e+00> : vector<80x128xf32>
    %71 = tpu.matmul %68, %70, %cst_79 {dimension_numbers = #tpu.dot_dimension_numbers<[1], [0], [0], [1], [0, 0, 1, 1], [], []>} : vector<80x128xbf16>, vector<128x128xbf16>, vector<80x128xf32> -> vector<80x128xf32>
    %72 = arith.addf %66, %71 : vector<80x128xf32>
    %c0_80 = arith.constant 0 : index
    %c0_81 = arith.constant 0 : index
    %c10_82 = arith.constant 10 : index
    %c0_83 = arith.constant 0 : index
    %73 = vector.load %arg3[%c0_80, %c0_81, %c10_82, %c0_83] : memref<1x1x110x128xbf16, #tpu.memory_space<vmem>>, vector<1x1x80x128xbf16>
    %74 = vector.shape_cast %73 : vector<1x1x80x128xbf16> to vector<80x128xbf16>
    %c12_84 = arith.constant 12 : index
    %c0_85 = arith.constant 0 : index
    %c0_86 = arith.constant 0 : index
    %75 = vector.load %arg5[%c12_84, %c0_85, %c0_86] : memref<27x128x128xbf16, #tpu.memory_space<vmem>>, vector<1x128x128xbf16>
    %76 = vector.shape_cast %75 : vector<1x128x128xbf16> to vector<128x128xbf16>
    %cst_87 = arith.constant dense<0.000000e+00> : vector<80x128xf32>
    %77 = tpu.matmul %74, %76, %cst_87 {dimension_numbers = #tpu.dot_dimension_numbers<[1], [0], [0], [1], [0, 0, 1, 1], [], []>} : vector<80x128xbf16>, vector<128x128xbf16>, vector<80x128xf32> -> vector<80x128xf32>
    %78 = arith.addf %72, %77 : vector<80x128xf32>
    %c0_88 = arith.constant 0 : index
    %c0_89 = arith.constant 0 : index
    %c11_90 = arith.constant 11 : index
    %c0_91 = arith.constant 0 : index
    %79 = vector.load %arg3[%c0_88, %c0_89, %c11_90, %c0_91] : memref<1x1x110x128xbf16, #tpu.memory_space<vmem>>, vector<1x1x80x128xbf16>
    %80 = vector.shape_cast %79 : vector<1x1x80x128xbf16> to vector<80x128xbf16>
    %c13 = arith.constant 13 : index
    %c0_92 = arith.constant 0 : index
    %c0_93 = arith.constant 0 : index
    %81 = vector.load %arg5[%c13, %c0_92, %c0_93] : memref<27x128x128xbf16, #tpu.memory_space<vmem>>, vector<1x128x128xbf16>
    %82 = vector.shape_cast %81 : vector<1x128x128xbf16> to vector<128x128xbf16>
    %cst_94 = arith.constant dense<0.000000e+00> : vector<80x128xf32>
    %83 = tpu.matmul %80, %82, %cst_94 {dimension_numbers = #tpu.dot_dimension_numbers<[1], [0], [0], [1], [0, 0, 1, 1], [], []>} : vector<80x128xbf16>, vector<128x128xbf16>, vector<80x128xf32> -> vector<80x128xf32>
    %84 = arith.addf %78, %83 : vector<80x128xf32>
    %c0_95 = arith.constant 0 : index
    %c0_96 = arith.constant 0 : index
    %c12_97 = arith.constant 12 : index
    %c0_98 = arith.constant 0 : index
    %85 = vector.load %arg3[%c0_95, %c0_96, %c12_97, %c0_98] : memref<1x1x110x128xbf16, #tpu.memory_space<vmem>>, vector<1x1x80x128xbf16>
    %86 = vector.shape_cast %85 : vector<1x1x80x128xbf16> to vector<80x128xbf16>
    %c14 = arith.constant 14 : index
    %c0_99 = arith.constant 0 : index
    %c0_100 = arith.constant 0 : index
    %87 = vector.load %arg5[%c14, %c0_99, %c0_100] : memref<27x128x128xbf16, #tpu.memory_space<vmem>>, vector<1x128x128xbf16>
    %88 = vector.shape_cast %87 : vector<1x128x128xbf16> to vector<128x128xbf16>
    %cst_101 = arith.constant dense<0.000000e+00> : vector<80x128xf32>
    %89 = tpu.matmul %86, %88, %cst_101 {dimension_numbers = #tpu.dot_dimension_numbers<[1], [0], [0], [1], [0, 0, 1, 1], [], []>} : vector<80x128xbf16>, vector<128x128xbf16>, vector<80x128xf32> -> vector<80x128xf32>
    %90 = arith.addf %84, %89 : vector<80x128xf32>
    %c0_102 = arith.constant 0 : index
    %c0_103 = arith.constant 0 : index
    %c20_104 = arith.constant 20 : index
    %c0_105 = arith.constant 0 : index
    %91 = vector.load %arg3[%c0_102, %c0_103, %c20_104, %c0_105] : memref<1x1x110x128xbf16, #tpu.memory_space<vmem>>, vector<1x1x80x128xbf16>
    %92 = vector.shape_cast %91 : vector<1x1x80x128xbf16> to vector<80x128xbf16>
    %c15 = arith.constant 15 : index
    %c0_106 = arith.constant 0 : index
    %c0_107 = arith.constant 0 : index
    %93 = vector.load %arg5[%c15, %c0_106, %c0_107] : memref<27x128x128xbf16, #tpu.memory_space<vmem>>, vector<1x128x128xbf16>
    %94 = vector.shape_cast %93 : vector<1x128x128xbf16> to vector<128x128xbf16>
    %cst_108 = arith.constant dense<0.000000e+00> : vector<80x128xf32>
    %95 = tpu.matmul %92, %94, %cst_108 {dimension_numbers = #tpu.dot_dimension_numbers<[1], [0], [0], [1], [0, 0, 1, 1], [], []>} : vector<80x128xbf16>, vector<128x128xbf16>, vector<80x128xf32> -> vector<80x128xf32>
    %96 = arith.addf %90, %95 : vector<80x128xf32>
    %c0_109 = arith.constant 0 : index
    %c0_110 = arith.constant 0 : index
    %c21_111 = arith.constant 21 : index
    %c0_112 = arith.constant 0 : index
    %97 = vector.load %arg3[%c0_109, %c0_110, %c21_111, %c0_112] : memref<1x1x110x128xbf16, #tpu.memory_space<vmem>>, vector<1x1x80x128xbf16>
    %98 = vector.shape_cast %97 : vector<1x1x80x128xbf16> to vector<80x128xbf16>
    %c16 = arith.constant 16 : index
    %c0_113 = arith.constant 0 : index
    %c0_114 = arith.constant 0 : index
    %99 = vector.load %arg5[%c16, %c0_113, %c0_114] : memref<27x128x128xbf16, #tpu.memory_space<vmem>>, vector<1x128x128xbf16>
    %100 = vector.shape_cast %99 : vector<1x128x128xbf16> to vector<128x128xbf16>
    %cst_115 = arith.constant dense<0.000000e+00> : vector<80x128xf32>
    %101 = tpu.matmul %98, %100, %cst_115 {dimension_numbers = #tpu.dot_dimension_numbers<[1], [0], [0], [1], [0, 0, 1, 1], [], []>} : vector<80x128xbf16>, vector<128x128xbf16>, vector<80x128xf32> -> vector<80x128xf32>
    %102 = arith.addf %96, %101 : vector<80x128xf32>
    %c0_116 = arith.constant 0 : index
    %c0_117 = arith.constant 0 : index
    %c22_118 = arith.constant 22 : index
    %c0_119 = arith.constant 0 : index
    %103 = vector.load %arg3[%c0_116, %c0_117, %c22_118, %c0_119] : memref<1x1x110x128xbf16, #tpu.memory_space<vmem>>, vector<1x1x80x128xbf16>
    %104 = vector.shape_cast %103 : vector<1x1x80x128xbf16> to vector<80x128xbf16>
    %c17 = arith.constant 17 : index
    %c0_120 = arith.constant 0 : index
    %c0_121 = arith.constant 0 : index
    %105 = vector.load %arg5[%c17, %c0_120, %c0_121] : memref<27x128x128xbf16, #tpu.memory_space<vmem>>, vector<1x128x128xbf16>
    %106 = vector.shape_cast %105 : vector<1x128x128xbf16> to vector<128x128xbf16>
    %cst_122 = arith.constant dense<0.000000e+00> : vector<80x128xf32>
    %107 = tpu.matmul %104, %106, %cst_122 {dimension_numbers = #tpu.dot_dimension_numbers<[1], [0], [0], [1], [0, 0, 1, 1], [], []>} : vector<80x128xbf16>, vector<128x128xbf16>, vector<80x128xf32> -> vector<80x128xf32>
    %108 = arith.addf %102, %107 : vector<80x128xf32>
    %c0_123 = arith.constant 0 : index
    %c0_124 = arith.constant 0 : index
    %c0_125 = arith.constant 0 : index
    %c0_126 = arith.constant 0 : index
    %109 = vector.load %arg4[%c0_123, %c0_124, %c0_125, %c0_126] : memref<1x1x110x128xbf16, #tpu.memory_space<vmem>>, vector<1x1x80x128xbf16>
    %110 = vector.shape_cast %109 : vector<1x1x80x128xbf16> to vector<80x128xbf16>
    %c18 = arith.constant 18 : index
    %c0_127 = arith.constant 0 : index
    %c0_128 = arith.constant 0 : index
    %111 = vector.load %arg5[%c18, %c0_127, %c0_128] : memref<27x128x128xbf16, #tpu.memory_space<vmem>>, vector<1x128x128xbf16>
    %112 = vector.shape_cast %111 : vector<1x128x128xbf16> to vector<128x128xbf16>
    %cst_129 = arith.constant dense<0.000000e+00> : vector<80x128xf32>
    %113 = tpu.matmul %110, %112, %cst_129 {dimension_numbers = #tpu.dot_dimension_numbers<[1], [0], [0], [1], [0, 0, 1, 1], [], []>} : vector<80x128xbf16>, vector<128x128xbf16>, vector<80x128xf32> -> vector<80x128xf32>
    %114 = arith.addf %108, %113 : vector<80x128xf32>
    %c0_130 = arith.constant 0 : index
    %c0_131 = arith.constant 0 : index
    %c1_132 = arith.constant 1 : index
    %c0_133 = arith.constant 0 : index
    %115 = vector.load %arg4[%c0_130, %c0_131, %c1_132, %c0_133] : memref<1x1x110x128xbf16, #tpu.memory_space<vmem>>, vector<1x1x80x128xbf16>
    %116 = vector.shape_cast %115 : vector<1x1x80x128xbf16> to vector<80x128xbf16>
    %c19 = arith.constant 19 : index
    %c0_134 = arith.constant 0 : index
    %c0_135 = arith.constant 0 : index
    %117 = vector.load %arg5[%c19, %c0_134, %c0_135] : memref<27x128x128xbf16, #tpu.memory_space<vmem>>, vector<1x128x128xbf16>
    %118 = vector.shape_cast %117 : vector<1x128x128xbf16> to vector<128x128xbf16>
    %cst_136 = arith.constant dense<0.000000e+00> : vector<80x128xf32>
    %119 = tpu.matmul %116, %118, %cst_136 {dimension_numbers = #tpu.dot_dimension_numbers<[1], [0], [0], [1], [0, 0, 1, 1], [], []>} : vector<80x128xbf16>, vector<128x128xbf16>, vector<80x128xf32> -> vector<80x128xf32>
    %120 = arith.addf %114, %119 : vector<80x128xf32>
    %c0_137 = arith.constant 0 : index
    %c0_138 = arith.constant 0 : index
    %c2_139 = arith.constant 2 : index
    %c0_140 = arith.constant 0 : index
    %121 = vector.load %arg4[%c0_137, %c0_138, %c2_139, %c0_140] : memref<1x1x110x128xbf16, #tpu.memory_space<vmem>>, vector<1x1x80x128xbf16>
    %122 = vector.shape_cast %121 : vector<1x1x80x128xbf16> to vector<80x128xbf16>
    %c20_141 = arith.constant 20 : index
    %c0_142 = arith.constant 0 : index
    %c0_143 = arith.constant 0 : index
    %123 = vector.load %arg5[%c20_141, %c0_142, %c0_143] : memref<27x128x128xbf16, #tpu.memory_space<vmem>>, vector<1x128x128xbf16>
    %124 = vector.shape_cast %123 : vector<1x128x128xbf16> to vector<128x128xbf16>
    %cst_144 = arith.constant dense<0.000000e+00> : vector<80x128xf32>
    %125 = tpu.matmul %122, %124, %cst_144 {dimension_numbers = #tpu.dot_dimension_numbers<[1], [0], [0], [1], [0, 0, 1, 1], [], []>} : vector<80x128xbf16>, vector<128x128xbf16>, vector<80x128xf32> -> vector<80x128xf32>
    %126 = arith.addf %120, %125 : vector<80x128xf32>
    %c0_145 = arith.constant 0 : index
    %c0_146 = arith.constant 0 : index
    %c10_147 = arith.constant 10 : index
    %c0_148 = arith.constant 0 : index
    %127 = vector.load %arg4[%c0_145, %c0_146, %c10_147, %c0_148] : memref<1x1x110x128xbf16, #tpu.memory_space<vmem>>, vector<1x1x80x128xbf16>
    %128 = vector.shape_cast %127 : vector<1x1x80x128xbf16> to vector<80x128xbf16>
    %c21_149 = arith.constant 21 : index
    %c0_150 = arith.constant 0 : index
    %c0_151 = arith.constant 0 : index
    %129 = vector.load %arg5[%c21_149, %c0_150, %c0_151] : memref<27x128x128xbf16, #tpu.memory_space<vmem>>, vector<1x128x128xbf16>
    %130 = vector.shape_cast %129 : vector<1x128x128xbf16> to vector<128x128xbf16>
    %cst_152 = arith.constant dense<0.000000e+00> : vector<80x128xf32>
    %131 = tpu.matmul %128, %130, %cst_152 {dimension_numbers = #tpu.dot_dimension_numbers<[1], [0], [0], [1], [0, 0, 1, 1], [], []>} : vector<80x128xbf16>, vector<128x128xbf16>, vector<80x128xf32> -> vector<80x128xf32>
    %132 = arith.addf %126, %131 : vector<80x128xf32>
    %c0_153 = arith.constant 0 : index
    %c0_154 = arith.constant 0 : index
    %c11_155 = arith.constant 11 : index
    %c0_156 = arith.constant 0 : index
    %133 = vector.load %arg4[%c0_153, %c0_154, %c11_155, %c0_156] : memref<1x1x110x128xbf16, #tpu.memory_space<vmem>>, vector<1x1x80x128xbf16>
    %134 = vector.shape_cast %133 : vector<1x1x80x128xbf16> to vector<80x128xbf16>
    %c22_157 = arith.constant 22 : index
    %c0_158 = arith.constant 0 : index
    %c0_159 = arith.constant 0 : index
    %135 = vector.load %arg5[%c22_157, %c0_158, %c0_159] : memref<27x128x128xbf16, #tpu.memory_space<vmem>>, vector<1x128x128xbf16>
    %136 = vector.shape_cast %135 : vector<1x128x128xbf16> to vector<128x128xbf16>
    %cst_160 = arith.constant dense<0.000000e+00> : vector<80x128xf32>
    %137 = tpu.matmul %134, %136, %cst_160 {dimension_numbers = #tpu.dot_dimension_numbers<[1], [0], [0], [1], [0, 0, 1, 1], [], []>} : vector<80x128xbf16>, vector<128x128xbf16>, vector<80x128xf32> -> vector<80x128xf32>
    %138 = arith.addf %132, %137 : vector<80x128xf32>
    %c0_161 = arith.constant 0 : index
    %c0_162 = arith.constant 0 : index
    %c12_163 = arith.constant 12 : index
    %c0_164 = arith.constant 0 : index
    %139 = vector.load %arg4[%c0_161, %c0_162, %c12_163, %c0_164] : memref<1x1x110x128xbf16, #tpu.memory_space<vmem>>, vector<1x1x80x128xbf16>
    %140 = vector.shape_cast %139 : vector<1x1x80x128xbf16> to vector<80x128xbf16>
    %c23 = arith.constant 23 : index
    %c0_165 = arith.constant 0 : index
    %c0_166 = arith.constant 0 : index
    %141 = vector.load %arg5[%c23, %c0_165, %c0_166] : memref<27x128x128xbf16, #tpu.memory_space<vmem>>, vector<1x128x128xbf16>
    %142 = vector.shape_cast %141 : vector<1x128x128xbf16> to vector<128x128xbf16>
    %cst_167 = arith.constant dense<0.000000e+00> : vector<80x128xf32>
    %143 = tpu.matmul %140, %142, %cst_167 {dimension_numbers = #tpu.dot_dimension_numbers<[1], [0], [0], [1], [0, 0, 1, 1], [], []>} : vector<80x128xbf16>, vector<128x128xbf16>, vector<80x128xf32> -> vector<80x128xf32>
    %144 = arith.addf %138, %143 : vector<80x128xf32>
    %c0_168 = arith.constant 0 : index
    %c0_169 = arith.constant 0 : index
    %c20_170 = arith.constant 20 : index
    %c0_171 = arith.constant 0 : index
    %145 = vector.load %arg4[%c0_168, %c0_169, %c20_170, %c0_171] : memref<1x1x110x128xbf16, #tpu.memory_space<vmem>>, vector<1x1x80x128xbf16>
    %146 = vector.shape_cast %145 : vector<1x1x80x128xbf16> to vector<80x128xbf16>
    %c24 = arith.constant 24 : index
    %c0_172 = arith.constant 0 : index
    %c0_173 = arith.constant 0 : index
    %147 = vector.load %arg5[%c24, %c0_172, %c0_173] : memref<27x128x128xbf16, #tpu.memory_space<vmem>>, vector<1x128x128xbf16>
    %148 = vector.shape_cast %147 : vector<1x128x128xbf16> to vector<128x128xbf16>
    %cst_174 = arith.constant dense<0.000000e+00> : vector<80x128xf32>
    %149 = tpu.matmul %146, %148, %cst_174 {dimension_numbers = #tpu.dot_dimension_numbers<[1], [0], [0], [1], [0, 0, 1, 1], [], []>} : vector<80x128xbf16>, vector<128x128xbf16>, vector<80x128xf32> -> vector<80x128xf32>
    %150 = arith.addf %144, %149 : vector<80x128xf32>
    %c0_175 = arith.constant 0 : index
    %c0_176 = arith.constant 0 : index
    %c21_177 = arith.constant 21 : index
    %c0_178 = arith.constant 0 : index
    %151 = vector.load %arg4[%c0_175, %c0_176, %c21_177, %c0_178] : memref<1x1x110x128xbf16, #tpu.memory_space<vmem>>, vector<1x1x80x128xbf16>
    %152 = vector.shape_cast %151 : vector<1x1x80x128xbf16> to vector<80x128xbf16>
    %c25 = arith.constant 25 : index
    %c0_179 = arith.constant 0 : index
    %c0_180 = arith.constant 0 : index
    %153 = vector.load %arg5[%c25, %c0_179, %c0_180] : memref<27x128x128xbf16, #tpu.memory_space<vmem>>, vector<1x128x128xbf16>
    %154 = vector.shape_cast %153 : vector<1x128x128xbf16> to vector<128x128xbf16>
    %cst_181 = arith.constant dense<0.000000e+00> : vector<80x128xf32>
    %155 = tpu.matmul %152, %154, %cst_181 {dimension_numbers = #tpu.dot_dimension_numbers<[1], [0], [0], [1], [0, 0, 1, 1], [], []>} : vector<80x128xbf16>, vector<128x128xbf16>, vector<80x128xf32> -> vector<80x128xf32>
    %156 = arith.addf %150, %155 : vector<80x128xf32>
    %c0_182 = arith.constant 0 : index
    %c0_183 = arith.constant 0 : index
    %c22_184 = arith.constant 22 : index
    %c0_185 = arith.constant 0 : index
    %157 = vector.load %arg4[%c0_182, %c0_183, %c22_184, %c0_185] : memref<1x1x110x128xbf16, #tpu.memory_space<vmem>>, vector<1x1x80x128xbf16>
    %158 = vector.shape_cast %157 : vector<1x1x80x128xbf16> to vector<80x128xbf16>
    %c26 = arith.constant 26 : index
    %c0_186 = arith.constant 0 : index
    %c0_187 = arith.constant 0 : index
    %159 = vector.load %arg5[%c26, %c0_186, %c0_187] : memref<27x128x128xbf16, #tpu.memory_space<vmem>>, vector<1x128x128xbf16>
    %160 = vector.shape_cast %159 : vector<1x128x128xbf16> to vector<128x128xbf16>
    %cst_188 = arith.constant dense<0.000000e+00> : vector<80x128xf32>
    %161 = tpu.matmul %158, %160, %cst_188 {dimension_numbers = #tpu.dot_dimension_numbers<[1], [0], [0], [1], [0, 0, 1, 1], [], []>} : vector<80x128xbf16>, vector<128x128xbf16>, vector<80x128xf32> -> vector<80x128xf32>
    %162 = arith.addf %156, %161 : vector<80x128xf32>
    %c0_189 = arith.constant 0 : index
    %c0_190 = arith.constant 0 : index
    %163 = vector.load %arg6[%c0_189, %c0_190] : memref<1x128xf32, #tpu.memory_space<vmem>>, vector<1x128xf32>
    %164 = vector.broadcast %163 : vector<1x128xf32> to vector<80x128xf32>
    %165 = arith.addf %162, %164 : vector<80x128xf32>
    %cst_191 = arith.constant 0.000000e+00 : f32
    %166 = vector.broadcast %cst_191 : f32 to vector<80x128xf32>
    %167 = arith.maximumf %165, %166 : vector<80x128xf32>
    %c0_192 = arith.constant 0 : index
    %c0_193 = arith.constant 0 : index
    %c0_194 = arith.constant 0 : index
    %c0_195 = arith.constant 0 : index
    %168 = vector.load %arg7[%c0_192, %c0_193, %c0_194, %c0_195] : memref<1x1x80x128xf32, #tpu.memory_space<vmem>>, vector<1x1x80x128xf32>
    %169 = vector.shape_cast %168 : vector<1x1x80x128xf32> to vector<80x128xf32>
    %170 = vector.shape_cast %167 : vector<80x128xf32> to vector<1x1x80x128xf32>
    tpu.vector_store %arg7[%c0_192, %c0_193, %c0_194, %c0_195], %170 {strides = array<i32>} : memref<1x1x80x128xf32, #tpu.memory_space<vmem>>, vector<1x1x80x128xf32>,
    return
  }
  func.func @transform_0(%arg0: i32, %arg1: i32) -> (i32, i32, i32, i32) {
    %c0_i32 = arith.constant 0 : i32
    %c0_i32_0 = arith.constant 0 : i32
    %c0_i32_1 = arith.constant 0 : i32
    return %arg0, %arg1, %c0_i32, %c0_i32_0 : i32, i32, i32, i32
  }
  func.func @transform_1(%arg0: i32, %arg1: i32) -> (i32, i32, i32, i32) {
    %c1_i32 = arith.constant 1 : i32
    %0 = arith.addi %arg1, %c1_i32 : i32
    %c0_i32 = arith.constant 0 : i32
    %c0_i32_0 = arith.constant 0 : i32
    %c0_i32_1 = arith.constant 0 : i32
    return %arg0, %0, %c0_i32, %c0_i32_0 : i32, i32, i32, i32
  }
  func.func @transform_2(%arg0: i32, %arg1: i32) -> (i32, i32, i32, i32) {
    %c2_i32 = arith.constant 2 : i32
    %0 = arith.addi %arg1, %c2_i32 : i32
    %c0_i32 = arith.constant 0 : i32
    %c0_i32_0 = arith.constant 0 : i32
    %c0_i32_1 = arith.constant 0 : i32
    return %arg0, %0, %c0_i32, %c0_i32_0 : i32, i32, i32, i32
  }
  func.func @transform_3(%arg0: i32, %arg1: i32) -> (i32, i32, i32) {
    %c0_i32 = arith.constant 0 : i32
    %c0_i32_0 = arith.constant 0 : i32
    %c0_i32_1 = arith.constant 0 : i32
    %c0_i32_2 = arith.constant 0 : i32
    return %c0_i32, %c0_i32_0, %c0_i32_1 : i32, i32, i32
  }
  func.func @transform_4(%arg0: i32, %arg1: i32) -> (i32, i32) {
    %c0_i32 = arith.constant 0 : i32
    %c0_i32_0 = arith.constant 0 : i32
    %c0_i32_1 = arith.constant 0 : i32
    return %c0_i32, %c0_i32_0 : i32, i32
  }
  func.func @transform_5(%arg0: i32, %arg1: i32) -> (i32, i32, i32, i32) {
    %c0_i32 = arith.constant 0 : i32
    %c0_i32_0 = arith.constant 0 : i32
    %c0_i32_1 = arith.constant 0 : i32
    return %arg0, %arg1, %c0_i32, %c0_i32_0 : i32, i32, i32, i32
  }
}

</mosaic_0001>

<llo_original>
// kernel: tile.9
$region0: #{tile.9}
  %s0 = inlined_call_operand.vmem [shape: f32[8,4], index: 0, kind: input, shape index: {}]
  %s1 = inlined_call_operand.vmem [shape: f32[32], index: 1, kind: output, shape index: {}]
  $region1: #{tile.9} parent=0
    #allocation0 [shape = 'u8[4096]{0}', space=vmem, size = 0x1000, scoped, tag = 'scoped mem for output reshape']
    %v2 = vld [vmem:[%s0] sm:$0x1]
    %vm3 = vcmask 31744
    %4 = vst.msk [vmem:[#allocation0] sm:$0x1] %vm3, %v2
    %s5 = scalar_lea.vmem %s0, 7
    %v6 = vld [vmem:[%s5] sm:$0x1]
    %7 = vrot.lane.b32.xlu0 %v6, 28
    %v8 = vpop.permute.xlu0 %7
    %vm9 = vcmask 261344
    %10 = vst.msk [vmem:[#allocation0] sm:$0x1] %vm9, %v8
    %s11 = scalar_lea.vmem %s0, 6
    %v12 = vld [vmem:[%s11] sm:$0x1]
    %13 = vrot.lane.b32.xlu0 %v12, 24
    %v14 = vpop.permute.xlu0 %13
    %vm15 = vcmask 228544
    %16 = vst.msk [vmem:[#allocation0] sm:$0x1] %vm15, %v14
    %s17 = scalar_lea.vmem %s0, 5
    %v18 = vld [vmem:[%s17] sm:$0x1]
    %19 = vrot.lane.b32.xlu0 %v18, 20
    %v20 = vpop.permute.xlu0 %19
    %vm21 = vcmask 195744
    %22 = vst.msk [vmem:[#allocation0] sm:$0x1] %vm21, %v20
    %s23 = scalar_lea.vmem %s0, 4
    %v24 = vld [vmem:[%s23] sm:$0x1]
    %25 = vrot.lane.b32.xlu0 %v24, 16
    %v26 = vpop.permute.xlu0 %25
    %vm27 = vcmask 162944
    %28 = vst.msk [vmem:[#allocation0] sm:$0x1] %vm27, %v26
    %s29 = scalar_lea.vmem %s0, 3
    %v30 = vld [vmem:[%s29] sm:$0x1]
    %31 = vrot.lane.b32.xlu0 %v30, 12
    %v32 = vpop.permute.xlu0 %31
    %vm33 = vcmask 130144
    %34 = vst.msk [vmem:[#allocation0] sm:$0x1] %vm33, %v32
    %s35 = scalar_lea.vmem %s0, 2
    %v36 = vld [vmem:[%s35] sm:$0x1]
    %37 = vrot.lane.b32.xlu0 %v36, 8
    %v38 = vpop.permute.xlu0 %37
    %vm39 = vcmask 97344
    %40 = vst.msk [vmem:[#allocation0] sm:$0x1] %vm39, %v38
    %s41 = scalar_lea.vmem %s0, 1
    %v42 = vld [vmem:[%s41] sm:$0x1]
    %43 = vrot.lane.b32.xlu0 %v42, 4
    %v44 = vpop.permute.xlu0 %43
    %vm45 = vcmask 64544
    %46 = vst.msk [vmem:[#allocation0] sm:$0x1] %vm45, %v44
    %s48 = ssub.s32 2, 1
    %v49 = vld [vmem:[#allocation0] sm:%s48]
    %s51 = ssub.s32 2, 1
    %52 = vst [vmem:[%s1] sm:%s51] %v49

// kernel: tile.8
$region0: #{tile.8}
  #allocation2 [shape = 's32[1]{0}', space=sflag, size = 0x4, scoped, tag = 'scoped memory for tile.8']
  %s0 = inlined_call_operand.hbm [shape: f32[4], index: 0, kind: input, shape index: {}]
  %s1 = inlined_call_operand.vmem [shape: f32[8,4], index: 1, kind: output, shape index: {}]
  $region1: #{tile.8} parent=0
    #allocation0 [shape = 'u8[512]{0}', space=vmem, size = 0x400, scoped, tag = 'operand span for operand 0']
    #allocation1 [shape = 's32[1]{0}', space=sflag, size = 0x4, scoped, tag = 'scoped memory for tile.8']
    %2 = vsyncpa [#allocation1], 0
    // Predicated region
    $region2: #{tile.8} parent=1 // pred_check
      _
    $region3: #{tile.8} parent=1 // pred_check_branch
      %4 = sbr.rel (0) target = $region5
    $region4: #{tile.8} parent=1 // pred_region
      %6 = vsyncadd [#allocation1], 0
      %s8 = sshll.u32 %s0, 4
      %s9 = int_to_ptr.hbm [resolvable:$true] %s8
      %s10 = sshll.u32 [#allocation0], 4
      %s11 = int_to_ptr.vmem [resolvable:$true] %s10
      %13 = dma.hbm_to_vmem [thread:$0]  %s9, 16, %s11, [#allocation1]
    $region5: #{tile.8} parent=1 // pred_fallthru
      _
    // Predicated region
    $region6: #{tile.8} parent=1 // pred_check
      _
    $region7: #{tile.8} parent=1 // pred_check_branch
      %15 = sbr.rel (0) target = $region9
    $region8: #{tile.8} parent=1 // pred_region
      %17 = dma.done [#allocation1], 16
    $region9: #{tile.8} parent=1 // pred_fallthru
      _
    %v18 = vld [vmem:[#allocation0] ss:$0 sm:$0xff]
    %19 = vst [vmem:[%s1] sm:$0xff] %v18
    %20 = vsyncpa [#allocation1], 1

// kernel: deconv_forward.3
$region0: #{deconv_forward.3}
  #allocation0 [shape = 'u32[]', space=smem, size = 0x4, offset = 0x4, fixed_abs, tag = 'smem constant byte address 0x4 - core index']
  #allocation1 [shape = 'u32[72,128]{1,0:T(1,128)}', space=vmem, size = 0x9000, scoped, tag = 'internal scratch']
  %s0 = inlined_call_operand.vmem [shape: bf16[128,8], index: 0, kind: input, shape index: {}]
  %s1 = inlined_call_operand.vmem [shape: bf16[8,128], index: 1, kind: input, shape index: {}]
  %s2 = inlined_call_operand.vmem [shape: f32[1,128], index: 2, kind: input, shape index: {}]
  %s3 = inlined_call_operand.vmem [shape: bf16[128,128], index: 3, kind: output, shape index: {}]
  %s4 = sld [smem:[#allocation0]]
  $region22: #{deconv_forward.3} parent=0
    _
  %s6 = ssub.s32 1, %s4
  %s7 = scalar_select 0, %s6, %s4
  // Predicated region
  $region2: #{deconv_forward.3} parent=0 // pred_check
    _
  $region3: #{deconv_forward.3} parent=0 // pred_check_branch
    %9 = sbr.rel (0) target = $region5
  $region4: #{deconv_forward.3} parent=0 // pred_region
    _
  $region5: #{deconv_forward.3} parent=0 // pred_fallthru
    _
  // Predicated region
  $region6: #{deconv_forward.3} parent=0 // pred_check
    _
  $region7: #{deconv_forward.3} parent=0 // pred_check_branch
    %11 = sbr.rel (0) target = $region9
  $region8: #{deconv_forward.3} parent=0 // pred_region
    _
  $region9: #{deconv_forward.3} parent=0 // pred_fallthru
    _
  // Predicated region
  $region10: #{deconv_forward.3} parent=0 // pred_check
    _
  $region11: #{deconv_forward.3} parent=0 // pred_check_branch
    %13 = sbr.rel (0) target = $region13
  $region12: #{deconv_forward.3} parent=0 // pred_region
    _
  $region13: #{deconv_forward.3} parent=0 // pred_fallthru
    _
  %v15 = vld [vmem:[%s0] sm:$0xf]
  %v16 = vld [vmem:[%s0 + $0x4] sm:$0xf]
  %v17 = vld [vmem:[%s0 + $0x8] sm:$0xf]
  %v18 = vld [vmem:[%s0 + $0xc] sm:$0xf]
  %v19 = vld [vmem:[%s0 + $0x10] sm:$0xf]
  %v20 = vld [vmem:[%s0 + $0x14] sm:$0xf]
  %v21 = vld [vmem:[%s0 + $0x18] sm:$0xf]
  %v22 = vld [vmem:[%s0 + $0x1c] sm:$0xf]
  %v23 = vld [vmem:[%s0 + $0x20] sm:$0xf]
  %v24 = vld [vmem:[%s0 + $0x24] sm:$0xf]
  %v25 = vld [vmem:[%s0 + $0x28] sm:$0xf]
  %v26 = vld [vmem:[%s0 + $0x2c] sm:$0xf]
  %v27 = vld [vmem:[%s0 + $0x30] sm:$0xf]
  %v28 = vld [vmem:[%s0 + $0x34] sm:$0xf]
  %v29 = vld [vmem:[%s0 + $0x38] sm:$0xf]
  %v30 = vld [vmem:[%s0 + $0x3c] sm:$0xf]
  %v31 = vld [vmem:[%s1] sm:$0xf]
  %v32 = vld [vmem:[%s2] sm:$0x1]
  %v34 = vperm.slane %v32, 0
  %v52 = vunpack.c.l.b16 %v15
  %v53 = vunpack.c.l.b16 %v16
  %v54 = vunpack.c.l.b16 %v17
  %v55 = vunpack.c.l.b16 %v18
  %v56 = vunpack.c.l.b16 %v19
  %v57 = vunpack.c.l.b16 %v20
  %v58 = vunpack.c.l.b16 %v21
  %v59 = vunpack.c.l.b16 %v22
  %v60 = vunpack.c.l.b16 %v23
  %v61 = vunpack.c.l.b16 %v24
  %v62 = vunpack.c.l.b16 %v25
  %v63 = vunpack.c.l.b16 %v26
  %v64 = vunpack.c.l.b16 %v27
  %v65 = vunpack.c.l.b16 %v28
  %v66 = vunpack.c.l.b16 %v29
  %v67 = vunpack.c.l.b16 %v30
  %v68 = vpack.c.b16 %v53, %v52
  %v69 = vpack.c.b16 %v55, %v54
  %v70 = vpack.c.b16 %v57, %v56
  %v71 = vpack.c.b16 %v59, %v58
  %v72 = vpack.c.b16 %v61, %v60
  %v73 = vpack.c.b16 %v63, %v62
  %v74 = vpack.c.b16 %v65, %v64
  %v75 = vpack.c.b16 %v67, %v66
  %vm76 = vcmask 64512
  %v78 = vsel %vm76, %v68, 0
  %v81 = vsel %vm76, %v69, 0
  %v84 = vsel %vm76, %v70, 0
  %v87 = vsel %vm76, %v71, 0
  %v90 = vsel %vm76, %v72, 0
  %v93 = vsel %vm76, %v73, 0
  %v96 = vsel %vm76, %v74, 0
  %v99 = vsel %vm76, %v75, 0
  %vm101 = vcmask 1043456
  %v103 = vsel %vm101, %v31, 0
  %105 = vmatpush.bf16.msra.mxu0 0
  %106 = vmatpush.bf16.msra.mxu0 0
  %107 = vmatpush.bf16.msra.mxu0 0
  %108 = vmatpush.bf16.msra.mxu0 0
  %109 = vmatpush.bf16.msra.mxu0 0
  %110 = vmatpush.bf16.msra.mxu0 0
  %111 = vmatpush.bf16.msra.mxu0 0
  %112 = vmatpush.bf16.msra.mxu0 %v103
  %113 = vmatmul.bf16.gmra.mxu0 %v78
  %v114 = vpop.f32.mrf.mxu0
  %v115 = vadd.f32 %v34, %v114
  %v116 = vpop.f32.mrf.mxu0
  %v117 = vadd.f32 %v34, %v116
  %118 = vmatmul.bf16.gmra.mxu0 %v81
  %v119 = vpop.f32.mrf.mxu0
  %v120 = vadd.f32 %v34, %v119
  %v121 = vpop.f32.mrf.mxu0
  %v122 = vadd.f32 %v34, %v121
  %123 = vmatmul.bf16.gmra.mxu0 %v84
  %v124 = vpop.f32.mrf.mxu0
  %v125 = vadd.f32 %v34, %v124
  %v126 = vpop.f32.mrf.mxu0
  %v127 = vadd.f32 %v34, %v126
  %128 = vmatmul.bf16.gmra.mxu0 %v87
  %v129 = vpop.f32.mrf.mxu0
  %v130 = vadd.f32 %v34, %v129
  %v131 = vpop.f32.mrf.mxu0
  %v132 = vadd.f32 %v34, %v131
  %133 = vmatmul.bf16.gmra.mxu0 %v90
  %v134 = vpop.f32.mrf.mxu0
  %v135 = vadd.f32 %v34, %v134
  %v136 = vpop.f32.mrf.mxu0
  %v137 = vadd.f32 %v34, %v136
  %138 = vmatmul.bf16.gmra.mxu0 %v93
  %v139 = vpop.f32.mrf.mxu0
  %v140 = vadd.f32 %v34, %v139
  %v141 = vpop.f32.mrf.mxu0
  %v142 = vadd.f32 %v34, %v141
  %143 = vmatmul.bf16.gmra.mxu0 %v96
  %v144 = vpop.f32.mrf.mxu0
  %v145 = vadd.f32 %v34, %v144
  %v146 = vpop.f32.mrf.mxu0
  %v147 = vadd.f32 %v34, %v146
  %148 = vmatmul.bf16.gmra.mxu0 %v99
  %v149 = vpop.f32.mrf.mxu0
  %v150 = vadd.f32 %v34, %v149
  %v151 = vpop.f32.mrf.mxu0
  %v152 = vadd.f32 %v34, %v151
  %153 = vdwg.mxu0
  %v154 = vpack.c.bf16 %v115, %v115
  %v155 = vpack.c.bf16 %v117, %v117
  %v156 = vpack.c.bf16 %v120, %v120
  %v157 = vpack.c.bf16 %v122, %v122
  %v158 = vpack.c.bf16 %v125, %v125
  %v159 = vpack.c.bf16 %v127, %v127
  %v160 = vpack.c.bf16 %v130, %v130
  %v161 = vpack.c.bf16 %v132, %v132
  %v162 = vpack.c.bf16 %v135, %v135
  %v163 = vpack.c.bf16 %v137, %v137
  %v164 = vpack.c.bf16 %v140, %v140
  %v165 = vpack.c.bf16 %v142, %v142
  %v166 = vpack.c.bf16 %v145, %v145
  %v167 = vpack.c.bf16 %v147, %v147
  %v168 = vpack.c.bf16 %v150, %v150
  %v169 = vpack.c.bf16 %v152, %v152
  %170 = vst [vmem:[%s3] sm:$0xf] %v154
  %171 = vst [vmem:[%s3 + $0x4] sm:$0xf] %v155
  %172 = vst [vmem:[%s3 + $0x8] sm:$0xf] %v156
  %173 = vst [vmem:[%s3 + $0xc] sm:$0xf] %v157
  %174 = vst [vmem:[%s3 + $0x10] sm:$0xf] %v158
  %175 = vst [vmem:[%s3 + $0x14] sm:$0xf] %v159
  %176 = vst [vmem:[%s3 + $0x18] sm:$0xf] %v160
  %177 = vst [vmem:[%s3 + $0x1c] sm:$0xf] %v161
  %178 = vst [vmem:[%s3 + $0x20] sm:$0xf] %v162
  %179 = vst [vmem:[%s3 + $0x24] sm:$0xf] %v163
  %180 = vst [vmem:[%s3 + $0x28] sm:$0xf] %v164
  %181 = vst [vmem:[%s3 + $0x2c] sm:$0xf] %v165
  %182 = vst [vmem:[%s3 + $0x30] sm:$0xf] %v166
  %183 = vst [vmem:[%s3 + $0x34] sm:$0xf] %v167
  %184 = vst [vmem:[%s3 + $0x38] sm:$0xf] %v168
  %185 = vst [vmem:[%s3 + $0x3c] sm:$0xf] %v169
  // Predicated region
  $region14: #{deconv_forward.3} parent=0 // pred_check
    _
  $region15: #{deconv_forward.3} parent=0 // pred_check_branch
    %187 = sbr.rel (0) target = $region17
  $region16: #{deconv_forward.3} parent=0 // pred_region
    _
  $region17: #{deconv_forward.3} parent=0 // pred_fallthru
    _
  // Predicated region
  $region18: #{deconv_forward.3} parent=0 // pred_check
    _
  $region19: #{deconv_forward.3} parent=0 // pred_check_branch
    %189 = sbr.rel (0) target = $region21
  $region20: #{deconv_forward.3} parent=0 // pred_region
    _
  $region21: #{deconv_forward.3} parent=0 // pred_fallthru
    _

// kernel: deconv_forward.4
$region0: #{deconv_forward.4}
  #allocation0 [shape = 'u32[]', space=smem, size = 0x4, offset = 0x4, fixed_abs, tag = 'smem constant byte address 0x4 - core index']
  #allocation1 [shape = 'u32[72,128]{1,0:T(1,128)}', space=vmem, size = 0x9000, scoped, tag = 'internal scratch']
  %s0 = inlined_call_operand.vmem [shape: bf16[2,10,110,8], index: 0, kind: input, shape index: {}, may-alias: {0,1,2}]
  %s1 = inlined_call_operand.vmem [shape: bf16[2,10,110,8], index: 1, kind: input, shape index: {}, may-alias: {0,1,2}]
  %s2 = inlined_call_operand.vmem [shape: bf16[2,10,110,8], index: 2, kind: input, shape index: {}, may-alias: {0,1,2}]
  %s3 = inlined_call_operand.vmem [shape: bf16[27,8,128], index: 3, kind: input, shape index: {}]
  %s4 = inlined_call_operand.vmem [shape: f32[1,128], index: 4, kind: input, shape index: {}]
  %s5 = inlined_call_operand.vmem [shape: bf16[2,8,80,128], index: 5, kind: output, shape index: {}]
  %s6 = sld [smem:[#allocation0]]
  $region53: #{deconv_forward.4} parent=0
    _
  %s8 = ssub.s32 1, %s6
  %s9 = scalar_select 0, %s8, %s6
  loop: start=0, step=1, limit=18
  $region2: #{deconv_forward.4} parent=0 // loop_pre_header
    _
  $region3: #{deconv_forward.4} parent=0 // loop_header
    %s11 = sphi 0, %s15
    %p12 = scmp.ge.s32.totalorder %s11, 18
    %s18 = sphi 0, %s30
    %s19 = sphi 0, %s26
    %s20 = sphi 0, %s18
    %s21 = sphi 0, %s19
    %s22 = sphi 0, %s20
    %s23 = sphi 0, %s21
    %s35 = sphi 0, %s37
    %s38 = sphi 0, %s35
    %s39 = sphi 0, %s38
    %s55 = sphi 0, %s39
    %s65 = sphi 0, %s67
    %s68 = sphi 0, %s65
    %s69 = sphi 0, %s68
    %s85 = sphi 0, %s69
    %s95 = sphi 0, %s97
    %s98 = sphi 0, %s95
    %s99 = sphi 0, %s98
    %s115 = sphi 0, %s99
    %s119 = sphi 0, %s119
    %s121 = sphi 0, %s119
    %s122 = sphi 0, %s121
    %s136 = sphi 0, %s122
    %s140 = sphi 0, %s140
    %s142 = sphi 0, %s140
    %s143 = sphi 0, %s142
    %s157 = sphi 0, %s143
    %s165 = sphi 0, %s167
    %s168 = sphi 0, %s165
    %s169 = sphi 0, %s168
    %s185 = sphi 0, %s169
  $region4: #{deconv_forward.4} parent=0 // loop_header_branch
    %14 = sbr.rel (%p12) target = $region8
  $region5: #{deconv_forward.4} parent=0 // loop_body
    %s16 = ssub.s32 %s11, 1
    %s17 = ssub.s32 %s11, 2
    %s24 = sadd.s32 1, %s19
    %p25 = scmp.ge.s32.totalorder %s24, 8
    %s26 = scalar_select %p25, 0, %s24
    %s27 = sadd.s32 1, %s18
    %s28 = scalar_select %p25, %s27, %s18
    %p29 = scmp.ge.s32.totalorder %s28, 2
    %s30 = scalar_select %p29, 0, %s28
    %s31 = ssub.s32 %s18, %s30
    %s32 = ssub.s32 %s19, %s26
    %s33 = sor.u32 %s31, %s32
    %p34 = scmp.eq.s32.totalorder %s33, 0
    %s36 = sadd.s32 %s35, 1
    %s37 = scalar_select %p34, %s35, %s36
    %p40 = pneg %p34
    %p41 = scmp.eq.s32.totalorder %s11, 15
    %p42 = por %p40, %p41
    %p43 = scmp.ne.s32.totalorder %s35, %s38
    %p44 = scmp.eq.s32.totalorder %s11, 0
    %p45 = por %p43, %p44
    %p46 = scmp.ne.s32.totalorder %s35, %s38
    %p47 = scmp.eq.s32.totalorder %s16, 15
    %p48 = por %p46, %p47
    %p49 = scmp.ne.s32.totalorder %s38, %s39
    %p50 = scmp.eq.s32.totalorder %s16, 0
    %p51 = por %p49, %p50
    %p52 = scmp.ne.s32.totalorder %s38, %s39
    %p53 = scmp.eq.s32.totalorder %s17, 15
    %p54 = por %p52, %p53
    %p56 = scmp.ne.s32.totalorder %s39, %s55
    %p57 = scmp.eq.s32.totalorder %s17, 0
    %p58 = por %p56, %p57
    %s59 = sadd.s32 %s19, 1
    %s60 = sadd.s32 %s26, 1
    %s61 = ssub.s32 %s18, %s30
    %s62 = ssub.s32 %s59, %s60
    %s63 = sor.u32 %s61, %s62
    %p64 = scmp.eq.s32.totalorder %s63, 0
    %s66 = sadd.s32 %s65, 1
    %s67 = scalar_select %p64, %s65, %s66
    %p70 = pneg %p64
    %p71 = scmp.eq.s32.totalorder %s11, 15
    %p72 = por %p70, %p71
    %p73 = scmp.ne.s32.totalorder %s65, %s68
    %p74 = scmp.eq.s32.totalorder %s11, 0
    %p75 = por %p73, %p74
    %p76 = scmp.ne.s32.totalorder %s65, %s68
    %p77 = scmp.eq.s32.totalorder %s16, 15
    %p78 = por %p76, %p77
    %p79 = scmp.ne.s32.totalorder %s68, %s69
    %p80 = scmp.eq.s32.totalorder %s16, 0
    %p81 = por %p79, %p80
    %p82 = scmp.ne.s32.totalorder %s68, %s69
    %p83 = scmp.eq.s32.totalorder %s17, 15
    %p84 = por %p82, %p83
    %p86 = scmp.ne.s32.totalorder %s69, %s85
    %p87 = scmp.eq.s32.totalorder %s17, 0
    %p88 = por %p86, %p87
    %s89 = sadd.s32 %s19, 2
    %s90 = sadd.s32 %s26, 2
    %s91 = ssub.s32 %s18, %s30
    %s92 = ssub.s32 %s89, %s90
    %s93 = sor.u32 %s91, %s92
    %p94 = scmp.eq.s32.totalorder %s93, 0
    %s96 = sadd.s32 %s95, 1
    %s97 = scalar_select %p94, %s95, %s96
    %p100 = pneg %p94
    %p101 = scmp.eq.s32.totalorder %s11, 15
    %p102 = por %p100, %p101
    %p103 = scmp.ne.s32.totalorder %s95, %s98
    %p104 = scmp.eq.s32.totalorder %s11, 0
    %p105 = por %p103, %p104
    %p106 = scmp.ne.s32.totalorder %s95, %s98
    %p107 = scmp.eq.s32.totalorder %s16, 15
    %p108 = por %p106, %p107
    %p109 = scmp.ne.s32.totalorder %s98, %s99
    %p110 = scmp.eq.s32.totalorder %s16, 0
    %p111 = por %p109, %p110
    %p112 = scmp.ne.s32.totalorder %s98, %s99
    %p113 = scmp.eq.s32.totalorder %s17, 15
    %p114 = por %p112, %p113
    %p116 = scmp.ne.s32.totalorder %s99, %s115
    %p117 = scmp.eq.s32.totalorder %s17, 0
    %p118 = por %p116, %p117
    %s120 = sadd.s32 %s119, 1
    %p123 = scmp.eq.s32.totalorder %s11, 15
    %p124 = scmp.ne.s32.totalorder %s119, %s121
    %p125 = scmp.eq.s32.totalorder %s11, 0
    %p126 = por %p124, %p125
    %p127 = scmp.ne.s32.totalorder %s119, %s121
    %p128 = scmp.eq.s32.totalorder %s16, 15
    %p129 = por %p127, %p128
    %p130 = scmp.ne.s32.totalorder %s121, %s122
    %p131 = scmp.eq.s32.totalorder %s16, 0
    %p132 = por %p130, %p131
    %p133 = scmp.ne.s32.totalorder %s121, %s122
    %p134 = scmp.eq.s32.totalorder %s17, 15
    %p135 = por %p133, %p134
    %p137 = scmp.ne.s32.totalorder %s122, %s136
    %p138 = scmp.eq.s32.totalorder %s17, 0
    %p139 = por %p137, %p138
    %s141 = sadd.s32 %s140, 1
    %p144 = scmp.eq.s32.totalorder %s11, 15
    %p145 = scmp.ne.s32.totalorder %s140, %s142
    %p146 = scmp.eq.s32.totalorder %s11, 0
    %p147 = por %p145, %p146
    %p148 = scmp.ne.s32.totalorder %s140, %s142
    %p149 = scmp.eq.s32.totalorder %s16, 15
    %p150 = por %p148, %p149
    %p151 = scmp.ne.s32.totalorder %s142, %s143
    %p152 = scmp.eq.s32.totalorder %s16, 0
    %p153 = por %p151, %p152
    %p154 = scmp.ne.s32.totalorder %s142, %s143
    %p155 = scmp.eq.s32.totalorder %s17, 15
    %p156 = por %p154, %p155
    %p158 = scmp.ne.s32.totalorder %s143, %s157
    %p159 = scmp.eq.s32.totalorder %s17, 0
    %p160 = por %p158, %p159
    %s161 = ssub.s32 %s18, %s30
    %s162 = ssub.s32 %s19, %s26
    %s163 = sor.u32 %s161, %s162
    %p164 = scmp.eq.s32.totalorder %s163, 0
    %s166 = sadd.s32 %s165, 1
    %s167 = scalar_select %p164, %s165, %s166
    %p170 = pneg %p164
    %p171 = scmp.eq.s32.totalorder %s11, 15
    %p172 = por %p170, %p171
    %p173 = scmp.ne.s32.totalorder %s165, %s168
    %p174 = scmp.eq.s32.totalorder %s11, 0
    %p175 = por %p173, %p174
    %p176 = scmp.ne.s32.totalorder %s165, %s168
    %p177 = scmp.eq.s32.totalorder %s16, 15
    %p178 = por %p176, %p177
    %p179 = scmp.ne.s32.totalorder %s168, %s169
    %p180 = scmp.eq.s32.totalorder %s16, 0
    %p181 = por %p179, %p180
    %p182 = scmp.ne.s32.totalorder %s168, %s169
    %p183 = scmp.eq.s32.totalorder %s17, 15
    %p184 = por %p182, %p183
    %p186 = scmp.ne.s32.totalorder %s169, %s185
    %p187 = scmp.eq.s32.totalorder %s17, 0
    %p188 = por %p186, %p187
    %p189 = scmp.le.s32.totalorder 1, %s11
    %p190 = scmp.lt.s32.totalorder %s11, 17
    %p191 = pnand %p189, %p190
    %p192 = pneg %p191
    // Predicated region
    $region9: #{deconv_forward.4} parent=5 // pred_check
      _
    $region10: #{deconv_forward.4} parent=5 // pred_check_branch
      %194 = sbr.rel (%p191) target = $region12
    $region11: #{deconv_forward.4} parent=5 // pred_region
      %s195 = ssub.s32 %s11, 1
      // Predicated region
      $region13: #{deconv_forward.4} parent=11 // pred_check
        %p196 = pneg %p132
      $region14: #{deconv_forward.4} parent=11 // pred_check_branch
        %198 = sbr.rel (%p196) target = $region16
      $region15: #{deconv_forward.4} parent=11 // pred_region
        _
      $region16: #{deconv_forward.4} parent=11 // pred_fallthru
        _
      // Predicated region
      $region17: #{deconv_forward.4} parent=11 // pred_check
        %p199 = pneg %p153
      $region18: #{deconv_forward.4} parent=11 // pred_check_branch
        %201 = sbr.rel (%p199) target = $region20
      $region19: #{deconv_forward.4} parent=11 // pred_region
        _
      $region20: #{deconv_forward.4} parent=11 // pred_fallthru
        _
    $region12: #{deconv_forward.4} parent=5 // pred_fallthru
      _
    %p202 = scmp.lt.s32.totalorder %s11, 16
    // Predicated region
    $region21: #{deconv_forward.4} parent=5 // pred_check
      %p203 = pneg %p202
    $region22: #{deconv_forward.4} parent=5 // pred_check_branch
      %205 = sbr.rel (%p203) target = $region24
    $region23: #{deconv_forward.4} parent=5 // pred_region
      // Predicated region
      $region25: #{deconv_forward.4} parent=23 // pred_check
        %p206 = pneg %p45
      $region26: #{deconv_forward.4} parent=23 // pred_check_branch
        %208 = sbr.rel (%p206) target = $region28
      $region27: #{deconv_forward.4} parent=23 // pred_region
        %p209 = scmp.lt.s32.totalorder %s18, 1
        %s210 = scalar_select %p209, %s18, 1
        %p211 = scmp.lt.s32.totalorder %s19, 9
        %s212 = scalar_select %p211, %s19, 9
        %s213 = smul.addr %s212, 14
        %s214 = smul.addr %s210, 140
        %s215 = sadd.s32 %s213, %s214
        %s216 = smul.addr %s215, 4
        %s217 = scalar_lea.vmem %s0, %s216
      $region28: #{deconv_forward.4} parent=23 // pred_fallthru
        _
      // Predicated region
      $region29: #{deconv_forward.4} parent=23 // pred_check
        %p218 = pneg %p75
      $region30: #{deconv_forward.4} parent=23 // pred_check_branch
        %220 = sbr.rel (%p218) target = $region32
      $region31: #{deconv_forward.4} parent=23 // pred_region
        %s221 = sadd.s32 %s19, 1
        %p222 = scmp.lt.s32.totalorder %s18, 1
        %s223 = scalar_select %p222, %s18, 1
        %p224 = scmp.lt.s32.totalorder %s221, 9
        %s225 = scalar_select %p224, %s221, 9
        %s226 = smul.addr %s225, 14
        %s227 = smul.addr %s223, 140
        %s228 = sadd.s32 %s226, %s227
        %s229 = smul.addr %s228, 4
        %s230 = scalar_lea.vmem %s1, %s229
        %s231 = sadd.s32 %s19, 1
      $region32: #{deconv_forward.4} parent=23 // pred_fallthru
        _
      // Predicated region
      $region33: #{deconv_forward.4} parent=23 // pred_check
        %p232 = pneg %p105
      $region34: #{deconv_forward.4} parent=23 // pred_check_branch
        %234 = sbr.rel (%p232) target = $region36
      $region35: #{deconv_forward.4} parent=23 // pred_region
        %s235 = sadd.s32 %s19, 2
        %p236 = scmp.lt.s32.totalorder %s18, 1
        %s237 = scalar_select %p236, %s18, 1
        %p238 = scmp.lt.s32.totalorder %s235, 9
        %s239 = scalar_select %p238, %s235, 9
        %s240 = smul.addr %s239, 14
        %s241 = smul.addr %s237, 140
        %s242 = sadd.s32 %s240, %s241
        %s243 = smul.addr %s242, 4
        %s244 = scalar_lea.vmem %s2, %s243
        %s245 = sadd.s32 %s19, 2
      $region36: #{deconv_forward.4} parent=23 // pred_fallthru
        _
    $region24: #{deconv_forward.4} parent=5 // pred_fallthru
      _
    %p246 = scmp.le.s32.totalorder 1, %s11
    %p247 = scmp.lt.s32.totalorder %s11, 17
    %p248 = pnand %p246, %p247
    %p249 = pneg %p248
    // Predicated region
    $region37: #{deconv_forward.4} parent=5 // pred_check
      _
    $region38: #{deconv_forward.4} parent=5 // pred_check_branch
      %251 = sbr.rel (%p248) target = $region40
    $region39: #{deconv_forward.4} parent=5 // pred_region
      %s252 = ssub.s32 %s11, 1
      %p253 = scmp.lt.s32.totalorder %s20, 1
      %s254 = scalar_select %p253, %s20, 1
      %p255 = scmp.lt.s32.totalorder %s21, 9
      %s256 = scalar_select %p255, %s21, 9
      %s257 = smul.addr %s256, 14
      %s258 = smul.addr %s254, 140
      %s259 = sadd.s32 %s257, %s258
      %s260 = smul.addr %s259, 4
      %s261 = scalar_lea.vmem %s0, %s260
      %p262 = pneg %p51
      %p263 = pneg %p48
      %s264 = sadd.s32 %s21, 1
      %p265 = scmp.lt.s32.totalorder %s20, 1
      %s266 = scalar_select %p265, %s20, 1
      %p267 = scmp.lt.s32.totalorder %s264, 9
      %s268 = scalar_select %p267, %s264, 9
      %s269 = smul.addr %s268, 14
      %s270 = smul.addr %s266, 140
      %s271 = sadd.s32 %s269, %s270
      %s272 = smul.addr %s271, 4
      %s273 = scalar_lea.vmem %s1, %s272
      %p274 = pneg %p81
      %p275 = pneg %p78
      %s276 = sadd.s32 %s21, 2
      %p277 = scmp.lt.s32.totalorder %s20, 1
      %s278 = scalar_select %p277, %s20, 1
      %p279 = scmp.lt.s32.totalorder %s276, 9
      %s280 = scalar_select %p279, %s276, 9
      %s281 = smul.addr %s280, 14
      %s282 = smul.addr %s278, 140
      %s283 = sadd.s32 %s281, %s282
      %s284 = smul.addr %s283, 4
      %s285 = scalar_lea.vmem %s2, %s284
      %p286 = pneg %p111
      %p287 = pneg %p108
      %p288 = pneg %p132
      %p289 = pneg %p129
      %p290 = pneg %p153
      %p291 = pneg %p150
      %p292 = pneg %p181
      %p293 = pneg %p178
      %p294 = scmp.lt.s32.totalorder %s20, 1
      %s295 = scalar_select %p294, %s20, 1
      %p296 = scmp.lt.s32.totalorder %s21, 7
      %s297 = scalar_select %p296, %s21, 7
      %s298 = smul.addr %s297, 10
      %s299 = smul.addr %s295, 80
      %s300 = sadd.s32 %s298, %s299
      %s301 = smul.addr %s300, 4
      %s302 = scalar_lea.vmem %s5, %s301
      %p303 = scmp.lt.s32.totalorder %s20, 1
      %s304 = scalar_select %p303, %s20, 1
      %p305 = scmp.lt.s32.totalorder %s21, 9
      %s306 = scalar_select %p305, %s21, 9
      %s307 = smul.addr %s306, 14
      %s308 = smul.addr %s304, 140
      %s309 = sadd.s32 %s307, %s308
      %s310 = smul.addr %s309, 4
      %s311 = scalar_lea.vmem %s0, %s310
      %s312 = sadd.s32 %s21, 1
      %p313 = scmp.lt.s32.totalorder %s20, 1
      %s314 = scalar_select %p313, %s20, 1
      %p315 = scmp.lt.s32.totalorder %s312, 9
      %s316 = scalar_select %p315, %s312, 9
      %s317 = smul.addr %s316, 14
      %s318 = smul.addr %s314, 140
      %s319 = sadd.s32 %s317, %s318
      %s320 = smul.addr %s319, 4
      %s321 = scalar_lea.vmem %s1, %s320
      %s322 = sadd.s32 %s21, 1
      %s323 = sadd.s32 %s21, 2
      %p324 = scmp.lt.s32.totalorder %s20, 1
      %s325 = scalar_select %p324, %s20, 1
      %p326 = scmp.lt.s32.totalorder %s323, 9
      %s327 = scalar_select %p326, %s323, 9
      %s328 = smul.addr %s327, 14
      %s329 = smul.addr %s325, 140
      %s330 = sadd.s32 %s328, %s329
      %s331 = smul.addr %s330, 4
      %s332 = scalar_lea.vmem %s2, %s331
      %s333 = sadd.s32 %s21, 2
      %p334 = scmp.lt.s32.totalorder %s20, 1
      %s335 = scalar_select %p334, %s20, 1
      %p336 = scmp.lt.s32.totalorder %s21, 7
      %s337 = scalar_select %p336, %s21, 7
      %s338 = smul.addr %s337, 10
      %s339 = smul.addr %s335, 80
      %s340 = sadd.s32 %s338, %s339
      %s341 = smul.addr %s340, 4
      %s342 = scalar_lea.vmem %s5, %s341
      %v344 = vld [vmem:[%s311] sm:$0xf]
      %v345 = vld [vmem:[%s311 + $0x4] sm:$0xf]
      %v346 = vld [vmem:[%s311 + $0x8] sm:$0xf]
      %v347 = vld [vmem:[%s311 + $0xc] sm:$0xf]
      %v348 = vld [vmem:[%s311 + $0x10] sm:$0xf]
      %v349 = vld [vmem:[%s311 + $0x14] sm:$0xf]
      %v350 = vld [vmem:[%s311 + $0x18] sm:$0xf]
      %v351 = vld [vmem:[%s311 + $0x1c] sm:$0xf]
      %v352 = vld [vmem:[%s311 + $0x20] sm:$0xf]
      %v353 = vld [vmem:[%s311 + $0x24] sm:$0xf]
      %v354 = vld [vmem:[%s3] sm:$0xf]
      %v355 = vld [vmem:[%s311 + $0x28] sm:$0x1]
      %s356 = scalar_lea.vmem %s3, 4
      %v357 = vld [vmem:[%s356] sm:$0xf]
      %v369 = vunpack.c.l.b16 %v344
      %v370 = vunpack.c.l.b16 %v345
      %v371 = vunpack.c.l.b16 %v346
      %v372 = vunpack.c.l.b16 %v347
      %v373 = vunpack.c.l.b16 %v348
      %v374 = vunpack.c.l.b16 %v349
      %v375 = vunpack.c.l.b16 %v350
      %v376 = vunpack.c.l.b16 %v351
      %v377 = vunpack.c.l.b16 %v352
      %v378 = vunpack.c.l.b16 %v353
      %v379 = vunpack.c.l.b16 %v355
      %v380 = vpack.c.b16 %v370, %v369
      %v381 = vpack.c.b16 %v372, %v371
      %v382 = vpack.c.b16 %v374, %v373
      %v383 = vpack.c.b16 %v376, %v375
      %v384 = vpack.c.b16 %v378, %v377
      %v385 = vpack.c.b16 %v379, %v379
      %vm386 = vsmask.f32 7424
      %v388 = vshrl.u32 %v380, 16
      %v390 = vshll.u32 %v380, 16
      %v392 = vrot.slane %v390, 1
      %v393 = vor.u32 %v388, %v392
      %v395 = vshll.u32 %v381, 16
      %v397 = vrot.slane %v395, 1
      %v398 = vsel %vm386, %v393, %v397
      %v399 = vshrl.u32 %v381, 16
      %v401 = vor.u32 %v399, %v397
      %v403 = vshll.u32 %v382, 16
      %v405 = vrot.slane %v403, 1
      %v406 = vsel %vm386, %v401, %v405
      %v407 = vshrl.u32 %v382, 16
      %v409 = vor.u32 %v407, %v405
      %v411 = vshll.u32 %v383, 16
      %v413 = vrot.slane %v411, 1
      %v414 = vsel %vm386, %v409, %v413
      %v415 = vshrl.u32 %v383, 16
      %v417 = vor.u32 %v415, %v413
      %v419 = vshll.u32 %v384, 16
      %v421 = vrot.slane %v419, 1
      %v422 = vsel %vm386, %v417, %v421
      %v423 = vshrl.u32 %v384, 16
      %v425 = vor.u32 %v423, %v421
      %v427 = vshll.u32 %v385, 16
      %v429 = vrot.slane %v427, 1
      %v430 = vsel %vm386, %v425, %v429
      %vm431 = vcmask 64512
      %v433 = vsel %vm431, %v398, 0
      %v436 = vsel %vm431, %v406, 0
      %v439 = vsel %vm431, %v414, 0
      %v442 = vsel %vm431, %v422, 0
      %v445 = vsel %vm431, %v430, 0
      %vm447 = vcmask 1043456
      %v449 = vsel %vm447, %v357, 0
      %451 = vmatpush.bf16.msra.mxu0 0
      %452 = vmatpush.bf16.msra.mxu0 0
      %453 = vmatpush.bf16.msra.mxu0 0
      %454 = vmatpush.bf16.msra.mxu0 0
      %455 = vmatpush.bf16.msra.mxu0 0
      %456 = vmatpush.bf16.msra.mxu0 0
      %457 = vmatpush.bf16.msra.mxu0 0
      %458 = vmatpush.bf16.msra.mxu0 %v449
      %459 = vmatmul.bf16.gmra.mxu0 %v433
      %v460 = vpop.f32.mrf.mxu0
      %v461 = vadd.f32 0.0, %v460
      %v462 = vpop.f32.mrf.mxu0
      %v463 = vadd.f32 0.0, %v462
      %464 = vmatmul.bf16.gmra.mxu0 %v436
      %v465 = vpop.f32.mrf.mxu0
      %v466 = vadd.f32 0.0, %v465
      %v467 = vpop.f32.mrf.mxu0
      %v468 = vadd.f32 0.0, %v467
      %469 = vmatmul.bf16.gmra.mxu0 %v439
      %v470 = vpop.f32.mrf.mxu0
      %v471 = vadd.f32 0.0, %v470
      %v472 = vpop.f32.mrf.mxu0
      %v473 = vadd.f32 0.0, %v472
      %474 = vmatmul.bf16.gmra.mxu0 %v442
      %v475 = vpop.f32.mrf.mxu0
      %v476 = vadd.f32 0.0, %v475
      %v477 = vpop.f32.mrf.mxu0
      %v478 = vadd.f32 0.0, %v477
      %479 = vmatmul.bf16.gmra.mxu0 %v445
      %v480 = vpop.f32.mrf.mxu0
      %v481 = vadd.f32 0.0, %v480
      %v482 = vpop.f32.mrf.mxu0
      %v483 = vadd.f32 0.0, %v482
      %484 = vdwg.mxu0
      %v485 = vsel %vm431, %v380, 0
      %v487 = vsel %vm431, %v381, 0
      %v489 = vsel %vm431, %v382, 0
      %v491 = vsel %vm431, %v383, 0
      %v493 = vsel %vm431, %v384, 0
      %v496 = vsel %vm447, %v354, 0
      %498 = vmatpush.bf16.msra.mxu0 0
      %499 = vmatpush.bf16.msra.mxu0 0
      %500 = vmatpush.bf16.msra.mxu0 0
      %501 = vmatpush.bf16.msra.mxu0 0
      %502 = vmatpush.bf16.msra.mxu0 0
      %503 = vmatpush.bf16.msra.mxu0 0
      %504 = vmatpush.bf16.msra.mxu0 0
      %505 = vmatpush.bf16.msra.mxu0 %v496
      %506 = vmatmul.bf16.gmra.mxu0 %v485
      %v507 = vpop.f32.mrf.mxu0
      %v508 = vadd.f32 %v461, %v507
      %v509 = vpop.f32.mrf.mxu0
      %v510 = vadd.f32 %v463, %v509
      %511 = vmatmul.bf16.gmra.mxu0 %v487
      %v512 = vpop.f32.mrf.mxu0
      %v513 = vadd.f32 %v466, %v512
      %v514 = vpop.f32.mrf.mxu0
      %v515 = vadd.f32 %v468, %v514
      %516 = vmatmul.bf16.gmra.mxu0 %v489
      %v517 = vpop.f32.mrf.mxu0
      %v518 = vadd.f32 %v471, %v517
      %v519 = vpop.f32.mrf.mxu0
      %v520 = vadd.f32 %v473, %v519
      %521 = vmatmul.bf16.gmra.mxu0 %v491
      %v522 = vpop.f32.mrf.mxu0
      %v523 = vadd.f32 %v476, %v522
      %v524 = vpop.f32.mrf.mxu0
      %v525 = vadd.f32 %v478, %v524
      %526 = vmatmul.bf16.gmra.mxu0 %v493
      %v527 = vpop.f32.mrf.mxu0
      %v528 = vadd.f32 %v481, %v527
      %v529 = vpop.f32.mrf.mxu0
      %v530 = vadd.f32 %v483, %v529
      %531 = vdwg.mxu0
      %v532 = vld [vmem:[%s311] sm:$0xe]
      %s533 = scalar_lea.vmem %s3, 8
      %v534 = vld [vmem:[%s533] sm:$0xf]
      %v536 = vunpack.c.l.b16 %v532
      %v537 = vpack.c.b16 %v370, %v536
      %vm538 = vcmask 1046528
      %v539 = vrot.slane %v537, 1
      %v540 = vrot.slane %v381, 1
      %v541 = vsel %vm538, %v539, %v540
      %v542 = vrot.slane %v382, 1
      %v543 = vsel %vm538, %v540, %v542
      %v544 = vrot.slane %v383, 1
      %v545 = vsel %vm538, %v542, %v544
      %v546 = vrot.slane %v384, 1
      %v547 = vsel %vm538, %v544, %v546
      %v548 = vrot.slane %v385, 1
      %v549 = vsel %vm538, %v546, %v548
      %v551 = vsel %vm431, %v541, 0
      %v554 = vsel %vm431, %v543, 0
      %v557 = vsel %vm431, %v545, 0
      %v560 = vsel %vm431, %v547, 0
      %v563 = vsel %vm431, %v549, 0
      %v566 = vsel %vm447, %v534, 0
      %568 = vmatpush.bf16.msra.mxu0 0
      %569 = vmatpush.bf16.msra.mxu0 0
      %570 = vmatpush.bf16.msra.mxu0 0
      %571 = vmatpush.bf16.msra.mxu0 0
      %572 = vmatpush.bf16.msra.mxu0 0
      %573 = vmatpush.bf16.msra.mxu0 0
      %574 = vmatpush.bf16.msra.mxu0 0
      %575 = vmatpush.bf16.msra.mxu0 %v566
      %576 = vmatmul.bf16.gmra.mxu0 %v551
      %v577 = vpop.f32.mrf.mxu0
      %v578 = vadd.f32 0.0, %v577
      %v579 = vpop.f32.mrf.mxu0
      %v580 = vadd.f32 0.0, %v579
      %581 = vmatmul.bf16.gmra.mxu0 %v554
      %v582 = vpop.f32.mrf.mxu0
      %v583 = vadd.f32 0.0, %v582
      %v584 = vpop.f32.mrf.mxu0
      %v585 = vadd.f32 0.0, %v584
      %586 = vmatmul.bf16.gmra.mxu0 %v557
      %v587 = vpop.f32.mrf.mxu0
      %v588 = vadd.f32 0.0, %v587
      %v589 = vpop.f32.mrf.mxu0
      %v590 = vadd.f32 0.0, %v589
      %591 = vmatmul.bf16.gmra.mxu0 %v560
      %v592 = vpop.f32.mrf.mxu0
      %v593 = vadd.f32 0.0, %v592
      %v594 = vpop.f32.mrf.mxu0
      %v595 = vadd.f32 0.0, %v594
      %596 = vmatmul.bf16.gmra.mxu0 %v563
      %v597 = vpop.f32.mrf.mxu0
      %v598 = vadd.f32 0.0, %v597
      %v599 = vpop.f32.mrf.mxu0
      %v600 = vadd.f32 0.0, %v599
      %601 = vdwg.mxu0
      %v602 = vadd.f32 %v508, %v578
      %v603 = vadd.f32 %v510, %v580
      %v604 = vadd.f32 %v513, %v583
      %v605 = vadd.f32 %v515, %v585
      %v606 = vadd.f32 %v518, %v588
      %v607 = vadd.f32 %v520, %v590
      %v608 = vadd.f32 %v523, %v593
      %v609 = vadd.f32 %v525, %v595
      %v610 = vadd.f32 %v528, %v598
      %v611 = vadd.f32 %v530, %v600
      %v612 = vld [vmem:[%s311 + $0x4] sm:$0xe]
      %v613 = vld [vmem:[%s311 + $0x8] sm:$0xf]
      %v614 = vld [vmem:[%s311 + $0xc] sm:$0xf]
      %v615 = vld [vmem:[%s311 + $0x10] sm:$0xf]
      %v616 = vld [vmem:[%s311 + $0x14] sm:$0xf]
      %v617 = vld [vmem:[%s311 + $0x18] sm:$0xf]
      %v618 = vld [vmem:[%s311 + $0x1c] sm:$0xf]
      %v619 = vld [vmem:[%s311 + $0x20] sm:$0xf]
      %v620 = vld [vmem:[%s311 + $0x24] sm:$0xf]
      %v621 = vld [vmem:[%s311 + $0x28] sm:$0xf]
      %v622 = vld [vmem:[%s311 + $0x2c] sm:$0x1]
      %s623 = scalar_lea.vmem %s3, 12
      %v624 = vld [vmem:[%s623] sm:$0xf]
      %v636 = vunpack.c.l.b16 %v612
      %v637 = vunpack.c.l.b16 %v613
      %v638 = vunpack.c.l.b16 %v614
      %v639 = vunpack.c.l.b16 %v615
      %v640 = vunpack.c.l.b16 %v616
      %v641 = vunpack.c.l.b16 %v617
      %v642 = vunpack.c.l.b16 %v618
      %v643 = vunpack.c.l.b16 %v619
      %v644 = vunpack.c.l.b16 %v620
      %v645 = vunpack.c.l.b16 %v621
      %v646 = vunpack.c.l.b16 %v622
      %v647 = vpack.c.b16 %v637, %v636
      %v648 = vpack.c.b16 %v639, %v638
      %v649 = vpack.c.b16 %v641, %v640
      %v650 = vpack.c.b16 %v643, %v642
      %v651 = vpack.c.b16 %v645, %v644
      %v652 = vpack.c.b16 %v646, %v646
      %v653 = vrot.slane %v647, 1
      %v654 = vrot.slane %v648, 1
      %v655 = vsel %vm538, %v653, %v654
      %v656 = vrot.slane %v649, 1
      %v657 = vsel %vm538, %v654, %v656
      %v658 = vrot.slane %v650, 1
      %v659 = vsel %vm538, %v656, %v658
      %v660 = vrot.slane %v651, 1
      %v661 = vsel %vm538, %v658, %v660
      %v662 = vrot.slane %v652, 1
      %v663 = vsel %vm538, %v660, %v662
      %v665 = vsel %vm431, %v655, 0
      %v668 = vsel %vm431, %v657, 0
      %v671 = vsel %vm431, %v659, 0
      %v674 = vsel %vm431, %v661, 0
      %v677 = vsel %vm431, %v663, 0
      %v680 = vsel %vm447, %v624, 0
      %682 = vmatpush.bf16.msra.mxu0 0
      %683 = vmatpush.bf16.msra.mxu0 0
      %684 = vmatpush.bf16.msra.mxu0 0
      %685 = vmatpush.bf16.msra.mxu0 0
      %686 = vmatpush.bf16.msra.mxu0 0
      %687 = vmatpush.bf16.msra.mxu0 0
      %688 = vmatpush.bf16.msra.mxu0 0
      %689 = vmatpush.bf16.msra.mxu0 %v680
      %690 = vmatmul.bf16.gmra.mxu0 %v665
      %v691 = vpop.f32.mrf.mxu0
      %v692 = vadd.f32 0.0, %v691
      %v693 = vpop.f32.mrf.mxu0
      %v694 = vadd.f32 0.0, %v693
      %695 = vmatmul.bf16.gmra.mxu0 %v668
      %v696 = vpop.f32.mrf.mxu0
      %v697 = vadd.f32 0.0, %v696
      %v698 = vpop.f32.mrf.mxu0
      %v699 = vadd.f32 0.0, %v698
      %700 = vmatmul.bf16.gmra.mxu0 %v671
      %v701 = vpop.f32.mrf.mxu0
      %v702 = vadd.f32 0.0, %v701
      %v703 = vpop.f32.mrf.mxu0
      %v704 = vadd.f32 0.0, %v703
      %705 = vmatmul.bf16.gmra.mxu0 %v674
      %v706 = vpop.f32.mrf.mxu0
      %v707 = vadd.f32 0.0, %v706
      %v708 = vpop.f32.mrf.mxu0
      %v709 = vadd.f32 0.0, %v708
      %710 = vmatmul.bf16.gmra.mxu0 %v677
      %v711 = vpop.f32.mrf.mxu0
      %v712 = vadd.f32 0.0, %v711
      %v713 = vpop.f32.mrf.mxu0
      %v714 = vadd.f32 0.0, %v713
      %715 = vdwg.mxu0
      %v716 = vadd.f32 %v602, %v692
      %v717 = vadd.f32 %v603, %v694
      %v718 = vadd.f32 %v604, %v697
      %v719 = vadd.f32 %v605, %v699
      %v720 = vadd.f32 %v606, %v702
      %v721 = vadd.f32 %v607, %v704
      %v722 = vadd.f32 %v608, %v707
      %v723 = vadd.f32 %v609, %v709
      %v724 = vadd.f32 %v610, %v712
      %v725 = vadd.f32 %v611, %v714
      %v726 = vld [vmem:[%s311 + $0x2c] sm:$0x3]
      %s727 = scalar_lea.vmem %s3, 16
      %v728 = vld [vmem:[%s727] sm:$0xf]
      %v730 = vunpack.c.l.b16 %v726
      %v731 = vpack.c.b16 %v730, %v730
      %vm732 = vsmask.f32 6400
      %v734 = vshrl.u32 %v647, 16
      %v736 = vrot.slane %v734, 1
      %v737 = vshll.u32 %v647, 16
      %v739 = vrot.slane %v737, 2
      %v740 = vor.u32 %v736, %v739
      %v742 = vshrl.u32 %v648, 16
      %v744 = vrot.slane %v742, 1
      %v745 = vshll.u32 %v648, 16
      %v747 = vrot.slane %v745, 2
      %v748 = vor.u32 %v744, %v747
      %v749 = vsel %vm732, %v740, %v748
      %v751 = vshrl.u32 %v649, 16
      %v753 = vrot.slane %v751, 1
      %v754 = vshll.u32 %v649, 16
      %v756 = vrot.slane %v754, 2
      %v757 = vor.u32 %v753, %v756
      %v758 = vsel %vm732, %v748, %v757
      %v760 = vshrl.u32 %v650, 16
      %v762 = vrot.slane %v760, 1
      %v763 = vshll.u32 %v650, 16
      %v765 = vrot.slane %v763, 2
      %v766 = vor.u32 %v762, %v765
      %v767 = vsel %vm732, %v757, %v766
      %v769 = vshrl.u32 %v651, 16
      %v771 = vrot.slane %v769, 1
      %v772 = vshll.u32 %v651, 16
      %v774 = vrot.slane %v772, 2
      %v775 = vor.u32 %v771, %v774
      %v776 = vsel %vm732, %v766, %v775
      %v778 = vshrl.u32 %v731, 16
      %v780 = vrot.slane %v778, 1
      %v781 = vshll.u32 %v731, 16
      %v783 = vrot.slane %v781, 2
      %v784 = vor.u32 %v780, %v783
      %v785 = vsel %vm732, %v775, %v784
      %v787 = vsel %vm431, %v749, 0
      %v790 = vsel %vm431, %v758, 0
      %v793 = vsel %vm431, %v767, 0
      %v796 = vsel %vm431, %v776, 0
      %v799 = vsel %vm431, %v785, 0
      %v802 = vsel %vm447, %v728, 0
      %804 = vmatpush.bf16.msra.mxu0 0
      %805 = vmatpush.bf16.msra.mxu0 0
      %806 = vmatpush.bf16.msra.mxu0 0
      %807 = vmatpush.bf16.msra.mxu0 0
      %808 = vmatpush.bf16.msra.mxu0 0
      %809 = vmatpush.bf16.msra.mxu0 0
      %810 = vmatpush.bf16.msra.mxu0 0
      %811 = vmatpush.bf16.msra.mxu0 %v802
      %812 = vmatmul.bf16.gmra.mxu0 %v787
      %v813 = vpop.f32.mrf.mxu0
      %v814 = vadd.f32 0.0, %v813
      %v815 = vpop.f32.mrf.mxu0
      %v816 = vadd.f32 0.0, %v815
      %817 = vmatmul.bf16.gmra.mxu0 %v790
      %v818 = vpop.f32.mrf.mxu0
      %v819 = vadd.f32 0.0, %v818
      %v820 = vpop.f32.mrf.mxu0
      %v821 = vadd.f32 0.0, %v820
      %822 = vmatmul.bf16.gmra.mxu0 %v793
      %v823 = vpop.f32.mrf.mxu0
      %v824 = vadd.f32 0.0, %v823
      %v825 = vpop.f32.mrf.mxu0
      %v826 = vadd.f32 0.0, %v825
      %827 = vmatmul.bf16.gmra.mxu0 %v796
      %v828 = vpop.f32.mrf.mxu0
      %v829 = vadd.f32 0.0, %v828
      %v830 = vpop.f32.mrf.mxu0
      %v831 = vadd.f32 0.0, %v830
      %832 = vmatmul.bf16.gmra.mxu0 %v799
      %v833 = vpop.f32.mrf.mxu0
      %v834 = vadd.f32 0.0, %v833
      %v835 = vpop.f32.mrf.mxu0
      %v836 = vadd.f32 0.0, %v835
      %837 = vdwg.mxu0
      %v838 = vadd.f32 %v716, %v814
      %v839 = vadd.f32 %v717, %v816
      %v840 = vadd.f32 %v718, %v819
      %v841 = vadd.f32 %v719, %v821
      %v842 = vadd.f32 %v720, %v824
      %v843 = vadd.f32 %v721, %v826
      %v844 = vadd.f32 %v722, %v829
      %v845 = vadd.f32 %v723, %v831
      %v846 = vadd.f32 %v724, %v834
      %v847 = vadd.f32 %v725, %v836
      %v848 = vld [vmem:[%s311 + $0x4] sm:$0xc]
      %s849 = scalar_lea.vmem %s3, 20
      %v850 = vld [vmem:[%s849] sm:$0xf]
      %v852 = vunpack.c.l.b16 %v848
      %v853 = vpack.c.b16 %v637, %v852
      %vm854 = vcmask 1045504
      %v855 = vrot.slane %v853, 2
      %v856 = vrot.slane %v648, 2
      %v857 = vsel %vm854, %v855, %v856
      %v858 = vrot.slane %v649, 2
      %v859 = vsel %vm854, %v856, %v858
      %v860 = vrot.slane %v650, 2
      %v861 = vsel %vm854, %v858, %v860
      %v862 = vrot.slane %v651, 2
      %v863 = vsel %vm854, %v860, %v862
      %v864 = vrot.slane %v731, 2
      %v865 = vsel %vm854, %v862, %v864
      %v867 = vsel %vm431, %v857, 0
      %v870 = vsel %vm431, %v859, 0
      %v873 = vsel %vm431, %v861, 0
      %v876 = vsel %vm431, %v863, 0
      %v879 = vsel %vm431, %v865, 0
      %v882 = vsel %vm447, %v850, 0
      %884 = vmatpush.bf16.msra.mxu0 0
      %885 = vmatpush.bf16.msra.mxu0 0
      %886 = vmatpush.bf16.msra.mxu0 0
      %887 = vmatpush.bf16.msra.mxu0 0
      %888 = vmatpush.bf16.msra.mxu0 0
      %889 = vmatpush.bf16.msra.mxu0 0
      %890 = vmatpush.bf16.msra.mxu0 0
      %891 = vmatpush.bf16.msra.mxu0 %v882
      %892 = vmatmul.bf16.gmra.mxu0 %v867
      %v893 = vpop.f32.mrf.mxu0
      %v894 = vadd.f32 0.0, %v893
      %v895 = vpop.f32.mrf.mxu0
      %v896 = vadd.f32 0.0, %v895
      %897 = vmatmul.bf16.gmra.mxu0 %v870
      %v898 = vpop.f32.mrf.mxu0
      %v899 = vadd.f32 0.0, %v898
      %v900 = vpop.f32.mrf.mxu0
      %v901 = vadd.f32 0.0, %v900
      %902 = vmatmul.bf16.gmra.mxu0 %v873
      %v903 = vpop.f32.mrf.mxu0
      %v904 = vadd.f32 0.0, %v903
      %v905 = vpop.f32.mrf.mxu0
      %v906 = vadd.f32 0.0, %v905
      %907 = vmatmul.bf16.gmra.mxu0 %v876
      %v908 = vpop.f32.mrf.mxu0
      %v909 = vadd.f32 0.0, %v908
      %v910 = vpop.f32.mrf.mxu0
      %v911 = vadd.f32 0.0, %v910
      %912 = vmatmul.bf16.gmra.mxu0 %v879
      %v913 = vpop.f32.mrf.mxu0
      %v914 = vadd.f32 0.0, %v913
      %v915 = vpop.f32.mrf.mxu0
      %v916 = vadd.f32 0.0, %v915
      %917 = vdwg.mxu0
      %v918 = vadd.f32 %v838, %v894
      %v919 = vadd.f32 %v839, %v896
      %v920 = vadd.f32 %v840, %v899
      %v921 = vadd.f32 %v841, %v901
      %v922 = vadd.f32 %v842, %v904
      %v923 = vadd.f32 %v843, %v906
      %v924 = vadd.f32 %v844, %v909
      %v925 = vadd.f32 %v845, %v911
      %v926 = vadd.f32 %v846, %v914
      %v927 = vadd.f32 %v847, %v916
      %v928 = vld [vmem:[%s311 + $0x8] sm:$0xc]
      %v929 = vld [vmem:[%s311 + $0xc] sm:$0xf]
      %v930 = vld [vmem:[%s311 + $0x10] sm:$0xf]
      %v931 = vld [vmem:[%s311 + $0x14] sm:$0xf]
      %v932 = vld [vmem:[%s311 + $0x18] sm:$0xf]
      %v933 = vld [vmem:[%s311 + $0x1c] sm:$0xf]
      %v934 = vld [vmem:[%s311 + $0x20] sm:$0xf]
      %v935 = vld [vmem:[%s311 + $0x24] sm:$0xf]
      %v936 = vld [vmem:[%s311 + $0x28] sm:$0xf]
      %v937 = vld [vmem:[%s311 + $0x2c] sm:$0xf]
      %v938 = vld [vmem:[%s311 + $0x30] sm:$0x3]
      %s939 = scalar_lea.vmem %s3, 24
      %v940 = vld [vmem:[%s939] sm:$0xf]
      %v952 = vunpack.c.l.b16 %v928
      %v953 = vunpack.c.l.b16 %v929
      %v954 = vunpack.c.l.b16 %v930
      %v955 = vunpack.c.l.b16 %v931
      %v956 = vunpack.c.l.b16 %v932
      %v957 = vunpack.c.l.b16 %v933
      %v958 = vunpack.c.l.b16 %v934
      %v959 = vunpack.c.l.b16 %v935
      %v960 = vunpack.c.l.b16 %v936
      %v961 = vunpack.c.l.b16 %v937
      %v962 = vunpack.c.l.b16 %v938
      %v963 = vpack.c.b16 %v953, %v952
      %v964 = vpack.c.b16 %v955, %v954
      %v965 = vpack.c.b16 %v957, %v956
      %v966 = vpack.c.b16 %v959, %v958
      %v967 = vpack.c.b16 %v961, %v960
      %v968 = vpack.c.b16 %v962, %v962
      %v969 = vrot.slane %v963, 2
      %v970 = vrot.slane %v964, 2
      %v971 = vsel %vm854, %v969, %v970
      %v972 = vrot.slane %v965, 2
      %v973 = vsel %vm854, %v970, %v972
      %v974 = vrot.slane %v966, 2
      %v975 = vsel %vm854, %v972, %v974
      %v976 = vrot.slane %v967, 2
      %v977 = vsel %vm854, %v974, %v976
      %v978 = vrot.slane %v968, 2
      %v979 = vsel %vm854, %v976, %v978
      %v981 = vsel %vm431, %v971, 0
      %v984 = vsel %vm431, %v973, 0
      %v987 = vsel %vm431, %v975, 0
      %v990 = vsel %vm431, %v977, 0
      %v993 = vsel %vm431, %v979, 0
      %v996 = vsel %vm447, %v940, 0
      %998 = vmatpush.bf16.msra.mxu0 0
      %999 = vmatpush.bf16.msra.mxu0 0
      %1000 = vmatpush.bf16.msra.mxu0 0
      %1001 = vmatpush.bf16.msra.mxu0 0
      %1002 = vmatpush.bf16.msra.mxu0 0
      %1003 = vmatpush.bf16.msra.mxu0 0
      %1004 = vmatpush.bf16.msra.mxu0 0
      %1005 = vmatpush.bf16.msra.mxu0 %v996
      %1006 = vmatmul.bf16.gmra.mxu0 %v981
      %v1007 = vpop.f32.mrf.mxu0
      %v1008 = vadd.f32 0.0, %v1007
      %v1009 = vpop.f32.mrf.mxu0
      %v1010 = vadd.f32 0.0, %v1009
      %1011 = vmatmul.bf16.gmra.mxu0 %v984
      %v1012 = vpop.f32.mrf.mxu0
      %v1013 = vadd.f32 0.0, %v1012
      %v1014 = vpop.f32.mrf.mxu0
      %v1015 = vadd.f32 0.0, %v1014
      %1016 = vmatmul.bf16.gmra.mxu0 %v987
      %v1017 = vpop.f32.mrf.mxu0
      %v1018 = vadd.f32 0.0, %v1017
      %v1019 = vpop.f32.mrf.mxu0
      %v1020 = vadd.f32 0.0, %v1019
      %1021 = vmatmul.bf16.gmra.mxu0 %v990
      %v1022 = vpop.f32.mrf.mxu0
      %v1023 = vadd.f32 0.0, %v1022
      %v1024 = vpop.f32.mrf.mxu0
      %v1025 = vadd.f32 0.0, %v1024
      %1026 = vmatmul.bf16.gmra.mxu0 %v993
      %v1027 = vpop.f32.mrf.mxu0
      %v1028 = vadd.f32 0.0, %v1027
      %v1029 = vpop.f32.mrf.mxu0
      %v1030 = vadd.f32 0.0, %v1029
      %1031 = vdwg.mxu0
      %v1032 = vadd.f32 %v918, %v1008
      %v1033 = vadd.f32 %v919, %v1010
      %v1034 = vadd.f32 %v920, %v1013
      %v1035 = vadd.f32 %v921, %v1015
      %v1036 = vadd.f32 %v922, %v1018
      %v1037 = vadd.f32 %v923, %v1020
      %v1038 = vadd.f32 %v924, %v1023
      %v1039 = vadd.f32 %v925, %v1025
      %v1040 = vadd.f32 %v926, %v1028
      %v1041 = vadd.f32 %v927, %v1030
      %v1042 = vld [vmem:[%s311 + $0x30] sm:$0x7]
      %s1043 = scalar_lea.vmem %s3, 28
      %v1044 = vld [vmem:[%s1043] sm:$0xf]
      %v1046 = vunpack.c.l.b16 %v1042
      %v1047 = vpack.c.b16 %v1046, %v1046
      %vm1048 = vsmask.f32 5376
      %v1050 = vshrl.u32 %v963, 16
      %v1052 = vrot.slane %v1050, 2
      %v1053 = vshll.u32 %v963, 16
      %v1055 = vrot.slane %v1053, 3
      %v1056 = vor.u32 %v1052, %v1055
      %v1058 = vshrl.u32 %v964, 16
      %v1060 = vrot.slane %v1058, 2
      %v1061 = vshll.u32 %v964, 16
      %v1063 = vrot.slane %v1061, 3
      %v1064 = vor.u32 %v1060, %v1063
      %v1065 = vsel %vm1048, %v1056, %v1064
      %v1067 = vshrl.u32 %v965, 16
      %v1069 = vrot.slane %v1067, 2
      %v1070 = vshll.u32 %v965, 16
      %v1072 = vrot.slane %v1070, 3
      %v1073 = vor.u32 %v1069, %v1072
      %v1074 = vsel %vm1048, %v1064, %v1073
      %v1076 = vshrl.u32 %v966, 16
      %v1078 = vrot.slane %v1076, 2
      %v1079 = vshll.u32 %v966, 16
      %v1081 = vrot.slane %v1079, 3
      %v1082 = vor.u32 %v1078, %v1081
      %v1083 = vsel %vm1048, %v1073, %v1082
      %v1085 = vshrl.u32 %v967, 16
      %v1087 = vrot.slane %v1085, 2
      %v1088 = vshll.u32 %v967, 16
      %v1090 = vrot.slane %v1088, 3
      %v1091 = vor.u32 %v1087, %v1090
      %v1092 = vsel %vm1048, %v1082, %v1091
      %v1094 = vshrl.u32 %v1047, 16
      %v1096 = vrot.slane %v1094, 2
      %v1097 = vshll.u32 %v1047, 16
      %v1099 = vrot.slane %v1097, 3
      %v1100 = vor.u32 %v1096, %v1099
      %v1101 = vsel %vm1048, %v1091, %v1100
      %v1103 = vsel %vm431, %v1065, 0
      %v1106 = vsel %vm431, %v1074, 0
      %v1109 = vsel %vm431, %v1083, 0
      %v1112 = vsel %vm431, %v1092, 0
      %v1115 = vsel %vm431, %v1101, 0
      %v1118 = vsel %vm447, %v1044, 0
      %1120 = vmatpush.bf16.msra.mxu0 0
      %1121 = vmatpush.bf16.msra.mxu0 0
      %1122 = vmatpush.bf16.msra.mxu0 0
      %1123 = vmatpush.bf16.msra.mxu0 0
      %1124 = vmatpush.bf16.msra.mxu0 0
      %1125 = vmatpush.bf16.msra.mxu0 0
      %1126 = vmatpush.bf16.msra.mxu0 0
      %1127 = vmatpush.bf16.msra.mxu0 %v1118
      %1128 = vmatmul.bf16.gmra.mxu0 %v1103
      %v1129 = vpop.f32.mrf.mxu0
      %v1130 = vadd.f32 0.0, %v1129
      %v1131 = vpop.f32.mrf.mxu0
      %v1132 = vadd.f32 0.0, %v1131
      %1133 = vmatmul.bf16.gmra.mxu0 %v1106
      %v1134 = vpop.f32.mrf.mxu0
      %v1135 = vadd.f32 0.0, %v1134
      %v1136 = vpop.f32.mrf.mxu0
      %v1137 = vadd.f32 0.0, %v1136
      %1138 = vmatmul.bf16.gmra.mxu0 %v1109
      %v1139 = vpop.f32.mrf.mxu0
      %v1140 = vadd.f32 0.0, %v1139
      %v1141 = vpop.f32.mrf.mxu0
      %v1142 = vadd.f32 0.0, %v1141
      %1143 = vmatmul.bf16.gmra.mxu0 %v1112
      %v1144 = vpop.f32.mrf.mxu0
      %v1145 = vadd.f32 0.0, %v1144
      %v1146 = vpop.f32.mrf.mxu0
      %v1147 = vadd.f32 0.0, %v1146
      %1148 = vmatmul.bf16.gmra.mxu0 %v1115
      %v1149 = vpop.f32.mrf.mxu0
      %v1150 = vadd.f32 0.0, %v1149
      %v1151 = vpop.f32.mrf.mxu0
      %v1152 = vadd.f32 0.0, %v1151
      %1153 = vdwg.mxu0
      %v1154 = vadd.f32 %v1032, %v1130
      %v1155 = vadd.f32 %v1033, %v1132
      %v1156 = vadd.f32 %v1034, %v1135
      %v1157 = vadd.f32 %v1035, %v1137
      %v1158 = vadd.f32 %v1036, %v1140
      %v1159 = vadd.f32 %v1037, %v1142
      %v1160 = vadd.f32 %v1038, %v1145
      %v1161 = vadd.f32 %v1039, %v1147
      %v1162 = vadd.f32 %v1040, %v1150
      %v1163 = vadd.f32 %v1041, %v1152
      %v1164 = vld [vmem:[%s311 + $0x8] sm:$0x8]
      %s1165 = scalar_lea.vmem %s3, 32
      %v1166 = vld [vmem:[%s1165] sm:$0xf]
      %v1168 = vunpack.c.l.b16 %v1164
      %v1169 = vpack.c.b16 %v953, %v1168
      %vm1170 = vcmask 1044480
      %v1171 = vrot.slane %v1169, 3
      %v1172 = vrot.slane %v964, 3
      %v1173 = vsel %vm1170, %v1171, %v1172
      %v1174 = vrot.slane %v965, 3
      %v1175 = vsel %vm1170, %v1172, %v1174
      %v1176 = vrot.slane %v966, 3
      %v1177 = vsel %vm1170, %v1174, %v1176
      %v1178 = vrot.slane %v967, 3
      %v1179 = vsel %vm1170, %v1176, %v1178
      %v1180 = vrot.slane %v1047, 3
      %v1181 = vsel %vm1170, %v1178, %v1180
      %v1183 = vsel %vm431, %v1173, 0
      %v1186 = vsel %vm431, %v1175, 0
      %v1189 = vsel %vm431, %v1177, 0
      %v1192 = vsel %vm431, %v1179, 0
      %v1195 = vsel %vm431, %v1181, 0
      %v1198 = vsel %vm447, %v1166, 0
      %1200 = vmatpush.bf16.msra.mxu0 0
      %1201 = vmatpush.bf16.msra.mxu0 0
      %1202 = vmatpush.bf16.msra.mxu0 0
      %1203 = vmatpush.bf16.msra.mxu0 0
      %1204 = vmatpush.bf16.msra.mxu0 0
      %1205 = vmatpush.bf16.msra.mxu0 0
      %1206 = vmatpush.bf16.msra.mxu0 0
      %1207 = vmatpush.bf16.msra.mxu0 %v1198
      %1208 = vmatmul.bf16.gmra.mxu0 %v1183
      %v1209 = vpop.f32.mrf.mxu0
      %v1210 = vadd.f32 0.0, %v1209
      %v1211 = vpop.f32.mrf.mxu0
      %v1212 = vadd.f32 0.0, %v1211
      %1213 = vmatmul.bf16.gmra.mxu0 %v1186
      %v1214 = vpop.f32.mrf.mxu0
      %v1215 = vadd.f32 0.0, %v1214
      %v1216 = vpop.f32.mrf.mxu0
      %v1217 = vadd.f32 0.0, %v1216
      %1218 = vmatmul.bf16.gmra.mxu0 %v1189
      %v1219 = vpop.f32.mrf.mxu0
      %v1220 = vadd.f32 0.0, %v1219
      %v1221 = vpop.f32.mrf.mxu0
      %v1222 = vadd.f32 0.0, %v1221
      %1223 = vmatmul.bf16.gmra.mxu0 %v1192
      %v1224 = vpop.f32.mrf.mxu0
      %v1225 = vadd.f32 0.0, %v1224
      %v1226 = vpop.f32.mrf.mxu0
      %v1227 = vadd.f32 0.0, %v1226
      %1228 = vmatmul.bf16.gmra.mxu0 %v1195
      %v1229 = vpop.f32.mrf.mxu0
      %v1230 = vadd.f32 0.0, %v1229
      %v1231 = vpop.f32.mrf.mxu0
      %v1232 = vadd.f32 0.0, %v1231
      %1233 = vdwg.mxu0
      %v1234 = vadd.f32 %v1154, %v1210
      %v1235 = vadd.f32 %v1155, %v1212
      %v1236 = vadd.f32 %v1156, %v1215
      %v1237 = vadd.f32 %v1157, %v1217
      %v1238 = vadd.f32 %v1158, %v1220
      %v1239 = vadd.f32 %v1159, %v1222
      %v1240 = vadd.f32 %v1160, %v1225
      %v1241 = vadd.f32 %v1161, %v1227
      %v1242 = vadd.f32 %v1162, %v1230
      %v1243 = vadd.f32 %v1163, %v1232
      %v1244 = vld [vmem:[%s321] sm:$0xf]
      %v1245 = vld [vmem:[%s321 + $0x4] sm:$0xf]
      %v1246 = vld [vmem:[%s321 + $0x8] sm:$0xf]
      %v1247 = vld [vmem:[%s321 + $0xc] sm:$0xf]
      %v1248 = vld [vmem:[%s321 + $0x10] sm:$0xf]
      %v1249 = vld [vmem:[%s321 + $0x14] sm:$0xf]
      %v1250 = vld [vmem:[%s321 + $0x18] sm:$0xf]
      %v1251 = vld [vmem:[%s321 + $0x1c] sm:$0xf]
      %v1252 = vld [vmem:[%s321 + $0x20] sm:$0xf]
      %v1253 = vld [vmem:[%s321 + $0x24] sm:$0xf]
      %s1254 = scalar_lea.vmem %s3, 36
      %v1255 = vld [vmem:[%s1254] sm:$0xf]
      %v1266 = vunpack.c.l.b16 %v1244
      %v1267 = vunpack.c.l.b16 %v1245
      %v1268 = vunpack.c.l.b16 %v1246
      %v1269 = vunpack.c.l.b16 %v1247
      %v1270 = vunpack.c.l.b16 %v1248
      %v1271 = vunpack.c.l.b16 %v1249
      %v1272 = vunpack.c.l.b16 %v1250
      %v1273 = vunpack.c.l.b16 %v1251
      %v1274 = vunpack.c.l.b16 %v1252
      %v1275 = vunpack.c.l.b16 %v1253
      %v1276 = vpack.c.b16 %v1267, %v1266
      %v1277 = vpack.c.b16 %v1269, %v1268
      %v1278 = vpack.c.b16 %v1271, %v1270
      %v1279 = vpack.c.b16 %v1273, %v1272
      %v1280 = vpack.c.b16 %v1275, %v1274
      %v1282 = vsel %vm431, %v1276, 0
      %v1285 = vsel %vm431, %v1277, 0
      %v1288 = vsel %vm431, %v1278, 0
      %v1291 = vsel %vm431, %v1279, 0
      %v1294 = vsel %vm431, %v1280, 0
      %v1297 = vsel %vm447, %v1255, 0
      %1299 = vmatpush.bf16.msra.mxu0 0
      %1300 = vmatpush.bf16.msra.mxu0 0
      %1301 = vmatpush.bf16.msra.mxu0 0
      %1302 = vmatpush.bf16.msra.mxu0 0
      %1303 = vmatpush.bf16.msra.mxu0 0
      %1304 = vmatpush.bf16.msra.mxu0 0
      %1305 = vmatpush.bf16.msra.mxu0 0
      %1306 = vmatpush.bf16.msra.mxu0 %v1297
      %1307 = vmatmul.bf16.gmra.mxu0 %v1282
      %v1308 = vpop.f32.mrf.mxu0
      %v1309 = vadd.f32 0.0, %v1308
      %v1310 = vpop.f32.mrf.mxu0
      %v1311 = vadd.f32 0.0, %v1310
      %1312 = vmatmul.bf16.gmra.mxu0 %v1285
      %v1313 = vpop.f32.mrf.mxu0
      %v1314 = vadd.f32 0.0, %v1313
      %v1315 = vpop.f32.mrf.mxu0
      %v1316 = vadd.f32 0.0, %v1315
      %1317 = vmatmul.bf16.gmra.mxu0 %v1288
      %v1318 = vpop.f32.mrf.mxu0
      %v1319 = vadd.f32 0.0, %v1318
      %v1320 = vpop.f32.mrf.mxu0
      %v1321 = vadd.f32 0.0, %v1320
      %1322 = vmatmul.bf16.gmra.mxu0 %v1291
      %v1323 = vpop.f32.mrf.mxu0
      %v1324 = vadd.f32 0.0, %v1323
      %v1325 = vpop.f32.mrf.mxu0
      %v1326 = vadd.f32 0.0, %v1325
      %1327 = vmatmul.bf16.gmra.mxu0 %v1294
      %v1328 = vpop.f32.mrf.mxu0
      %v1329 = vadd.f32 0.0, %v1328
      %v1330 = vpop.f32.mrf.mxu0
      %v1331 = vadd.f32 0.0, %v1330
      %1332 = vdwg.mxu0
      %v1333 = vadd.f32 %v1234, %v1309
      %v1334 = vadd.f32 %v1235, %v1311
      %v1335 = vadd.f32 %v1236, %v1314
      %v1336 = vadd.f32 %v1237, %v1316
      %v1337 = vadd.f32 %v1238, %v1319
      %v1338 = vadd.f32 %v1239, %v1321
      %v1339 = vadd.f32 %v1240, %v1324
      %v1340 = vadd.f32 %v1241, %v1326
      %v1341 = vadd.f32 %v1242, %v1329
      %v1342 = vadd.f32 %v1243, %v1331
      %v1343 = vld [vmem:[%s321] sm:$0xf]
      %v1344 = vld [vmem:[%s321 + $0x4] sm:$0xf]
      %v1345 = vld [vmem:[%s321 + $0x8] sm:$0xf]
      %v1346 = vld [vmem:[%s321 + $0xc] sm:$0xf]
      %v1347 = vld [vmem:[%s321 + $0x10] sm:$0xf]
      %v1348 = vld [vmem:[%s321 + $0x14] sm:$0xf]
      %v1349 = vld [vmem:[%s321 + $0x18] sm:$0xf]
      %v1350 = vld [vmem:[%s321 + $0x1c] sm:$0xf]
      %v1351 = vld [vmem:[%s321 + $0x20] sm:$0xf]
      %v1352 = vld [vmem:[%s321 + $0x24] sm:$0xf]
      %v1353 = vld [vmem:[%s321 + $0x28] sm:$0x1]
      %s1354 = scalar_lea.vmem %s3, 40
      %v1355 = vld [vmem:[%s1354] sm:$0xf]
      %v1367 = vunpack.c.l.b16 %v1343
      %v1368 = vunpack.c.l.b16 %v1344
      %v1369 = vunpack.c.l.b16 %v1345
      %v1370 = vunpack.c.l.b16 %v1346
      %v1371 = vunpack.c.l.b16 %v1347
      %v1372 = vunpack.c.l.b16 %v1348
      %v1373 = vunpack.c.l.b16 %v1349
      %v1374 = vunpack.c.l.b16 %v1350
      %v1375 = vunpack.c.l.b16 %v1351
      %v1376 = vunpack.c.l.b16 %v1352
      %v1377 = vunpack.c.l.b16 %v1353
      %v1378 = vpack.c.b16 %v1368, %v1367
      %v1379 = vpack.c.b16 %v1370, %v1369
      %v1380 = vpack.c.b16 %v1372, %v1371
      %v1381 = vpack.c.b16 %v1374, %v1373
      %v1382 = vpack.c.b16 %v1376, %v1375
      %v1383 = vpack.c.b16 %v1377, %v1377
      %v1385 = vshrl.u32 %v1378, 16
      %v1387 = vshll.u32 %v1378, 16
      %v1389 = vrot.slane %v1387, 1
      %v1390 = vor.u32 %v1385, %v1389
      %v1392 = vshll.u32 %v1379, 16
      %v1394 = vrot.slane %v1392, 1
      %v1395 = vsel %vm386, %v1390, %v1394
      %v1396 = vshrl.u32 %v1379, 16
      %v1398 = vor.u32 %v1396, %v1394
      %v1400 = vshll.u32 %v1380, 16
      %v1402 = vrot.slane %v1400, 1
      %v1403 = vsel %vm386, %v1398, %v1402
      %v1404 = vshrl.u32 %v1380, 16
      %v1406 = vor.u32 %v1404, %v1402
      %v1408 = vshll.u32 %v1381, 16
      %v1410 = vrot.slane %v1408, 1
      %v1411 = vsel %vm386, %v1406, %v1410
      %v1412 = vshrl.u32 %v1381, 16
      %v1414 = vor.u32 %v1412, %v1410
      %v1416 = vshll.u32 %v1382, 16
      %v1418 = vrot.slane %v1416, 1
      %v1419 = vsel %vm386, %v1414, %v1418
      %v1420 = vshrl.u32 %v1382, 16
      %v1422 = vor.u32 %v1420, %v1418
      %v1424 = vshll.u32 %v1383, 16
      %v1426 = vrot.slane %v1424, 1
      %v1427 = vsel %vm386, %v1422, %v1426
      %v1429 = vsel %vm431, %v1395, 0
      %v1432 = vsel %vm431, %v1403, 0
      %v1435 = vsel %vm431, %v1411, 0
      %v1438 = vsel %vm431, %v1419, 0
      %v1441 = vsel %vm431, %v1427, 0
      %v1444 = vsel %vm447, %v1355, 0
      %1446 = vmatpush.bf16.msra.mxu0 0
      %1447 = vmatpush.bf16.msra.mxu0 0
      %1448 = vmatpush.bf16.msra.mxu0 0
      %1449 = vmatpush.bf16.msra.mxu0 0
      %1450 = vmatpush.bf16.msra.mxu0 0
      %1451 = vmatpush.bf16.msra.mxu0 0
      %1452 = vmatpush.bf16.msra.mxu0 0
      %1453 = vmatpush.bf16.msra.mxu0 %v1444
      %1454 = vmatmul.bf16.gmra.mxu0 %v1429
      %v1455 = vpop.f32.mrf.mxu0
      %v1456 = vadd.f32 0.0, %v1455
      %v1457 = vpop.f32.mrf.mxu0
      %v1458 = vadd.f32 0.0, %v1457
      %1459 = vmatmul.bf16.gmra.mxu0 %v1432
      %v1460 = vpop.f32.mrf.mxu0
      %v1461 = vadd.f32 0.0, %v1460
      %v1462 = vpop.f32.mrf.mxu0
      %v1463 = vadd.f32 0.0, %v1462
      %1464 = vmatmul.bf16.gmra.mxu0 %v1435
      %v1465 = vpop.f32.mrf.mxu0
      %v1466 = vadd.f32 0.0, %v1465
      %v1467 = vpop.f32.mrf.mxu0
      %v1468 = vadd.f32 0.0, %v1467
      %1469 = vmatmul.bf16.gmra.mxu0 %v1438
      %v1470 = vpop.f32.mrf.mxu0
      %v1471 = vadd.f32 0.0, %v1470
      %v1472 = vpop.f32.mrf.mxu0
      %v1473 = vadd.f32 0.0, %v1472
      %1474 = vmatmul.bf16.gmra.mxu0 %v1441
      %v1475 = vpop.f32.mrf.mxu0
      %v1476 = vadd.f32 0.0, %v1475
      %v1477 = vpop.f32.mrf.mxu0
      %v1478 = vadd.f32 0.0, %v1477
      %1479 = vdwg.mxu0
      %v1480 = vadd.f32 %v1333, %v1456
      %v1481 = vadd.f32 %v1334, %v1458
      %v1482 = vadd.f32 %v1335, %v1461
      %v1483 = vadd.f32 %v1336, %v1463
      %v1484 = vadd.f32 %v1337, %v1466
      %v1485 = vadd.f32 %v1338, %v1468
      %v1486 = vadd.f32 %v1339, %v1471
      %v1487 = vadd.f32 %v1340, %v1473
      %v1488 = vadd.f32 %v1341, %v1476
      %v1489 = vadd.f32 %v1342, %v1478
      %v1490 = vld [vmem:[%s321] sm:$0xe]
      %s1491 = scalar_lea.vmem %s3, 44
      %v1492 = vld [vmem:[%s1491] sm:$0xf]
      %v1494 = vunpack.c.l.b16 %v1490
      %v1495 = vpack.c.b16 %v1368, %v1494
      %v1496 = vrot.slane %v1495, 1
      %v1497 = vrot.slane %v1379, 1
      %v1498 = vsel %vm538, %v1496, %v1497
      %v1499 = vrot.slane %v1380, 1
      %v1500 = vsel %vm538, %v1497, %v1499
      %v1501 = vrot.slane %v1381, 1
      %v1502 = vsel %vm538, %v1499, %v1501
      %v1503 = vrot.slane %v1382, 1
      %v1504 = vsel %vm538, %v1501, %v1503
      %v1505 = vrot.slane %v1383, 1
      %v1506 = vsel %vm538, %v1503, %v1505
      %v1508 = vsel %vm431, %v1498, 0
      %v1511 = vsel %vm431, %v1500, 0
      %v1514 = vsel %vm431, %v1502, 0
      %v1517 = vsel %vm431, %v1504, 0
      %v1520 = vsel %vm431, %v1506, 0
      %v1523 = vsel %vm447, %v1492, 0
      %1525 = vmatpush.bf16.msra.mxu0 0
      %1526 = vmatpush.bf16.msra.mxu0 0
      %1527 = vmatpush.bf16.msra.mxu0 0
      %1528 = vmatpush.bf16.msra.mxu0 0
      %1529 = vmatpush.bf16.msra.mxu0 0
      %1530 = vmatpush.bf16.msra.mxu0 0
      %1531 = vmatpush.bf16.msra.mxu0 0
      %1532 = vmatpush.bf16.msra.mxu0 %v1523
      %1533 = vmatmul.bf16.gmra.mxu0 %v1508
      %v1534 = vpop.f32.mrf.mxu0
      %v1535 = vadd.f32 0.0, %v1534
      %v1536 = vpop.f32.mrf.mxu0
      %v1537 = vadd.f32 0.0, %v1536
      %1538 = vmatmul.bf16.gmra.mxu0 %v1511
      %v1539 = vpop.f32.mrf.mxu0
      %v1540 = vadd.f32 0.0, %v1539
      %v1541 = vpop.f32.mrf.mxu0
      %v1542 = vadd.f32 0.0, %v1541
      %1543 = vmatmul.bf16.gmra.mxu0 %v1514
      %v1544 = vpop.f32.mrf.mxu0
      %v1545 = vadd.f32 0.0, %v1544
      %v1546 = vpop.f32.mrf.mxu0
      %v1547 = vadd.f32 0.0, %v1546
      %1548 = vmatmul.bf16.gmra.mxu0 %v1517
      %v1549 = vpop.f32.mrf.mxu0
      %v1550 = vadd.f32 0.0, %v1549
      %v1551 = vpop.f32.mrf.mxu0
      %v1552 = vadd.f32 0.0, %v1551
      %1553 = vmatmul.bf16.gmra.mxu0 %v1520
      %v1554 = vpop.f32.mrf.mxu0
      %v1555 = vadd.f32 0.0, %v1554
      %v1556 = vpop.f32.mrf.mxu0
      %v1557 = vadd.f32 0.0, %v1556
      %1558 = vdwg.mxu0
      %v1559 = vadd.f32 %v1480, %v1535
      %v1560 = vadd.f32 %v1481, %v1537
      %v1561 = vadd.f32 %v1482, %v1540
      %v1562 = vadd.f32 %v1483, %v1542
      %v1563 = vadd.f32 %v1484, %v1545
      %v1564 = vadd.f32 %v1485, %v1547
      %v1565 = vadd.f32 %v1486, %v1550
      %v1566 = vadd.f32 %v1487, %v1552
      %v1567 = vadd.f32 %v1488, %v1555
      %v1568 = vadd.f32 %v1489, %v1557
      %v1569 = vld [vmem:[%s321 + $0x4] sm:$0xe]
      %v1570 = vld [vmem:[%s321 + $0x8] sm:$0xf]
      %v1571 = vld [vmem:[%s321 + $0xc] sm:$0xf]
      %v1572 = vld [vmem:[%s321 + $0x10] sm:$0xf]
      %v1573 = vld [vmem:[%s321 + $0x14] sm:$0xf]
      %v1574 = vld [vmem:[%s321 + $0x18] sm:$0xf]
      %v1575 = vld [vmem:[%s321 + $0x1c] sm:$0xf]
      %v1576 = vld [vmem:[%s321 + $0x20] sm:$0xf]
      %v1577 = vld [vmem:[%s321 + $0x24] sm:$0xf]
      %v1578 = vld [vmem:[%s321 + $0x28] sm:$0xf]
      %v1579 = vld [vmem:[%s321 + $0x2c] sm:$0x1]
      %s1580 = scalar_lea.vmem %s3, 48
      %v1581 = vld [vmem:[%s1580] sm:$0xf]
      %v1593 = vunpack.c.l.b16 %v1569
      %v1594 = vunpack.c.l.b16 %v1570
      %v1595 = vunpack.c.l.b16 %v1571
      %v1596 = vunpack.c.l.b16 %v1572
      %v1597 = vunpack.c.l.b16 %v1573
      %v1598 = vunpack.c.l.b16 %v1574
      %v1599 = vunpack.c.l.b16 %v1575
      %v1600 = vunpack.c.l.b16 %v1576
      %v1601 = vunpack.c.l.b16 %v1577
      %v1602 = vunpack.c.l.b16 %v1578
      %v1603 = vunpack.c.l.b16 %v1579
      %v1604 = vpack.c.b16 %v1594, %v1593
      %v1605 = vpack.c.b16 %v1596, %v1595
      %v1606 = vpack.c.b16 %v1598, %v1597
      %v1607 = vpack.c.b16 %v1600, %v1599
      %v1608 = vpack.c.b16 %v1602, %v1601
      %v1609 = vpack.c.b16 %v1603, %v1603
      %v1610 = vrot.slane %v1604, 1
      %v1611 = vrot.slane %v1605, 1
      %v1612 = vsel %vm538, %v1610, %v1611
      %v1613 = vrot.slane %v1606, 1
      %v1614 = vsel %vm538, %v1611, %v1613
      %v1615 = vrot.slane %v1607, 1
      %v1616 = vsel %vm538, %v1613, %v1615
      %v1617 = vrot.slane %v1608, 1
      %v1618 = vsel %vm538, %v1615, %v1617
      %v1619 = vrot.slane %v1609, 1
      %v1620 = vsel %vm538, %v1617, %v1619
      %v1622 = vsel %vm431, %v1612, 0
      %v1625 = vsel %vm431, %v1614, 0
      %v1628 = vsel %vm431, %v1616, 0
      %v1631 = vsel %vm431, %v1618, 0
      %v1634 = vsel %vm431, %v1620, 0
      %v1637 = vsel %vm447, %v1581, 0
      %1639 = vmatpush.bf16.msra.mxu0 0
      %1640 = vmatpush.bf16.msra.mxu0 0
      %1641 = vmatpush.bf16.msra.mxu0 0
      %1642 = vmatpush.bf16.msra.mxu0 0
      %1643 = vmatpush.bf16.msra.mxu0 0
      %1644 = vmatpush.bf16.msra.mxu0 0
      %1645 = vmatpush.bf16.msra.mxu0 0
      %1646 = vmatpush.bf16.msra.mxu0 %v1637
      %1647 = vmatmul.bf16.gmra.mxu0 %v1622
      %v1648 = vpop.f32.mrf.mxu0
      %v1649 = vadd.f32 0.0, %v1648
      %v1650 = vpop.f32.mrf.mxu0
      %v1651 = vadd.f32 0.0, %v1650
      %1652 = vmatmul.bf16.gmra.mxu0 %v1625
      %v1653 = vpop.f32.mrf.mxu0
      %v1654 = vadd.f32 0.0, %v1653
      %v1655 = vpop.f32.mrf.mxu0
      %v1656 = vadd.f32 0.0, %v1655
      %1657 = vmatmul.bf16.gmra.mxu0 %v1628
      %v1658 = vpop.f32.mrf.mxu0
      %v1659 = vadd.f32 0.0, %v1658
      %v1660 = vpop.f32.mrf.mxu0
      %v1661 = vadd.f32 0.0, %v1660
      %1662 = vmatmul.bf16.gmra.mxu0 %v1631
      %v1663 = vpop.f32.mrf.mxu0
      %v1664 = vadd.f32 0.0, %v1663
      %v1665 = vpop.f32.mrf.mxu0
      %v1666 = vadd.f32 0.0, %v1665
      %1667 = vmatmul.bf16.gmra.mxu0 %v1634
      %v1668 = vpop.f32.mrf.mxu0
      %v1669 = vadd.f32 0.0, %v1668
      %v1670 = vpop.f32.mrf.mxu0
      %v1671 = vadd.f32 0.0, %v1670
      %1672 = vdwg.mxu0
      %v1673 = vadd.f32 %v1559, %v1649
      %v1674 = vadd.f32 %v1560, %v1651
      %v1675 = vadd.f32 %v1561, %v1654
      %v1676 = vadd.f32 %v1562, %v1656
      %v1677 = vadd.f32 %v1563, %v1659
      %v1678 = vadd.f32 %v1564, %v1661
      %v1679 = vadd.f32 %v1565, %v1664
      %v1680 = vadd.f32 %v1566, %v1666
      %v1681 = vadd.f32 %v1567, %v1669
      %v1682 = vadd.f32 %v1568, %v1671
      %v1683 = vld [vmem:[%s321 + $0x2c] sm:$0x3]
      %s1684 = scalar_lea.vmem %s3, 52
      %v1685 = vld [vmem:[%s1684] sm:$0xf]
      %v1687 = vunpack.c.l.b16 %v1683
      %v1688 = vpack.c.b16 %v1687, %v1687
      %v1690 = vshrl.u32 %v1604, 16
      %v1692 = vrot.slane %v1690, 1
      %v1693 = vshll.u32 %v1604, 16
      %v1695 = vrot.slane %v1693, 2
      %v1696 = vor.u32 %v1692, %v1695
      %v1698 = vshrl.u32 %v1605, 16
      %v1700 = vrot.slane %v1698, 1
      %v1701 = vshll.u32 %v1605, 16
      %v1703 = vrot.slane %v1701, 2
      %v1704 = vor.u32 %v1700, %v1703
      %v1705 = vsel %vm732, %v1696, %v1704
      %v1707 = vshrl.u32 %v1606, 16
      %v1709 = vrot.slane %v1707, 1
      %v1710 = vshll.u32 %v1606, 16
      %v1712 = vrot.slane %v1710, 2
      %v1713 = vor.u32 %v1709, %v1712
      %v1714 = vsel %vm732, %v1704, %v1713
      %v1716 = vshrl.u32 %v1607, 16
      %v1718 = vrot.slane %v1716, 1
      %v1719 = vshll.u32 %v1607, 16
      %v1721 = vrot.slane %v1719, 2
      %v1722 = vor.u32 %v1718, %v1721
      %v1723 = vsel %vm732, %v1713, %v1722
      %v1725 = vshrl.u32 %v1608, 16
      %v1727 = vrot.slane %v1725, 1
      %v1728 = vshll.u32 %v1608, 16
      %v1730 = vrot.slane %v1728, 2
      %v1731 = vor.u32 %v1727, %v1730
      %v1732 = vsel %vm732, %v1722, %v1731
      %v1734 = vshrl.u32 %v1688, 16
      %v1736 = vrot.slane %v1734, 1
      %v1737 = vshll.u32 %v1688, 16
      %v1739 = vrot.slane %v1737, 2
      %v1740 = vor.u32 %v1736, %v1739
      %v1741 = vsel %vm732, %v1731, %v1740
      %v1743 = vsel %vm431, %v1705, 0
      %v1746 = vsel %vm431, %v1714, 0
      %v1749 = vsel %vm431, %v1723, 0
      %v1752 = vsel %vm431, %v1732, 0
      %v1755 = vsel %vm431, %v1741, 0
      %v1758 = vsel %vm447, %v1685, 0
      %1760 = vmatpush.bf16.msra.mxu0 0
      %1761 = vmatpush.bf16.msra.mxu0 0
      %1762 = vmatpush.bf16.msra.mxu0 0
      %1763 = vmatpush.bf16.msra.mxu0 0
      %1764 = vmatpush.bf16.msra.mxu0 0
      %1765 = vmatpush.bf16.msra.mxu0 0
      %1766 = vmatpush.bf16.msra.mxu0 0
      %1767 = vmatpush.bf16.msra.mxu0 %v1758
      %1768 = vmatmul.bf16.gmra.mxu0 %v1743
      %v1769 = vpop.f32.mrf.mxu0
      %v1770 = vadd.f32 0.0, %v1769
      %v1771 = vpop.f32.mrf.mxu0
      %v1772 = vadd.f32 0.0, %v1771
      %1773 = vmatmul.bf16.gmra.mxu0 %v1746
      %v1774 = vpop.f32.mrf.mxu0
      %v1775 = vadd.f32 0.0, %v1774
      %v1776 = vpop.f32.mrf.mxu0
      %v1777 = vadd.f32 0.0, %v1776
      %1778 = vmatmul.bf16.gmra.mxu0 %v1749
      %v1779 = vpop.f32.mrf.mxu0
      %v1780 = vadd.f32 0.0, %v1779
      %v1781 = vpop.f32.mrf.mxu0
      %v1782 = vadd.f32 0.0, %v1781
      %1783 = vmatmul.bf16.gmra.mxu0 %v1752
      %v1784 = vpop.f32.mrf.mxu0
      %v1785 = vadd.f32 0.0, %v1784
      %v1786 = vpop.f32.mrf.mxu0
      %v1787 = vadd.f32 0.0, %v1786
      %1788 = vmatmul.bf16.gmra.mxu0 %v1755
      %v1789 = vpop.f32.mrf.mxu0
      %v1790 = vadd.f32 0.0, %v1789
      %v1791 = vpop.f32.mrf.mxu0
      %v1792 = vadd.f32 0.0, %v1791
      %1793 = vdwg.mxu0
      %v1794 = vadd.f32 %v1673, %v1770
      %v1795 = vadd.f32 %v1674, %v1772
      %v1796 = vadd.f32 %v1675, %v1775
      %v1797 = vadd.f32 %v1676, %v1777
      %v1798 = vadd.f32 %v1677, %v1780
      %v1799 = vadd.f32 %v1678, %v1782
      %v1800 = vadd.f32 %v1679, %v1785
      %v1801 = vadd.f32 %v1680, %v1787
      %v1802 = vadd.f32 %v1681, %v1790
      %v1803 = vadd.f32 %v1682, %v1792
      %v1804 = vld [vmem:[%s321 + $0x4] sm:$0xc]
      %s1805 = scalar_lea.vmem %s3, 56
      %v1806 = vld [vmem:[%s1805] sm:$0xf]
      %v1808 = vunpack.c.l.b16 %v1804
      %v1809 = vpack.c.b16 %v1594, %v1808
      %v1810 = vrot.slane %v1809, 2
      %v1811 = vrot.slane %v1605, 2
      %v1812 = vsel %vm854, %v1810, %v1811
      %v1813 = vrot.slane %v1606, 2
      %v1814 = vsel %vm854, %v1811, %v1813
      %v1815 = vrot.slane %v1607, 2
      %v1816 = vsel %vm854, %v1813, %v1815
      %v1817 = vrot.slane %v1608, 2
      %v1818 = vsel %vm854, %v1815, %v1817
      %v1819 = vrot.slane %v1688, 2
      %v1820 = vsel %vm854, %v1817, %v1819
      %v1822 = vsel %vm431, %v1812, 0
      %v1825 = vsel %vm431, %v1814, 0
      %v1828 = vsel %vm431, %v1816, 0
      %v1831 = vsel %vm431, %v1818, 0
      %v1834 = vsel %vm431, %v1820, 0
      %v1837 = vsel %vm447, %v1806, 0
      %1839 = vmatpush.bf16.msra.mxu0 0
      %1840 = vmatpush.bf16.msra.mxu0 0
      %1841 = vmatpush.bf16.msra.mxu0 0
      %1842 = vmatpush.bf16.msra.mxu0 0
      %1843 = vmatpush.bf16.msra.mxu0 0
      %1844 = vmatpush.bf16.msra.mxu0 0
      %1845 = vmatpush.bf16.msra.mxu0 0
      %1846 = vmatpush.bf16.msra.mxu0 %v1837
      %1847 = vmatmul.bf16.gmra.mxu0 %v1822
      %v1848 = vpop.f32.mrf.mxu0
      %v1849 = vadd.f32 0.0, %v1848
      %v1850 = vpop.f32.mrf.mxu0
      %v1851 = vadd.f32 0.0, %v1850
      %1852 = vmatmul.bf16.gmra.mxu0 %v1825
      %v1853 = vpop.f32.mrf.mxu0
      %v1854 = vadd.f32 0.0, %v1853
      %v1855 = vpop.f32.mrf.mxu0
      %v1856 = vadd.f32 0.0, %v1855
      %1857 = vmatmul.bf16.gmra.mxu0 %v1828
      %v1858 = vpop.f32.mrf.mxu0
      %v1859 = vadd.f32 0.0, %v1858
      %v1860 = vpop.f32.mrf.mxu0
      %v1861 = vadd.f32 0.0, %v1860
      %1862 = vmatmul.bf16.gmra.mxu0 %v1831
      %v1863 = vpop.f32.mrf.mxu0
      %v1864 = vadd.f32 0.0, %v1863
      %v1865 = vpop.f32.mrf.mxu0
      %v1866 = vadd.f32 0.0, %v1865
      %1867 = vmatmul.bf16.gmra.mxu0 %v1834
      %v1868 = vpop.f32.mrf.mxu0
      %v1869 = vadd.f32 0.0, %v1868
      %v1870 = vpop.f32.mrf.mxu0
      %v1871 = vadd.f32 0.0, %v1870
      %1872 = vdwg.mxu0
      %v1873 = vadd.f32 %v1794, %v1849
      %v1874 = vadd.f32 %v1795, %v1851
      %v1875 = vadd.f32 %v1796, %v1854
      %v1876 = vadd.f32 %v1797, %v1856
      %v1877 = vadd.f32 %v1798, %v1859
      %v1878 = vadd.f32 %v1799, %v1861
      %v1879 = vadd.f32 %v1800, %v1864
      %v1880 = vadd.f32 %v1801, %v1866
      %v1881 = vadd.f32 %v1802, %v1869
      %v1882 = vadd.f32 %v1803, %v1871
      %v1883 = vld [vmem:[%s321 + $0x8] sm:$0xc]
      %v1884 = vld [vmem:[%s321 + $0xc] sm:$0xf]
      %v1885 = vld [vmem:[%s321 + $0x10] sm:$0xf]
      %v1886 = vld [vmem:[%s321 + $0x14] sm:$0xf]
      %v1887 = vld [vmem:[%s321 + $0x18] sm:$0xf]
      %v1888 = vld [vmem:[%s321 + $0x1c] sm:$0xf]
      %v1889 = vld [vmem:[%s321 + $0x20] sm:$0xf]
      %v1890 = vld [vmem:[%s321 + $0x24] sm:$0xf]
      %v1891 = vld [vmem:[%s321 + $0x28] sm:$0xf]
      %v1892 = vld [vmem:[%s321 + $0x2c] sm:$0xf]
      %v1893 = vld [vmem:[%s321 + $0x30] sm:$0x3]
      %s1894 = scalar_lea.vmem %s3, 60
      %v1895 = vld [vmem:[%s1894] sm:$0xf]
      %v1907 = vunpack.c.l.b16 %v1883
      %v1908 = vunpack.c.l.b16 %v1884
      %v1909 = vunpack.c.l.b16 %v1885
      %v1910 = vunpack.c.l.b16 %v1886
      %v1911 = vunpack.c.l.b16 %v1887
      %v1912 = vunpack.c.l.b16 %v1888
      %v1913 = vunpack.c.l.b16 %v1889
      %v1914 = vunpack.c.l.b16 %v1890
      %v1915 = vunpack.c.l.b16 %v1891
      %v1916 = vunpack.c.l.b16 %v1892
      %v1917 = vunpack.c.l.b16 %v1893
      %v1918 = vpack.c.b16 %v1908, %v1907
      %v1919 = vpack.c.b16 %v1910, %v1909
      %v1920 = vpack.c.b16 %v1912, %v1911
      %v1921 = vpack.c.b16 %v1914, %v1913
      %v1922 = vpack.c.b16 %v1916, %v1915
      %v1923 = vpack.c.b16 %v1917, %v1917
      %v1924 = vrot.slane %v1918, 2
      %v1925 = vrot.slane %v1919, 2
      %v1926 = vsel %vm854, %v1924, %v1925
      %v1927 = vrot.slane %v1920, 2
      %v1928 = vsel %vm854, %v1925, %v1927
      %v1929 = vrot.slane %v1921, 2
      %v1930 = vsel %vm854, %v1927, %v1929
      %v1931 = vrot.slane %v1922, 2
      %v1932 = vsel %vm854, %v1929, %v1931
      %v1933 = vrot.slane %v1923, 2
      %v1934 = vsel %vm854, %v1931, %v1933
      %v1936 = vsel %vm431, %v1926, 0
      %v1939 = vsel %vm431, %v1928, 0
      %v1942 = vsel %vm431, %v1930, 0
      %v1945 = vsel %vm431, %v1932, 0
      %v1948 = vsel %vm431, %v1934, 0
      %v1951 = vsel %vm447, %v1895, 0
      %1953 = vmatpush.bf16.msra.mxu0 0
      %1954 = vmatpush.bf16.msra.mxu0 0
      %1955 = vmatpush.bf16.msra.mxu0 0
      %1956 = vmatpush.bf16.msra.mxu0 0
      %1957 = vmatpush.bf16.msra.mxu0 0
      %1958 = vmatpush.bf16.msra.mxu0 0
      %1959 = vmatpush.bf16.msra.mxu0 0
      %1960 = vmatpush.bf16.msra.mxu0 %v1951
      %1961 = vmatmul.bf16.gmra.mxu0 %v1936
      %v1962 = vpop.f32.mrf.mxu0
      %v1963 = vadd.f32 0.0, %v1962
      %v1964 = vpop.f32.mrf.mxu0
      %v1965 = vadd.f32 0.0, %v1964
      %1966 = vmatmul.bf16.gmra.mxu0 %v1939
      %v1967 = vpop.f32.mrf.mxu0
      %v1968 = vadd.f32 0.0, %v1967
      %v1969 = vpop.f32.mrf.mxu0
      %v1970 = vadd.f32 0.0, %v1969
      %1971 = vmatmul.bf16.gmra.mxu0 %v1942
      %v1972 = vpop.f32.mrf.mxu0
      %v1973 = vadd.f32 0.0, %v1972
      %v1974 = vpop.f32.mrf.mxu0
      %v1975 = vadd.f32 0.0, %v1974
      %1976 = vmatmul.bf16.gmra.mxu0 %v1945
      %v1977 = vpop.f32.mrf.mxu0
      %v1978 = vadd.f32 0.0, %v1977
      %v1979 = vpop.f32.mrf.mxu0
      %v1980 = vadd.f32 0.0, %v1979
      %1981 = vmatmul.bf16.gmra.mxu0 %v1948
      %v1982 = vpop.f32.mrf.mxu0
      %v1983 = vadd.f32 0.0, %v1982
      %v1984 = vpop.f32.mrf.mxu0
      %v1985 = vadd.f32 0.0, %v1984
      %1986 = vdwg.mxu0
      %v1987 = vadd.f32 %v1873, %v1963
      %v1988 = vadd.f32 %v1874, %v1965
      %v1989 = vadd.f32 %v1875, %v1968
      %v1990 = vadd.f32 %v1876, %v1970
      %v1991 = vadd.f32 %v1877, %v1973
      %v1992 = vadd.f32 %v1878, %v1975
      %v1993 = vadd.f32 %v1879, %v1978
      %v1994 = vadd.f32 %v1880, %v1980
      %v1995 = vadd.f32 %v1881, %v1983
      %v1996 = vadd.f32 %v1882, %v1985
      %v1997 = vld [vmem:[%s321 + $0x30] sm:$0x7]
      %s1998 = scalar_lea.vmem %s3, 64
      %v1999 = vld [vmem:[%s1998] sm:$0xf]
      %v2001 = vunpack.c.l.b16 %v1997
      %v2002 = vpack.c.b16 %v2001, %v2001
      %v2004 = vshrl.u32 %v1918, 16
      %v2006 = vrot.slane %v2004, 2
      %v2007 = vshll.u32 %v1918, 16
      %v2009 = vrot.slane %v2007, 3
      %v2010 = vor.u32 %v2006, %v2009
      %v2012 = vshrl.u32 %v1919, 16
      %v2014 = vrot.slane %v2012, 2
      %v2015 = vshll.u32 %v1919, 16
      %v2017 = vrot.slane %v2015, 3
      %v2018 = vor.u32 %v2014, %v2017
      %v2019 = vsel %vm1048, %v2010, %v2018
      %v2021 = vshrl.u32 %v1920, 16
      %v2023 = vrot.slane %v2021, 2
      %v2024 = vshll.u32 %v1920, 16
      %v2026 = vrot.slane %v2024, 3
      %v2027 = vor.u32 %v2023, %v2026
      %v2028 = vsel %vm1048, %v2018, %v2027
      %v2030 = vshrl.u32 %v1921, 16
      %v2032 = vrot.slane %v2030, 2
      %v2033 = vshll.u32 %v1921, 16
      %v2035 = vrot.slane %v2033, 3
      %v2036 = vor.u32 %v2032, %v2035
      %v2037 = vsel %vm1048, %v2027, %v2036
      %v2039 = vshrl.u32 %v1922, 16
      %v2041 = vrot.slane %v2039, 2
      %v2042 = vshll.u32 %v1922, 16
      %v2044 = vrot.slane %v2042, 3
      %v2045 = vor.u32 %v2041, %v2044
      %v2046 = vsel %vm1048, %v2036, %v2045
      %v2048 = vshrl.u32 %v2002, 16
      %v2050 = vrot.slane %v2048, 2
      %v2051 = vshll.u32 %v2002, 16
      %v2053 = vrot.slane %v2051, 3
      %v2054 = vor.u32 %v2050, %v2053
      %v2055 = vsel %vm1048, %v2045, %v2054
      %v2057 = vsel %vm431, %v2019, 0
      %v2060 = vsel %vm431, %v2028, 0
      %v2063 = vsel %vm431, %v2037, 0
      %v2066 = vsel %vm431, %v2046, 0
      %v2069 = vsel %vm431, %v2055, 0
      %v2072 = vsel %vm447, %v1999, 0
      %2074 = vmatpush.bf16.msra.mxu0 0
      %2075 = vmatpush.bf16.msra.mxu0 0
      %2076 = vmatpush.bf16.msra.mxu0 0
      %2077 = vmatpush.bf16.msra.mxu0 0
      %2078 = vmatpush.bf16.msra.mxu0 0
      %2079 = vmatpush.bf16.msra.mxu0 0
      %2080 = vmatpush.bf16.msra.mxu0 0
      %2081 = vmatpush.bf16.msra.mxu0 %v2072
      %2082 = vmatmul.bf16.gmra.mxu0 %v2057
      %v2083 = vpop.f32.mrf.mxu0
      %v2084 = vadd.f32 0.0, %v2083
      %v2085 = vpop.f32.mrf.mxu0
      %v2086 = vadd.f32 0.0, %v2085
      %2087 = vmatmul.bf16.gmra.mxu0 %v2060
      %v2088 = vpop.f32.mrf.mxu0
      %v2089 = vadd.f32 0.0, %v2088
      %v2090 = vpop.f32.mrf.mxu0
      %v2091 = vadd.f32 0.0, %v2090
      %2092 = vmatmul.bf16.gmra.mxu0 %v2063
      %v2093 = vpop.f32.mrf.mxu0
      %v2094 = vadd.f32 0.0, %v2093
      %v2095 = vpop.f32.mrf.mxu0
      %v2096 = vadd.f32 0.0, %v2095
      %2097 = vmatmul.bf16.gmra.mxu0 %v2066
      %v2098 = vpop.f32.mrf.mxu0
      %v2099 = vadd.f32 0.0, %v2098
      %v2100 = vpop.f32.mrf.mxu0
      %v2101 = vadd.f32 0.0, %v2100
      %2102 = vmatmul.bf16.gmra.mxu0 %v2069
      %v2103 = vpop.f32.mrf.mxu0
      %v2104 = vadd.f32 0.0, %v2103
      %v2105 = vpop.f32.mrf.mxu0
      %v2106 = vadd.f32 0.0, %v2105
      %2107 = vdwg.mxu0
      %v2108 = vadd.f32 %v1987, %v2084
      %v2109 = vadd.f32 %v1988, %v2086
      %v2110 = vadd.f32 %v1989, %v2089
      %v2111 = vadd.f32 %v1990, %v2091
      %v2112 = vadd.f32 %v1991, %v2094
      %v2113 = vadd.f32 %v1992, %v2096
      %v2114 = vadd.f32 %v1993, %v2099
      %v2115 = vadd.f32 %v1994, %v2101
      %v2116 = vadd.f32 %v1995, %v2104
      %v2117 = vadd.f32 %v1996, %v2106
      %v2118 = vld [vmem:[%s321 + $0x8] sm:$0x8]
      %s2119 = scalar_lea.vmem %s3, 68
      %v2120 = vld [vmem:[%s2119] sm:$0xf]
      %v2122 = vunpack.c.l.b16 %v2118
      %v2123 = vpack.c.b16 %v1908, %v2122
      %v2124 = vrot.slane %v2123, 3
      %v2125 = vrot.slane %v1919, 3
      %v2126 = vsel %vm1170, %v2124, %v2125
      %v2127 = vrot.slane %v1920, 3
      %v2128 = vsel %vm1170, %v2125, %v2127
      %v2129 = vrot.slane %v1921, 3
      %v2130 = vsel %vm1170, %v2127, %v2129
      %v2131 = vrot.slane %v1922, 3
      %v2132 = vsel %vm1170, %v2129, %v2131
      %v2133 = vrot.slane %v2002, 3
      %v2134 = vsel %vm1170, %v2131, %v2133
      %v2136 = vsel %vm431, %v2126, 0
      %v2139 = vsel %vm431, %v2128, 0
      %v2142 = vsel %vm431, %v2130, 0
      %v2145 = vsel %vm431, %v2132, 0
      %v2148 = vsel %vm431, %v2134, 0
      %v2151 = vsel %vm447, %v2120, 0
      %2153 = vmatpush.bf16.msra.mxu0 0
      %2154 = vmatpush.bf16.msra.mxu0 0
      %2155 = vmatpush.bf16.msra.mxu0 0
      %2156 = vmatpush.bf16.msra.mxu0 0
      %2157 = vmatpush.bf16.msra.mxu0 0
      %2158 = vmatpush.bf16.msra.mxu0 0
      %2159 = vmatpush.bf16.msra.mxu0 0
      %2160 = vmatpush.bf16.msra.mxu0 %v2151
      %2161 = vmatmul.bf16.gmra.mxu0 %v2136
      %v2162 = vpop.f32.mrf.mxu0
      %v2163 = vadd.f32 0.0, %v2162
      %v2164 = vpop.f32.mrf.mxu0
      %v2165 = vadd.f32 0.0, %v2164
      %2166 = vmatmul.bf16.gmra.mxu0 %v2139
      %v2167 = vpop.f32.mrf.mxu0
      %v2168 = vadd.f32 0.0, %v2167
      %v2169 = vpop.f32.mrf.mxu0
      %v2170 = vadd.f32 0.0, %v2169
      %2171 = vmatmul.bf16.gmra.mxu0 %v2142
      %v2172 = vpop.f32.mrf.mxu0
      %v2173 = vadd.f32 0.0, %v2172
      %v2174 = vpop.f32.mrf.mxu0
      %v2175 = vadd.f32 0.0, %v2174
      %2176 = vmatmul.bf16.gmra.mxu0 %v2145
      %v2177 = vpop.f32.mrf.mxu0
      %v2178 = vadd.f32 0.0, %v2177
      %v2179 = vpop.f32.mrf.mxu0
      %v2180 = vadd.f32 0.0, %v2179
      %2181 = vmatmul.bf16.gmra.mxu0 %v2148
      %v2182 = vpop.f32.mrf.mxu0
      %v2183 = vadd.f32 0.0, %v2182
      %v2184 = vpop.f32.mrf.mxu0
      %v2185 = vadd.f32 0.0, %v2184
      %2186 = vdwg.mxu0
      %v2187 = vadd.f32 %v2108, %v2163
      %v2188 = vadd.f32 %v2109, %v2165
      %v2189 = vadd.f32 %v2110, %v2168
      %v2190 = vadd.f32 %v2111, %v2170
      %v2191 = vadd.f32 %v2112, %v2173
      %v2192 = vadd.f32 %v2113, %v2175
      %v2193 = vadd.f32 %v2114, %v2178
      %v2194 = vadd.f32 %v2115, %v2180
      %v2195 = vadd.f32 %v2116, %v2183
      %v2196 = vadd.f32 %v2117, %v2185
      %v2197 = vld [vmem:[%s332] sm:$0xf]
      %v2198 = vld [vmem:[%s332 + $0x4] sm:$0xf]
      %v2199 = vld [vmem:[%s332 + $0x8] sm:$0xf]
      %v2200 = vld [vmem:[%s332 + $0xc] sm:$0xf]
      %v2201 = vld [vmem:[%s332 + $0x10] sm:$0xf]
      %v2202 = vld [vmem:[%s332 + $0x14] sm:$0xf]
      %v2203 = vld [vmem:[%s332 + $0x18] sm:$0xf]
      %v2204 = vld [vmem:[%s332 + $0x1c] sm:$0xf]
      %v2205 = vld [vmem:[%s332 + $0x20] sm:$0xf]
      %v2206 = vld [vmem:[%s332 + $0x24] sm:$0xf]
      %s2207 = scalar_lea.vmem %s3, 72
      %v2208 = vld [vmem:[%s2207] sm:$0xf]
      %v2219 = vunpack.c.l.b16 %v2197
      %v2220 = vunpack.c.l.b16 %v2198
      %v2221 = vunpack.c.l.b16 %v2199
      %v2222 = vunpack.c.l.b16 %v2200
      %v2223 = vunpack.c.l.b16 %v2201
      %v2224 = vunpack.c.l.b16 %v2202
      %v2225 = vunpack.c.l.b16 %v2203
      %v2226 = vunpack.c.l.b16 %v2204
      %v2227 = vunpack.c.l.b16 %v2205
      %v2228 = vunpack.c.l.b16 %v2206
      %v2229 = vpack.c.b16 %v2220, %v2219
      %v2230 = vpack.c.b16 %v2222, %v2221
      %v2231 = vpack.c.b16 %v2224, %v2223
      %v2232 = vpack.c.b16 %v2226, %v2225
      %v2233 = vpack.c.b16 %v2228, %v2227
      %v2235 = vsel %vm431, %v2229, 0
      %v2238 = vsel %vm431, %v2230, 0
      %v2241 = vsel %vm431, %v2231, 0
      %v2244 = vsel %vm431, %v2232, 0
      %v2247 = vsel %vm431, %v2233, 0
      %v2250 = vsel %vm447, %v2208, 0
      %2252 = vmatpush.bf16.msra.mxu0 0
      %2253 = vmatpush.bf16.msra.mxu0 0
      %2254 = vmatpush.bf16.msra.mxu0 0
      %2255 = vmatpush.bf16.msra.mxu0 0
      %2256 = vmatpush.bf16.msra.mxu0 0
      %2257 = vmatpush.bf16.msra.mxu0 0
      %2258 = vmatpush.bf16.msra.mxu0 0
      %2259 = vmatpush.bf16.msra.mxu0 %v2250
      %2260 = vmatmul.bf16.gmra.mxu0 %v2235
      %v2261 = vpop.f32.mrf.mxu0
      %v2262 = vadd.f32 0.0, %v2261
      %v2263 = vpop.f32.mrf.mxu0
      %v2264 = vadd.f32 0.0, %v2263
      %2265 = vmatmul.bf16.gmra.mxu0 %v2238
      %v2266 = vpop.f32.mrf.mxu0
      %v2267 = vadd.f32 0.0, %v2266
      %v2268 = vpop.f32.mrf.mxu0
      %v2269 = vadd.f32 0.0, %v2268
      %2270 = vmatmul.bf16.gmra.mxu0 %v2241
      %v2271 = vpop.f32.mrf.mxu0
      %v2272 = vadd.f32 0.0, %v2271
      %v2273 = vpop.f32.mrf.mxu0
      %v2274 = vadd.f32 0.0, %v2273
      %2275 = vmatmul.bf16.gmra.mxu0 %v2244
      %v2276 = vpop.f32.mrf.mxu0
      %v2277 = vadd.f32 0.0, %v2276
      %v2278 = vpop.f32.mrf.mxu0
      %v2279 = vadd.f32 0.0, %v2278
      %2280 = vmatmul.bf16.gmra.mxu0 %v2247
      %v2281 = vpop.f32.mrf.mxu0
      %v2282 = vadd.f32 0.0, %v2281
      %v2283 = vpop.f32.mrf.mxu0
      %v2284 = vadd.f32 0.0, %v2283
      %2285 = vdwg.mxu0
      %v2286 = vadd.f32 %v2187, %v2262
      %v2287 = vadd.f32 %v2188, %v2264
      %v2288 = vadd.f32 %v2189, %v2267
      %v2289 = vadd.f32 %v2190, %v2269
      %v2290 = vadd.f32 %v2191, %v2272
      %v2291 = vadd.f32 %v2192, %v2274
      %v2292 = vadd.f32 %v2193, %v2277
      %v2293 = vadd.f32 %v2194, %v2279
      %v2294 = vadd.f32 %v2195, %v2282
      %v2295 = vadd.f32 %v2196, %v2284
      %v2296 = vld [vmem:[%s332] sm:$0xf]
      %v2297 = vld [vmem:[%s332 + $0x4] sm:$0xf]
      %v2298 = vld [vmem:[%s332 + $0x8] sm:$0xf]
      %v2299 = vld [vmem:[%s332 + $0xc] sm:$0xf]
      %v2300 = vld [vmem:[%s332 + $0x10] sm:$0xf]
      %v2301 = vld [vmem:[%s332 + $0x14] sm:$0xf]
      %v2302 = vld [vmem:[%s332 + $0x18] sm:$0xf]
      %v2303 = vld [vmem:[%s332 + $0x1c] sm:$0xf]
      %v2304 = vld [vmem:[%s332 + $0x20] sm:$0xf]
      %v2305 = vld [vmem:[%s332 + $0x24] sm:$0xf]
      %v2306 = vld [vmem:[%s332 + $0x28] sm:$0x1]
      %s2307 = scalar_lea.vmem %s3, 76
      %v2308 = vld [vmem:[%s2307] sm:$0xf]
      %v2320 = vunpack.c.l.b16 %v2296
      %v2321 = vunpack.c.l.b16 %v2297
      %v2322 = vunpack.c.l.b16 %v2298
      %v2323 = vunpack.c.l.b16 %v2299
      %v2324 = vunpack.c.l.b16 %v2300
      %v2325 = vunpack.c.l.b16 %v2301
      %v2326 = vunpack.c.l.b16 %v2302
      %v2327 = vunpack.c.l.b16 %v2303
      %v2328 = vunpack.c.l.b16 %v2304
      %v2329 = vunpack.c.l.b16 %v2305
      %v2330 = vunpack.c.l.b16 %v2306
      %v2331 = vpack.c.b16 %v2321, %v2320
      %v2332 = vpack.c.b16 %v2323, %v2322
      %v2333 = vpack.c.b16 %v2325, %v2324
      %v2334 = vpack.c.b16 %v2327, %v2326
      %v2335 = vpack.c.b16 %v2329, %v2328
      %v2336 = vpack.c.b16 %v2330, %v2330
      %v2338 = vshrl.u32 %v2331, 16
      %v2340 = vshll.u32 %v2331, 16
      %v2342 = vrot.slane %v2340, 1
      %v2343 = vor.u32 %v2338, %v2342
      %v2345 = vshll.u32 %v2332, 16
      %v2347 = vrot.slane %v2345, 1
      %v2348 = vsel %vm386, %v2343, %v2347
      %v2349 = vshrl.u32 %v2332, 16
      %v2351 = vor.u32 %v2349, %v2347
      %v2353 = vshll.u32 %v2333, 16
      %v2355 = vrot.slane %v2353, 1
      %v2356 = vsel %vm386, %v2351, %v2355
      %v2357 = vshrl.u32 %v2333, 16
      %v2359 = vor.u32 %v2357, %v2355
      %v2361 = vshll.u32 %v2334, 16
      %v2363 = vrot.slane %v2361, 1
      %v2364 = vsel %vm386, %v2359, %v2363
      %v2365 = vshrl.u32 %v2334, 16
      %v2367 = vor.u32 %v2365, %v2363
      %v2369 = vshll.u32 %v2335, 16
      %v2371 = vrot.slane %v2369, 1
      %v2372 = vsel %vm386, %v2367, %v2371
      %v2373 = vshrl.u32 %v2335, 16
      %v2375 = vor.u32 %v2373, %v2371
      %v2377 = vshll.u32 %v2336, 16
      %v2379 = vrot.slane %v2377, 1
      %v2380 = vsel %vm386, %v2375, %v2379
      %v2382 = vsel %vm431, %v2348, 0
      %v2385 = vsel %vm431, %v2356, 0
      %v2388 = vsel %vm431, %v2364, 0
      %v2391 = vsel %vm431, %v2372, 0
      %v2394 = vsel %vm431, %v2380, 0
      %v2397 = vsel %vm447, %v2308, 0
      %2399 = vmatpush.bf16.msra.mxu0 0
      %2400 = vmatpush.bf16.msra.mxu0 0
      %2401 = vmatpush.bf16.msra.mxu0 0
      %2402 = vmatpush.bf16.msra.mxu0 0
      %2403 = vmatpush.bf16.msra.mxu0 0
      %2404 = vmatpush.bf16.msra.mxu0 0
      %2405 = vmatpush.bf16.msra.mxu0 0
      %2406 = vmatpush.bf16.msra.mxu0 %v2397
      %2407 = vmatmul.bf16.gmra.mxu0 %v2382
      %v2408 = vpop.f32.mrf.mxu0
      %v2409 = vadd.f32 0.0, %v2408
      %v2410 = vpop.f32.mrf.mxu0
      %v2411 = vadd.f32 0.0, %v2410
      %2412 = vmatmul.bf16.gmra.mxu0 %v2385
      %v2413 = vpop.f32.mrf.mxu0
      %v2414 = vadd.f32 0.0, %v2413
      %v2415 = vpop.f32.mrf.mxu0
      %v2416 = vadd.f32 0.0, %v2415
      %2417 = vmatmul.bf16.gmra.mxu0 %v2388
      %v2418 = vpop.f32.mrf.mxu0
      %v2419 = vadd.f32 0.0, %v2418
      %v2420 = vpop.f32.mrf.mxu0
      %v2421 = vadd.f32 0.0, %v2420
      %2422 = vmatmul.bf16.gmra.mxu0 %v2391
      %v2423 = vpop.f32.mrf.mxu0
      %v2424 = vadd.f32 0.0, %v2423
      %v2425 = vpop.f32.mrf.mxu0
      %v2426 = vadd.f32 0.0, %v2425
      %2427 = vmatmul.bf16.gmra.mxu0 %v2394
      %v2428 = vpop.f32.mrf.mxu0
      %v2429 = vadd.f32 0.0, %v2428
      %v2430 = vpop.f32.mrf.mxu0
      %v2431 = vadd.f32 0.0, %v2430
      %2432 = vdwg.mxu0
      %v2433 = vadd.f32 %v2286, %v2409
      %v2434 = vadd.f32 %v2287, %v2411
      %v2435 = vadd.f32 %v2288, %v2414
      %v2436 = vadd.f32 %v2289, %v2416
      %v2437 = vadd.f32 %v2290, %v2419
      %v2438 = vadd.f32 %v2291, %v2421
      %v2439 = vadd.f32 %v2292, %v2424
      %v2440 = vadd.f32 %v2293, %v2426
      %v2441 = vadd.f32 %v2294, %v2429
      %v2442 = vadd.f32 %v2295, %v2431
      %v2443 = vld [vmem:[%s332] sm:$0xe]
      %s2444 = scalar_lea.vmem %s3, 80
      %v2445 = vld [vmem:[%s2444] sm:$0xf]
      %v2447 = vunpack.c.l.b16 %v2443
      %v2448 = vpack.c.b16 %v2321, %v2447
      %v2449 = vrot.slane %v2448, 1
      %v2450 = vrot.slane %v2332, 1
      %v2451 = vsel %vm538, %v2449, %v2450
      %v2452 = vrot.slane %v2333, 1
      %v2453 = vsel %vm538, %v2450, %v2452
      %v2454 = vrot.slane %v2334, 1
      %v2455 = vsel %vm538, %v2452, %v2454
      %v2456 = vrot.slane %v2335, 1
      %v2457 = vsel %vm538, %v2454, %v2456
      %v2458 = vrot.slane %v2336, 1
      %v2459 = vsel %vm538, %v2456, %v2458
      %v2461 = vsel %vm431, %v2451, 0
      %v2464 = vsel %vm431, %v2453, 0
      %v2467 = vsel %vm431, %v2455, 0
      %v2470 = vsel %vm431, %v2457, 0
      %v2473 = vsel %vm431, %v2459, 0
      %v2476 = vsel %vm447, %v2445, 0
      %2478 = vmatpush.bf16.msra.mxu0 0
      %2479 = vmatpush.bf16.msra.mxu0 0
      %2480 = vmatpush.bf16.msra.mxu0 0
      %2481 = vmatpush.bf16.msra.mxu0 0
      %2482 = vmatpush.bf16.msra.mxu0 0
      %2483 = vmatpush.bf16.msra.mxu0 0
      %2484 = vmatpush.bf16.msra.mxu0 0
      %2485 = vmatpush.bf16.msra.mxu0 %v2476
      %2486 = vmatmul.bf16.gmra.mxu0 %v2461
      %v2487 = vpop.f32.mrf.mxu0
      %v2488 = vadd.f32 0.0, %v2487
      %v2489 = vpop.f32.mrf.mxu0
      %v2490 = vadd.f32 0.0, %v2489
      %2491 = vmatmul.bf16.gmra.mxu0 %v2464
      %v2492 = vpop.f32.mrf.mxu0
      %v2493 = vadd.f32 0.0, %v2492
      %v2494 = vpop.f32.mrf.mxu0
      %v2495 = vadd.f32 0.0, %v2494
      %2496 = vmatmul.bf16.gmra.mxu0 %v2467
      %v2497 = vpop.f32.mrf.mxu0
      %v2498 = vadd.f32 0.0, %v2497
      %v2499 = vpop.f32.mrf.mxu0
      %v2500 = vadd.f32 0.0, %v2499
      %2501 = vmatmul.bf16.gmra.mxu0 %v2470
      %v2502 = vpop.f32.mrf.mxu0
      %v2503 = vadd.f32 0.0, %v2502
      %v2504 = vpop.f32.mrf.mxu0
      %v2505 = vadd.f32 0.0, %v2504
      %2506 = vmatmul.bf16.gmra.mxu0 %v2473
      %v2507 = vpop.f32.mrf.mxu0
      %v2508 = vadd.f32 0.0, %v2507
      %v2509 = vpop.f32.mrf.mxu0
      %v2510 = vadd.f32 0.0, %v2509
      %2511 = vdwg.mxu0
      %v2512 = vadd.f32 %v2433, %v2488
      %v2513 = vadd.f32 %v2434, %v2490
      %v2514 = vadd.f32 %v2435, %v2493
      %v2515 = vadd.f32 %v2436, %v2495
      %v2516 = vadd.f32 %v2437, %v2498
      %v2517 = vadd.f32 %v2438, %v2500
      %v2518 = vadd.f32 %v2439, %v2503
      %v2519 = vadd.f32 %v2440, %v2505
      %v2520 = vadd.f32 %v2441, %v2508
      %v2521 = vadd.f32 %v2442, %v2510
      %v2522 = vld [vmem:[%s332 + $0x4] sm:$0xe]
      %v2523 = vld [vmem:[%s332 + $0x8] sm:$0xf]
      %v2524 = vld [vmem:[%s332 + $0xc] sm:$0xf]
      %v2525 = vld [vmem:[%s332 + $0x10] sm:$0xf]
      %v2526 = vld [vmem:[%s332 + $0x14] sm:$0xf]
      %v2527 = vld [vmem:[%s332 + $0x18] sm:$0xf]
      %v2528 = vld [vmem:[%s332 + $0x1c] sm:$0xf]
      %v2529 = vld [vmem:[%s332 + $0x20] sm:$0xf]
      %v2530 = vld [vmem:[%s332 + $0x24] sm:$0xf]
      %v2531 = vld [vmem:[%s332 + $0x28] sm:$0xf]
      %v2532 = vld [vmem:[%s332 + $0x2c] sm:$0x1]
      %s2533 = scalar_lea.vmem %s3, 84
      %v2534 = vld [vmem:[%s2533] sm:$0xf]
      %v2546 = vunpack.c.l.b16 %v2522
      %v2547 = vunpack.c.l.b16 %v2523
      %v2548 = vunpack.c.l.b16 %v2524
      %v2549 = vunpack.c.l.b16 %v2525
      %v2550 = vunpack.c.l.b16 %v2526
      %v2551 = vunpack.c.l.b16 %v2527
      %v2552 = vunpack.c.l.b16 %v2528
      %v2553 = vunpack.c.l.b16 %v2529
      %v2554 = vunpack.c.l.b16 %v2530
      %v2555 = vunpack.c.l.b16 %v2531
      %v2556 = vunpack.c.l.b16 %v2532
      %v2557 = vpack.c.b16 %v2547, %v2546
      %v2558 = vpack.c.b16 %v2549, %v2548
      %v2559 = vpack.c.b16 %v2551, %v2550
      %v2560 = vpack.c.b16 %v2553, %v2552
      %v2561 = vpack.c.b16 %v2555, %v2554
      %v2562 = vpack.c.b16 %v2556, %v2556
      %v2563 = vrot.slane %v2557, 1
      %v2564 = vrot.slane %v2558, 1
      %v2565 = vsel %vm538, %v2563, %v2564
      %v2566 = vrot.slane %v2559, 1
      %v2567 = vsel %vm538, %v2564, %v2566
      %v2568 = vrot.slane %v2560, 1
      %v2569 = vsel %vm538, %v2566, %v2568
      %v2570 = vrot.slane %v2561, 1
      %v2571 = vsel %vm538, %v2568, %v2570
      %v2572 = vrot.slane %v2562, 1
      %v2573 = vsel %vm538, %v2570, %v2572
      %v2575 = vsel %vm431, %v2565, 0
      %v2578 = vsel %vm431, %v2567, 0
      %v2581 = vsel %vm431, %v2569, 0
      %v2584 = vsel %vm431, %v2571, 0
      %v2587 = vsel %vm431, %v2573, 0
      %v2590 = vsel %vm447, %v2534, 0
      %2592 = vmatpush.bf16.msra.mxu0 0
      %2593 = vmatpush.bf16.msra.mxu0 0
      %2594 = vmatpush.bf16.msra.mxu0 0
      %2595 = vmatpush.bf16.msra.mxu0 0
      %2596 = vmatpush.bf16.msra.mxu0 0
      %2597 = vmatpush.bf16.msra.mxu0 0
      %2598 = vmatpush.bf16.msra.mxu0 0
      %2599 = vmatpush.bf16.msra.mxu0 %v2590
      %2600 = vmatmul.bf16.gmra.mxu0 %v2575
      %v2601 = vpop.f32.mrf.mxu0
      %v2602 = vadd.f32 0.0, %v2601
      %v2603 = vpop.f32.mrf.mxu0
      %v2604 = vadd.f32 0.0, %v2603
      %2605 = vmatmul.bf16.gmra.mxu0 %v2578
      %v2606 = vpop.f32.mrf.mxu0
      %v2607 = vadd.f32 0.0, %v2606
      %v2608 = vpop.f32.mrf.mxu0
      %v2609 = vadd.f32 0.0, %v2608
      %2610 = vmatmul.bf16.gmra.mxu0 %v2581
      %v2611 = vpop.f32.mrf.mxu0
      %v2612 = vadd.f32 0.0, %v2611
      %v2613 = vpop.f32.mrf.mxu0
      %v2614 = vadd.f32 0.0, %v2613
      %2615 = vmatmul.bf16.gmra.mxu0 %v2584
      %v2616 = vpop.f32.mrf.mxu0
      %v2617 = vadd.f32 0.0, %v2616
      %v2618 = vpop.f32.mrf.mxu0
      %v2619 = vadd.f32 0.0, %v2618
      %2620 = vmatmul.bf16.gmra.mxu0 %v2587
      %v2621 = vpop.f32.mrf.mxu0
      %v2622 = vadd.f32 0.0, %v2621
      %v2623 = vpop.f32.mrf.mxu0
      %v2624 = vadd.f32 0.0, %v2623
      %2625 = vdwg.mxu0
      %v2626 = vadd.f32 %v2512, %v2602
      %v2627 = vadd.f32 %v2513, %v2604
      %v2628 = vadd.f32 %v2514, %v2607
      %v2629 = vadd.f32 %v2515, %v2609
      %v2630 = vadd.f32 %v2516, %v2612
      %v2631 = vadd.f32 %v2517, %v2614
      %v2632 = vadd.f32 %v2518, %v2617
      %v2633 = vadd.f32 %v2519, %v2619
      %v2634 = vadd.f32 %v2520, %v2622
      %v2635 = vadd.f32 %v2521, %v2624
      %v2636 = vld [vmem:[%s332 + $0x2c] sm:$0x3]
      %s2637 = scalar_lea.vmem %s3, 88
      %v2638 = vld [vmem:[%s2637] sm:$0xf]
      %v2640 = vunpack.c.l.b16 %v2636
      %v2641 = vpack.c.b16 %v2640, %v2640
      %v2643 = vshrl.u32 %v2557, 16
      %v2645 = vrot.slane %v2643, 1
      %v2646 = vshll.u32 %v2557, 16
      %v2648 = vrot.slane %v2646, 2
      %v2649 = vor.u32 %v2645, %v2648
      %v2651 = vshrl.u32 %v2558, 16
      %v2653 = vrot.slane %v2651, 1
      %v2654 = vshll.u32 %v2558, 16
      %v2656 = vrot.slane %v2654, 2
      %v2657 = vor.u32 %v2653, %v2656
      %v2658 = vsel %vm732, %v2649, %v2657
      %v2660 = vshrl.u32 %v2559, 16
      %v2662 = vrot.slane %v2660, 1
      %v2663 = vshll.u32 %v2559, 16
      %v2665 = vrot.slane %v2663, 2
      %v2666 = vor.u32 %v2662, %v2665
      %v2667 = vsel %vm732, %v2657, %v2666
      %v2669 = vshrl.u32 %v2560, 16
      %v2671 = vrot.slane %v2669, 1
      %v2672 = vshll.u32 %v2560, 16
      %v2674 = vrot.slane %v2672, 2
      %v2675 = vor.u32 %v2671, %v2674
      %v2676 = vsel %vm732, %v2666, %v2675
      %v2678 = vshrl.u32 %v2561, 16
      %v2680 = vrot.slane %v2678, 1
      %v2681 = vshll.u32 %v2561, 16
      %v2683 = vrot.slane %v2681, 2
      %v2684 = vor.u32 %v2680, %v2683
      %v2685 = vsel %vm732, %v2675, %v2684
      %v2687 = vshrl.u32 %v2641, 16
      %v2689 = vrot.slane %v2687, 1
      %v2690 = vshll.u32 %v2641, 16
      %v2692 = vrot.slane %v2690, 2
      %v2693 = vor.u32 %v2689, %v2692
      %v2694 = vsel %vm732, %v2684, %v2693
      %v2696 = vsel %vm431, %v2658, 0
      %v2699 = vsel %vm431, %v2667, 0
      %v2702 = vsel %vm431, %v2676, 0
      %v2705 = vsel %vm431, %v2685, 0
      %v2708 = vsel %vm431, %v2694, 0
      %v2711 = vsel %vm447, %v2638, 0
      %2713 = vmatpush.bf16.msra.mxu0 0
      %2714 = vmatpush.bf16.msra.mxu0 0
      %2715 = vmatpush.bf16.msra.mxu0 0
      %2716 = vmatpush.bf16.msra.mxu0 0
      %2717 = vmatpush.bf16.msra.mxu0 0
      %2718 = vmatpush.bf16.msra.mxu0 0
      %2719 = vmatpush.bf16.msra.mxu0 0
      %2720 = vmatpush.bf16.msra.mxu0 %v2711
      %2721 = vmatmul.bf16.gmra.mxu0 %v2696
      %v2722 = vpop.f32.mrf.mxu0
      %v2723 = vadd.f32 0.0, %v2722
      %v2724 = vpop.f32.mrf.mxu0
      %v2725 = vadd.f32 0.0, %v2724
      %2726 = vmatmul.bf16.gmra.mxu0 %v2699
      %v2727 = vpop.f32.mrf.mxu0
      %v2728 = vadd.f32 0.0, %v2727
      %v2729 = vpop.f32.mrf.mxu0
      %v2730 = vadd.f32 0.0, %v2729
      %2731 = vmatmul.bf16.gmra.mxu0 %v2702
      %v2732 = vpop.f32.mrf.mxu0
      %v2733 = vadd.f32 0.0, %v2732
      %v2734 = vpop.f32.mrf.mxu0
      %v2735 = vadd.f32 0.0, %v2734
      %2736 = vmatmul.bf16.gmra.mxu0 %v2705
      %v2737 = vpop.f32.mrf.mxu0
      %v2738 = vadd.f32 0.0, %v2737
      %v2739 = vpop.f32.mrf.mxu0
      %v2740 = vadd.f32 0.0, %v2739
      %2741 = vmatmul.bf16.gmra.mxu0 %v2708
      %v2742 = vpop.f32.mrf.mxu0
      %v2743 = vadd.f32 0.0, %v2742
      %v2744 = vpop.f32.mrf.mxu0
      %v2745 = vadd.f32 0.0, %v2744
      %2746 = vdwg.mxu0
      %v2747 = vadd.f32 %v2626, %v2723
      %v2748 = vadd.f32 %v2627, %v2725
      %v2749 = vadd.f32 %v2628, %v2728
      %v2750 = vadd.f32 %v2629, %v2730
      %v2751 = vadd.f32 %v2630, %v2733
      %v2752 = vadd.f32 %v2631, %v2735
      %v2753 = vadd.f32 %v2632, %v2738
      %v2754 = vadd.f32 %v2633, %v2740
      %v2755 = vadd.f32 %v2634, %v2743
      %v2756 = vadd.f32 %v2635, %v2745
      %v2757 = vld [vmem:[%s332 + $0x4] sm:$0xc]
      %s2758 = scalar_lea.vmem %s3, 92
      %v2759 = vld [vmem:[%s2758] sm:$0xf]
      %v2761 = vunpack.c.l.b16 %v2757
      %v2762 = vpack.c.b16 %v2547, %v2761
      %v2763 = vrot.slane %v2762, 2
      %v2764 = vrot.slane %v2558, 2
      %v2765 = vsel %vm854, %v2763, %v2764
      %v2766 = vrot.slane %v2559, 2
      %v2767 = vsel %vm854, %v2764, %v2766
      %v2768 = vrot.slane %v2560, 2
      %v2769 = vsel %vm854, %v2766, %v2768
      %v2770 = vrot.slane %v2561, 2
      %v2771 = vsel %vm854, %v2768, %v2770
      %v2772 = vrot.slane %v2641, 2
      %v2773 = vsel %vm854, %v2770, %v2772
      %v2775 = vsel %vm431, %v2765, 0
      %v2778 = vsel %vm431, %v2767, 0
      %v2781 = vsel %vm431, %v2769, 0
      %v2784 = vsel %vm431, %v2771, 0
      %v2787 = vsel %vm431, %v2773, 0
      %v2790 = vsel %vm447, %v2759, 0
      %2792 = vmatpush.bf16.msra.mxu0 0
      %2793 = vmatpush.bf16.msra.mxu0 0
      %2794 = vmatpush.bf16.msra.mxu0 0
      %2795 = vmatpush.bf16.msra.mxu0 0
      %2796 = vmatpush.bf16.msra.mxu0 0
      %2797 = vmatpush.bf16.msra.mxu0 0
      %2798 = vmatpush.bf16.msra.mxu0 0
      %2799 = vmatpush.bf16.msra.mxu0 %v2790
      %2800 = vmatmul.bf16.gmra.mxu0 %v2775
      %v2801 = vpop.f32.mrf.mxu0
      %v2802 = vadd.f32 0.0, %v2801
      %v2803 = vpop.f32.mrf.mxu0
      %v2804 = vadd.f32 0.0, %v2803
      %2805 = vmatmul.bf16.gmra.mxu0 %v2778
      %v2806 = vpop.f32.mrf.mxu0
      %v2807 = vadd.f32 0.0, %v2806
      %v2808 = vpop.f32.mrf.mxu0
      %v2809 = vadd.f32 0.0, %v2808
      %2810 = vmatmul.bf16.gmra.mxu0 %v2781
      %v2811 = vpop.f32.mrf.mxu0
      %v2812 = vadd.f32 0.0, %v2811
      %v2813 = vpop.f32.mrf.mxu0
      %v2814 = vadd.f32 0.0, %v2813
      %2815 = vmatmul.bf16.gmra.mxu0 %v2784
      %v2816 = vpop.f32.mrf.mxu0
      %v2817 = vadd.f32 0.0, %v2816
      %v2818 = vpop.f32.mrf.mxu0
      %v2819 = vadd.f32 0.0, %v2818
      %2820 = vmatmul.bf16.gmra.mxu0 %v2787
      %v2821 = vpop.f32.mrf.mxu0
      %v2822 = vadd.f32 0.0, %v2821
      %v2823 = vpop.f32.mrf.mxu0
      %v2824 = vadd.f32 0.0, %v2823
      %2825 = vdwg.mxu0
      %v2826 = vadd.f32 %v2747, %v2802
      %v2827 = vadd.f32 %v2748, %v2804
      %v2828 = vadd.f32 %v2749, %v2807
      %v2829 = vadd.f32 %v2750, %v2809
      %v2830 = vadd.f32 %v2751, %v2812
      %v2831 = vadd.f32 %v2752, %v2814
      %v2832 = vadd.f32 %v2753, %v2817
      %v2833 = vadd.f32 %v2754, %v2819
      %v2834 = vadd.f32 %v2755, %v2822
      %v2835 = vadd.f32 %v2756, %v2824
      %v2836 = vld [vmem:[%s332 + $0x8] sm:$0xc]
      %v2837 = vld [vmem:[%s332 + $0xc] sm:$0xf]
      %v2838 = vld [vmem:[%s332 + $0x10] sm:$0xf]
      %v2839 = vld [vmem:[%s332 + $0x14] sm:$0xf]
      %v2840 = vld [vmem:[%s332 + $0x18] sm:$0xf]
      %v2841 = vld [vmem:[%s332 + $0x1c] sm:$0xf]
      %v2842 = vld [vmem:[%s332 + $0x20] sm:$0xf]
      %v2843 = vld [vmem:[%s332 + $0x24] sm:$0xf]
      %v2844 = vld [vmem:[%s332 + $0x28] sm:$0xf]
      %v2845 = vld [vmem:[%s332 + $0x2c] sm:$0xf]
      %v2846 = vld [vmem:[%s332 + $0x30] sm:$0x3]
      %s2847 = scalar_lea.vmem %s3, 96
      %v2848 = vld [vmem:[%s2847] sm:$0xf]
      %v2860 = vunpack.c.l.b16 %v2836
      %v2861 = vunpack.c.l.b16 %v2837
      %v2862 = vunpack.c.l.b16 %v2838
      %v2863 = vunpack.c.l.b16 %v2839
      %v2864 = vunpack.c.l.b16 %v2840
      %v2865 = vunpack.c.l.b16 %v2841
      %v2866 = vunpack.c.l.b16 %v2842
      %v2867 = vunpack.c.l.b16 %v2843
      %v2868 = vunpack.c.l.b16 %v2844
      %v2869 = vunpack.c.l.b16 %v2845
      %v2870 = vunpack.c.l.b16 %v2846
      %v2871 = vpack.c.b16 %v2861, %v2860
      %v2872 = vpack.c.b16 %v2863, %v2862
      %v2873 = vpack.c.b16 %v2865, %v2864
      %v2874 = vpack.c.b16 %v2867, %v2866
      %v2875 = vpack.c.b16 %v2869, %v2868
      %v2876 = vpack.c.b16 %v2870, %v2870
      %v2877 = vrot.slane %v2871, 2
      %v2878 = vrot.slane %v2872, 2
      %v2879 = vsel %vm854, %v2877, %v2878
      %v2880 = vrot.slane %v2873, 2
      %v2881 = vsel %vm854, %v2878, %v2880
      %v2882 = vrot.slane %v2874, 2
      %v2883 = vsel %vm854, %v2880, %v2882
      %v2884 = vrot.slane %v2875, 2
      %v2885 = vsel %vm854, %v2882, %v2884
      %v2886 = vrot.slane %v2876, 2
      %v2887 = vsel %vm854, %v2884, %v2886
      %v2889 = vsel %vm431, %v2879, 0
      %v2892 = vsel %vm431, %v2881, 0
      %v2895 = vsel %vm431, %v2883, 0
      %v2898 = vsel %vm431, %v2885, 0
      %v2901 = vsel %vm431, %v2887, 0
      %v2904 = vsel %vm447, %v2848, 0
      %2906 = vmatpush.bf16.msra.mxu0 0
      %2907 = vmatpush.bf16.msra.mxu0 0
      %2908 = vmatpush.bf16.msra.mxu0 0
      %2909 = vmatpush.bf16.msra.mxu0 0
      %2910 = vmatpush.bf16.msra.mxu0 0
      %2911 = vmatpush.bf16.msra.mxu0 0
      %2912 = vmatpush.bf16.msra.mxu0 0
      %2913 = vmatpush.bf16.msra.mxu0 %v2904
      %2914 = vmatmul.bf16.gmra.mxu0 %v2889
      %v2915 = vpop.f32.mrf.mxu0
      %v2916 = vadd.f32 0.0, %v2915
      %v2917 = vpop.f32.mrf.mxu0
      %v2918 = vadd.f32 0.0, %v2917
      %2919 = vmatmul.bf16.gmra.mxu0 %v2892
      %v2920 = vpop.f32.mrf.mxu0
      %v2921 = vadd.f32 0.0, %v2920
      %v2922 = vpop.f32.mrf.mxu0
      %v2923 = vadd.f32 0.0, %v2922
      %2924 = vmatmul.bf16.gmra.mxu0 %v2895
      %v2925 = vpop.f32.mrf.mxu0
      %v2926 = vadd.f32 0.0, %v2925
      %v2927 = vpop.f32.mrf.mxu0
      %v2928 = vadd.f32 0.0, %v2927
      %2929 = vmatmul.bf16.gmra.mxu0 %v2898
      %v2930 = vpop.f32.mrf.mxu0
      %v2931 = vadd.f32 0.0, %v2930
      %v2932 = vpop.f32.mrf.mxu0
      %v2933 = vadd.f32 0.0, %v2932
      %2934 = vmatmul.bf16.gmra.mxu0 %v2901
      %v2935 = vpop.f32.mrf.mxu0
      %v2936 = vadd.f32 0.0, %v2935
      %v2937 = vpop.f32.mrf.mxu0
      %v2938 = vadd.f32 0.0, %v2937
      %2939 = vdwg.mxu0
      %v2940 = vadd.f32 %v2826, %v2916
      %v2941 = vadd.f32 %v2827, %v2918
      %v2942 = vadd.f32 %v2828, %v2921
      %v2943 = vadd.f32 %v2829, %v2923
      %v2944 = vadd.f32 %v2830, %v2926
      %v2945 = vadd.f32 %v2831, %v2928
      %v2946 = vadd.f32 %v2832, %v2931
      %v2947 = vadd.f32 %v2833, %v2933
      %v2948 = vadd.f32 %v2834, %v2936
      %v2949 = vadd.f32 %v2835, %v2938
      %v2950 = vld [vmem:[%s332 + $0x30] sm:$0x7]
      %s2951 = scalar_lea.vmem %s3, 100
      %v2952 = vld [vmem:[%s2951] sm:$0xf]
      %v2954 = vunpack.c.l.b16 %v2950
      %v2955 = vpack.c.b16 %v2954, %v2954
      %v2957 = vshrl.u32 %v2871, 16
      %v2959 = vrot.slane %v2957, 2
      %v2960 = vshll.u32 %v2871, 16
      %v2962 = vrot.slane %v2960, 3
      %v2963 = vor.u32 %v2959, %v2962
      %v2965 = vshrl.u32 %v2872, 16
      %v2967 = vrot.slane %v2965, 2
      %v2968 = vshll.u32 %v2872, 16
      %v2970 = vrot.slane %v2968, 3
      %v2971 = vor.u32 %v2967, %v2970
      %v2972 = vsel %vm1048, %v2963, %v2971
      %v2974 = vshrl.u32 %v2873, 16
      %v2976 = vrot.slane %v2974, 2
      %v2977 = vshll.u32 %v2873, 16
      %v2979 = vrot.slane %v2977, 3
      %v2980 = vor.u32 %v2976, %v2979
      %v2981 = vsel %vm1048, %v2971, %v2980
      %v2983 = vshrl.u32 %v2874, 16
      %v2985 = vrot.slane %v2983, 2
      %v2986 = vshll.u32 %v2874, 16
      %v2988 = vrot.slane %v2986, 3
      %v2989 = vor.u32 %v2985, %v2988
      %v2990 = vsel %vm1048, %v2980, %v2989
      %v2992 = vshrl.u32 %v2875, 16
      %v2994 = vrot.slane %v2992, 2
      %v2995 = vshll.u32 %v2875, 16
      %v2997 = vrot.slane %v2995, 3
      %v2998 = vor.u32 %v2994, %v2997
      %v2999 = vsel %vm1048, %v2989, %v2998
      %v3001 = vshrl.u32 %v2955, 16
      %v3003 = vrot.slane %v3001, 2
      %v3004 = vshll.u32 %v2955, 16
      %v3006 = vrot.slane %v3004, 3
      %v3007 = vor.u32 %v3003, %v3006
      %v3008 = vsel %vm1048, %v2998, %v3007
      %v3010 = vsel %vm431, %v2972, 0
      %v3013 = vsel %vm431, %v2981, 0
      %v3016 = vsel %vm431, %v2990, 0
      %v3019 = vsel %vm431, %v2999, 0
      %v3022 = vsel %vm431, %v3008, 0
      %v3025 = vsel %vm447, %v2952, 0
      %3027 = vmatpush.bf16.msra.mxu0 0
      %3028 = vmatpush.bf16.msra.mxu0 0
      %3029 = vmatpush.bf16.msra.mxu0 0
      %3030 = vmatpush.bf16.msra.mxu0 0
      %3031 = vmatpush.bf16.msra.mxu0 0
      %3032 = vmatpush.bf16.msra.mxu0 0
      %3033 = vmatpush.bf16.msra.mxu0 0
      %3034 = vmatpush.bf16.msra.mxu0 %v3025
      %3035 = vmatmul.bf16.gmra.mxu0 %v3010
      %v3036 = vpop.f32.mrf.mxu0
      %v3037 = vadd.f32 0.0, %v3036
      %v3038 = vpop.f32.mrf.mxu0
      %v3039 = vadd.f32 0.0, %v3038
      %3040 = vmatmul.bf16.gmra.mxu0 %v3013
      %v3041 = vpop.f32.mrf.mxu0
      %v3042 = vadd.f32 0.0, %v3041
      %v3043 = vpop.f32.mrf.mxu0
      %v3044 = vadd.f32 0.0, %v3043
      %3045 = vmatmul.bf16.gmra.mxu0 %v3016
      %v3046 = vpop.f32.mrf.mxu0
      %v3047 = vadd.f32 0.0, %v3046
      %v3048 = vpop.f32.mrf.mxu0
      %v3049 = vadd.f32 0.0, %v3048
      %3050 = vmatmul.bf16.gmra.mxu0 %v3019
      %v3051 = vpop.f32.mrf.mxu0
      %v3052 = vadd.f32 0.0, %v3051
      %v3053 = vpop.f32.mrf.mxu0
      %v3054 = vadd.f32 0.0, %v3053
      %3055 = vmatmul.bf16.gmra.mxu0 %v3022
      %v3056 = vpop.f32.mrf.mxu0
      %v3057 = vadd.f32 0.0, %v3056
      %v3058 = vpop.f32.mrf.mxu0
      %v3059 = vadd.f32 0.0, %v3058
      %3060 = vdwg.mxu0
      %v3061 = vadd.f32 %v2940, %v3037
      %v3062 = vadd.f32 %v2941, %v3039
      %v3063 = vadd.f32 %v2942, %v3042
      %v3064 = vadd.f32 %v2943, %v3044
      %v3065 = vadd.f32 %v2944, %v3047
      %v3066 = vadd.f32 %v2945, %v3049
      %v3067 = vadd.f32 %v2946, %v3052
      %v3068 = vadd.f32 %v2947, %v3054
      %v3069 = vadd.f32 %v2948, %v3057
      %v3070 = vadd.f32 %v2949, %v3059
      %v3071 = vld [vmem:[%s332 + $0x8] sm:$0x8]
      %s3072 = scalar_lea.vmem %s3, 104
      %v3073 = vld [vmem:[%s3072] sm:$0xf]
      %v3075 = vunpack.c.l.b16 %v3071
      %v3076 = vpack.c.b16 %v2861, %v3075
      %v3077 = vrot.slane %v3076, 3
      %v3078 = vrot.slane %v2872, 3
      %v3079 = vsel %vm1170, %v3077, %v3078
      %v3080 = vrot.slane %v2873, 3
      %v3081 = vsel %vm1170, %v3078, %v3080
      %v3082 = vrot.slane %v2874, 3
      %v3083 = vsel %vm1170, %v3080, %v3082
      %v3084 = vrot.slane %v2875, 3
      %v3085 = vsel %vm1170, %v3082, %v3084
      %v3086 = vrot.slane %v2955, 3
      %v3087 = vsel %vm1170, %v3084, %v3086
      %v3089 = vsel %vm431, %v3079, 0
      %v3092 = vsel %vm431, %v3081, 0
      %v3095 = vsel %vm431, %v3083, 0
      %v3098 = vsel %vm431, %v3085, 0
      %v3101 = vsel %vm431, %v3087, 0
      %v3104 = vsel %vm447, %v3073, 0
      %3106 = vmatpush.bf16.msra.mxu0 0
      %3107 = vmatpush.bf16.msra.mxu0 0
      %3108 = vmatpush.bf16.msra.mxu0 0
      %3109 = vmatpush.bf16.msra.mxu0 0
      %3110 = vmatpush.bf16.msra.mxu0 0
      %3111 = vmatpush.bf16.msra.mxu0 0
      %3112 = vmatpush.bf16.msra.mxu0 0
      %3113 = vmatpush.bf16.msra.mxu0 %v3104
      %3114 = vmatmul.bf16.gmra.mxu0 %v3089
      %v3115 = vpop.f32.mrf.mxu0
      %v3116 = vadd.f32 0.0, %v3115
      %v3117 = vpop.f32.mrf.mxu0
      %v3118 = vadd.f32 0.0, %v3117
      %3119 = vmatmul.bf16.gmra.mxu0 %v3092
      %v3120 = vpop.f32.mrf.mxu0
      %v3121 = vadd.f32 0.0, %v3120
      %v3122 = vpop.f32.mrf.mxu0
      %v3123 = vadd.f32 0.0, %v3122
      %3124 = vmatmul.bf16.gmra.mxu0 %v3095
      %v3125 = vpop.f32.mrf.mxu0
      %v3126 = vadd.f32 0.0, %v3125
      %v3127 = vpop.f32.mrf.mxu0
      %v3128 = vadd.f32 0.0, %v3127
      %3129 = vmatmul.bf16.gmra.mxu0 %v3098
      %v3130 = vpop.f32.mrf.mxu0
      %v3131 = vadd.f32 0.0, %v3130
      %v3132 = vpop.f32.mrf.mxu0
      %v3133 = vadd.f32 0.0, %v3132
      %3134 = vmatmul.bf16.gmra.mxu0 %v3101
      %v3135 = vpop.f32.mrf.mxu0
      %v3136 = vadd.f32 0.0, %v3135
      %v3137 = vpop.f32.mrf.mxu0
      %v3138 = vadd.f32 0.0, %v3137
      %3139 = vdwg.mxu0
      %v3140 = vadd.f32 %v3061, %v3116
      %v3141 = vadd.f32 %v3062, %v3118
      %v3142 = vadd.f32 %v3063, %v3121
      %v3143 = vadd.f32 %v3064, %v3123
      %v3144 = vadd.f32 %v3065, %v3126
      %v3145 = vadd.f32 %v3066, %v3128
      %v3146 = vadd.f32 %v3067, %v3131
      %v3147 = vadd.f32 %v3068, %v3133
      %v3148 = vadd.f32 %v3069, %v3136
      %v3149 = vadd.f32 %v3070, %v3138
      %v3150 = vld [vmem:[%s4] sm:$0x1]
      %v3152 = vperm.slane %v3150, 0
      %v3154 = vadd.f32 %v3140, %v3152
      %v3155 = vadd.f32 %v3141, %v3152
      %v3156 = vadd.f32 %v3142, %v3152
      %v3157 = vadd.f32 %v3143, %v3152
      %v3158 = vadd.f32 %v3144, %v3152
      %v3159 = vadd.f32 %v3145, %v3152
      %v3160 = vadd.f32 %v3146, %v3152
      %v3161 = vadd.f32 %v3147, %v3152
      %v3162 = vadd.f32 %v3148, %v3152
      %v3163 = vadd.f32 %v3149, %v3152
      %v3164 = vmax.f32 %v3154, 0.0
      %v3165 = vmax.f32 %v3155, 0.0
      %v3166 = vmax.f32 %v3156, 0.0
      %v3167 = vmax.f32 %v3157, 0.0
      %v3168 = vmax.f32 %v3158, 0.0
      %v3169 = vmax.f32 %v3159, 0.0
      %v3170 = vmax.f32 %v3160, 0.0
      %v3171 = vmax.f32 %v3161, 0.0
      %v3172 = vmax.f32 %v3162, 0.0
      %v3173 = vmax.f32 %v3163, 0.0
      %v3174 = vpack.c.bf16 %v3164, %v3164
      %v3175 = vpack.c.bf16 %v3165, %v3165
      %v3176 = vpack.c.bf16 %v3166, %v3166
      %v3177 = vpack.c.bf16 %v3167, %v3167
      %v3178 = vpack.c.bf16 %v3168, %v3168
      %v3179 = vpack.c.bf16 %v3169, %v3169
      %v3180 = vpack.c.bf16 %v3170, %v3170
      %v3181 = vpack.c.bf16 %v3171, %v3171
      %v3182 = vpack.c.bf16 %v3172, %v3172
      %v3183 = vpack.c.bf16 %v3173, %v3173
      %3184 = vst [vmem:[%s342] sm:$0xf] %v3174
      %3185 = vst [vmem:[%s342 + $0x4] sm:$0xf] %v3175
      %3186 = vst [vmem:[%s342 + $0x8] sm:$0xf] %v3176
      %3187 = vst [vmem:[%s342 + $0xc] sm:$0xf] %v3177
      %3188 = vst [vmem:[%s342 + $0x10] sm:$0xf] %v3178
      %3189 = vst [vmem:[%s342 + $0x14] sm:$0xf] %v3179
      %3190 = vst [vmem:[%s342 + $0x18] sm:$0xf] %v3180
      %3191 = vst [vmem:[%s342 + $0x1c] sm:$0xf] %v3181
      %3192 = vst [vmem:[%s342 + $0x20] sm:$0xf] %v3182
      %3193 = vst [vmem:[%s342 + $0x24] sm:$0xf] %v3183
      %p3194 = scmp.lt.s32.totalorder %s20, 1
      %s3195 = scalar_select %p3194, %s20, 1
      %p3196 = scmp.lt.s32.totalorder %s21, 7
      %s3197 = scalar_select %p3196, %s21, 7
      %s3198 = smul.addr %s3197, 10
      %s3199 = smul.addr %s3195, 80
      %s3200 = sadd.s32 %s3198, %s3199
      %s3201 = smul.addr %s3200, 4
      %s3202 = scalar_lea.vmem %s5, %s3201
      // Predicated region
      $region41: #{deconv_forward.4} parent=39 // pred_check
        %p3203 = pneg %p178
      $region42: #{deconv_forward.4} parent=39 // pred_check_branch
        %3205 = sbr.rel (%p3203) target = $region44
      $region43: #{deconv_forward.4} parent=39 // pred_region
        _
      $region44: #{deconv_forward.4} parent=39 // pred_fallthru
        _
    $region40: #{deconv_forward.4} parent=5 // pred_fallthru
      _
    %p3206 = scmp.le.s32.totalorder 2, %s11
    // Predicated region
    $region45: #{deconv_forward.4} parent=5 // pred_check
      %p3207 = pneg %p3206
    $region46: #{deconv_forward.4} parent=5 // pred_check_branch
      %3209 = sbr.rel (%p3207) target = $region48
    $region47: #{deconv_forward.4} parent=5 // pred_region
      %s3210 = ssub.s32 %s11, 2
      // Predicated region
      $region49: #{deconv_forward.4} parent=47 // pred_check
        %p3211 = pneg %p184
      $region50: #{deconv_forward.4} parent=47 // pred_check_branch
        %3213 = sbr.rel (%p3211) target = $region52
      $region51: #{deconv_forward.4} parent=47 // pred_region
        %p3214 = scmp.lt.s32.totalorder %s22, 1
        %s3215 = scalar_select %p3214, %s22, 1
        %p3216 = scmp.lt.s32.totalorder %s23, 7
        %s3217 = scalar_select %p3216, %s23, 7
        %s3218 = smul.addr %s3217, 10
        %s3219 = smul.addr %s3215, 80
        %s3220 = sadd.s32 %s3218, %s3219
        %s3221 = smul.addr %s3220, 4
        %s3222 = scalar_lea.vmem %s5, %s3221
      $region52: #{deconv_forward.4} parent=47 // pred_fallthru
        _
    $region48: #{deconv_forward.4} parent=5 // pred_fallthru
      _
  $region6: #{deconv_forward.4} parent=0 // loop_footer
    %s15 = sadd.s32 1, %s11
  $region7: #{deconv_forward.4} parent=0 // loop_footer_branch
    %10 = sbr.rel target = $region3
  $region8: #{deconv_forward.4} parent=0 // loop_exit
    _

// kernel: deconv_forward.5
$region0: #{deconv_forward.5}
  #allocation0 [shape = 'u32[]', space=smem, size = 0x4, offset = 0x4, fixed_abs, tag = 'smem constant byte address 0x4 - core index']
  #allocation1 [shape = 'u32[72,128]{1,0:T(1,128)}', space=vmem, size = 0x9000, scoped, tag = 'internal scratch']
  %s0 = inlined_call_operand.vmem [shape: bf16[2,10,110,128], index: 0, kind: input, shape index: {}, may-alias: {0,1,2}]
  %s1 = inlined_call_operand.vmem [shape: bf16[2,10,110,128], index: 1, kind: input, shape index: {}, may-alias: {0,1,2}]
  %s2 = inlined_call_operand.vmem [shape: bf16[2,10,110,128], index: 2, kind: input, shape index: {}, may-alias: {0,1,2}]
  %s3 = inlined_call_operand.vmem [shape: bf16[27,128,128], index: 3, kind: input, shape index: {}]
  %s4 = inlined_call_operand.vmem [shape: f32[1,128], index: 4, kind: input, shape index: {}]
  %s5 = inlined_call_operand.vmem [shape: f32[2,8,80,128], index: 5, kind: output, shape index: {}]
  %s6 = sld [smem:[#allocation0]]
  $region53: #{deconv_forward.5} parent=0
    _
  %s8 = ssub.s32 1, %s6
  %s9 = scalar_select 0, %s8, %s6
  loop: start=0, step=1, limit=18
  $region2: #{deconv_forward.5} parent=0 // loop_pre_header
    _
  $region3: #{deconv_forward.5} parent=0 // loop_header
    %s11 = sphi 0, %s15
    %p12 = scmp.ge.s32.totalorder %s11, 18
    %s18 = sphi 0, %s30
    %s19 = sphi 0, %s26
    %s20 = sphi 0, %s18
    %s21 = sphi 0, %s19
    %s22 = sphi 0, %s20
    %s23 = sphi 0, %s21
    %s35 = sphi 0, %s37
    %s38 = sphi 0, %s35
    %s39 = sphi 0, %s38
    %s55 = sphi 0, %s39
    %s65 = sphi 0, %s67
    %s68 = sphi 0, %s65
    %s69 = sphi 0, %s68
    %s85 = sphi 0, %s69
    %s95 = sphi 0, %s97
    %s98 = sphi 0, %s95
    %s99 = sphi 0, %s98
    %s115 = sphi 0, %s99
    %s119 = sphi 0, %s119
    %s121 = sphi 0, %s119
    %s122 = sphi 0, %s121
    %s136 = sphi 0, %s122
    %s140 = sphi 0, %s140
    %s142 = sphi 0, %s140
    %s143 = sphi 0, %s142
    %s157 = sphi 0, %s143
    %s165 = sphi 0, %s167
    %s168 = sphi 0, %s165
    %s169 = sphi 0, %s168
    %s185 = sphi 0, %s169
  $region4: #{deconv_forward.5} parent=0 // loop_header_branch
    %14 = sbr.rel (%p12) target = $region8
  $region5: #{deconv_forward.5} parent=0 // loop_body
    %s16 = ssub.s32 %s11, 1
    %s17 = ssub.s32 %s11, 2
    %s24 = sadd.s32 1, %s19
    %p25 = scmp.ge.s32.totalorder %s24, 8
    %s26 = scalar_select %p25, 0, %s24
    %s27 = sadd.s32 1, %s18
    %s28 = scalar_select %p25, %s27, %s18
    %p29 = scmp.ge.s32.totalorder %s28, 2
    %s30 = scalar_select %p29, 0, %s28
    %s31 = ssub.s32 %s18, %s30
    %s32 = ssub.s32 %s19, %s26
    %s33 = sor.u32 %s31, %s32
    %p34 = scmp.eq.s32.totalorder %s33, 0
    %s36 = sadd.s32 %s35, 1
    %s37 = scalar_select %p34, %s35, %s36
    %p40 = pneg %p34
    %p41 = scmp.eq.s32.totalorder %s11, 15
    %p42 = por %p40, %p41
    %p43 = scmp.ne.s32.totalorder %s35, %s38
    %p44 = scmp.eq.s32.totalorder %s11, 0
    %p45 = por %p43, %p44
    %p46 = scmp.ne.s32.totalorder %s35, %s38
    %p47 = scmp.eq.s32.totalorder %s16, 15
    %p48 = por %p46, %p47
    %p49 = scmp.ne.s32.totalorder %s38, %s39
    %p50 = scmp.eq.s32.totalorder %s16, 0
    %p51 = por %p49, %p50
    %p52 = scmp.ne.s32.totalorder %s38, %s39
    %p53 = scmp.eq.s32.totalorder %s17, 15
    %p54 = por %p52, %p53
    %p56 = scmp.ne.s32.totalorder %s39, %s55
    %p57 = scmp.eq.s32.totalorder %s17, 0
    %p58 = por %p56, %p57
    %s59 = sadd.s32 %s19, 1
    %s60 = sadd.s32 %s26, 1
    %s61 = ssub.s32 %s18, %s30
    %s62 = ssub.s32 %s59, %s60
    %s63 = sor.u32 %s61, %s62
    %p64 = scmp.eq.s32.totalorder %s63, 0
    %s66 = sadd.s32 %s65, 1
    %s67 = scalar_select %p64, %s65, %s66
    %p70 = pneg %p64
    %p71 = scmp.eq.s32.totalorder %s11, 15
    %p72 = por %p70, %p71
    %p73 = scmp.ne.s32.totalorder %s65, %s68
    %p74 = scmp.eq.s32.totalorder %s11, 0
    %p75 = por %p73, %p74
    %p76 = scmp.ne.s32.totalorder %s65, %s68
    %p77 = scmp.eq.s32.totalorder %s16, 15
    %p78 = por %p76, %p77
    %p79 = scmp.ne.s32.totalorder %s68, %s69
    %p80 = scmp.eq.s32.totalorder %s16, 0
    %p81 = por %p79, %p80
    %p82 = scmp.ne.s32.totalorder %s68, %s69
    %p83 = scmp.eq.s32.totalorder %s17, 15
    %p84 = por %p82, %p83
    %p86 = scmp.ne.s32.totalorder %s69, %s85
    %p87 = scmp.eq.s32.totalorder %s17, 0
    %p88 = por %p86, %p87
    %s89 = sadd.s32 %s19, 2
    %s90 = sadd.s32 %s26, 2
    %s91 = ssub.s32 %s18, %s30
    %s92 = ssub.s32 %s89, %s90
    %s93 = sor.u32 %s91, %s92
    %p94 = scmp.eq.s32.totalorder %s93, 0
    %s96 = sadd.s32 %s95, 1
    %s97 = scalar_select %p94, %s95, %s96
    %p100 = pneg %p94
    %p101 = scmp.eq.s32.totalorder %s11, 15
    %p102 = por %p100, %p101
    %p103 = scmp.ne.s32.totalorder %s95, %s98
    %p104 = scmp.eq.s32.totalorder %s11, 0
    %p105 = por %p103, %p104
    %p106 = scmp.ne.s32.totalorder %s95, %s98
    %p107 = scmp.eq.s32.totalorder %s16, 15
    %p108 = por %p106, %p107
    %p109 = scmp.ne.s32.totalorder %s98, %s99
    %p110 = scmp.eq.s32.totalorder %s16, 0
    %p111 = por %p109, %p110
    %p112 = scmp.ne.s32.totalorder %s98, %s99
    %p113 = scmp.eq.s32.totalorder %s17, 15
    %p114 = por %p112, %p113
    %p116 = scmp.ne.s32.totalorder %s99, %s115
    %p117 = scmp.eq.s32.totalorder %s17, 0
    %p118 = por %p116, %p117
    %s120 = sadd.s32 %s119, 1
    %p123 = scmp.eq.s32.totalorder %s11, 15
    %p124 = scmp.ne.s32.totalorder %s119, %s121
    %p125 = scmp.eq.s32.totalorder %s11, 0
    %p126 = por %p124, %p125
    %p127 = scmp.ne.s32.totalorder %s119, %s121
    %p128 = scmp.eq.s32.totalorder %s16, 15
    %p129 = por %p127, %p128
    %p130 = scmp.ne.s32.totalorder %s121, %s122
    %p131 = scmp.eq.s32.totalorder %s16, 0
    %p132 = por %p130, %p131
    %p133 = scmp.ne.s32.totalorder %s121, %s122
    %p134 = scmp.eq.s32.totalorder %s17, 15
    %p135 = por %p133, %p134
    %p137 = scmp.ne.s32.totalorder %s122, %s136
    %p138 = scmp.eq.s32.totalorder %s17, 0
    %p139 = por %p137, %p138
    %s141 = sadd.s32 %s140, 1
    %p144 = scmp.eq.s32.totalorder %s11, 15
    %p145 = scmp.ne.s32.totalorder %s140, %s142
    %p146 = scmp.eq.s32.totalorder %s11, 0
    %p147 = por %p145, %p146
    %p148 = scmp.ne.s32.totalorder %s140, %s142
    %p149 = scmp.eq.s32.totalorder %s16, 15
    %p150 = por %p148, %p149
    %p151 = scmp.ne.s32.totalorder %s142, %s143
    %p152 = scmp.eq.s32.totalorder %s16, 0
    %p153 = por %p151, %p152
    %p154 = scmp.ne.s32.totalorder %s142, %s143
    %p155 = scmp.eq.s32.totalorder %s17, 15
    %p156 = por %p154, %p155
    %p158 = scmp.ne.s32.totalorder %s143, %s157
    %p159 = scmp.eq.s32.totalorder %s17, 0
    %p160 = por %p158, %p159
    %s161 = ssub.s32 %s18, %s30
    %s162 = ssub.s32 %s19, %s26
    %s163 = sor.u32 %s161, %s162
    %p164 = scmp.eq.s32.totalorder %s163, 0
    %s166 = sadd.s32 %s165, 1
    %s167 = scalar_select %p164, %s165, %s166
    %p170 = pneg %p164
    %p171 = scmp.eq.s32.totalorder %s11, 15
    %p172 = por %p170, %p171
    %p173 = scmp.ne.s32.totalorder %s165, %s168
    %p174 = scmp.eq.s32.totalorder %s11, 0
    %p175 = por %p173, %p174
    %p176 = scmp.ne.s32.totalorder %s165, %s168
    %p177 = scmp.eq.s32.totalorder %s16, 15
    %p178 = por %p176, %p177
    %p179 = scmp.ne.s32.totalorder %s168, %s169
    %p180 = scmp.eq.s32.totalorder %s16, 0
    %p181 = por %p179, %p180
    %p182 = scmp.ne.s32.totalorder %s168, %s169
    %p183 = scmp.eq.s32.totalorder %s17, 15
    %p184 = por %p182, %p183
    %p186 = scmp.ne.s32.totalorder %s169, %s185
    %p187 = scmp.eq.s32.totalorder %s17, 0
    %p188 = por %p186, %p187
    %p189 = scmp.le.s32.totalorder 1, %s11
    %p190 = scmp.lt.s32.totalorder %s11, 17
    %p191 = pnand %p189, %p190
    %p192 = pneg %p191
    // Predicated region
    $region9: #{deconv_forward.5} parent=5 // pred_check
      _
    $region10: #{deconv_forward.5} parent=5 // pred_check_branch
      %194 = sbr.rel (%p191) target = $region12
    $region11: #{deconv_forward.5} parent=5 // pred_region
      %s195 = ssub.s32 %s11, 1
      // Predicated region
      $region13: #{deconv_forward.5} parent=11 // pred_check
        %p196 = pneg %p132
      $region14: #{deconv_forward.5} parent=11 // pred_check_branch
        %198 = sbr.rel (%p196) target = $region16
      $region15: #{deconv_forward.5} parent=11 // pred_region
        _
      $region16: #{deconv_forward.5} parent=11 // pred_fallthru
        _
      // Predicated region
      $region17: #{deconv_forward.5} parent=11 // pred_check
        %p199 = pneg %p153
      $region18: #{deconv_forward.5} parent=11 // pred_check_branch
        %201 = sbr.rel (%p199) target = $region20
      $region19: #{deconv_forward.5} parent=11 // pred_region
        _
      $region20: #{deconv_forward.5} parent=11 // pred_fallthru
        _
    $region12: #{deconv_forward.5} parent=5 // pred_fallthru
      _
    %p202 = scmp.lt.s32.totalorder %s11, 16
    // Predicated region
    $region21: #{deconv_forward.5} parent=5 // pred_check
      %p203 = pneg %p202
    $region22: #{deconv_forward.5} parent=5 // pred_check_branch
      %205 = sbr.rel (%p203) target = $region24
    $region23: #{deconv_forward.5} parent=5 // pred_region
      // Predicated region
      $region25: #{deconv_forward.5} parent=23 // pred_check
        %p206 = pneg %p45
      $region26: #{deconv_forward.5} parent=23 // pred_check_branch
        %208 = sbr.rel (%p206) target = $region28
      $region27: #{deconv_forward.5} parent=23 // pred_region
        %p209 = scmp.lt.s32.totalorder %s18, 1
        %s210 = scalar_select %p209, %s18, 1
        %p211 = scmp.lt.s32.totalorder %s19, 9
        %s212 = scalar_select %p211, %s19, 9
        %s213 = smul.addr %s212, 14
        %s214 = smul.addr %s210, 140
        %s215 = sadd.s32 %s213, %s214
        %s216 = smul.addr %s215, 4
        %s217 = scalar_lea.vmem %s0, %s216
      $region28: #{deconv_forward.5} parent=23 // pred_fallthru
        _
      // Predicated region
      $region29: #{deconv_forward.5} parent=23 // pred_check
        %p218 = pneg %p75
      $region30: #{deconv_forward.5} parent=23 // pred_check_branch
        %220 = sbr.rel (%p218) target = $region32
      $region31: #{deconv_forward.5} parent=23 // pred_region
        %s221 = sadd.s32 %s19, 1
        %p222 = scmp.lt.s32.totalorder %s18, 1
        %s223 = scalar_select %p222, %s18, 1
        %p224 = scmp.lt.s32.totalorder %s221, 9
        %s225 = scalar_select %p224, %s221, 9
        %s226 = smul.addr %s225, 14
        %s227 = smul.addr %s223, 140
        %s228 = sadd.s32 %s226, %s227
        %s229 = smul.addr %s228, 4
        %s230 = scalar_lea.vmem %s1, %s229
        %s231 = sadd.s32 %s19, 1
      $region32: #{deconv_forward.5} parent=23 // pred_fallthru
        _
      // Predicated region
      $region33: #{deconv_forward.5} parent=23 // pred_check
        %p232 = pneg %p105
      $region34: #{deconv_forward.5} parent=23 // pred_check_branch
        %234 = sbr.rel (%p232) target = $region36
      $region35: #{deconv_forward.5} parent=23 // pred_region
        %s235 = sadd.s32 %s19, 2
        %p236 = scmp.lt.s32.totalorder %s18, 1
        %s237 = scalar_select %p236, %s18, 1
        %p238 = scmp.lt.s32.totalorder %s235, 9
        %s239 = scalar_select %p238, %s235, 9
        %s240 = smul.addr %s239, 14
        %s241 = smul.addr %s237, 140
        %s242 = sadd.s32 %s240, %s241
        %s243 = smul.addr %s242, 4
        %s244 = scalar_lea.vmem %s2, %s243
        %s245 = sadd.s32 %s19, 2
      $region36: #{deconv_forward.5} parent=23 // pred_fallthru
        _
    $region24: #{deconv_forward.5} parent=5 // pred_fallthru
      _
    %p246 = scmp.le.s32.totalorder 1, %s11
    %p247 = scmp.lt.s32.totalorder %s11, 17
    %p248 = pnand %p246, %p247
    %p249 = pneg %p248
    // Predicated region
    $region37: #{deconv_forward.5} parent=5 // pred_check
      _
    $region38: #{deconv_forward.5} parent=5 // pred_check_branch
      %251 = sbr.rel (%p248) target = $region40
    $region39: #{deconv_forward.5} parent=5 // pred_region
      %s252 = ssub.s32 %s11, 1
      %p253 = scmp.lt.s32.totalorder %s20, 1
      %s254 = scalar_select %p253, %s20, 1
      %p255 = scmp.lt.s32.totalorder %s21, 9
      %s256 = scalar_select %p255, %s21, 9
      %s257 = smul.addr %s256, 14
      %s258 = smul.addr %s254, 140
      %s259 = sadd.s32 %s257, %s258
      %s260 = smul.addr %s259, 4
      %s261 = scalar_lea.vmem %s0, %s260
      %p262 = pneg %p51
      %p263 = pneg %p48
      %s264 = sadd.s32 %s21, 1
      %p265 = scmp.lt.s32.totalorder %s20, 1
      %s266 = scalar_select %p265, %s20, 1
      %p267 = scmp.lt.s32.totalorder %s264, 9
      %s268 = scalar_select %p267, %s264, 9
      %s269 = smul.addr %s268, 14
      %s270 = smul.addr %s266, 140
      %s271 = sadd.s32 %s269, %s270
      %s272 = smul.addr %s271, 4
      %s273 = scalar_lea.vmem %s1, %s272
      %p274 = pneg %p81
      %p275 = pneg %p78
      %s276 = sadd.s32 %s21, 2
      %p277 = scmp.lt.s32.totalorder %s20, 1
      %s278 = scalar_select %p277, %s20, 1
      %p279 = scmp.lt.s32.totalorder %s276, 9
      %s280 = scalar_select %p279, %s276, 9
      %s281 = smul.addr %s280, 14
      %s282 = smul.addr %s278, 140
      %s283 = sadd.s32 %s281, %s282
      %s284 = smul.addr %s283, 4
      %s285 = scalar_lea.vmem %s2, %s284
      %p286 = pneg %p111
      %p287 = pneg %p108
      %p288 = pneg %p132
      %p289 = pneg %p129
      %p290 = pneg %p153
      %p291 = pneg %p150
      %p292 = pneg %p181
      %p293 = pneg %p178
      %p294 = scmp.lt.s32.totalorder %s20, 1
      %s295 = scalar_select %p294, %s20, 1
      %p296 = scmp.lt.s32.totalorder %s21, 7
      %s297 = scalar_select %p296, %s21, 7
      %s298 = smul.addr %s297, 10
      %s299 = smul.addr %s295, 80
      %s300 = sadd.s32 %s298, %s299
      %s301 = smul.addr %s300, 8
      %s302 = scalar_lea.vmem %s5, %s301
      %p303 = scmp.lt.s32.totalorder %s20, 1
      %s304 = scalar_select %p303, %s20, 1
      %p305 = scmp.lt.s32.totalorder %s21, 9
      %s306 = scalar_select %p305, %s21, 9
      %s307 = smul.addr %s306, 14
      %s308 = smul.addr %s304, 140
      %s309 = sadd.s32 %s307, %s308
      %s310 = smul.addr %s309, 4
      %s311 = scalar_lea.vmem %s0, %s310
      %s312 = sadd.s32 %s21, 1
      %p313 = scmp.lt.s32.totalorder %s20, 1
      %s314 = scalar_select %p313, %s20, 1
      %p315 = scmp.lt.s32.totalorder %s312, 9
      %s316 = scalar_select %p315, %s312, 9
      %s317 = smul.addr %s316, 14
      %s318 = smul.addr %s314, 140
      %s319 = sadd.s32 %s317, %s318
      %s320 = smul.addr %s319, 4
      %s321 = scalar_lea.vmem %s1, %s320
      %s322 = sadd.s32 %s21, 1
      %s323 = sadd.s32 %s21, 2
      %p324 = scmp.lt.s32.totalorder %s20, 1
      %s325 = scalar_select %p324, %s20, 1
      %p326 = scmp.lt.s32.totalorder %s323, 9
      %s327 = scalar_select %p326, %s323, 9
      %s328 = smul.addr %s327, 14
      %s329 = smul.addr %s325, 140
      %s330 = sadd.s32 %s328, %s329
      %s331 = smul.addr %s330, 4
      %s332 = scalar_lea.vmem %s2, %s331
      %s333 = sadd.s32 %s21, 2
      %p334 = scmp.lt.s32.totalorder %s20, 1
      %s335 = scalar_select %p334, %s20, 1
      %p336 = scmp.lt.s32.totalorder %s21, 7
      %s337 = scalar_select %p336, %s21, 7
      %s338 = smul.addr %s337, 10
      %s339 = smul.addr %s335, 80
      %s340 = sadd.s32 %s338, %s339
      %s341 = smul.addr %s340, 8
      %s342 = scalar_lea.vmem %s5, %s341
      %v343 = vld [vmem:[%s311] sm:$0xf]
      %v344 = vld [vmem:[%s311 + $0x4] sm:$0xf]
      %v345 = vld [vmem:[%s311 + $0x8] sm:$0xf]
      %v346 = vld [vmem:[%s311 + $0xc] sm:$0xf]
      %v347 = vld [vmem:[%s311 + $0x10] sm:$0xf]
      %v348 = vld [vmem:[%s311 + $0x14] sm:$0xf]
      %v349 = vld [vmem:[%s311 + $0x18] sm:$0xf]
      %v350 = vld [vmem:[%s311 + $0x1c] sm:$0xf]
      %v351 = vld [vmem:[%s311 + $0x20] sm:$0xf]
      %v352 = vld [vmem:[%s311 + $0x24] sm:$0xf]
      %v353 = vld [vmem:[%s3] sm:$0xf]
      %v354 = vld [vmem:[%s3 + $0x4] sm:$0xf]
      %v355 = vld [vmem:[%s3 + $0x8] sm:$0xf]
      %v356 = vld [vmem:[%s3 + $0xc] sm:$0xf]
      %v357 = vld [vmem:[%s3 + $0x10] sm:$0xf]
      %v358 = vld [vmem:[%s3 + $0x14] sm:$0xf]
      %v359 = vld [vmem:[%s3 + $0x18] sm:$0xf]
      %v360 = vld [vmem:[%s3 + $0x1c] sm:$0xf]
      %v361 = vld [vmem:[%s3 + $0x20] sm:$0xf]
      %v362 = vld [vmem:[%s3 + $0x24] sm:$0xf]
      %v363 = vld [vmem:[%s3 + $0x28] sm:$0xf]
      %v364 = vld [vmem:[%s3 + $0x2c] sm:$0xf]
      %v365 = vld [vmem:[%s3 + $0x30] sm:$0xf]
      %v366 = vld [vmem:[%s3 + $0x34] sm:$0xf]
      %v367 = vld [vmem:[%s3 + $0x38] sm:$0xf]
      %v368 = vld [vmem:[%s3 + $0x3c] sm:$0xf]
      %v369 = vld [vmem:[%s311 + $0x28] sm:$0x1]
      %s370 = scalar_lea.vmem %s3, 64
      %v371 = vld [vmem:[%s370] sm:$0xf]
      %v372 = vld [vmem:[%s370 + $0x4] sm:$0xf]
      %v373 = vld [vmem:[%s370 + $0x8] sm:$0xf]
      %v374 = vld [vmem:[%s370 + $0xc] sm:$0xf]
      %v375 = vld [vmem:[%s370 + $0x10] sm:$0xf]
      %v376 = vld [vmem:[%s370 + $0x14] sm:$0xf]
      %v377 = vld [vmem:[%s370 + $0x18] sm:$0xf]
      %v378 = vld [vmem:[%s370 + $0x1c] sm:$0xf]
      %v379 = vld [vmem:[%s370 + $0x20] sm:$0xf]
      %v380 = vld [vmem:[%s370 + $0x24] sm:$0xf]
      %v381 = vld [vmem:[%s370 + $0x28] sm:$0xf]
      %v382 = vld [vmem:[%s370 + $0x2c] sm:$0xf]
      %v383 = vld [vmem:[%s370 + $0x30] sm:$0xf]
      %v384 = vld [vmem:[%s370 + $0x34] sm:$0xf]
      %v385 = vld [vmem:[%s370 + $0x38] sm:$0xf]
      %v386 = vld [vmem:[%s370 + $0x3c] sm:$0xf]
      %v398 = vunpack.c.l.b16 %v343
      %v399 = vunpack.c.l.b16 %v344
      %v400 = vunpack.c.l.b16 %v345
      %v401 = vunpack.c.l.b16 %v346
      %v402 = vunpack.c.l.b16 %v347
      %v403 = vunpack.c.l.b16 %v348
      %v404 = vunpack.c.l.b16 %v349
      %v405 = vunpack.c.l.b16 %v350
      %v406 = vunpack.c.l.b16 %v351
      %v407 = vunpack.c.l.b16 %v352
      %v408 = vunpack.c.l.b16 %v369
      %v409 = vpack.c.b16 %v399, %v398
      %v410 = vpack.c.b16 %v401, %v400
      %v411 = vpack.c.b16 %v403, %v402
      %v412 = vpack.c.b16 %v405, %v404
      %v413 = vpack.c.b16 %v407, %v406
      %v414 = vpack.c.b16 %v408, %v408
      %vm415 = vsmask.f32 7424
      %v417 = vshrl.u32 %v409, 16
      %v419 = vshll.u32 %v409, 16
      %v421 = vrot.slane %v419, 1
      %v422 = vor.u32 %v417, %v421
      %v424 = vshll.u32 %v410, 16
      %v426 = vrot.slane %v424, 1
      %v427 = vsel %vm415, %v422, %v426
      %v428 = vshrl.u32 %v410, 16
      %v430 = vor.u32 %v428, %v426
      %v432 = vshll.u32 %v411, 16
      %v434 = vrot.slane %v432, 1
      %v435 = vsel %vm415, %v430, %v434
      %v436 = vshrl.u32 %v411, 16
      %v438 = vor.u32 %v436, %v434
      %v440 = vshll.u32 %v412, 16
      %v442 = vrot.slane %v440, 1
      %v443 = vsel %vm415, %v438, %v442
      %v444 = vshrl.u32 %v412, 16
      %v446 = vor.u32 %v444, %v442
      %v448 = vshll.u32 %v413, 16
      %v450 = vrot.slane %v448, 1
      %v451 = vsel %vm415, %v446, %v450
      %v452 = vshrl.u32 %v413, 16
      %v454 = vor.u32 %v452, %v450
      %v456 = vshll.u32 %v414, 16
      %v458 = vrot.slane %v456, 1
      %v459 = vsel %vm415, %v454, %v458
      %v481 = vunpack.c.l.b16 %v371
      %v482 = vunpack.c.l.b16 %v372
      %v483 = vunpack.c.l.b16 %v373
      %v484 = vunpack.c.l.b16 %v374
      %v485 = vunpack.c.l.b16 %v375
      %v486 = vunpack.c.l.b16 %v376
      %v487 = vunpack.c.l.b16 %v377
      %v488 = vunpack.c.l.b16 %v378
      %v489 = vunpack.c.l.b16 %v379
      %v490 = vunpack.c.l.b16 %v380
      %v491 = vunpack.c.l.b16 %v381
      %v492 = vunpack.c.l.b16 %v382
      %v493 = vunpack.c.l.b16 %v383
      %v494 = vunpack.c.l.b16 %v384
      %v495 = vunpack.c.l.b16 %v385
      %v496 = vunpack.c.l.b16 %v386
      %v497 = vpack.c.b16 %v482, %v481
      %v498 = vpack.c.b16 %v484, %v483
      %v499 = vpack.c.b16 %v486, %v485
      %v500 = vpack.c.b16 %v488, %v487
      %v501 = vpack.c.b16 %v490, %v489
      %v502 = vpack.c.b16 %v492, %v491
      %v503 = vpack.c.b16 %v494, %v493
      %v504 = vpack.c.b16 %v496, %v495
      %513 = vmatpush.bf16.msra.mxu0 %v504
      %514 = vmatpush.bf16.msra.mxu0 %v503
      %515 = vmatpush.bf16.msra.mxu0 %v502
      %516 = vmatpush.bf16.msra.mxu0 %v501
      %517 = vmatpush.bf16.msra.mxu0 %v500
      %518 = vmatpush.bf16.msra.mxu0 %v499
      %519 = vmatpush.bf16.msra.mxu0 %v498
      %520 = vmatpush.bf16.msra.mxu0 %v497
      %521 = vmatmul.bf16.gmra.mxu0 %v427
      %v522 = vpop.f32.mrf.mxu0
      %v523 = vadd.f32 0.0, %v522
      %v524 = vpop.f32.mrf.mxu0
      %v525 = vadd.f32 0.0, %v524
      %526 = vmatmul.bf16.gmra.mxu0 %v435
      %v527 = vpop.f32.mrf.mxu0
      %v528 = vadd.f32 0.0, %v527
      %v529 = vpop.f32.mrf.mxu0
      %v530 = vadd.f32 0.0, %v529
      %531 = vmatmul.bf16.gmra.mxu0 %v443
      %v532 = vpop.f32.mrf.mxu0
      %v533 = vadd.f32 0.0, %v532
      %v534 = vpop.f32.mrf.mxu0
      %v535 = vadd.f32 0.0, %v534
      %536 = vmatmul.bf16.gmra.mxu0 %v451
      %v537 = vpop.f32.mrf.mxu0
      %v538 = vadd.f32 0.0, %v537
      %v539 = vpop.f32.mrf.mxu0
      %v540 = vadd.f32 0.0, %v539
      %541 = vmatmul.bf16.gmra.mxu0 %v459
      %v542 = vpop.f32.mrf.mxu0
      %v543 = vadd.f32 0.0, %v542
      %v544 = vpop.f32.mrf.mxu0
      %v545 = vadd.f32 0.0, %v544
      %546 = vdwg.mxu0
      %v568 = vunpack.c.l.b16 %v353
      %v569 = vunpack.c.l.b16 %v354
      %v570 = vunpack.c.l.b16 %v355
      %v571 = vunpack.c.l.b16 %v356
      %v572 = vunpack.c.l.b16 %v357
      %v573 = vunpack.c.l.b16 %v358
      %v574 = vunpack.c.l.b16 %v359
      %v575 = vunpack.c.l.b16 %v360
      %v576 = vunpack.c.l.b16 %v361
      %v577 = vunpack.c.l.b16 %v362
      %v578 = vunpack.c.l.b16 %v363
      %v579 = vunpack.c.l.b16 %v364
      %v580 = vunpack.c.l.b16 %v365
      %v581 = vunpack.c.l.b16 %v366
      %v582 = vunpack.c.l.b16 %v367
      %v583 = vunpack.c.l.b16 %v368
      %v584 = vpack.c.b16 %v569, %v568
      %v585 = vpack.c.b16 %v571, %v570
      %v586 = vpack.c.b16 %v573, %v572
      %v587 = vpack.c.b16 %v575, %v574
      %v588 = vpack.c.b16 %v577, %v576
      %v589 = vpack.c.b16 %v579, %v578
      %v590 = vpack.c.b16 %v581, %v580
      %v591 = vpack.c.b16 %v583, %v582
      %600 = vmatpush.bf16.msra.mxu0 %v591
      %601 = vmatpush.bf16.msra.mxu0 %v590
      %602 = vmatpush.bf16.msra.mxu0 %v589
      %603 = vmatpush.bf16.msra.mxu0 %v588
      %604 = vmatpush.bf16.msra.mxu0 %v587
      %605 = vmatpush.bf16.msra.mxu0 %v586
      %606 = vmatpush.bf16.msra.mxu0 %v585
      %607 = vmatpush.bf16.msra.mxu0 %v584
      %608 = vmatmul.bf16.gmra.mxu0 %v409
      %v609 = vpop.f32.mrf.mxu0
      %v610 = vadd.f32 %v523, %v609
      %v611 = vpop.f32.mrf.mxu0
      %v612 = vadd.f32 %v525, %v611
      %613 = vmatmul.bf16.gmra.mxu0 %v410
      %v614 = vpop.f32.mrf.mxu0
      %v615 = vadd.f32 %v528, %v614
      %v616 = vpop.f32.mrf.mxu0
      %v617 = vadd.f32 %v530, %v616
      %618 = vmatmul.bf16.gmra.mxu0 %v411
      %v619 = vpop.f32.mrf.mxu0
      %v620 = vadd.f32 %v533, %v619
      %v621 = vpop.f32.mrf.mxu0
      %v622 = vadd.f32 %v535, %v621
      %623 = vmatmul.bf16.gmra.mxu0 %v412
      %v624 = vpop.f32.mrf.mxu0
      %v625 = vadd.f32 %v538, %v624
      %v626 = vpop.f32.mrf.mxu0
      %v627 = vadd.f32 %v540, %v626
      %628 = vmatmul.bf16.gmra.mxu0 %v413
      %v629 = vpop.f32.mrf.mxu0
      %v630 = vadd.f32 %v543, %v629
      %v631 = vpop.f32.mrf.mxu0
      %v632 = vadd.f32 %v545, %v631
      %633 = vdwg.mxu0
      %v634 = vld [vmem:[%s311] sm:$0xe]
      %s635 = scalar_lea.vmem %s3, 128
      %v636 = vld [vmem:[%s635] sm:$0xf]
      %v637 = vld [vmem:[%s635 + $0x4] sm:$0xf]
      %v638 = vld [vmem:[%s635 + $0x8] sm:$0xf]
      %v639 = vld [vmem:[%s635 + $0xc] sm:$0xf]
      %v640 = vld [vmem:[%s635 + $0x10] sm:$0xf]
      %v641 = vld [vmem:[%s635 + $0x14] sm:$0xf]
      %v642 = vld [vmem:[%s635 + $0x18] sm:$0xf]
      %v643 = vld [vmem:[%s635 + $0x1c] sm:$0xf]
      %v644 = vld [vmem:[%s635 + $0x20] sm:$0xf]
      %v645 = vld [vmem:[%s635 + $0x24] sm:$0xf]
      %v646 = vld [vmem:[%s635 + $0x28] sm:$0xf]
      %v647 = vld [vmem:[%s635 + $0x2c] sm:$0xf]
      %v648 = vld [vmem:[%s635 + $0x30] sm:$0xf]
      %v649 = vld [vmem:[%s635 + $0x34] sm:$0xf]
      %v650 = vld [vmem:[%s635 + $0x38] sm:$0xf]
      %v651 = vld [vmem:[%s635 + $0x3c] sm:$0xf]
      %v653 = vunpack.c.l.b16 %v634
      %v654 = vpack.c.b16 %v399, %v653
      %vm655 = vcmask 1046528
      %v656 = vrot.slane %v654, 1
      %v657 = vrot.slane %v410, 1
      %v658 = vsel %vm655, %v656, %v657
      %v659 = vrot.slane %v411, 1
      %v660 = vsel %vm655, %v657, %v659
      %v661 = vrot.slane %v412, 1
      %v662 = vsel %vm655, %v659, %v661
      %v663 = vrot.slane %v413, 1
      %v664 = vsel %vm655, %v661, %v663
      %v665 = vrot.slane %v414, 1
      %v666 = vsel %vm655, %v663, %v665
      %v688 = vunpack.c.l.b16 %v636
      %v689 = vunpack.c.l.b16 %v637
      %v690 = vunpack.c.l.b16 %v638
      %v691 = vunpack.c.l.b16 %v639
      %v692 = vunpack.c.l.b16 %v640
      %v693 = vunpack.c.l.b16 %v641
      %v694 = vunpack.c.l.b16 %v642
      %v695 = vunpack.c.l.b16 %v643
      %v696 = vunpack.c.l.b16 %v644
      %v697 = vunpack.c.l.b16 %v645
      %v698 = vunpack.c.l.b16 %v646
      %v699 = vunpack.c.l.b16 %v647
      %v700 = vunpack.c.l.b16 %v648
      %v701 = vunpack.c.l.b16 %v649
      %v702 = vunpack.c.l.b16 %v650
      %v703 = vunpack.c.l.b16 %v651
      %v704 = vpack.c.b16 %v689, %v688
      %v705 = vpack.c.b16 %v691, %v690
      %v706 = vpack.c.b16 %v693, %v692
      %v707 = vpack.c.b16 %v695, %v694
      %v708 = vpack.c.b16 %v697, %v696
      %v709 = vpack.c.b16 %v699, %v698
      %v710 = vpack.c.b16 %v701, %v700
      %v711 = vpack.c.b16 %v703, %v702
      %720 = vmatpush.bf16.msra.mxu0 %v711
      %721 = vmatpush.bf16.msra.mxu0 %v710
      %722 = vmatpush.bf16.msra.mxu0 %v709
      %723 = vmatpush.bf16.msra.mxu0 %v708
      %724 = vmatpush.bf16.msra.mxu0 %v707
      %725 = vmatpush.bf16.msra.mxu0 %v706
      %726 = vmatpush.bf16.msra.mxu0 %v705
      %727 = vmatpush.bf16.msra.mxu0 %v704
      %728 = vmatmul.bf16.gmra.mxu0 %v658
      %v729 = vpop.f32.mrf.mxu0
      %v730 = vadd.f32 0.0, %v729
      %v731 = vpop.f32.mrf.mxu0
      %v732 = vadd.f32 0.0, %v731
      %733 = vmatmul.bf16.gmra.mxu0 %v660
      %v734 = vpop.f32.mrf.mxu0
      %v735 = vadd.f32 0.0, %v734
      %v736 = vpop.f32.mrf.mxu0
      %v737 = vadd.f32 0.0, %v736
      %738 = vmatmul.bf16.gmra.mxu0 %v662
      %v739 = vpop.f32.mrf.mxu0
      %v740 = vadd.f32 0.0, %v739
      %v741 = vpop.f32.mrf.mxu0
      %v742 = vadd.f32 0.0, %v741
      %743 = vmatmul.bf16.gmra.mxu0 %v664
      %v744 = vpop.f32.mrf.mxu0
      %v745 = vadd.f32 0.0, %v744
      %v746 = vpop.f32.mrf.mxu0
      %v747 = vadd.f32 0.0, %v746
      %748 = vmatmul.bf16.gmra.mxu0 %v666
      %v749 = vpop.f32.mrf.mxu0
      %v750 = vadd.f32 0.0, %v749
      %v751 = vpop.f32.mrf.mxu0
      %v752 = vadd.f32 0.0, %v751
      %753 = vdwg.mxu0
      %v754 = vadd.f32 %v610, %v730
      %v755 = vadd.f32 %v612, %v732
      %v756 = vadd.f32 %v615, %v735
      %v757 = vadd.f32 %v617, %v737
      %v758 = vadd.f32 %v620, %v740
      %v759 = vadd.f32 %v622, %v742
      %v760 = vadd.f32 %v625, %v745
      %v761 = vadd.f32 %v627, %v747
      %v762 = vadd.f32 %v630, %v750
      %v763 = vadd.f32 %v632, %v752
      %v764 = vld [vmem:[%s311 + $0x4] sm:$0xe]
      %v765 = vld [vmem:[%s311 + $0x8] sm:$0xf]
      %v766 = vld [vmem:[%s311 + $0xc] sm:$0xf]
      %v767 = vld [vmem:[%s311 + $0x10] sm:$0xf]
      %v768 = vld [vmem:[%s311 + $0x14] sm:$0xf]
      %v769 = vld [vmem:[%s311 + $0x18] sm:$0xf]
      %v770 = vld [vmem:[%s311 + $0x1c] sm:$0xf]
      %v771 = vld [vmem:[%s311 + $0x20] sm:$0xf]
      %v772 = vld [vmem:[%s311 + $0x24] sm:$0xf]
      %v773 = vld [vmem:[%s311 + $0x28] sm:$0xf]
      %v774 = vld [vmem:[%s311 + $0x2c] sm:$0x1]
      %s775 = scalar_lea.vmem %s3, 192
      %v776 = vld [vmem:[%s775] sm:$0xf]
      %v777 = vld [vmem:[%s775 + $0x4] sm:$0xf]
      %v778 = vld [vmem:[%s775 + $0x8] sm:$0xf]
      %v779 = vld [vmem:[%s775 + $0xc] sm:$0xf]
      %v780 = vld [vmem:[%s775 + $0x10] sm:$0xf]
      %v781 = vld [vmem:[%s775 + $0x14] sm:$0xf]
      %v782 = vld [vmem:[%s775 + $0x18] sm:$0xf]
      %v783 = vld [vmem:[%s775 + $0x1c] sm:$0xf]
      %v784 = vld [vmem:[%s775 + $0x20] sm:$0xf]
      %v785 = vld [vmem:[%s775 + $0x24] sm:$0xf]
      %v786 = vld [vmem:[%s775 + $0x28] sm:$0xf]
      %v787 = vld [vmem:[%s775 + $0x2c] sm:$0xf]
      %v788 = vld [vmem:[%s775 + $0x30] sm:$0xf]
      %v789 = vld [vmem:[%s775 + $0x34] sm:$0xf]
      %v790 = vld [vmem:[%s775 + $0x38] sm:$0xf]
      %v791 = vld [vmem:[%s775 + $0x3c] sm:$0xf]
      %v803 = vunpack.c.l.b16 %v764
      %v804 = vunpack.c.l.b16 %v765
      %v805 = vunpack.c.l.b16 %v766
      %v806 = vunpack.c.l.b16 %v767
      %v807 = vunpack.c.l.b16 %v768
      %v808 = vunpack.c.l.b16 %v769
      %v809 = vunpack.c.l.b16 %v770
      %v810 = vunpack.c.l.b16 %v771
      %v811 = vunpack.c.l.b16 %v772
      %v812 = vunpack.c.l.b16 %v773
      %v813 = vunpack.c.l.b16 %v774
      %v814 = vpack.c.b16 %v804, %v803
      %v815 = vpack.c.b16 %v806, %v805
      %v816 = vpack.c.b16 %v808, %v807
      %v817 = vpack.c.b16 %v810, %v809
      %v818 = vpack.c.b16 %v812, %v811
      %v819 = vpack.c.b16 %v813, %v813
      %v820 = vrot.slane %v814, 1
      %v821 = vrot.slane %v815, 1
      %v822 = vsel %vm655, %v820, %v821
      %v823 = vrot.slane %v816, 1
      %v824 = vsel %vm655, %v821, %v823
      %v825 = vrot.slane %v817, 1
      %v826 = vsel %vm655, %v823, %v825
      %v827 = vrot.slane %v818, 1
      %v828 = vsel %vm655, %v825, %v827
      %v829 = vrot.slane %v819, 1
      %v830 = vsel %vm655, %v827, %v829
      %v852 = vunpack.c.l.b16 %v776
      %v853 = vunpack.c.l.b16 %v777
      %v854 = vunpack.c.l.b16 %v778
      %v855 = vunpack.c.l.b16 %v779
      %v856 = vunpack.c.l.b16 %v780
      %v857 = vunpack.c.l.b16 %v781
      %v858 = vunpack.c.l.b16 %v782
      %v859 = vunpack.c.l.b16 %v783
      %v860 = vunpack.c.l.b16 %v784
      %v861 = vunpack.c.l.b16 %v785
      %v862 = vunpack.c.l.b16 %v786
      %v863 = vunpack.c.l.b16 %v787
      %v864 = vunpack.c.l.b16 %v788
      %v865 = vunpack.c.l.b16 %v789
      %v866 = vunpack.c.l.b16 %v790
      %v867 = vunpack.c.l.b16 %v791
      %v868 = vpack.c.b16 %v853, %v852
      %v869 = vpack.c.b16 %v855, %v854
      %v870 = vpack.c.b16 %v857, %v856
      %v871 = vpack.c.b16 %v859, %v858
      %v872 = vpack.c.b16 %v861, %v860
      %v873 = vpack.c.b16 %v863, %v862
      %v874 = vpack.c.b16 %v865, %v864
      %v875 = vpack.c.b16 %v867, %v866
      %884 = vmatpush.bf16.msra.mxu0 %v875
      %885 = vmatpush.bf16.msra.mxu0 %v874
      %886 = vmatpush.bf16.msra.mxu0 %v873
      %887 = vmatpush.bf16.msra.mxu0 %v872
      %888 = vmatpush.bf16.msra.mxu0 %v871
      %889 = vmatpush.bf16.msra.mxu0 %v870
      %890 = vmatpush.bf16.msra.mxu0 %v869
      %891 = vmatpush.bf16.msra.mxu0 %v868
      %892 = vmatmul.bf16.gmra.mxu0 %v822
      %v893 = vpop.f32.mrf.mxu0
      %v894 = vadd.f32 0.0, %v893
      %v895 = vpop.f32.mrf.mxu0
      %v896 = vadd.f32 0.0, %v895
      %897 = vmatmul.bf16.gmra.mxu0 %v824
      %v898 = vpop.f32.mrf.mxu0
      %v899 = vadd.f32 0.0, %v898
      %v900 = vpop.f32.mrf.mxu0
      %v901 = vadd.f32 0.0, %v900
      %902 = vmatmul.bf16.gmra.mxu0 %v826
      %v903 = vpop.f32.mrf.mxu0
      %v904 = vadd.f32 0.0, %v903
      %v905 = vpop.f32.mrf.mxu0
      %v906 = vadd.f32 0.0, %v905
      %907 = vmatmul.bf16.gmra.mxu0 %v828
      %v908 = vpop.f32.mrf.mxu0
      %v909 = vadd.f32 0.0, %v908
      %v910 = vpop.f32.mrf.mxu0
      %v911 = vadd.f32 0.0, %v910
      %912 = vmatmul.bf16.gmra.mxu0 %v830
      %v913 = vpop.f32.mrf.mxu0
      %v914 = vadd.f32 0.0, %v913
      %v915 = vpop.f32.mrf.mxu0
      %v916 = vadd.f32 0.0, %v915
      %917 = vdwg.mxu0
      %v918 = vadd.f32 %v754, %v894
      %v919 = vadd.f32 %v755, %v896
      %v920 = vadd.f32 %v756, %v899
      %v921 = vadd.f32 %v757, %v901
      %v922 = vadd.f32 %v758, %v904
      %v923 = vadd.f32 %v759, %v906
      %v924 = vadd.f32 %v760, %v909
      %v925 = vadd.f32 %v761, %v911
      %v926 = vadd.f32 %v762, %v914
      %v927 = vadd.f32 %v763, %v916
      %v928 = vld [vmem:[%s311 + $0x2c] sm:$0x3]
      %s929 = scalar_lea.vmem %s3, 256
      %v930 = vld [vmem:[%s929] sm:$0xf]
      %v931 = vld [vmem:[%s929 + $0x4] sm:$0xf]
      %v932 = vld [vmem:[%s929 + $0x8] sm:$0xf]
      %v933 = vld [vmem:[%s929 + $0xc] sm:$0xf]
      %v934 = vld [vmem:[%s929 + $0x10] sm:$0xf]
      %v935 = vld [vmem:[%s929 + $0x14] sm:$0xf]
      %v936 = vld [vmem:[%s929 + $0x18] sm:$0xf]
      %v937 = vld [vmem:[%s929 + $0x1c] sm:$0xf]
      %v938 = vld [vmem:[%s929 + $0x20] sm:$0xf]
      %v939 = vld [vmem:[%s929 + $0x24] sm:$0xf]
      %v940 = vld [vmem:[%s929 + $0x28] sm:$0xf]
      %v941 = vld [vmem:[%s929 + $0x2c] sm:$0xf]
      %v942 = vld [vmem:[%s929 + $0x30] sm:$0xf]
      %v943 = vld [vmem:[%s929 + $0x34] sm:$0xf]
      %v944 = vld [vmem:[%s929 + $0x38] sm:$0xf]
      %v945 = vld [vmem:[%s929 + $0x3c] sm:$0xf]
      %v947 = vunpack.c.l.b16 %v928
      %v948 = vpack.c.b16 %v947, %v947
      %vm949 = vsmask.f32 6400
      %v951 = vshrl.u32 %v814, 16
      %v953 = vrot.slane %v951, 1
      %v954 = vshll.u32 %v814, 16
      %v956 = vrot.slane %v954, 2
      %v957 = vor.u32 %v953, %v956
      %v959 = vshrl.u32 %v815, 16
      %v961 = vrot.slane %v959, 1
      %v962 = vshll.u32 %v815, 16
      %v964 = vrot.slane %v962, 2
      %v965 = vor.u32 %v961, %v964
      %v966 = vsel %vm949, %v957, %v965
      %v968 = vshrl.u32 %v816, 16
      %v970 = vrot.slane %v968, 1
      %v971 = vshll.u32 %v816, 16
      %v973 = vrot.slane %v971, 2
      %v974 = vor.u32 %v970, %v973
      %v975 = vsel %vm949, %v965, %v974
      %v977 = vshrl.u32 %v817, 16
      %v979 = vrot.slane %v977, 1
      %v980 = vshll.u32 %v817, 16
      %v982 = vrot.slane %v980, 2
      %v983 = vor.u32 %v979, %v982
      %v984 = vsel %vm949, %v974, %v983
      %v986 = vshrl.u32 %v818, 16
      %v988 = vrot.slane %v986, 1
      %v989 = vshll.u32 %v818, 16
      %v991 = vrot.slane %v989, 2
      %v992 = vor.u32 %v988, %v991
      %v993 = vsel %vm949, %v983, %v992
      %v995 = vshrl.u32 %v948, 16
      %v997 = vrot.slane %v995, 1
      %v998 = vshll.u32 %v948, 16
      %v1000 = vrot.slane %v998, 2
      %v1001 = vor.u32 %v997, %v1000
      %v1002 = vsel %vm949, %v992, %v1001
      %v1024 = vunpack.c.l.b16 %v930
      %v1025 = vunpack.c.l.b16 %v931
      %v1026 = vunpack.c.l.b16 %v932
      %v1027 = vunpack.c.l.b16 %v933
      %v1028 = vunpack.c.l.b16 %v934
      %v1029 = vunpack.c.l.b16 %v935
      %v1030 = vunpack.c.l.b16 %v936
      %v1031 = vunpack.c.l.b16 %v937
      %v1032 = vunpack.c.l.b16 %v938
      %v1033 = vunpack.c.l.b16 %v939
      %v1034 = vunpack.c.l.b16 %v940
      %v1035 = vunpack.c.l.b16 %v941
      %v1036 = vunpack.c.l.b16 %v942
      %v1037 = vunpack.c.l.b16 %v943
      %v1038 = vunpack.c.l.b16 %v944
      %v1039 = vunpack.c.l.b16 %v945
      %v1040 = vpack.c.b16 %v1025, %v1024
      %v1041 = vpack.c.b16 %v1027, %v1026
      %v1042 = vpack.c.b16 %v1029, %v1028
      %v1043 = vpack.c.b16 %v1031, %v1030
      %v1044 = vpack.c.b16 %v1033, %v1032
      %v1045 = vpack.c.b16 %v1035, %v1034
      %v1046 = vpack.c.b16 %v1037, %v1036
      %v1047 = vpack.c.b16 %v1039, %v1038
      %1056 = vmatpush.bf16.msra.mxu0 %v1047
      %1057 = vmatpush.bf16.msra.mxu0 %v1046
      %1058 = vmatpush.bf16.msra.mxu0 %v1045
      %1059 = vmatpush.bf16.msra.mxu0 %v1044
      %1060 = vmatpush.bf16.msra.mxu0 %v1043
      %1061 = vmatpush.bf16.msra.mxu0 %v1042
      %1062 = vmatpush.bf16.msra.mxu0 %v1041
      %1063 = vmatpush.bf16.msra.mxu0 %v1040
      %1064 = vmatmul.bf16.gmra.mxu0 %v966
      %v1065 = vpop.f32.mrf.mxu0
      %v1066 = vadd.f32 0.0, %v1065
      %v1067 = vpop.f32.mrf.mxu0
      %v1068 = vadd.f32 0.0, %v1067
      %1069 = vmatmul.bf16.gmra.mxu0 %v975
      %v1070 = vpop.f32.mrf.mxu0
      %v1071 = vadd.f32 0.0, %v1070
      %v1072 = vpop.f32.mrf.mxu0
      %v1073 = vadd.f32 0.0, %v1072
      %1074 = vmatmul.bf16.gmra.mxu0 %v984
      %v1075 = vpop.f32.mrf.mxu0
      %v1076 = vadd.f32 0.0, %v1075
      %v1077 = vpop.f32.mrf.mxu0
      %v1078 = vadd.f32 0.0, %v1077
      %1079 = vmatmul.bf16.gmra.mxu0 %v993
      %v1080 = vpop.f32.mrf.mxu0
      %v1081 = vadd.f32 0.0, %v1080
      %v1082 = vpop.f32.mrf.mxu0
      %v1083 = vadd.f32 0.0, %v1082
      %1084 = vmatmul.bf16.gmra.mxu0 %v1002
      %v1085 = vpop.f32.mrf.mxu0
      %v1086 = vadd.f32 0.0, %v1085
      %v1087 = vpop.f32.mrf.mxu0
      %v1088 = vadd.f32 0.0, %v1087
      %1089 = vdwg.mxu0
      %v1090 = vadd.f32 %v918, %v1066
      %v1091 = vadd.f32 %v919, %v1068
      %v1092 = vadd.f32 %v920, %v1071
      %v1093 = vadd.f32 %v921, %v1073
      %v1094 = vadd.f32 %v922, %v1076
      %v1095 = vadd.f32 %v923, %v1078
      %v1096 = vadd.f32 %v924, %v1081
      %v1097 = vadd.f32 %v925, %v1083
      %v1098 = vadd.f32 %v926, %v1086
      %v1099 = vadd.f32 %v927, %v1088
      %v1100 = vld [vmem:[%s311 + $0x4] sm:$0xc]
      %s1101 = scalar_lea.vmem %s3, 320
      %v1102 = vld [vmem:[%s1101] sm:$0xf]
      %v1103 = vld [vmem:[%s1101 + $0x4] sm:$0xf]
      %v1104 = vld [vmem:[%s1101 + $0x8] sm:$0xf]
      %v1105 = vld [vmem:[%s1101 + $0xc] sm:$0xf]
      %v1106 = vld [vmem:[%s1101 + $0x10] sm:$0xf]
      %v1107 = vld [vmem:[%s1101 + $0x14] sm:$0xf]
      %v1108 = vld [vmem:[%s1101 + $0x18] sm:$0xf]
      %v1109 = vld [vmem:[%s1101 + $0x1c] sm:$0xf]
      %v1110 = vld [vmem:[%s1101 + $0x20] sm:$0xf]
      %v1111 = vld [vmem:[%s1101 + $0x24] sm:$0xf]
      %v1112 = vld [vmem:[%s1101 + $0x28] sm:$0xf]
      %v1113 = vld [vmem:[%s1101 + $0x2c] sm:$0xf]
      %v1114 = vld [vmem:[%s1101 + $0x30] sm:$0xf]
      %v1115 = vld [vmem:[%s1101 + $0x34] sm:$0xf]
      %v1116 = vld [vmem:[%s1101 + $0x38] sm:$0xf]
      %v1117 = vld [vmem:[%s1101 + $0x3c] sm:$0xf]
      %v1119 = vunpack.c.l.b16 %v1100
      %v1120 = vpack.c.b16 %v804, %v1119
      %vm1121 = vcmask 1045504
      %v1122 = vrot.slane %v1120, 2
      %v1123 = vrot.slane %v815, 2
      %v1124 = vsel %vm1121, %v1122, %v1123
      %v1125 = vrot.slane %v816, 2
      %v1126 = vsel %vm1121, %v1123, %v1125
      %v1127 = vrot.slane %v817, 2
      %v1128 = vsel %vm1121, %v1125, %v1127
      %v1129 = vrot.slane %v818, 2
      %v1130 = vsel %vm1121, %v1127, %v1129
      %v1131 = vrot.slane %v948, 2
      %v1132 = vsel %vm1121, %v1129, %v1131
      %v1154 = vunpack.c.l.b16 %v1102
      %v1155 = vunpack.c.l.b16 %v1103
      %v1156 = vunpack.c.l.b16 %v1104
      %v1157 = vunpack.c.l.b16 %v1105
      %v1158 = vunpack.c.l.b16 %v1106
      %v1159 = vunpack.c.l.b16 %v1107
      %v1160 = vunpack.c.l.b16 %v1108
      %v1161 = vunpack.c.l.b16 %v1109
      %v1162 = vunpack.c.l.b16 %v1110
      %v1163 = vunpack.c.l.b16 %v1111
      %v1164 = vunpack.c.l.b16 %v1112
      %v1165 = vunpack.c.l.b16 %v1113
      %v1166 = vunpack.c.l.b16 %v1114
      %v1167 = vunpack.c.l.b16 %v1115
      %v1168 = vunpack.c.l.b16 %v1116
      %v1169 = vunpack.c.l.b16 %v1117
      %v1170 = vpack.c.b16 %v1155, %v1154
      %v1171 = vpack.c.b16 %v1157, %v1156
      %v1172 = vpack.c.b16 %v1159, %v1158
      %v1173 = vpack.c.b16 %v1161, %v1160
      %v1174 = vpack.c.b16 %v1163, %v1162
      %v1175 = vpack.c.b16 %v1165, %v1164
      %v1176 = vpack.c.b16 %v1167, %v1166
      %v1177 = vpack.c.b16 %v1169, %v1168
      %1186 = vmatpush.bf16.msra.mxu0 %v1177
      %1187 = vmatpush.bf16.msra.mxu0 %v1176
      %1188 = vmatpush.bf16.msra.mxu0 %v1175
      %1189 = vmatpush.bf16.msra.mxu0 %v1174
      %1190 = vmatpush.bf16.msra.mxu0 %v1173
      %1191 = vmatpush.bf16.msra.mxu0 %v1172
      %1192 = vmatpush.bf16.msra.mxu0 %v1171
      %1193 = vmatpush.bf16.msra.mxu0 %v1170
      %1194 = vmatmul.bf16.gmra.mxu0 %v1124
      %v1195 = vpop.f32.mrf.mxu0
      %v1196 = vadd.f32 0.0, %v1195
      %v1197 = vpop.f32.mrf.mxu0
      %v1198 = vadd.f32 0.0, %v1197
      %1199 = vmatmul.bf16.gmra.mxu0 %v1126
      %v1200 = vpop.f32.mrf.mxu0
      %v1201 = vadd.f32 0.0, %v1200
      %v1202 = vpop.f32.mrf.mxu0
      %v1203 = vadd.f32 0.0, %v1202
      %1204 = vmatmul.bf16.gmra.mxu0 %v1128
      %v1205 = vpop.f32.mrf.mxu0
      %v1206 = vadd.f32 0.0, %v1205
      %v1207 = vpop.f32.mrf.mxu0
      %v1208 = vadd.f32 0.0, %v1207
      %1209 = vmatmul.bf16.gmra.mxu0 %v1130
      %v1210 = vpop.f32.mrf.mxu0
      %v1211 = vadd.f32 0.0, %v1210
      %v1212 = vpop.f32.mrf.mxu0
      %v1213 = vadd.f32 0.0, %v1212
      %1214 = vmatmul.bf16.gmra.mxu0 %v1132
      %v1215 = vpop.f32.mrf.mxu0
      %v1216 = vadd.f32 0.0, %v1215
      %v1217 = vpop.f32.mrf.mxu0
      %v1218 = vadd.f32 0.0, %v1217
      %1219 = vdwg.mxu0
      %v1220 = vadd.f32 %v1090, %v1196
      %v1221 = vadd.f32 %v1091, %v1198
      %v1222 = vadd.f32 %v1092, %v1201
      %v1223 = vadd.f32 %v1093, %v1203
      %v1224 = vadd.f32 %v1094, %v1206
      %v1225 = vadd.f32 %v1095, %v1208
      %v1226 = vadd.f32 %v1096, %v1211
      %v1227 = vadd.f32 %v1097, %v1213
      %v1228 = vadd.f32 %v1098, %v1216
      %v1229 = vadd.f32 %v1099, %v1218
      %v1230 = vld [vmem:[%s311 + $0x8] sm:$0xc]
      %v1231 = vld [vmem:[%s311 + $0xc] sm:$0xf]
      %v1232 = vld [vmem:[%s311 + $0x10] sm:$0xf]
      %v1233 = vld [vmem:[%s311 + $0x14] sm:$0xf]
      %v1234 = vld [vmem:[%s311 + $0x18] sm:$0xf]
      %v1235 = vld [vmem:[%s311 + $0x1c] sm:$0xf]
      %v1236 = vld [vmem:[%s311 + $0x20] sm:$0xf]
      %v1237 = vld [vmem:[%s311 + $0x24] sm:$0xf]
      %v1238 = vld [vmem:[%s311 + $0x28] sm:$0xf]
      %v1239 = vld [vmem:[%s311 + $0x2c] sm:$0xf]
      %v1240 = vld [vmem:[%s311 + $0x30] sm:$0x3]
      %s1241 = scalar_lea.vmem %s3, 384
      %v1242 = vld [vmem:[%s1241] sm:$0xf]
      %v1243 = vld [vmem:[%s1241 + $0x4] sm:$0xf]
      %v1244 = vld [vmem:[%s1241 + $0x8] sm:$0xf]
      %v1245 = vld [vmem:[%s1241 + $0xc] sm:$0xf]
      %v1246 = vld [vmem:[%s1241 + $0x10] sm:$0xf]
      %v1247 = vld [vmem:[%s1241 + $0x14] sm:$0xf]
      %v1248 = vld [vmem:[%s1241 + $0x18] sm:$0xf]
      %v1249 = vld [vmem:[%s1241 + $0x1c] sm:$0xf]
      %v1250 = vld [vmem:[%s1241 + $0x20] sm:$0xf]
      %v1251 = vld [vmem:[%s1241 + $0x24] sm:$0xf]
      %v1252 = vld [vmem:[%s1241 + $0x28] sm:$0xf]
      %v1253 = vld [vmem:[%s1241 + $0x2c] sm:$0xf]
      %v1254 = vld [vmem:[%s1241 + $0x30] sm:$0xf]
      %v1255 = vld [vmem:[%s1241 + $0x34] sm:$0xf]
      %v1256 = vld [vmem:[%s1241 + $0x38] sm:$0xf]
      %v1257 = vld [vmem:[%s1241 + $0x3c] sm:$0xf]
      %v1269 = vunpack.c.l.b16 %v1230
      %v1270 = vunpack.c.l.b16 %v1231
      %v1271 = vunpack.c.l.b16 %v1232
      %v1272 = vunpack.c.l.b16 %v1233
      %v1273 = vunpack.c.l.b16 %v1234
      %v1274 = vunpack.c.l.b16 %v1235
      %v1275 = vunpack.c.l.b16 %v1236
      %v1276 = vunpack.c.l.b16 %v1237
      %v1277 = vunpack.c.l.b16 %v1238
      %v1278 = vunpack.c.l.b16 %v1239
      %v1279 = vunpack.c.l.b16 %v1240
      %v1280 = vpack.c.b16 %v1270, %v1269
      %v1281 = vpack.c.b16 %v1272, %v1271
      %v1282 = vpack.c.b16 %v1274, %v1273
      %v1283 = vpack.c.b16 %v1276, %v1275
      %v1284 = vpack.c.b16 %v1278, %v1277
      %v1285 = vpack.c.b16 %v1279, %v1279
      %v1286 = vrot.slane %v1280, 2
      %v1287 = vrot.slane %v1281, 2
      %v1288 = vsel %vm1121, %v1286, %v1287
      %v1289 = vrot.slane %v1282, 2
      %v1290 = vsel %vm1121, %v1287, %v1289
      %v1291 = vrot.slane %v1283, 2
      %v1292 = vsel %vm1121, %v1289, %v1291
      %v1293 = vrot.slane %v1284, 2
      %v1294 = vsel %vm1121, %v1291, %v1293
      %v1295 = vrot.slane %v1285, 2
      %v1296 = vsel %vm1121, %v1293, %v1295
      %v1318 = vunpack.c.l.b16 %v1242
      %v1319 = vunpack.c.l.b16 %v1243
      %v1320 = vunpack.c.l.b16 %v1244
      %v1321 = vunpack.c.l.b16 %v1245
      %v1322 = vunpack.c.l.b16 %v1246
      %v1323 = vunpack.c.l.b16 %v1247
      %v1324 = vunpack.c.l.b16 %v1248
      %v1325 = vunpack.c.l.b16 %v1249
      %v1326 = vunpack.c.l.b16 %v1250
      %v1327 = vunpack.c.l.b16 %v1251
      %v1328 = vunpack.c.l.b16 %v1252
      %v1329 = vunpack.c.l.b16 %v1253
      %v1330 = vunpack.c.l.b16 %v1254
      %v1331 = vunpack.c.l.b16 %v1255
      %v1332 = vunpack.c.l.b16 %v1256
      %v1333 = vunpack.c.l.b16 %v1257
      %v1334 = vpack.c.b16 %v1319, %v1318
      %v1335 = vpack.c.b16 %v1321, %v1320
      %v1336 = vpack.c.b16 %v1323, %v1322
      %v1337 = vpack.c.b16 %v1325, %v1324
      %v1338 = vpack.c.b16 %v1327, %v1326
      %v1339 = vpack.c.b16 %v1329, %v1328
      %v1340 = vpack.c.b16 %v1331, %v1330
      %v1341 = vpack.c.b16 %v1333, %v1332
      %1350 = vmatpush.bf16.msra.mxu0 %v1341
      %1351 = vmatpush.bf16.msra.mxu0 %v1340
      %1352 = vmatpush.bf16.msra.mxu0 %v1339
      %1353 = vmatpush.bf16.msra.mxu0 %v1338
      %1354 = vmatpush.bf16.msra.mxu0 %v1337
      %1355 = vmatpush.bf16.msra.mxu0 %v1336
      %1356 = vmatpush.bf16.msra.mxu0 %v1335
      %1357 = vmatpush.bf16.msra.mxu0 %v1334
      %1358 = vmatmul.bf16.gmra.mxu0 %v1288
      %v1359 = vpop.f32.mrf.mxu0
      %v1360 = vadd.f32 0.0, %v1359
      %v1361 = vpop.f32.mrf.mxu0
      %v1362 = vadd.f32 0.0, %v1361
      %1363 = vmatmul.bf16.gmra.mxu0 %v1290
      %v1364 = vpop.f32.mrf.mxu0
      %v1365 = vadd.f32 0.0, %v1364
      %v1366 = vpop.f32.mrf.mxu0
      %v1367 = vadd.f32 0.0, %v1366
      %1368 = vmatmul.bf16.gmra.mxu0 %v1292
      %v1369 = vpop.f32.mrf.mxu0
      %v1370 = vadd.f32 0.0, %v1369
      %v1371 = vpop.f32.mrf.mxu0
      %v1372 = vadd.f32 0.0, %v1371
      %1373 = vmatmul.bf16.gmra.mxu0 %v1294
      %v1374 = vpop.f32.mrf.mxu0
      %v1375 = vadd.f32 0.0, %v1374
      %v1376 = vpop.f32.mrf.mxu0
      %v1377 = vadd.f32 0.0, %v1376
      %1378 = vmatmul.bf16.gmra.mxu0 %v1296
      %v1379 = vpop.f32.mrf.mxu0
      %v1380 = vadd.f32 0.0, %v1379
      %v1381 = vpop.f32.mrf.mxu0
      %v1382 = vadd.f32 0.0, %v1381
      %1383 = vdwg.mxu0
      %v1384 = vadd.f32 %v1220, %v1360
      %v1385 = vadd.f32 %v1221, %v1362
      %v1386 = vadd.f32 %v1222, %v1365
      %v1387 = vadd.f32 %v1223, %v1367
      %v1388 = vadd.f32 %v1224, %v1370
      %v1389 = vadd.f32 %v1225, %v1372
      %v1390 = vadd.f32 %v1226, %v1375
      %v1391 = vadd.f32 %v1227, %v1377
      %v1392 = vadd.f32 %v1228, %v1380
      %v1393 = vadd.f32 %v1229, %v1382
      %v1394 = vld [vmem:[%s311 + $0x30] sm:$0x7]
      %s1395 = scalar_lea.vmem %s3, 448
      %v1396 = vld [vmem:[%s1395] sm:$0xf]
      %v1397 = vld [vmem:[%s1395 + $0x4] sm:$0xf]
      %v1398 = vld [vmem:[%s1395 + $0x8] sm:$0xf]
      %v1399 = vld [vmem:[%s1395 + $0xc] sm:$0xf]
      %v1400 = vld [vmem:[%s1395 + $0x10] sm:$0xf]
      %v1401 = vld [vmem:[%s1395 + $0x14] sm:$0xf]
      %v1402 = vld [vmem:[%s1395 + $0x18] sm:$0xf]
      %v1403 = vld [vmem:[%s1395 + $0x1c] sm:$0xf]
      %v1404 = vld [vmem:[%s1395 + $0x20] sm:$0xf]
      %v1405 = vld [vmem:[%s1395 + $0x24] sm:$0xf]
      %v1406 = vld [vmem:[%s1395 + $0x28] sm:$0xf]
      %v1407 = vld [vmem:[%s1395 + $0x2c] sm:$0xf]
      %v1408 = vld [vmem:[%s1395 + $0x30] sm:$0xf]
      %v1409 = vld [vmem:[%s1395 + $0x34] sm:$0xf]
      %v1410 = vld [vmem:[%s1395 + $0x38] sm:$0xf]
      %v1411 = vld [vmem:[%s1395 + $0x3c] sm:$0xf]
      %v1413 = vunpack.c.l.b16 %v1394
      %v1414 = vpack.c.b16 %v1413, %v1413
      %vm1415 = vsmask.f32 5376
      %v1417 = vshrl.u32 %v1280, 16
      %v1419 = vrot.slane %v1417, 2
      %v1420 = vshll.u32 %v1280, 16
      %v1422 = vrot.slane %v1420, 3
      %v1423 = vor.u32 %v1419, %v1422
      %v1425 = vshrl.u32 %v1281, 16
      %v1427 = vrot.slane %v1425, 2
      %v1428 = vshll.u32 %v1281, 16
      %v1430 = vrot.slane %v1428, 3
      %v1431 = vor.u32 %v1427, %v1430
      %v1432 = vsel %vm1415, %v1423, %v1431
      %v1434 = vshrl.u32 %v1282, 16
      %v1436 = vrot.slane %v1434, 2
      %v1437 = vshll.u32 %v1282, 16
      %v1439 = vrot.slane %v1437, 3
      %v1440 = vor.u32 %v1436, %v1439
      %v1441 = vsel %vm1415, %v1431, %v1440
      %v1443 = vshrl.u32 %v1283, 16
      %v1445 = vrot.slane %v1443, 2
      %v1446 = vshll.u32 %v1283, 16
      %v1448 = vrot.slane %v1446, 3
      %v1449 = vor.u32 %v1445, %v1448
      %v1450 = vsel %vm1415, %v1440, %v1449
      %v1452 = vshrl.u32 %v1284, 16
      %v1454 = vrot.slane %v1452, 2
      %v1455 = vshll.u32 %v1284, 16
      %v1457 = vrot.slane %v1455, 3
      %v1458 = vor.u32 %v1454, %v1457
      %v1459 = vsel %vm1415, %v1449, %v1458
      %v1461 = vshrl.u32 %v1414, 16
      %v1463 = vrot.slane %v1461, 2
      %v1464 = vshll.u32 %v1414, 16
      %v1466 = vrot.slane %v1464, 3
      %v1467 = vor.u32 %v1463, %v1466
      %v1468 = vsel %vm1415, %v1458, %v1467
      %v1490 = vunpack.c.l.b16 %v1396
      %v1491 = vunpack.c.l.b16 %v1397
      %v1492 = vunpack.c.l.b16 %v1398
      %v1493 = vunpack.c.l.b16 %v1399
      %v1494 = vunpack.c.l.b16 %v1400
      %v1495 = vunpack.c.l.b16 %v1401
      %v1496 = vunpack.c.l.b16 %v1402
      %v1497 = vunpack.c.l.b16 %v1403
      %v1498 = vunpack.c.l.b16 %v1404
      %v1499 = vunpack.c.l.b16 %v1405
      %v1500 = vunpack.c.l.b16 %v1406
      %v1501 = vunpack.c.l.b16 %v1407
      %v1502 = vunpack.c.l.b16 %v1408
      %v1503 = vunpack.c.l.b16 %v1409
      %v1504 = vunpack.c.l.b16 %v1410
      %v1505 = vunpack.c.l.b16 %v1411
      %v1506 = vpack.c.b16 %v1491, %v1490
      %v1507 = vpack.c.b16 %v1493, %v1492
      %v1508 = vpack.c.b16 %v1495, %v1494
      %v1509 = vpack.c.b16 %v1497, %v1496
      %v1510 = vpack.c.b16 %v1499, %v1498
      %v1511 = vpack.c.b16 %v1501, %v1500
      %v1512 = vpack.c.b16 %v1503, %v1502
      %v1513 = vpack.c.b16 %v1505, %v1504
      %1522 = vmatpush.bf16.msra.mxu0 %v1513
      %1523 = vmatpush.bf16.msra.mxu0 %v1512
      %1524 = vmatpush.bf16.msra.mxu0 %v1511
      %1525 = vmatpush.bf16.msra.mxu0 %v1510
      %1526 = vmatpush.bf16.msra.mxu0 %v1509
      %1527 = vmatpush.bf16.msra.mxu0 %v1508
      %1528 = vmatpush.bf16.msra.mxu0 %v1507
      %1529 = vmatpush.bf16.msra.mxu0 %v1506
      %1530 = vmatmul.bf16.gmra.mxu0 %v1432
      %v1531 = vpop.f32.mrf.mxu0
      %v1532 = vadd.f32 0.0, %v1531
      %v1533 = vpop.f32.mrf.mxu0
      %v1534 = vadd.f32 0.0, %v1533
      %1535 = vmatmul.bf16.gmra.mxu0 %v1441
      %v1536 = vpop.f32.mrf.mxu0
      %v1537 = vadd.f32 0.0, %v1536
      %v1538 = vpop.f32.mrf.mxu0
      %v1539 = vadd.f32 0.0, %v1538
      %1540 = vmatmul.bf16.gmra.mxu0 %v1450
      %v1541 = vpop.f32.mrf.mxu0
      %v1542 = vadd.f32 0.0, %v1541
      %v1543 = vpop.f32.mrf.mxu0
      %v1544 = vadd.f32 0.0, %v1543
      %1545 = vmatmul.bf16.gmra.mxu0 %v1459
      %v1546 = vpop.f32.mrf.mxu0
      %v1547 = vadd.f32 0.0, %v1546
      %v1548 = vpop.f32.mrf.mxu0
      %v1549 = vadd.f32 0.0, %v1548
      %1550 = vmatmul.bf16.gmra.mxu0 %v1468
      %v1551 = vpop.f32.mrf.mxu0
      %v1552 = vadd.f32 0.0, %v1551
      %v1553 = vpop.f32.mrf.mxu0
      %v1554 = vadd.f32 0.0, %v1553
      %1555 = vdwg.mxu0
      %v1556 = vadd.f32 %v1384, %v1532
      %v1557 = vadd.f32 %v1385, %v1534
      %v1558 = vadd.f32 %v1386, %v1537
      %v1559 = vadd.f32 %v1387, %v1539
      %v1560 = vadd.f32 %v1388, %v1542
      %v1561 = vadd.f32 %v1389, %v1544
      %v1562 = vadd.f32 %v1390, %v1547
      %v1563 = vadd.f32 %v1391, %v1549
      %v1564 = vadd.f32 %v1392, %v1552
      %v1565 = vadd.f32 %v1393, %v1554
      %v1566 = vld [vmem:[%s311 + $0x8] sm:$0x8]
      %s1567 = scalar_lea.vmem %s3, 512
      %v1568 = vld [vmem:[%s1567] sm:$0xf]
      %v1569 = vld [vmem:[%s1567 + $0x4] sm:$0xf]
      %v1570 = vld [vmem:[%s1567 + $0x8] sm:$0xf]
      %v1571 = vld [vmem:[%s1567 + $0xc] sm:$0xf]
      %v1572 = vld [vmem:[%s1567 + $0x10] sm:$0xf]
      %v1573 = vld [vmem:[%s1567 + $0x14] sm:$0xf]
      %v1574 = vld [vmem:[%s1567 + $0x18] sm:$0xf]
      %v1575 = vld [vmem:[%s1567 + $0x1c] sm:$0xf]
      %v1576 = vld [vmem:[%s1567 + $0x20] sm:$0xf]
      %v1577 = vld [vmem:[%s1567 + $0x24] sm:$0xf]
      %v1578 = vld [vmem:[%s1567 + $0x28] sm:$0xf]
      %v1579 = vld [vmem:[%s1567 + $0x2c] sm:$0xf]
      %v1580 = vld [vmem:[%s1567 + $0x30] sm:$0xf]
      %v1581 = vld [vmem:[%s1567 + $0x34] sm:$0xf]
      %v1582 = vld [vmem:[%s1567 + $0x38] sm:$0xf]
      %v1583 = vld [vmem:[%s1567 + $0x3c] sm:$0xf]
      %v1585 = vunpack.c.l.b16 %v1566
      %v1586 = vpack.c.b16 %v1270, %v1585
      %vm1587 = vcmask 1044480
      %v1588 = vrot.slane %v1586, 3
      %v1589 = vrot.slane %v1281, 3
      %v1590 = vsel %vm1587, %v1588, %v1589
      %v1591 = vrot.slane %v1282, 3
      %v1592 = vsel %vm1587, %v1589, %v1591
      %v1593 = vrot.slane %v1283, 3
      %v1594 = vsel %vm1587, %v1591, %v1593
      %v1595 = vrot.slane %v1284, 3
      %v1596 = vsel %vm1587, %v1593, %v1595
      %v1597 = vrot.slane %v1414, 3
      %v1598 = vsel %vm1587, %v1595, %v1597
      %v1620 = vunpack.c.l.b16 %v1568
      %v1621 = vunpack.c.l.b16 %v1569
      %v1622 = vunpack.c.l.b16 %v1570
      %v1623 = vunpack.c.l.b16 %v1571
      %v1624 = vunpack.c.l.b16 %v1572
      %v1625 = vunpack.c.l.b16 %v1573
      %v1626 = vunpack.c.l.b16 %v1574
      %v1627 = vunpack.c.l.b16 %v1575
      %v1628 = vunpack.c.l.b16 %v1576
      %v1629 = vunpack.c.l.b16 %v1577
      %v1630 = vunpack.c.l.b16 %v1578
      %v1631 = vunpack.c.l.b16 %v1579
      %v1632 = vunpack.c.l.b16 %v1580
      %v1633 = vunpack.c.l.b16 %v1581
      %v1634 = vunpack.c.l.b16 %v1582
      %v1635 = vunpack.c.l.b16 %v1583
      %v1636 = vpack.c.b16 %v1621, %v1620
      %v1637 = vpack.c.b16 %v1623, %v1622
      %v1638 = vpack.c.b16 %v1625, %v1624
      %v1639 = vpack.c.b16 %v1627, %v1626
      %v1640 = vpack.c.b16 %v1629, %v1628
      %v1641 = vpack.c.b16 %v1631, %v1630
      %v1642 = vpack.c.b16 %v1633, %v1632
      %v1643 = vpack.c.b16 %v1635, %v1634
      %1652 = vmatpush.bf16.msra.mxu0 %v1643
      %1653 = vmatpush.bf16.msra.mxu0 %v1642
      %1654 = vmatpush.bf16.msra.mxu0 %v1641
      %1655 = vmatpush.bf16.msra.mxu0 %v1640
      %1656 = vmatpush.bf16.msra.mxu0 %v1639
      %1657 = vmatpush.bf16.msra.mxu0 %v1638
      %1658 = vmatpush.bf16.msra.mxu0 %v1637
      %1659 = vmatpush.bf16.msra.mxu0 %v1636
      %1660 = vmatmul.bf16.gmra.mxu0 %v1590
      %v1661 = vpop.f32.mrf.mxu0
      %v1662 = vadd.f32 0.0, %v1661
      %v1663 = vpop.f32.mrf.mxu0
      %v1664 = vadd.f32 0.0, %v1663
      %1665 = vmatmul.bf16.gmra.mxu0 %v1592
      %v1666 = vpop.f32.mrf.mxu0
      %v1667 = vadd.f32 0.0, %v1666
      %v1668 = vpop.f32.mrf.mxu0
      %v1669 = vadd.f32 0.0, %v1668
      %1670 = vmatmul.bf16.gmra.mxu0 %v1594
      %v1671 = vpop.f32.mrf.mxu0
      %v1672 = vadd.f32 0.0, %v1671
      %v1673 = vpop.f32.mrf.mxu0
      %v1674 = vadd.f32 0.0, %v1673
      %1675 = vmatmul.bf16.gmra.mxu0 %v1596
      %v1676 = vpop.f32.mrf.mxu0
      %v1677 = vadd.f32 0.0, %v1676
      %v1678 = vpop.f32.mrf.mxu0
      %v1679 = vadd.f32 0.0, %v1678
      %1680 = vmatmul.bf16.gmra.mxu0 %v1598
      %v1681 = vpop.f32.mrf.mxu0
      %v1682 = vadd.f32 0.0, %v1681
      %v1683 = vpop.f32.mrf.mxu0
      %v1684 = vadd.f32 0.0, %v1683
      %1685 = vdwg.mxu0
      %v1686 = vadd.f32 %v1556, %v1662
      %v1687 = vadd.f32 %v1557, %v1664
      %v1688 = vadd.f32 %v1558, %v1667
      %v1689 = vadd.f32 %v1559, %v1669
      %v1690 = vadd.f32 %v1560, %v1672
      %v1691 = vadd.f32 %v1561, %v1674
      %v1692 = vadd.f32 %v1562, %v1677
      %v1693 = vadd.f32 %v1563, %v1679
      %v1694 = vadd.f32 %v1564, %v1682
      %v1695 = vadd.f32 %v1565, %v1684
      %v1696 = vld [vmem:[%s321] sm:$0xf]
      %v1697 = vld [vmem:[%s321 + $0x4] sm:$0xf]
      %v1698 = vld [vmem:[%s321 + $0x8] sm:$0xf]
      %v1699 = vld [vmem:[%s321 + $0xc] sm:$0xf]
      %v1700 = vld [vmem:[%s321 + $0x10] sm:$0xf]
      %v1701 = vld [vmem:[%s321 + $0x14] sm:$0xf]
      %v1702 = vld [vmem:[%s321 + $0x18] sm:$0xf]
      %v1703 = vld [vmem:[%s321 + $0x1c] sm:$0xf]
      %v1704 = vld [vmem:[%s321 + $0x20] sm:$0xf]
      %v1705 = vld [vmem:[%s321 + $0x24] sm:$0xf]
      %s1706 = scalar_lea.vmem %s3, 576
      %v1707 = vld [vmem:[%s1706] sm:$0xf]
      %v1708 = vld [vmem:[%s1706 + $0x4] sm:$0xf]
      %v1709 = vld [vmem:[%s1706 + $0x8] sm:$0xf]
      %v1710 = vld [vmem:[%s1706 + $0xc] sm:$0xf]
      %v1711 = vld [vmem:[%s1706 + $0x10] sm:$0xf]
      %v1712 = vld [vmem:[%s1706 + $0x14] sm:$0xf]
      %v1713 = vld [vmem:[%s1706 + $0x18] sm:$0xf]
      %v1714 = vld [vmem:[%s1706 + $0x1c] sm:$0xf]
      %v1715 = vld [vmem:[%s1706 + $0x20] sm:$0xf]
      %v1716 = vld [vmem:[%s1706 + $0x24] sm:$0xf]
      %v1717 = vld [vmem:[%s1706 + $0x28] sm:$0xf]
      %v1718 = vld [vmem:[%s1706 + $0x2c] sm:$0xf]
      %v1719 = vld [vmem:[%s1706 + $0x30] sm:$0xf]
      %v1720 = vld [vmem:[%s1706 + $0x34] sm:$0xf]
      %v1721 = vld [vmem:[%s1706 + $0x38] sm:$0xf]
      %v1722 = vld [vmem:[%s1706 + $0x3c] sm:$0xf]
      %v1733 = vunpack.c.l.b16 %v1696
      %v1734 = vunpack.c.l.b16 %v1697
      %v1735 = vunpack.c.l.b16 %v1698
      %v1736 = vunpack.c.l.b16 %v1699
      %v1737 = vunpack.c.l.b16 %v1700
      %v1738 = vunpack.c.l.b16 %v1701
      %v1739 = vunpack.c.l.b16 %v1702
      %v1740 = vunpack.c.l.b16 %v1703
      %v1741 = vunpack.c.l.b16 %v1704
      %v1742 = vunpack.c.l.b16 %v1705
      %v1743 = vpack.c.b16 %v1734, %v1733
      %v1744 = vpack.c.b16 %v1736, %v1735
      %v1745 = vpack.c.b16 %v1738, %v1737
      %v1746 = vpack.c.b16 %v1740, %v1739
      %v1747 = vpack.c.b16 %v1742, %v1741
      %v1769 = vunpack.c.l.b16 %v1707
      %v1770 = vunpack.c.l.b16 %v1708
      %v1771 = vunpack.c.l.b16 %v1709
      %v1772 = vunpack.c.l.b16 %v1710
      %v1773 = vunpack.c.l.b16 %v1711
      %v1774 = vunpack.c.l.b16 %v1712
      %v1775 = vunpack.c.l.b16 %v1713
      %v1776 = vunpack.c.l.b16 %v1714
      %v1777 = vunpack.c.l.b16 %v1715
      %v1778 = vunpack.c.l.b16 %v1716
      %v1779 = vunpack.c.l.b16 %v1717
      %v1780 = vunpack.c.l.b16 %v1718
      %v1781 = vunpack.c.l.b16 %v1719
      %v1782 = vunpack.c.l.b16 %v1720
      %v1783 = vunpack.c.l.b16 %v1721
      %v1784 = vunpack.c.l.b16 %v1722
      %v1785 = vpack.c.b16 %v1770, %v1769
      %v1786 = vpack.c.b16 %v1772, %v1771
      %v1787 = vpack.c.b16 %v1774, %v1773
      %v1788 = vpack.c.b16 %v1776, %v1775
      %v1789 = vpack.c.b16 %v1778, %v1777
      %v1790 = vpack.c.b16 %v1780, %v1779
      %v1791 = vpack.c.b16 %v1782, %v1781
      %v1792 = vpack.c.b16 %v1784, %v1783
      %1801 = vmatpush.bf16.msra.mxu0 %v1792
      %1802 = vmatpush.bf16.msra.mxu0 %v1791
      %1803 = vmatpush.bf16.msra.mxu0 %v1790
      %1804 = vmatpush.bf16.msra.mxu0 %v1789
      %1805 = vmatpush.bf16.msra.mxu0 %v1788
      %1806 = vmatpush.bf16.msra.mxu0 %v1787
      %1807 = vmatpush.bf16.msra.mxu0 %v1786
      %1808 = vmatpush.bf16.msra.mxu0 %v1785
      %1809 = vmatmul.bf16.gmra.mxu0 %v1743
      %v1810 = vpop.f32.mrf.mxu0
      %v1811 = vadd.f32 0.0, %v1810
      %v1812 = vpop.f32.mrf.mxu0
      %v1813 = vadd.f32 0.0, %v1812
      %1814 = vmatmul.bf16.gmra.mxu0 %v1744
      %v1815 = vpop.f32.mrf.mxu0
      %v1816 = vadd.f32 0.0, %v1815
      %v1817 = vpop.f32.mrf.mxu0
      %v1818 = vadd.f32 0.0, %v1817
      %1819 = vmatmul.bf16.gmra.mxu0 %v1745
      %v1820 = vpop.f32.mrf.mxu0
      %v1821 = vadd.f32 0.0, %v1820
      %v1822 = vpop.f32.mrf.mxu0
      %v1823 = vadd.f32 0.0, %v1822
      %1824 = vmatmul.bf16.gmra.mxu0 %v1746
      %v1825 = vpop.f32.mrf.mxu0
      %v1826 = vadd.f32 0.0, %v1825
      %v1827 = vpop.f32.mrf.mxu0
      %v1828 = vadd.f32 0.0, %v1827
      %1829 = vmatmul.bf16.gmra.mxu0 %v1747
      %v1830 = vpop.f32.mrf.mxu0
      %v1831 = vadd.f32 0.0, %v1830
      %v1832 = vpop.f32.mrf.mxu0
      %v1833 = vadd.f32 0.0, %v1832
      %1834 = vdwg.mxu0
      %v1835 = vadd.f32 %v1686, %v1811
      %v1836 = vadd.f32 %v1687, %v1813
      %v1837 = vadd.f32 %v1688, %v1816
      %v1838 = vadd.f32 %v1689, %v1818
      %v1839 = vadd.f32 %v1690, %v1821
      %v1840 = vadd.f32 %v1691, %v1823
      %v1841 = vadd.f32 %v1692, %v1826
      %v1842 = vadd.f32 %v1693, %v1828
      %v1843 = vadd.f32 %v1694, %v1831
      %v1844 = vadd.f32 %v1695, %v1833
      %v1845 = vld [vmem:[%s321] sm:$0xf]
      %v1846 = vld [vmem:[%s321 + $0x4] sm:$0xf]
      %v1847 = vld [vmem:[%s321 + $0x8] sm:$0xf]
      %v1848 = vld [vmem:[%s321 + $0xc] sm:$0xf]
      %v1849 = vld [vmem:[%s321 + $0x10] sm:$0xf]
      %v1850 = vld [vmem:[%s321 + $0x14] sm:$0xf]
      %v1851 = vld [vmem:[%s321 + $0x18] sm:$0xf]
      %v1852 = vld [vmem:[%s321 + $0x1c] sm:$0xf]
      %v1853 = vld [vmem:[%s321 + $0x20] sm:$0xf]
      %v1854 = vld [vmem:[%s321 + $0x24] sm:$0xf]
      %v1855 = vld [vmem:[%s321 + $0x28] sm:$0x1]
      %s1856 = scalar_lea.vmem %s3, 640
      %v1857 = vld [vmem:[%s1856] sm:$0xf]
      %v1858 = vld [vmem:[%s1856 + $0x4] sm:$0xf]
      %v1859 = vld [vmem:[%s1856 + $0x8] sm:$0xf]
      %v1860 = vld [vmem:[%s1856 + $0xc] sm:$0xf]
      %v1861 = vld [vmem:[%s1856 + $0x10] sm:$0xf]
      %v1862 = vld [vmem:[%s1856 + $0x14] sm:$0xf]
      %v1863 = vld [vmem:[%s1856 + $0x18] sm:$0xf]
      %v1864 = vld [vmem:[%s1856 + $0x1c] sm:$0xf]
      %v1865 = vld [vmem:[%s1856 + $0x20] sm:$0xf]
      %v1866 = vld [vmem:[%s1856 + $0x24] sm:$0xf]
      %v1867 = vld [vmem:[%s1856 + $0x28] sm:$0xf]
      %v1868 = vld [vmem:[%s1856 + $0x2c] sm:$0xf]
      %v1869 = vld [vmem:[%s1856 + $0x30] sm:$0xf]
      %v1870 = vld [vmem:[%s1856 + $0x34] sm:$0xf]
      %v1871 = vld [vmem:[%s1856 + $0x38] sm:$0xf]
      %v1872 = vld [vmem:[%s1856 + $0x3c] sm:$0xf]
      %v1884 = vunpack.c.l.b16 %v1845
      %v1885 = vunpack.c.l.b16 %v1846
      %v1886 = vunpack.c.l.b16 %v1847
      %v1887 = vunpack.c.l.b16 %v1848
      %v1888 = vunpack.c.l.b16 %v1849
      %v1889 = vunpack.c.l.b16 %v1850
      %v1890 = vunpack.c.l.b16 %v1851
      %v1891 = vunpack.c.l.b16 %v1852
      %v1892 = vunpack.c.l.b16 %v1853
      %v1893 = vunpack.c.l.b16 %v1854
      %v1894 = vunpack.c.l.b16 %v1855
      %v1895 = vpack.c.b16 %v1885, %v1884
      %v1896 = vpack.c.b16 %v1887, %v1886
      %v1897 = vpack.c.b16 %v1889, %v1888
      %v1898 = vpack.c.b16 %v1891, %v1890
      %v1899 = vpack.c.b16 %v1893, %v1892
      %v1900 = vpack.c.b16 %v1894, %v1894
      %v1902 = vshrl.u32 %v1895, 16
      %v1904 = vshll.u32 %v1895, 16
      %v1906 = vrot.slane %v1904, 1
      %v1907 = vor.u32 %v1902, %v1906
      %v1909 = vshll.u32 %v1896, 16
      %v1911 = vrot.slane %v1909, 1
      %v1912 = vsel %vm415, %v1907, %v1911
      %v1913 = vshrl.u32 %v1896, 16
      %v1915 = vor.u32 %v1913, %v1911
      %v1917 = vshll.u32 %v1897, 16
      %v1919 = vrot.slane %v1917, 1
      %v1920 = vsel %vm415, %v1915, %v1919
      %v1921 = vshrl.u32 %v1897, 16
      %v1923 = vor.u32 %v1921, %v1919
      %v1925 = vshll.u32 %v1898, 16
      %v1927 = vrot.slane %v1925, 1
      %v1928 = vsel %vm415, %v1923, %v1927
      %v1929 = vshrl.u32 %v1898, 16
      %v1931 = vor.u32 %v1929, %v1927
      %v1933 = vshll.u32 %v1899, 16
      %v1935 = vrot.slane %v1933, 1
      %v1936 = vsel %vm415, %v1931, %v1935
      %v1937 = vshrl.u32 %v1899, 16
      %v1939 = vor.u32 %v1937, %v1935
      %v1941 = vshll.u32 %v1900, 16
      %v1943 = vrot.slane %v1941, 1
      %v1944 = vsel %vm415, %v1939, %v1943
      %v1966 = vunpack.c.l.b16 %v1857
      %v1967 = vunpack.c.l.b16 %v1858
      %v1968 = vunpack.c.l.b16 %v1859
      %v1969 = vunpack.c.l.b16 %v1860
      %v1970 = vunpack.c.l.b16 %v1861
      %v1971 = vunpack.c.l.b16 %v1862
      %v1972 = vunpack.c.l.b16 %v1863
      %v1973 = vunpack.c.l.b16 %v1864
      %v1974 = vunpack.c.l.b16 %v1865
      %v1975 = vunpack.c.l.b16 %v1866
      %v1976 = vunpack.c.l.b16 %v1867
      %v1977 = vunpack.c.l.b16 %v1868
      %v1978 = vunpack.c.l.b16 %v1869
      %v1979 = vunpack.c.l.b16 %v1870
      %v1980 = vunpack.c.l.b16 %v1871
      %v1981 = vunpack.c.l.b16 %v1872
      %v1982 = vpack.c.b16 %v1967, %v1966
      %v1983 = vpack.c.b16 %v1969, %v1968
      %v1984 = vpack.c.b16 %v1971, %v1970
      %v1985 = vpack.c.b16 %v1973, %v1972
      %v1986 = vpack.c.b16 %v1975, %v1974
      %v1987 = vpack.c.b16 %v1977, %v1976
      %v1988 = vpack.c.b16 %v1979, %v1978
      %v1989 = vpack.c.b16 %v1981, %v1980
      %1998 = vmatpush.bf16.msra.mxu0 %v1989
      %1999 = vmatpush.bf16.msra.mxu0 %v1988
      %2000 = vmatpush.bf16.msra.mxu0 %v1987
      %2001 = vmatpush.bf16.msra.mxu0 %v1986
      %2002 = vmatpush.bf16.msra.mxu0 %v1985
      %2003 = vmatpush.bf16.msra.mxu0 %v1984
      %2004 = vmatpush.bf16.msra.mxu0 %v1983
      %2005 = vmatpush.bf16.msra.mxu0 %v1982
      %2006 = vmatmul.bf16.gmra.mxu0 %v1912
      %v2007 = vpop.f32.mrf.mxu0
      %v2008 = vadd.f32 0.0, %v2007
      %v2009 = vpop.f32.mrf.mxu0
      %v2010 = vadd.f32 0.0, %v2009
      %2011 = vmatmul.bf16.gmra.mxu0 %v1920
      %v2012 = vpop.f32.mrf.mxu0
      %v2013 = vadd.f32 0.0, %v2012
      %v2014 = vpop.f32.mrf.mxu0
      %v2015 = vadd.f32 0.0, %v2014
      %2016 = vmatmul.bf16.gmra.mxu0 %v1928
      %v2017 = vpop.f32.mrf.mxu0
      %v2018 = vadd.f32 0.0, %v2017
      %v2019 = vpop.f32.mrf.mxu0
      %v2020 = vadd.f32 0.0, %v2019
      %2021 = vmatmul.bf16.gmra.mxu0 %v1936
      %v2022 = vpop.f32.mrf.mxu0
      %v2023 = vadd.f32 0.0, %v2022
      %v2024 = vpop.f32.mrf.mxu0
      %v2025 = vadd.f32 0.0, %v2024
      %2026 = vmatmul.bf16.gmra.mxu0 %v1944
      %v2027 = vpop.f32.mrf.mxu0
      %v2028 = vadd.f32 0.0, %v2027
      %v2029 = vpop.f32.mrf.mxu0
      %v2030 = vadd.f32 0.0, %v2029
      %2031 = vdwg.mxu0
      %v2032 = vadd.f32 %v1835, %v2008
      %v2033 = vadd.f32 %v1836, %v2010
      %v2034 = vadd.f32 %v1837, %v2013
      %v2035 = vadd.f32 %v1838, %v2015
      %v2036 = vadd.f32 %v1839, %v2018
      %v2037 = vadd.f32 %v1840, %v2020
      %v2038 = vadd.f32 %v1841, %v2023
      %v2039 = vadd.f32 %v1842, %v2025
      %v2040 = vadd.f32 %v1843, %v2028
      %v2041 = vadd.f32 %v1844, %v2030
      %v2042 = vld [vmem:[%s321] sm:$0xe]
      %s2043 = scalar_lea.vmem %s3, 704
      %v2044 = vld [vmem:[%s2043] sm:$0xf]
      %v2045 = vld [vmem:[%s2043 + $0x4] sm:$0xf]
      %v2046 = vld [vmem:[%s2043 + $0x8] sm:$0xf]
      %v2047 = vld [vmem:[%s2043 + $0xc] sm:$0xf]
      %v2048 = vld [vmem:[%s2043 + $0x10] sm:$0xf]
      %v2049 = vld [vmem:[%s2043 + $0x14] sm:$0xf]
      %v2050 = vld [vmem:[%s2043 + $0x18] sm:$0xf]
      %v2051 = vld [vmem:[%s2043 + $0x1c] sm:$0xf]
      %v2052 = vld [vmem:[%s2043 + $0x20] sm:$0xf]
      %v2053 = vld [vmem:[%s2043 + $0x24] sm:$0xf]
      %v2054 = vld [vmem:[%s2043 + $0x28] sm:$0xf]
      %v2055 = vld [vmem:[%s2043 + $0x2c] sm:$0xf]
      %v2056 = vld [vmem:[%s2043 + $0x30] sm:$0xf]
      %v2057 = vld [vmem:[%s2043 + $0x34] sm:$0xf]
      %v2058 = vld [vmem:[%s2043 + $0x38] sm:$0xf]
      %v2059 = vld [vmem:[%s2043 + $0x3c] sm:$0xf]
      %v2061 = vunpack.c.l.b16 %v2042
      %v2062 = vpack.c.b16 %v1885, %v2061
      %v2063 = vrot.slane %v2062, 1
      %v2064 = vrot.slane %v1896, 1
      %v2065 = vsel %vm655, %v2063, %v2064
      %v2066 = vrot.slane %v1897, 1
      %v2067 = vsel %vm655, %v2064, %v2066
      %v2068 = vrot.slane %v1898, 1
      %v2069 = vsel %vm655, %v2066, %v2068
      %v2070 = vrot.slane %v1899, 1
      %v2071 = vsel %vm655, %v2068, %v2070
      %v2072 = vrot.slane %v1900, 1
      %v2073 = vsel %vm655, %v2070, %v2072
      %v2095 = vunpack.c.l.b16 %v2044
      %v2096 = vunpack.c.l.b16 %v2045
      %v2097 = vunpack.c.l.b16 %v2046
      %v2098 = vunpack.c.l.b16 %v2047
      %v2099 = vunpack.c.l.b16 %v2048
      %v2100 = vunpack.c.l.b16 %v2049
      %v2101 = vunpack.c.l.b16 %v2050
      %v2102 = vunpack.c.l.b16 %v2051
      %v2103 = vunpack.c.l.b16 %v2052
      %v2104 = vunpack.c.l.b16 %v2053
      %v2105 = vunpack.c.l.b16 %v2054
      %v2106 = vunpack.c.l.b16 %v2055
      %v2107 = vunpack.c.l.b16 %v2056
      %v2108 = vunpack.c.l.b16 %v2057
      %v2109 = vunpack.c.l.b16 %v2058
      %v2110 = vunpack.c.l.b16 %v2059
      %v2111 = vpack.c.b16 %v2096, %v2095
      %v2112 = vpack.c.b16 %v2098, %v2097
      %v2113 = vpack.c.b16 %v2100, %v2099
      %v2114 = vpack.c.b16 %v2102, %v2101
      %v2115 = vpack.c.b16 %v2104, %v2103
      %v2116 = vpack.c.b16 %v2106, %v2105
      %v2117 = vpack.c.b16 %v2108, %v2107
      %v2118 = vpack.c.b16 %v2110, %v2109
      %2127 = vmatpush.bf16.msra.mxu0 %v2118
      %2128 = vmatpush.bf16.msra.mxu0 %v2117
      %2129 = vmatpush.bf16.msra.mxu0 %v2116
      %2130 = vmatpush.bf16.msra.mxu0 %v2115
      %2131 = vmatpush.bf16.msra.mxu0 %v2114
      %2132 = vmatpush.bf16.msra.mxu0 %v2113
      %2133 = vmatpush.bf16.msra.mxu0 %v2112
      %2134 = vmatpush.bf16.msra.mxu0 %v2111
      %2135 = vmatmul.bf16.gmra.mxu0 %v2065
      %v2136 = vpop.f32.mrf.mxu0
      %v2137 = vadd.f32 0.0, %v2136
      %v2138 = vpop.f32.mrf.mxu0
      %v2139 = vadd.f32 0.0, %v2138
      %2140 = vmatmul.bf16.gmra.mxu0 %v2067
      %v2141 = vpop.f32.mrf.mxu0
      %v2142 = vadd.f32 0.0, %v2141
      %v2143 = vpop.f32.mrf.mxu0
      %v2144 = vadd.f32 0.0, %v2143
      %2145 = vmatmul.bf16.gmra.mxu0 %v2069
      %v2146 = vpop.f32.mrf.mxu0
      %v2147 = vadd.f32 0.0, %v2146
      %v2148 = vpop.f32.mrf.mxu0
      %v2149 = vadd.f32 0.0, %v2148
      %2150 = vmatmul.bf16.gmra.mxu0 %v2071
      %v2151 = vpop.f32.mrf.mxu0
      %v2152 = vadd.f32 0.0, %v2151
      %v2153 = vpop.f32.mrf.mxu0
      %v2154 = vadd.f32 0.0, %v2153
      %2155 = vmatmul.bf16.gmra.mxu0 %v2073
      %v2156 = vpop.f32.mrf.mxu0
      %v2157 = vadd.f32 0.0, %v2156
      %v2158 = vpop.f32.mrf.mxu0
      %v2159 = vadd.f32 0.0, %v2158
      %2160 = vdwg.mxu0
      %v2161 = vadd.f32 %v2032, %v2137
      %v2162 = vadd.f32 %v2033, %v2139
      %v2163 = vadd.f32 %v2034, %v2142
      %v2164 = vadd.f32 %v2035, %v2144
      %v2165 = vadd.f32 %v2036, %v2147
      %v2166 = vadd.f32 %v2037, %v2149
      %v2167 = vadd.f32 %v2038, %v2152
      %v2168 = vadd.f32 %v2039, %v2154
      %v2169 = vadd.f32 %v2040, %v2157
      %v2170 = vadd.f32 %v2041, %v2159
      %v2171 = vld [vmem:[%s321 + $0x4] sm:$0xe]
      %v2172 = vld [vmem:[%s321 + $0x8] sm:$0xf]
      %v2173 = vld [vmem:[%s321 + $0xc] sm:$0xf]
      %v2174 = vld [vmem:[%s321 + $0x10] sm:$0xf]
      %v2175 = vld [vmem:[%s321 + $0x14] sm:$0xf]
      %v2176 = vld [vmem:[%s321 + $0x18] sm:$0xf]
      %v2177 = vld [vmem:[%s321 + $0x1c] sm:$0xf]
      %v2178 = vld [vmem:[%s321 + $0x20] sm:$0xf]
      %v2179 = vld [vmem:[%s321 + $0x24] sm:$0xf]
      %v2180 = vld [vmem:[%s321 + $0x28] sm:$0xf]
      %v2181 = vld [vmem:[%s321 + $0x2c] sm:$0x1]
      %s2182 = scalar_lea.vmem %s3, 768
      %v2183 = vld [vmem:[%s2182] sm:$0xf]
      %v2184 = vld [vmem:[%s2182 + $0x4] sm:$0xf]
      %v2185 = vld [vmem:[%s2182 + $0x8] sm:$0xf]
      %v2186 = vld [vmem:[%s2182 + $0xc] sm:$0xf]
      %v2187 = vld [vmem:[%s2182 + $0x10] sm:$0xf]
      %v2188 = vld [vmem:[%s2182 + $0x14] sm:$0xf]
      %v2189 = vld [vmem:[%s2182 + $0x18] sm:$0xf]
      %v2190 = vld [vmem:[%s2182 + $0x1c] sm:$0xf]
      %v2191 = vld [vmem:[%s2182 + $0x20] sm:$0xf]
      %v2192 = vld [vmem:[%s2182 + $0x24] sm:$0xf]
      %v2193 = vld [vmem:[%s2182 + $0x28] sm:$0xf]
      %v2194 = vld [vmem:[%s2182 + $0x2c] sm:$0xf]
      %v2195 = vld [vmem:[%s2182 + $0x30] sm:$0xf]
      %v2196 = vld [vmem:[%s2182 + $0x34] sm:$0xf]
      %v2197 = vld [vmem:[%s2182 + $0x38] sm:$0xf]
      %v2198 = vld [vmem:[%s2182 + $0x3c] sm:$0xf]
      %v2210 = vunpack.c.l.b16 %v2171
      %v2211 = vunpack.c.l.b16 %v2172
      %v2212 = vunpack.c.l.b16 %v2173
      %v2213 = vunpack.c.l.b16 %v2174
      %v2214 = vunpack.c.l.b16 %v2175
      %v2215 = vunpack.c.l.b16 %v2176
      %v2216 = vunpack.c.l.b16 %v2177
      %v2217 = vunpack.c.l.b16 %v2178
      %v2218 = vunpack.c.l.b16 %v2179
      %v2219 = vunpack.c.l.b16 %v2180
      %v2220 = vunpack.c.l.b16 %v2181
      %v2221 = vpack.c.b16 %v2211, %v2210
      %v2222 = vpack.c.b16 %v2213, %v2212
      %v2223 = vpack.c.b16 %v2215, %v2214
      %v2224 = vpack.c.b16 %v2217, %v2216
      %v2225 = vpack.c.b16 %v2219, %v2218
      %v2226 = vpack.c.b16 %v2220, %v2220
      %v2227 = vrot.slane %v2221, 1
      %v2228 = vrot.slane %v2222, 1
      %v2229 = vsel %vm655, %v2227, %v2228
      %v2230 = vrot.slane %v2223, 1
      %v2231 = vsel %vm655, %v2228, %v2230
      %v2232 = vrot.slane %v2224, 1
      %v2233 = vsel %vm655, %v2230, %v2232
      %v2234 = vrot.slane %v2225, 1
      %v2235 = vsel %vm655, %v2232, %v2234
      %v2236 = vrot.slane %v2226, 1
      %v2237 = vsel %vm655, %v2234, %v2236
      %v2259 = vunpack.c.l.b16 %v2183
      %v2260 = vunpack.c.l.b16 %v2184
      %v2261 = vunpack.c.l.b16 %v2185
      %v2262 = vunpack.c.l.b16 %v2186
      %v2263 = vunpack.c.l.b16 %v2187
      %v2264 = vunpack.c.l.b16 %v2188
      %v2265 = vunpack.c.l.b16 %v2189
      %v2266 = vunpack.c.l.b16 %v2190
      %v2267 = vunpack.c.l.b16 %v2191
      %v2268 = vunpack.c.l.b16 %v2192
      %v2269 = vunpack.c.l.b16 %v2193
      %v2270 = vunpack.c.l.b16 %v2194
      %v2271 = vunpack.c.l.b16 %v2195
      %v2272 = vunpack.c.l.b16 %v2196
      %v2273 = vunpack.c.l.b16 %v2197
      %v2274 = vunpack.c.l.b16 %v2198
      %v2275 = vpack.c.b16 %v2260, %v2259
      %v2276 = vpack.c.b16 %v2262, %v2261
      %v2277 = vpack.c.b16 %v2264, %v2263
      %v2278 = vpack.c.b16 %v2266, %v2265
      %v2279 = vpack.c.b16 %v2268, %v2267
      %v2280 = vpack.c.b16 %v2270, %v2269
      %v2281 = vpack.c.b16 %v2272, %v2271
      %v2282 = vpack.c.b16 %v2274, %v2273
      %2291 = vmatpush.bf16.msra.mxu0 %v2282
      %2292 = vmatpush.bf16.msra.mxu0 %v2281
      %2293 = vmatpush.bf16.msra.mxu0 %v2280
      %2294 = vmatpush.bf16.msra.mxu0 %v2279
      %2295 = vmatpush.bf16.msra.mxu0 %v2278
      %2296 = vmatpush.bf16.msra.mxu0 %v2277
      %2297 = vmatpush.bf16.msra.mxu0 %v2276
      %2298 = vmatpush.bf16.msra.mxu0 %v2275
      %2299 = vmatmul.bf16.gmra.mxu0 %v2229
      %v2300 = vpop.f32.mrf.mxu0
      %v2301 = vadd.f32 0.0, %v2300
      %v2302 = vpop.f32.mrf.mxu0
      %v2303 = vadd.f32 0.0, %v2302
      %2304 = vmatmul.bf16.gmra.mxu0 %v2231
      %v2305 = vpop.f32.mrf.mxu0
      %v2306 = vadd.f32 0.0, %v2305
      %v2307 = vpop.f32.mrf.mxu0
      %v2308 = vadd.f32 0.0, %v2307
      %2309 = vmatmul.bf16.gmra.mxu0 %v2233
      %v2310 = vpop.f32.mrf.mxu0
      %v2311 = vadd.f32 0.0, %v2310
      %v2312 = vpop.f32.mrf.mxu0
      %v2313 = vadd.f32 0.0, %v2312
      %2314 = vmatmul.bf16.gmra.mxu0 %v2235
      %v2315 = vpop.f32.mrf.mxu0
      %v2316 = vadd.f32 0.0, %v2315
      %v2317 = vpop.f32.mrf.mxu0
      %v2318 = vadd.f32 0.0, %v2317
      %2319 = vmatmul.bf16.gmra.mxu0 %v2237
      %v2320 = vpop.f32.mrf.mxu0
      %v2321 = vadd.f32 0.0, %v2320
      %v2322 = vpop.f32.mrf.mxu0
      %v2323 = vadd.f32 0.0, %v2322
      %2324 = vdwg.mxu0
      %v2325 = vadd.f32 %v2161, %v2301
      %v2326 = vadd.f32 %v2162, %v2303
      %v2327 = vadd.f32 %v2163, %v2306
      %v2328 = vadd.f32 %v2164, %v2308
      %v2329 = vadd.f32 %v2165, %v2311
      %v2330 = vadd.f32 %v2166, %v2313
      %v2331 = vadd.f32 %v2167, %v2316
      %v2332 = vadd.f32 %v2168, %v2318
      %v2333 = vadd.f32 %v2169, %v2321
      %v2334 = vadd.f32 %v2170, %v2323
      %v2335 = vld [vmem:[%s321 + $0x2c] sm:$0x3]
      %s2336 = scalar_lea.vmem %s3, 832
      %v2337 = vld [vmem:[%s2336] sm:$0xf]
      %v2338 = vld [vmem:[%s2336 + $0x4] sm:$0xf]
      %v2339 = vld [vmem:[%s2336 + $0x8] sm:$0xf]
      %v2340 = vld [vmem:[%s2336 + $0xc] sm:$0xf]
      %v2341 = vld [vmem:[%s2336 + $0x10] sm:$0xf]
      %v2342 = vld [vmem:[%s2336 + $0x14] sm:$0xf]
      %v2343 = vld [vmem:[%s2336 + $0x18] sm:$0xf]
      %v2344 = vld [vmem:[%s2336 + $0x1c] sm:$0xf]
      %v2345 = vld [vmem:[%s2336 + $0x20] sm:$0xf]
      %v2346 = vld [vmem:[%s2336 + $0x24] sm:$0xf]
      %v2347 = vld [vmem:[%s2336 + $0x28] sm:$0xf]
      %v2348 = vld [vmem:[%s2336 + $0x2c] sm:$0xf]
      %v2349 = vld [vmem:[%s2336 + $0x30] sm:$0xf]
      %v2350 = vld [vmem:[%s2336 + $0x34] sm:$0xf]
      %v2351 = vld [vmem:[%s2336 + $0x38] sm:$0xf]
      %v2352 = vld [vmem:[%s2336 + $0x3c] sm:$0xf]
      %v2354 = vunpack.c.l.b16 %v2335
      %v2355 = vpack.c.b16 %v2354, %v2354
      %v2357 = vshrl.u32 %v2221, 16
      %v2359 = vrot.slane %v2357, 1
      %v2360 = vshll.u32 %v2221, 16
      %v2362 = vrot.slane %v2360, 2
      %v2363 = vor.u32 %v2359, %v2362
      %v2365 = vshrl.u32 %v2222, 16
      %v2367 = vrot.slane %v2365, 1
      %v2368 = vshll.u32 %v2222, 16
      %v2370 = vrot.slane %v2368, 2
      %v2371 = vor.u32 %v2367, %v2370
      %v2372 = vsel %vm949, %v2363, %v2371
      %v2374 = vshrl.u32 %v2223, 16
      %v2376 = vrot.slane %v2374, 1
      %v2377 = vshll.u32 %v2223, 16
      %v2379 = vrot.slane %v2377, 2
      %v2380 = vor.u32 %v2376, %v2379
      %v2381 = vsel %vm949, %v2371, %v2380
      %v2383 = vshrl.u32 %v2224, 16
      %v2385 = vrot.slane %v2383, 1
      %v2386 = vshll.u32 %v2224, 16
      %v2388 = vrot.slane %v2386, 2
      %v2389 = vor.u32 %v2385, %v2388
      %v2390 = vsel %vm949, %v2380, %v2389
      %v2392 = vshrl.u32 %v2225, 16
      %v2394 = vrot.slane %v2392, 1
      %v2395 = vshll.u32 %v2225, 16
      %v2397 = vrot.slane %v2395, 2
      %v2398 = vor.u32 %v2394, %v2397
      %v2399 = vsel %vm949, %v2389, %v2398
      %v2401 = vshrl.u32 %v2355, 16
      %v2403 = vrot.slane %v2401, 1
      %v2404 = vshll.u32 %v2355, 16
      %v2406 = vrot.slane %v2404, 2
      %v2407 = vor.u32 %v2403, %v2406
      %v2408 = vsel %vm949, %v2398, %v2407
      %v2430 = vunpack.c.l.b16 %v2337
      %v2431 = vunpack.c.l.b16 %v2338
      %v2432 = vunpack.c.l.b16 %v2339
      %v2433 = vunpack.c.l.b16 %v2340
      %v2434 = vunpack.c.l.b16 %v2341
      %v2435 = vunpack.c.l.b16 %v2342
      %v2436 = vunpack.c.l.b16 %v2343
      %v2437 = vunpack.c.l.b16 %v2344
      %v2438 = vunpack.c.l.b16 %v2345
      %v2439 = vunpack.c.l.b16 %v2346
      %v2440 = vunpack.c.l.b16 %v2347
      %v2441 = vunpack.c.l.b16 %v2348
      %v2442 = vunpack.c.l.b16 %v2349
      %v2443 = vunpack.c.l.b16 %v2350
      %v2444 = vunpack.c.l.b16 %v2351
      %v2445 = vunpack.c.l.b16 %v2352
      %v2446 = vpack.c.b16 %v2431, %v2430
      %v2447 = vpack.c.b16 %v2433, %v2432
      %v2448 = vpack.c.b16 %v2435, %v2434
      %v2449 = vpack.c.b16 %v2437, %v2436
      %v2450 = vpack.c.b16 %v2439, %v2438
      %v2451 = vpack.c.b16 %v2441, %v2440
      %v2452 = vpack.c.b16 %v2443, %v2442
      %v2453 = vpack.c.b16 %v2445, %v2444
      %2462 = vmatpush.bf16.msra.mxu0 %v2453
      %2463 = vmatpush.bf16.msra.mxu0 %v2452
      %2464 = vmatpush.bf16.msra.mxu0 %v2451
      %2465 = vmatpush.bf16.msra.mxu0 %v2450
      %2466 = vmatpush.bf16.msra.mxu0 %v2449
      %2467 = vmatpush.bf16.msra.mxu0 %v2448
      %2468 = vmatpush.bf16.msra.mxu0 %v2447
      %2469 = vmatpush.bf16.msra.mxu0 %v2446
      %2470 = vmatmul.bf16.gmra.mxu0 %v2372
      %v2471 = vpop.f32.mrf.mxu0
      %v2472 = vadd.f32 0.0, %v2471
      %v2473 = vpop.f32.mrf.mxu0
      %v2474 = vadd.f32 0.0, %v2473
      %2475 = vmatmul.bf16.gmra.mxu0 %v2381
      %v2476 = vpop.f32.mrf.mxu0
      %v2477 = vadd.f32 0.0, %v2476
      %v2478 = vpop.f32.mrf.mxu0
      %v2479 = vadd.f32 0.0, %v2478
      %2480 = vmatmul.bf16.gmra.mxu0 %v2390
      %v2481 = vpop.f32.mrf.mxu0
      %v2482 = vadd.f32 0.0, %v2481
      %v2483 = vpop.f32.mrf.mxu0
      %v2484 = vadd.f32 0.0, %v2483
      %2485 = vmatmul.bf16.gmra.mxu0 %v2399
      %v2486 = vpop.f32.mrf.mxu0
      %v2487 = vadd.f32 0.0, %v2486
      %v2488 = vpop.f32.mrf.mxu0
      %v2489 = vadd.f32 0.0, %v2488
      %2490 = vmatmul.bf16.gmra.mxu0 %v2408
      %v2491 = vpop.f32.mrf.mxu0
      %v2492 = vadd.f32 0.0, %v2491
      %v2493 = vpop.f32.mrf.mxu0
      %v2494 = vadd.f32 0.0, %v2493
      %2495 = vdwg.mxu0
      %v2496 = vadd.f32 %v2325, %v2472
      %v2497 = vadd.f32 %v2326, %v2474
      %v2498 = vadd.f32 %v2327, %v2477
      %v2499 = vadd.f32 %v2328, %v2479
      %v2500 = vadd.f32 %v2329, %v2482
      %v2501 = vadd.f32 %v2330, %v2484
      %v2502 = vadd.f32 %v2331, %v2487
      %v2503 = vadd.f32 %v2332, %v2489
      %v2504 = vadd.f32 %v2333, %v2492
      %v2505 = vadd.f32 %v2334, %v2494
      %v2506 = vld [vmem:[%s321 + $0x4] sm:$0xc]
      %s2507 = scalar_lea.vmem %s3, 896
      %v2508 = vld [vmem:[%s2507] sm:$0xf]
      %v2509 = vld [vmem:[%s2507 + $0x4] sm:$0xf]
      %v2510 = vld [vmem:[%s2507 + $0x8] sm:$0xf]
      %v2511 = vld [vmem:[%s2507 + $0xc] sm:$0xf]
      %v2512 = vld [vmem:[%s2507 + $0x10] sm:$0xf]
      %v2513 = vld [vmem:[%s2507 + $0x14] sm:$0xf]
      %v2514 = vld [vmem:[%s2507 + $0x18] sm:$0xf]
      %v2515 = vld [vmem:[%s2507 + $0x1c] sm:$0xf]
      %v2516 = vld [vmem:[%s2507 + $0x20] sm:$0xf]
      %v2517 = vld [vmem:[%s2507 + $0x24] sm:$0xf]
      %v2518 = vld [vmem:[%s2507 + $0x28] sm:$0xf]
      %v2519 = vld [vmem:[%s2507 + $0x2c] sm:$0xf]
      %v2520 = vld [vmem:[%s2507 + $0x30] sm:$0xf]
      %v2521 = vld [vmem:[%s2507 + $0x34] sm:$0xf]
      %v2522 = vld [vmem:[%s2507 + $0x38] sm:$0xf]
      %v2523 = vld [vmem:[%s2507 + $0x3c] sm:$0xf]
      %v2525 = vunpack.c.l.b16 %v2506
      %v2526 = vpack.c.b16 %v2211, %v2525
      %v2527 = vrot.slane %v2526, 2
      %v2528 = vrot.slane %v2222, 2
      %v2529 = vsel %vm1121, %v2527, %v2528
      %v2530 = vrot.slane %v2223, 2
      %v2531 = vsel %vm1121, %v2528, %v2530
      %v2532 = vrot.slane %v2224, 2
      %v2533 = vsel %vm1121, %v2530, %v2532
      %v2534 = vrot.slane %v2225, 2
      %v2535 = vsel %vm1121, %v2532, %v2534
      %v2536 = vrot.slane %v2355, 2
      %v2537 = vsel %vm1121, %v2534, %v2536
      %v2559 = vunpack.c.l.b16 %v2508
      %v2560 = vunpack.c.l.b16 %v2509
      %v2561 = vunpack.c.l.b16 %v2510
      %v2562 = vunpack.c.l.b16 %v2511
      %v2563 = vunpack.c.l.b16 %v2512
      %v2564 = vunpack.c.l.b16 %v2513
      %v2565 = vunpack.c.l.b16 %v2514
      %v2566 = vunpack.c.l.b16 %v2515
      %v2567 = vunpack.c.l.b16 %v2516
      %v2568 = vunpack.c.l.b16 %v2517
      %v2569 = vunpack.c.l.b16 %v2518
      %v2570 = vunpack.c.l.b16 %v2519
      %v2571 = vunpack.c.l.b16 %v2520
      %v2572 = vunpack.c.l.b16 %v2521
      %v2573 = vunpack.c.l.b16 %v2522
      %v2574 = vunpack.c.l.b16 %v2523
      %v2575 = vpack.c.b16 %v2560, %v2559
      %v2576 = vpack.c.b16 %v2562, %v2561
      %v2577 = vpack.c.b16 %v2564, %v2563
      %v2578 = vpack.c.b16 %v2566, %v2565
      %v2579 = vpack.c.b16 %v2568, %v2567
      %v2580 = vpack.c.b16 %v2570, %v2569
      %v2581 = vpack.c.b16 %v2572, %v2571
      %v2582 = vpack.c.b16 %v2574, %v2573
      %2591 = vmatpush.bf16.msra.mxu0 %v2582
      %2592 = vmatpush.bf16.msra.mxu0 %v2581
      %2593 = vmatpush.bf16.msra.mxu0 %v2580
      %2594 = vmatpush.bf16.msra.mxu0 %v2579
      %2595 = vmatpush.bf16.msra.mxu0 %v2578
      %2596 = vmatpush.bf16.msra.mxu0 %v2577
      %2597 = vmatpush.bf16.msra.mxu0 %v2576
      %2598 = vmatpush.bf16.msra.mxu0 %v2575
      %2599 = vmatmul.bf16.gmra.mxu0 %v2529
      %v2600 = vpop.f32.mrf.mxu0
      %v2601 = vadd.f32 0.0, %v2600
      %v2602 = vpop.f32.mrf.mxu0
      %v2603 = vadd.f32 0.0, %v2602
      %2604 = vmatmul.bf16.gmra.mxu0 %v2531
      %v2605 = vpop.f32.mrf.mxu0
      %v2606 = vadd.f32 0.0, %v2605
      %v2607 = vpop.f32.mrf.mxu0
      %v2608 = vadd.f32 0.0, %v2607
      %2609 = vmatmul.bf16.gmra.mxu0 %v2533
      %v2610 = vpop.f32.mrf.mxu0
      %v2611 = vadd.f32 0.0, %v2610
      %v2612 = vpop.f32.mrf.mxu0
      %v2613 = vadd.f32 0.0, %v2612
      %2614 = vmatmul.bf16.gmra.mxu0 %v2535
      %v2615 = vpop.f32.mrf.mxu0
      %v2616 = vadd.f32 0.0, %v2615
      %v2617 = vpop.f32.mrf.mxu0
      %v2618 = vadd.f32 0.0, %v2617
      %2619 = vmatmul.bf16.gmra.mxu0 %v2537
      %v2620 = vpop.f32.mrf.mxu0
      %v2621 = vadd.f32 0.0, %v2620
      %v2622 = vpop.f32.mrf.mxu0
      %v2623 = vadd.f32 0.0, %v2622
      %2624 = vdwg.mxu0
      %v2625 = vadd.f32 %v2496, %v2601
      %v2626 = vadd.f32 %v2497, %v2603
      %v2627 = vadd.f32 %v2498, %v2606
      %v2628 = vadd.f32 %v2499, %v2608
      %v2629 = vadd.f32 %v2500, %v2611
      %v2630 = vadd.f32 %v2501, %v2613
      %v2631 = vadd.f32 %v2502, %v2616
      %v2632 = vadd.f32 %v2503, %v2618
      %v2633 = vadd.f32 %v2504, %v2621
      %v2634 = vadd.f32 %v2505, %v2623
      %v2635 = vld [vmem:[%s321 + $0x8] sm:$0xc]
      %v2636 = vld [vmem:[%s321 + $0xc] sm:$0xf]
      %v2637 = vld [vmem:[%s321 + $0x10] sm:$0xf]
      %v2638 = vld [vmem:[%s321 + $0x14] sm:$0xf]
      %v2639 = vld [vmem:[%s321 + $0x18] sm:$0xf]
      %v2640 = vld [vmem:[%s321 + $0x1c] sm:$0xf]
      %v2641 = vld [vmem:[%s321 + $0x20] sm:$0xf]
      %v2642 = vld [vmem:[%s321 + $0x24] sm:$0xf]
      %v2643 = vld [vmem:[%s321 + $0x28] sm:$0xf]
      %v2644 = vld [vmem:[%s321 + $0x2c] sm:$0xf]
      %v2645 = vld [vmem:[%s321 + $0x30] sm:$0x3]
      %s2646 = scalar_lea.vmem %s3, 960
      %v2647 = vld [vmem:[%s2646] sm:$0xf]
      %v2648 = vld [vmem:[%s2646 + $0x4] sm:$0xf]
      %v2649 = vld [vmem:[%s2646 + $0x8] sm:$0xf]
      %v2650 = vld [vmem:[%s2646 + $0xc] sm:$0xf]
      %v2651 = vld [vmem:[%s2646 + $0x10] sm:$0xf]
      %v2652 = vld [vmem:[%s2646 + $0x14] sm:$0xf]
      %v2653 = vld [vmem:[%s2646 + $0x18] sm:$0xf]
      %v2654 = vld [vmem:[%s2646 + $0x1c] sm:$0xf]
      %v2655 = vld [vmem:[%s2646 + $0x20] sm:$0xf]
      %v2656 = vld [vmem:[%s2646 + $0x24] sm:$0xf]
      %v2657 = vld [vmem:[%s2646 + $0x28] sm:$0xf]
      %v2658 = vld [vmem:[%s2646 + $0x2c] sm:$0xf]
      %v2659 = vld [vmem:[%s2646 + $0x30] sm:$0xf]
      %v2660 = vld [vmem:[%s2646 + $0x34] sm:$0xf]
      %v2661 = vld [vmem:[%s2646 + $0x38] sm:$0xf]
      %v2662 = vld [vmem:[%s2646 + $0x3c] sm:$0xf]
      %v2674 = vunpack.c.l.b16 %v2635
      %v2675 = vunpack.c.l.b16 %v2636
      %v2676 = vunpack.c.l.b16 %v2637
      %v2677 = vunpack.c.l.b16 %v2638
      %v2678 = vunpack.c.l.b16 %v2639
      %v2679 = vunpack.c.l.b16 %v2640
      %v2680 = vunpack.c.l.b16 %v2641
      %v2681 = vunpack.c.l.b16 %v2642
      %v2682 = vunpack.c.l.b16 %v2643
      %v2683 = vunpack.c.l.b16 %v2644
      %v2684 = vunpack.c.l.b16 %v2645
      %v2685 = vpack.c.b16 %v2675, %v2674
      %v2686 = vpack.c.b16 %v2677, %v2676
      %v2687 = vpack.c.b16 %v2679, %v2678
      %v2688 = vpack.c.b16 %v2681, %v2680
      %v2689 = vpack.c.b16 %v2683, %v2682
      %v2690 = vpack.c.b16 %v2684, %v2684
      %v2691 = vrot.slane %v2685, 2
      %v2692 = vrot.slane %v2686, 2
      %v2693 = vsel %vm1121, %v2691, %v2692
      %v2694 = vrot.slane %v2687, 2
      %v2695 = vsel %vm1121, %v2692, %v2694
      %v2696 = vrot.slane %v2688, 2
      %v2697 = vsel %vm1121, %v2694, %v2696
      %v2698 = vrot.slane %v2689, 2
      %v2699 = vsel %vm1121, %v2696, %v2698
      %v2700 = vrot.slane %v2690, 2
      %v2701 = vsel %vm1121, %v2698, %v2700
      %v2723 = vunpack.c.l.b16 %v2647
      %v2724 = vunpack.c.l.b16 %v2648
      %v2725 = vunpack.c.l.b16 %v2649
      %v2726 = vunpack.c.l.b16 %v2650
      %v2727 = vunpack.c.l.b16 %v2651
      %v2728 = vunpack.c.l.b16 %v2652
      %v2729 = vunpack.c.l.b16 %v2653
      %v2730 = vunpack.c.l.b16 %v2654
      %v2731 = vunpack.c.l.b16 %v2655
      %v2732 = vunpack.c.l.b16 %v2656
      %v2733 = vunpack.c.l.b16 %v2657
      %v2734 = vunpack.c.l.b16 %v2658
      %v2735 = vunpack.c.l.b16 %v2659
      %v2736 = vunpack.c.l.b16 %v2660
      %v2737 = vunpack.c.l.b16 %v2661
      %v2738 = vunpack.c.l.b16 %v2662
      %v2739 = vpack.c.b16 %v2724, %v2723
      %v2740 = vpack.c.b16 %v2726, %v2725
      %v2741 = vpack.c.b16 %v2728, %v2727
      %v2742 = vpack.c.b16 %v2730, %v2729
      %v2743 = vpack.c.b16 %v2732, %v2731
      %v2744 = vpack.c.b16 %v2734, %v2733
      %v2745 = vpack.c.b16 %v2736, %v2735
      %v2746 = vpack.c.b16 %v2738, %v2737
      %2755 = vmatpush.bf16.msra.mxu0 %v2746
      %2756 = vmatpush.bf16.msra.mxu0 %v2745
      %2757 = vmatpush.bf16.msra.mxu0 %v2744
      %2758 = vmatpush.bf16.msra.mxu0 %v2743
      %2759 = vmatpush.bf16.msra.mxu0 %v2742
      %2760 = vmatpush.bf16.msra.mxu0 %v2741
      %2761 = vmatpush.bf16.msra.mxu0 %v2740
      %2762 = vmatpush.bf16.msra.mxu0 %v2739
      %2763 = vmatmul.bf16.gmra.mxu0 %v2693
      %v2764 = vpop.f32.mrf.mxu0
      %v2765 = vadd.f32 0.0, %v2764
      %v2766 = vpop.f32.mrf.mxu0
      %v2767 = vadd.f32 0.0, %v2766
      %2768 = vmatmul.bf16.gmra.mxu0 %v2695
      %v2769 = vpop.f32.mrf.mxu0
      %v2770 = vadd.f32 0.0, %v2769
      %v2771 = vpop.f32.mrf.mxu0
      %v2772 = vadd.f32 0.0, %v2771
      %2773 = vmatmul.bf16.gmra.mxu0 %v2697
      %v2774 = vpop.f32.mrf.mxu0
      %v2775 = vadd.f32 0.0, %v2774
      %v2776 = vpop.f32.mrf.mxu0
      %v2777 = vadd.f32 0.0, %v2776
      %2778 = vmatmul.bf16.gmra.mxu0 %v2699
      %v2779 = vpop.f32.mrf.mxu0
      %v2780 = vadd.f32 0.0, %v2779
      %v2781 = vpop.f32.mrf.mxu0
      %v2782 = vadd.f32 0.0, %v2781
      %2783 = vmatmul.bf16.gmra.mxu0 %v2701
      %v2784 = vpop.f32.mrf.mxu0
      %v2785 = vadd.f32 0.0, %v2784
      %v2786 = vpop.f32.mrf.mxu0
      %v2787 = vadd.f32 0.0, %v2786
      %2788 = vdwg.mxu0
      %v2789 = vadd.f32 %v2625, %v2765
      %v2790 = vadd.f32 %v2626, %v2767
      %v2791 = vadd.f32 %v2627, %v2770
      %v2792 = vadd.f32 %v2628, %v2772
      %v2793 = vadd.f32 %v2629, %v2775
      %v2794 = vadd.f32 %v2630, %v2777
      %v2795 = vadd.f32 %v2631, %v2780
      %v2796 = vadd.f32 %v2632, %v2782
      %v2797 = vadd.f32 %v2633, %v2785
      %v2798 = vadd.f32 %v2634, %v2787
      %v2799 = vld [vmem:[%s321 + $0x30] sm:$0x7]
      %s2800 = scalar_lea.vmem %s3, 1024
      %v2801 = vld [vmem:[%s2800] sm:$0xf]
      %v2802 = vld [vmem:[%s2800 + $0x4] sm:$0xf]
      %v2803 = vld [vmem:[%s2800 + $0x8] sm:$0xf]
      %v2804 = vld [vmem:[%s2800 + $0xc] sm:$0xf]
      %v2805 = vld [vmem:[%s2800 + $0x10] sm:$0xf]
      %v2806 = vld [vmem:[%s2800 + $0x14] sm:$0xf]
      %v2807 = vld [vmem:[%s2800 + $0x18] sm:$0xf]
      %v2808 = vld [vmem:[%s2800 + $0x1c] sm:$0xf]
      %v2809 = vld [vmem:[%s2800 + $0x20] sm:$0xf]
      %v2810 = vld [vmem:[%s2800 + $0x24] sm:$0xf]
      %v2811 = vld [vmem:[%s2800 + $0x28] sm:$0xf]
      %v2812 = vld [vmem:[%s2800 + $0x2c] sm:$0xf]
      %v2813 = vld [vmem:[%s2800 + $0x30] sm:$0xf]
      %v2814 = vld [vmem:[%s2800 + $0x34] sm:$0xf]
      %v2815 = vld [vmem:[%s2800 + $0x38] sm:$0xf]
      %v2816 = vld [vmem:[%s2800 + $0x3c] sm:$0xf]
      %v2818 = vunpack.c.l.b16 %v2799
      %v2819 = vpack.c.b16 %v2818, %v2818
      %v2821 = vshrl.u32 %v2685, 16
      %v2823 = vrot.slane %v2821, 2
      %v2824 = vshll.u32 %v2685, 16
      %v2826 = vrot.slane %v2824, 3
      %v2827 = vor.u32 %v2823, %v2826
      %v2829 = vshrl.u32 %v2686, 16
      %v2831 = vrot.slane %v2829, 2
      %v2832 = vshll.u32 %v2686, 16
      %v2834 = vrot.slane %v2832, 3
      %v2835 = vor.u32 %v2831, %v2834
      %v2836 = vsel %vm1415, %v2827, %v2835
      %v2838 = vshrl.u32 %v2687, 16
      %v2840 = vrot.slane %v2838, 2
      %v2841 = vshll.u32 %v2687, 16
      %v2843 = vrot.slane %v2841, 3
      %v2844 = vor.u32 %v2840, %v2843
      %v2845 = vsel %vm1415, %v2835, %v2844
      %v2847 = vshrl.u32 %v2688, 16
      %v2849 = vrot.slane %v2847, 2
      %v2850 = vshll.u32 %v2688, 16
      %v2852 = vrot.slane %v2850, 3
      %v2853 = vor.u32 %v2849, %v2852
      %v2854 = vsel %vm1415, %v2844, %v2853
      %v2856 = vshrl.u32 %v2689, 16
      %v2858 = vrot.slane %v2856, 2
      %v2859 = vshll.u32 %v2689, 16
      %v2861 = vrot.slane %v2859, 3
      %v2862 = vor.u32 %v2858, %v2861
      %v2863 = vsel %vm1415, %v2853, %v2862
      %v2865 = vshrl.u32 %v2819, 16
      %v2867 = vrot.slane %v2865, 2
      %v2868 = vshll.u32 %v2819, 16
      %v2870 = vrot.slane %v2868, 3
      %v2871 = vor.u32 %v2867, %v2870
      %v2872 = vsel %vm1415, %v2862, %v2871
      %v2894 = vunpack.c.l.b16 %v2801
      %v2895 = vunpack.c.l.b16 %v2802
      %v2896 = vunpack.c.l.b16 %v2803
      %v2897 = vunpack.c.l.b16 %v2804
      %v2898 = vunpack.c.l.b16 %v2805
      %v2899 = vunpack.c.l.b16 %v2806
      %v2900 = vunpack.c.l.b16 %v2807
      %v2901 = vunpack.c.l.b16 %v2808
      %v2902 = vunpack.c.l.b16 %v2809
      %v2903 = vunpack.c.l.b16 %v2810
      %v2904 = vunpack.c.l.b16 %v2811
      %v2905 = vunpack.c.l.b16 %v2812
      %v2906 = vunpack.c.l.b16 %v2813
      %v2907 = vunpack.c.l.b16 %v2814
      %v2908 = vunpack.c.l.b16 %v2815
      %v2909 = vunpack.c.l.b16 %v2816
      %v2910 = vpack.c.b16 %v2895, %v2894
      %v2911 = vpack.c.b16 %v2897, %v2896
      %v2912 = vpack.c.b16 %v2899, %v2898
      %v2913 = vpack.c.b16 %v2901, %v2900
      %v2914 = vpack.c.b16 %v2903, %v2902
      %v2915 = vpack.c.b16 %v2905, %v2904
      %v2916 = vpack.c.b16 %v2907, %v2906
      %v2917 = vpack.c.b16 %v2909, %v2908
      %2926 = vmatpush.bf16.msra.mxu0 %v2917
      %2927 = vmatpush.bf16.msra.mxu0 %v2916
      %2928 = vmatpush.bf16.msra.mxu0 %v2915
      %2929 = vmatpush.bf16.msra.mxu0 %v2914
      %2930 = vmatpush.bf16.msra.mxu0 %v2913
      %2931 = vmatpush.bf16.msra.mxu0 %v2912
      %2932 = vmatpush.bf16.msra.mxu0 %v2911
      %2933 = vmatpush.bf16.msra.mxu0 %v2910
      %2934 = vmatmul.bf16.gmra.mxu0 %v2836
      %v2935 = vpop.f32.mrf.mxu0
      %v2936 = vadd.f32 0.0, %v2935
      %v2937 = vpop.f32.mrf.mxu0
      %v2938 = vadd.f32 0.0, %v2937
      %2939 = vmatmul.bf16.gmra.mxu0 %v2845
      %v2940 = vpop.f32.mrf.mxu0
      %v2941 = vadd.f32 0.0, %v2940
      %v2942 = vpop.f32.mrf.mxu0
      %v2943 = vadd.f32 0.0, %v2942
      %2944 = vmatmul.bf16.gmra.mxu0 %v2854
      %v2945 = vpop.f32.mrf.mxu0
      %v2946 = vadd.f32 0.0, %v2945
      %v2947 = vpop.f32.mrf.mxu0
      %v2948 = vadd.f32 0.0, %v2947
      %2949 = vmatmul.bf16.gmra.mxu0 %v2863
      %v2950 = vpop.f32.mrf.mxu0
      %v2951 = vadd.f32 0.0, %v2950
      %v2952 = vpop.f32.mrf.mxu0
      %v2953 = vadd.f32 0.0, %v2952
      %2954 = vmatmul.bf16.gmra.mxu0 %v2872
      %v2955 = vpop.f32.mrf.mxu0
      %v2956 = vadd.f32 0.0, %v2955
      %v2957 = vpop.f32.mrf.mxu0
      %v2958 = vadd.f32 0.0, %v2957
      %2959 = vdwg.mxu0
      %v2960 = vadd.f32 %v2789, %v2936
      %v2961 = vadd.f32 %v2790, %v2938
      %v2962 = vadd.f32 %v2791, %v2941
      %v2963 = vadd.f32 %v2792, %v2943
      %v2964 = vadd.f32 %v2793, %v2946
      %v2965 = vadd.f32 %v2794, %v2948
      %v2966 = vadd.f32 %v2795, %v2951
      %v2967 = vadd.f32 %v2796, %v2953
      %v2968 = vadd.f32 %v2797, %v2956
      %v2969 = vadd.f32 %v2798, %v2958
      %v2970 = vld [vmem:[%s321 + $0x8] sm:$0x8]
      %s2971 = scalar_lea.vmem %s3, 1088
      %v2972 = vld [vmem:[%s2971] sm:$0xf]
      %v2973 = vld [vmem:[%s2971 + $0x4] sm:$0xf]
      %v2974 = vld [vmem:[%s2971 + $0x8] sm:$0xf]
      %v2975 = vld [vmem:[%s2971 + $0xc] sm:$0xf]
      %v2976 = vld [vmem:[%s2971 + $0x10] sm:$0xf]
      %v2977 = vld [vmem:[%s2971 + $0x14] sm:$0xf]
      %v2978 = vld [vmem:[%s2971 + $0x18] sm:$0xf]
      %v2979 = vld [vmem:[%s2971 + $0x1c] sm:$0xf]
      %v2980 = vld [vmem:[%s2971 + $0x20] sm:$0xf]
      %v2981 = vld [vmem:[%s2971 + $0x24] sm:$0xf]
      %v2982 = vld [vmem:[%s2971 + $0x28] sm:$0xf]
      %v2983 = vld [vmem:[%s2971 + $0x2c] sm:$0xf]
      %v2984 = vld [vmem:[%s2971 + $0x30] sm:$0xf]
      %v2985 = vld [vmem:[%s2971 + $0x34] sm:$0xf]
      %v2986 = vld [vmem:[%s2971 + $0x38] sm:$0xf]
      %v2987 = vld [vmem:[%s2971 + $0x3c] sm:$0xf]
      %v2989 = vunpack.c.l.b16 %v2970
      %v2990 = vpack.c.b16 %v2675, %v2989
      %v2991 = vrot.slane %v2990, 3
      %v2992 = vrot.slane %v2686, 3
      %v2993 = vsel %vm1587, %v2991, %v2992
      %v2994 = vrot.slane %v2687, 3
      %v2995 = vsel %vm1587, %v2992, %v2994
      %v2996 = vrot.slane %v2688, 3
      %v2997 = vsel %vm1587, %v2994, %v2996
      %v2998 = vrot.slane %v2689, 3
      %v2999 = vsel %vm1587, %v2996, %v2998
      %v3000 = vrot.slane %v2819, 3
      %v3001 = vsel %vm1587, %v2998, %v3000
      %v3023 = vunpack.c.l.b16 %v2972
      %v3024 = vunpack.c.l.b16 %v2973
      %v3025 = vunpack.c.l.b16 %v2974
      %v3026 = vunpack.c.l.b16 %v2975
      %v3027 = vunpack.c.l.b16 %v2976
      %v3028 = vunpack.c.l.b16 %v2977
      %v3029 = vunpack.c.l.b16 %v2978
      %v3030 = vunpack.c.l.b16 %v2979
      %v3031 = vunpack.c.l.b16 %v2980
      %v3032 = vunpack.c.l.b16 %v2981
      %v3033 = vunpack.c.l.b16 %v2982
      %v3034 = vunpack.c.l.b16 %v2983
      %v3035 = vunpack.c.l.b16 %v2984
      %v3036 = vunpack.c.l.b16 %v2985
      %v3037 = vunpack.c.l.b16 %v2986
      %v3038 = vunpack.c.l.b16 %v2987
      %v3039 = vpack.c.b16 %v3024, %v3023
      %v3040 = vpack.c.b16 %v3026, %v3025
      %v3041 = vpack.c.b16 %v3028, %v3027
      %v3042 = vpack.c.b16 %v3030, %v3029
      %v3043 = vpack.c.b16 %v3032, %v3031
      %v3044 = vpack.c.b16 %v3034, %v3033
      %v3045 = vpack.c.b16 %v3036, %v3035
      %v3046 = vpack.c.b16 %v3038, %v3037
      %3055 = vmatpush.bf16.msra.mxu0 %v3046
      %3056 = vmatpush.bf16.msra.mxu0 %v3045
      %3057 = vmatpush.bf16.msra.mxu0 %v3044
      %3058 = vmatpush.bf16.msra.mxu0 %v3043
      %3059 = vmatpush.bf16.msra.mxu0 %v3042
      %3060 = vmatpush.bf16.msra.mxu0 %v3041
      %3061 = vmatpush.bf16.msra.mxu0 %v3040
      %3062 = vmatpush.bf16.msra.mxu0 %v3039
      %3063 = vmatmul.bf16.gmra.mxu0 %v2993
      %v3064 = vpop.f32.mrf.mxu0
      %v3065 = vadd.f32 0.0, %v3064
      %v3066 = vpop.f32.mrf.mxu0
      %v3067 = vadd.f32 0.0, %v3066
      %3068 = vmatmul.bf16.gmra.mxu0 %v2995
      %v3069 = vpop.f32.mrf.mxu0
      %v3070 = vadd.f32 0.0, %v3069
      %v3071 = vpop.f32.mrf.mxu0
      %v3072 = vadd.f32 0.0, %v3071
      %3073 = vmatmul.bf16.gmra.mxu0 %v2997
      %v3074 = vpop.f32.mrf.mxu0
      %v3075 = vadd.f32 0.0, %v3074
      %v3076 = vpop.f32.mrf.mxu0
      %v3077 = vadd.f32 0.0, %v3076
      %3078 = vmatmul.bf16.gmra.mxu0 %v2999
      %v3079 = vpop.f32.mrf.mxu0
      %v3080 = vadd.f32 0.0, %v3079
      %v3081 = vpop.f32.mrf.mxu0
      %v3082 = vadd.f32 0.0, %v3081
      %3083 = vmatmul.bf16.gmra.mxu0 %v3001
      %v3084 = vpop.f32.mrf.mxu0
      %v3085 = vadd.f32 0.0, %v3084
      %v3086 = vpop.f32.mrf.mxu0
      %v3087 = vadd.f32 0.0, %v3086
      %3088 = vdwg.mxu0
      %v3089 = vadd.f32 %v2960, %v3065
      %v3090 = vadd.f32 %v2961, %v3067
      %v3091 = vadd.f32 %v2962, %v3070
      %v3092 = vadd.f32 %v2963, %v3072
      %v3093 = vadd.f32 %v2964, %v3075
      %v3094 = vadd.f32 %v2965, %v3077
      %v3095 = vadd.f32 %v2966, %v3080
      %v3096 = vadd.f32 %v2967, %v3082
      %v3097 = vadd.f32 %v2968, %v3085
      %v3098 = vadd.f32 %v2969, %v3087
      %v3099 = vld [vmem:[%s332] sm:$0xf]
      %v3100 = vld [vmem:[%s332 + $0x4] sm:$0xf]
      %v3101 = vld [vmem:[%s332 + $0x8] sm:$0xf]
      %v3102 = vld [vmem:[%s332 + $0xc] sm:$0xf]
      %v3103 = vld [vmem:[%s332 + $0x10] sm:$0xf]
      %v3104 = vld [vmem:[%s332 + $0x14] sm:$0xf]
      %v3105 = vld [vmem:[%s332 + $0x18] sm:$0xf]
      %v3106 = vld [vmem:[%s332 + $0x1c] sm:$0xf]
      %v3107 = vld [vmem:[%s332 + $0x20] sm:$0xf]
      %v3108 = vld [vmem:[%s332 + $0x24] sm:$0xf]
      %s3109 = scalar_lea.vmem %s3, 1152
      %v3110 = vld [vmem:[%s3109] sm:$0xf]
      %v3111 = vld [vmem:[%s3109 + $0x4] sm:$0xf]
      %v3112 = vld [vmem:[%s3109 + $0x8] sm:$0xf]
      %v3113 = vld [vmem:[%s3109 + $0xc] sm:$0xf]
      %v3114 = vld [vmem:[%s3109 + $0x10] sm:$0xf]
      %v3115 = vld [vmem:[%s3109 + $0x14] sm:$0xf]
      %v3116 = vld [vmem:[%s3109 + $0x18] sm:$0xf]
      %v3117 = vld [vmem:[%s3109 + $0x1c] sm:$0xf]
      %v3118 = vld [vmem:[%s3109 + $0x20] sm:$0xf]
      %v3119 = vld [vmem:[%s3109 + $0x24] sm:$0xf]
      %v3120 = vld [vmem:[%s3109 + $0x28] sm:$0xf]
      %v3121 = vld [vmem:[%s3109 + $0x2c] sm:$0xf]
      %v3122 = vld [vmem:[%s3109 + $0x30] sm:$0xf]
      %v3123 = vld [vmem:[%s3109 + $0x34] sm:$0xf]
      %v3124 = vld [vmem:[%s3109 + $0x38] sm:$0xf]
      %v3125 = vld [vmem:[%s3109 + $0x3c] sm:$0xf]
      %v3136 = vunpack.c.l.b16 %v3099
      %v3137 = vunpack.c.l.b16 %v3100
      %v3138 = vunpack.c.l.b16 %v3101
      %v3139 = vunpack.c.l.b16 %v3102
      %v3140 = vunpack.c.l.b16 %v3103
      %v3141 = vunpack.c.l.b16 %v3104
      %v3142 = vunpack.c.l.b16 %v3105
      %v3143 = vunpack.c.l.b16 %v3106
      %v3144 = vunpack.c.l.b16 %v3107
      %v3145 = vunpack.c.l.b16 %v3108
      %v3146 = vpack.c.b16 %v3137, %v3136
      %v3147 = vpack.c.b16 %v3139, %v3138
      %v3148 = vpack.c.b16 %v3141, %v3140
      %v3149 = vpack.c.b16 %v3143, %v3142
      %v3150 = vpack.c.b16 %v3145, %v3144
      %v3172 = vunpack.c.l.b16 %v3110
      %v3173 = vunpack.c.l.b16 %v3111
      %v3174 = vunpack.c.l.b16 %v3112
      %v3175 = vunpack.c.l.b16 %v3113
      %v3176 = vunpack.c.l.b16 %v3114
      %v3177 = vunpack.c.l.b16 %v3115
      %v3178 = vunpack.c.l.b16 %v3116
      %v3179 = vunpack.c.l.b16 %v3117
      %v3180 = vunpack.c.l.b16 %v3118
      %v3181 = vunpack.c.l.b16 %v3119
      %v3182 = vunpack.c.l.b16 %v3120
      %v3183 = vunpack.c.l.b16 %v3121
      %v3184 = vunpack.c.l.b16 %v3122
      %v3185 = vunpack.c.l.b16 %v3123
      %v3186 = vunpack.c.l.b16 %v3124
      %v3187 = vunpack.c.l.b16 %v3125
      %v3188 = vpack.c.b16 %v3173, %v3172
      %v3189 = vpack.c.b16 %v3175, %v3174
      %v3190 = vpack.c.b16 %v3177, %v3176
      %v3191 = vpack.c.b16 %v3179, %v3178
      %v3192 = vpack.c.b16 %v3181, %v3180
      %v3193 = vpack.c.b16 %v3183, %v3182
      %v3194 = vpack.c.b16 %v3185, %v3184
      %v3195 = vpack.c.b16 %v3187, %v3186
      %3204 = vmatpush.bf16.msra.mxu0 %v3195
      %3205 = vmatpush.bf16.msra.mxu0 %v3194
      %3206 = vmatpush.bf16.msra.mxu0 %v3193
      %3207 = vmatpush.bf16.msra.mxu0 %v3192
      %3208 = vmatpush.bf16.msra.mxu0 %v3191
      %3209 = vmatpush.bf16.msra.mxu0 %v3190
      %3210 = vmatpush.bf16.msra.mxu0 %v3189
      %3211 = vmatpush.bf16.msra.mxu0 %v3188
      %3212 = vmatmul.bf16.gmra.mxu0 %v3146
      %v3213 = vpop.f32.mrf.mxu0
      %v3214 = vadd.f32 0.0, %v3213
      %v3215 = vpop.f32.mrf.mxu0
      %v3216 = vadd.f32 0.0, %v3215
      %3217 = vmatmul.bf16.gmra.mxu0 %v3147
      %v3218 = vpop.f32.mrf.mxu0
      %v3219 = vadd.f32 0.0, %v3218
      %v3220 = vpop.f32.mrf.mxu0
      %v3221 = vadd.f32 0.0, %v3220
      %3222 = vmatmul.bf16.gmra.mxu0 %v3148
      %v3223 = vpop.f32.mrf.mxu0
      %v3224 = vadd.f32 0.0, %v3223
      %v3225 = vpop.f32.mrf.mxu0
      %v3226 = vadd.f32 0.0, %v3225
      %3227 = vmatmul.bf16.gmra.mxu0 %v3149
      %v3228 = vpop.f32.mrf.mxu0
      %v3229 = vadd.f32 0.0, %v3228
      %v3230 = vpop.f32.mrf.mxu0
      %v3231 = vadd.f32 0.0, %v3230
      %3232 = vmatmul.bf16.gmra.mxu0 %v3150
      %v3233 = vpop.f32.mrf.mxu0
      %v3234 = vadd.f32 0.0, %v3233
      %v3235 = vpop.f32.mrf.mxu0
      %v3236 = vadd.f32 0.0, %v3235
      %3237 = vdwg.mxu0
      %v3238 = vadd.f32 %v3089, %v3214
      %v3239 = vadd.f32 %v3090, %v3216
      %v3240 = vadd.f32 %v3091, %v3219
      %v3241 = vadd.f32 %v3092, %v3221
      %v3242 = vadd.f32 %v3093, %v3224
      %v3243 = vadd.f32 %v3094, %v3226
      %v3244 = vadd.f32 %v3095, %v3229
      %v3245 = vadd.f32 %v3096, %v3231
      %v3246 = vadd.f32 %v3097, %v3234
      %v3247 = vadd.f32 %v3098, %v3236
      %v3248 = vld [vmem:[%s332] sm:$0xf]
      %v3249 = vld [vmem:[%s332 + $0x4] sm:$0xf]
      %v3250 = vld [vmem:[%s332 + $0x8] sm:$0xf]
      %v3251 = vld [vmem:[%s332 + $0xc] sm:$0xf]
      %v3252 = vld [vmem:[%s332 + $0x10] sm:$0xf]
      %v3253 = vld [vmem:[%s332 + $0x14] sm:$0xf]
      %v3254 = vld [vmem:[%s332 + $0x18] sm:$0xf]
      %v3255 = vld [vmem:[%s332 + $0x1c] sm:$0xf]
      %v3256 = vld [vmem:[%s332 + $0x20] sm:$0xf]
      %v3257 = vld [vmem:[%s332 + $0x24] sm:$0xf]
      %v3258 = vld [vmem:[%s332 + $0x28] sm:$0x1]
      %s3259 = scalar_lea.vmem %s3, 1216
      %v3260 = vld [vmem:[%s3259] sm:$0xf]
      %v3261 = vld [vmem:[%s3259 + $0x4] sm:$0xf]
      %v3262 = vld [vmem:[%s3259 + $0x8] sm:$0xf]
      %v3263 = vld [vmem:[%s3259 + $0xc] sm:$0xf]
      %v3264 = vld [vmem:[%s3259 + $0x10] sm:$0xf]
      %v3265 = vld [vmem:[%s3259 + $0x14] sm:$0xf]
      %v3266 = vld [vmem:[%s3259 + $0x18] sm:$0xf]
      %v3267 = vld [vmem:[%s3259 + $0x1c] sm:$0xf]
      %v3268 = vld [vmem:[%s3259 + $0x20] sm:$0xf]
      %v3269 = vld [vmem:[%s3259 + $0x24] sm:$0xf]
      %v3270 = vld [vmem:[%s3259 + $0x28] sm:$0xf]
      %v3271 = vld [vmem:[%s3259 + $0x2c] sm:$0xf]
      %v3272 = vld [vmem:[%s3259 + $0x30] sm:$0xf]
      %v3273 = vld [vmem:[%s3259 + $0x34] sm:$0xf]
      %v3274 = vld [vmem:[%s3259 + $0x38] sm:$0xf]
      %v3275 = vld [vmem:[%s3259 + $0x3c] sm:$0xf]
      %v3287 = vunpack.c.l.b16 %v3248
      %v3288 = vunpack.c.l.b16 %v3249
      %v3289 = vunpack.c.l.b16 %v3250
      %v3290 = vunpack.c.l.b16 %v3251
      %v3291 = vunpack.c.l.b16 %v3252
      %v3292 = vunpack.c.l.b16 %v3253
      %v3293 = vunpack.c.l.b16 %v3254
      %v3294 = vunpack.c.l.b16 %v3255
      %v3295 = vunpack.c.l.b16 %v3256
      %v3296 = vunpack.c.l.b16 %v3257
      %v3297 = vunpack.c.l.b16 %v3258
      %v3298 = vpack.c.b16 %v3288, %v3287
      %v3299 = vpack.c.b16 %v3290, %v3289
      %v3300 = vpack.c.b16 %v3292, %v3291
      %v3301 = vpack.c.b16 %v3294, %v3293
      %v3302 = vpack.c.b16 %v3296, %v3295
      %v3303 = vpack.c.b16 %v3297, %v3297
      %v3305 = vshrl.u32 %v3298, 16
      %v3307 = vshll.u32 %v3298, 16
      %v3309 = vrot.slane %v3307, 1
      %v3310 = vor.u32 %v3305, %v3309
      %v3312 = vshll.u32 %v3299, 16
      %v3314 = vrot.slane %v3312, 1
      %v3315 = vsel %vm415, %v3310, %v3314
      %v3316 = vshrl.u32 %v3299, 16
      %v3318 = vor.u32 %v3316, %v3314
      %v3320 = vshll.u32 %v3300, 16
      %v3322 = vrot.slane %v3320, 1
      %v3323 = vsel %vm415, %v3318, %v3322
      %v3324 = vshrl.u32 %v3300, 16
      %v3326 = vor.u32 %v3324, %v3322
      %v3328 = vshll.u32 %v3301, 16
      %v3330 = vrot.slane %v3328, 1
      %v3331 = vsel %vm415, %v3326, %v3330
      %v3332 = vshrl.u32 %v3301, 16
      %v3334 = vor.u32 %v3332, %v3330
      %v3336 = vshll.u32 %v3302, 16
      %v3338 = vrot.slane %v3336, 1
      %v3339 = vsel %vm415, %v3334, %v3338
      %v3340 = vshrl.u32 %v3302, 16
      %v3342 = vor.u32 %v3340, %v3338
      %v3344 = vshll.u32 %v3303, 16
      %v3346 = vrot.slane %v3344, 1
      %v3347 = vsel %vm415, %v3342, %v3346
      %v3369 = vunpack.c.l.b16 %v3260
      %v3370 = vunpack.c.l.b16 %v3261
      %v3371 = vunpack.c.l.b16 %v3262
      %v3372 = vunpack.c.l.b16 %v3263
      %v3373 = vunpack.c.l.b16 %v3264
      %v3374 = vunpack.c.l.b16 %v3265
      %v3375 = vunpack.c.l.b16 %v3266
      %v3376 = vunpack.c.l.b16 %v3267
      %v3377 = vunpack.c.l.b16 %v3268
      %v3378 = vunpack.c.l.b16 %v3269
      %v3379 = vunpack.c.l.b16 %v3270
      %v3380 = vunpack.c.l.b16 %v3271
      %v3381 = vunpack.c.l.b16 %v3272
      %v3382 = vunpack.c.l.b16 %v3273
      %v3383 = vunpack.c.l.b16 %v3274
      %v3384 = vunpack.c.l.b16 %v3275
      %v3385 = vpack.c.b16 %v3370, %v3369
      %v3386 = vpack.c.b16 %v3372, %v3371
      %v3387 = vpack.c.b16 %v3374, %v3373
      %v3388 = vpack.c.b16 %v3376, %v3375
      %v3389 = vpack.c.b16 %v3378, %v3377
      %v3390 = vpack.c.b16 %v3380, %v3379
      %v3391 = vpack.c.b16 %v3382, %v3381
      %v3392 = vpack.c.b16 %v3384, %v3383
      %3401 = vmatpush.bf16.msra.mxu0 %v3392
      %3402 = vmatpush.bf16.msra.mxu0 %v3391
      %3403 = vmatpush.bf16.msra.mxu0 %v3390
      %3404 = vmatpush.bf16.msra.mxu0 %v3389
      %3405 = vmatpush.bf16.msra.mxu0 %v3388
      %3406 = vmatpush.bf16.msra.mxu0 %v3387
      %3407 = vmatpush.bf16.msra.mxu0 %v3386
      %3408 = vmatpush.bf16.msra.mxu0 %v3385
      %3409 = vmatmul.bf16.gmra.mxu0 %v3315
      %v3410 = vpop.f32.mrf.mxu0
      %v3411 = vadd.f32 0.0, %v3410
      %v3412 = vpop.f32.mrf.mxu0
      %v3413 = vadd.f32 0.0, %v3412
      %3414 = vmatmul.bf16.gmra.mxu0 %v3323
      %v3415 = vpop.f32.mrf.mxu0
      %v3416 = vadd.f32 0.0, %v3415
      %v3417 = vpop.f32.mrf.mxu0
      %v3418 = vadd.f32 0.0, %v3417
      %3419 = vmatmul.bf16.gmra.mxu0 %v3331
      %v3420 = vpop.f32.mrf.mxu0
      %v3421 = vadd.f32 0.0, %v3420
      %v3422 = vpop.f32.mrf.mxu0
      %v3423 = vadd.f32 0.0, %v3422
      %3424 = vmatmul.bf16.gmra.mxu0 %v3339
      %v3425 = vpop.f32.mrf.mxu0
      %v3426 = vadd.f32 0.0, %v3425
      %v3427 = vpop.f32.mrf.mxu0
      %v3428 = vadd.f32 0.0, %v3427
      %3429 = vmatmul.bf16.gmra.mxu0 %v3347
      %v3430 = vpop.f32.mrf.mxu0
      %v3431 = vadd.f32 0.0, %v3430
      %v3432 = vpop.f32.mrf.mxu0
      %v3433 = vadd.f32 0.0, %v3432
      %3434 = vdwg.mxu0
      %v3435 = vadd.f32 %v3238, %v3411
      %v3436 = vadd.f32 %v3239, %v3413
      %v3437 = vadd.f32 %v3240, %v3416
      %v3438 = vadd.f32 %v3241, %v3418
      %v3439 = vadd.f32 %v3242, %v3421
      %v3440 = vadd.f32 %v3243, %v3423
      %v3441 = vadd.f32 %v3244, %v3426
      %v3442 = vadd.f32 %v3245, %v3428
      %v3443 = vadd.f32 %v3246, %v3431
      %v3444 = vadd.f32 %v3247, %v3433
      %v3445 = vld [vmem:[%s332] sm:$0xe]
      %s3446 = scalar_lea.vmem %s3, 1280
      %v3447 = vld [vmem:[%s3446] sm:$0xf]
      %v3448 = vld [vmem:[%s3446 + $0x4] sm:$0xf]
      %v3449 = vld [vmem:[%s3446 + $0x8] sm:$0xf]
      %v3450 = vld [vmem:[%s3446 + $0xc] sm:$0xf]
      %v3451 = vld [vmem:[%s3446 + $0x10] sm:$0xf]
      %v3452 = vld [vmem:[%s3446 + $0x14] sm:$0xf]
      %v3453 = vld [vmem:[%s3446 + $0x18] sm:$0xf]
      %v3454 = vld [vmem:[%s3446 + $0x1c] sm:$0xf]
      %v3455 = vld [vmem:[%s3446 + $0x20] sm:$0xf]
      %v3456 = vld [vmem:[%s3446 + $0x24] sm:$0xf]
      %v3457 = vld [vmem:[%s3446 + $0x28] sm:$0xf]
      %v3458 = vld [vmem:[%s3446 + $0x2c] sm:$0xf]
      %v3459 = vld [vmem:[%s3446 + $0x30] sm:$0xf]
      %v3460 = vld [vmem:[%s3446 + $0x34] sm:$0xf]
      %v3461 = vld [vmem:[%s3446 + $0x38] sm:$0xf]
      %v3462 = vld [vmem:[%s3446 + $0x3c] sm:$0xf]
      %v3464 = vunpack.c.l.b16 %v3445
      %v3465 = vpack.c.b16 %v3288, %v3464
      %v3466 = vrot.slane %v3465, 1
      %v3467 = vrot.slane %v3299, 1
      %v3468 = vsel %vm655, %v3466, %v3467
      %v3469 = vrot.slane %v3300, 1
      %v3470 = vsel %vm655, %v3467, %v3469
      %v3471 = vrot.slane %v3301, 1
      %v3472 = vsel %vm655, %v3469, %v3471
      %v3473 = vrot.slane %v3302, 1
      %v3474 = vsel %vm655, %v3471, %v3473
      %v3475 = vrot.slane %v3303, 1
      %v3476 = vsel %vm655, %v3473, %v3475
      %v3498 = vunpack.c.l.b16 %v3447
      %v3499 = vunpack.c.l.b16 %v3448
      %v3500 = vunpack.c.l.b16 %v3449
      %v3501 = vunpack.c.l.b16 %v3450
      %v3502 = vunpack.c.l.b16 %v3451
      %v3503 = vunpack.c.l.b16 %v3452
      %v3504 = vunpack.c.l.b16 %v3453
      %v3505 = vunpack.c.l.b16 %v3454
      %v3506 = vunpack.c.l.b16 %v3455
      %v3507 = vunpack.c.l.b16 %v3456
      %v3508 = vunpack.c.l.b16 %v3457
      %v3509 = vunpack.c.l.b16 %v3458
      %v3510 = vunpack.c.l.b16 %v3459
      %v3511 = vunpack.c.l.b16 %v3460
      %v3512 = vunpack.c.l.b16 %v3461
      %v3513 = vunpack.c.l.b16 %v3462
      %v3514 = vpack.c.b16 %v3499, %v3498
      %v3515 = vpack.c.b16 %v3501, %v3500
      %v3516 = vpack.c.b16 %v3503, %v3502
      %v3517 = vpack.c.b16 %v3505, %v3504
      %v3518 = vpack.c.b16 %v3507, %v3506
      %v3519 = vpack.c.b16 %v3509, %v3508
      %v3520 = vpack.c.b16 %v3511, %v3510
      %v3521 = vpack.c.b16 %v3513, %v3512
      %3530 = vmatpush.bf16.msra.mxu0 %v3521
      %3531 = vmatpush.bf16.msra.mxu0 %v3520
      %3532 = vmatpush.bf16.msra.mxu0 %v3519
      %3533 = vmatpush.bf16.msra.mxu0 %v3518
      %3534 = vmatpush.bf16.msra.mxu0 %v3517
      %3535 = vmatpush.bf16.msra.mxu0 %v3516
      %3536 = vmatpush.bf16.msra.mxu0 %v3515
      %3537 = vmatpush.bf16.msra.mxu0 %v3514
      %3538 = vmatmul.bf16.gmra.mxu0 %v3468
      %v3539 = vpop.f32.mrf.mxu0
      %v3540 = vadd.f32 0.0, %v3539
      %v3541 = vpop.f32.mrf.mxu0
      %v3542 = vadd.f32 0.0, %v3541
      %3543 = vmatmul.bf16.gmra.mxu0 %v3470
      %v3544 = vpop.f32.mrf.mxu0
      %v3545 = vadd.f32 0.0, %v3544
      %v3546 = vpop.f32.mrf.mxu0
      %v3547 = vadd.f32 0.0, %v3546
      %3548 = vmatmul.bf16.gmra.mxu0 %v3472
      %v3549 = vpop.f32.mrf.mxu0
      %v3550 = vadd.f32 0.0, %v3549
      %v3551 = vpop.f32.mrf.mxu0
      %v3552 = vadd.f32 0.0, %v3551
      %3553 = vmatmul.bf16.gmra.mxu0 %v3474
      %v3554 = vpop.f32.mrf.mxu0
      %v3555 = vadd.f32 0.0, %v3554
      %v3556 = vpop.f32.mrf.mxu0
      %v3557 = vadd.f32 0.0, %v3556
      %3558 = vmatmul.bf16.gmra.mxu0 %v3476
      %v3559 = vpop.f32.mrf.mxu0
      %v3560 = vadd.f32 0.0, %v3559
      %v3561 = vpop.f32.mrf.mxu0
      %v3562 = vadd.f32 0.0, %v3561
      %3563 = vdwg.mxu0
      %v3564 = vadd.f32 %v3435, %v3540
      %v3565 = vadd.f32 %v3436, %v3542
      %v3566 = vadd.f32 %v3437, %v3545
      %v3567 = vadd.f32 %v3438, %v3547
      %v3568 = vadd.f32 %v3439, %v3550
      %v3569 = vadd.f32 %v3440, %v3552
      %v3570 = vadd.f32 %v3441, %v3555
      %v3571 = vadd.f32 %v3442, %v3557
      %v3572 = vadd.f32 %v3443, %v3560
      %v3573 = vadd.f32 %v3444, %v3562
      %v3574 = vld [vmem:[%s332 + $0x4] sm:$0xe]
      %v3575 = vld [vmem:[%s332 + $0x8] sm:$0xf]
      %v3576 = vld [vmem:[%s332 + $0xc] sm:$0xf]
      %v3577 = vld [vmem:[%s332 + $0x10] sm:$0xf]
      %v3578 = vld [vmem:[%s332 + $0x14] sm:$0xf]
      %v3579 = vld [vmem:[%s332 + $0x18] sm:$0xf]
      %v3580 = vld [vmem:[%s332 + $0x1c] sm:$0xf]
      %v3581 = vld [vmem:[%s332 + $0x20] sm:$0xf]
      %v3582 = vld [vmem:[%s332 + $0x24] sm:$0xf]
      %v3583 = vld [vmem:[%s332 + $0x28] sm:$0xf]
      %v3584 = vld [vmem:[%s332 + $0x2c] sm:$0x1]
      %s3585 = scalar_lea.vmem %s3, 1344
      %v3586 = vld [vmem:[%s3585] sm:$0xf]
      %v3587 = vld [vmem:[%s3585 + $0x4] sm:$0xf]
      %v3588 = vld [vmem:[%s3585 + $0x8] sm:$0xf]
      %v3589 = vld [vmem:[%s3585 + $0xc] sm:$0xf]
      %v3590 = vld [vmem:[%s3585 + $0x10] sm:$0xf]
      %v3591 = vld [vmem:[%s3585 + $0x14] sm:$0xf]
      %v3592 = vld [vmem:[%s3585 + $0x18] sm:$0xf]
      %v3593 = vld [vmem:[%s3585 + $0x1c] sm:$0xf]
      %v3594 = vld [vmem:[%s3585 + $0x20] sm:$0xf]
      %v3595 = vld [vmem:[%s3585 + $0x24] sm:$0xf]
      %v3596 = vld [vmem:[%s3585 + $0x28] sm:$0xf]
      %v3597 = vld [vmem:[%s3585 + $0x2c] sm:$0xf]
      %v3598 = vld [vmem:[%s3585 + $0x30] sm:$0xf]
      %v3599 = vld [vmem:[%s3585 + $0x34] sm:$0xf]
      %v3600 = vld [vmem:[%s3585 + $0x38] sm:$0xf]
      %v3601 = vld [vmem:[%s3585 + $0x3c] sm:$0xf]
      %v3613 = vunpack.c.l.b16 %v3574
      %v3614 = vunpack.c.l.b16 %v3575
      %v3615 = vunpack.c.l.b16 %v3576
      %v3616 = vunpack.c.l.b16 %v3577
      %v3617 = vunpack.c.l.b16 %v3578
      %v3618 = vunpack.c.l.b16 %v3579
      %v3619 = vunpack.c.l.b16 %v3580
      %v3620 = vunpack.c.l.b16 %v3581
      %v3621 = vunpack.c.l.b16 %v3582
      %v3622 = vunpack.c.l.b16 %v3583
      %v3623 = vunpack.c.l.b16 %v3584
      %v3624 = vpack.c.b16 %v3614, %v3613
      %v3625 = vpack.c.b16 %v3616, %v3615
      %v3626 = vpack.c.b16 %v3618, %v3617
      %v3627 = vpack.c.b16 %v3620, %v3619
      %v3628 = vpack.c.b16 %v3622, %v3621
      %v3629 = vpack.c.b16 %v3623, %v3623
      %v3630 = vrot.slane %v3624, 1
      %v3631 = vrot.slane %v3625, 1
      %v3632 = vsel %vm655, %v3630, %v3631
      %v3633 = vrot.slane %v3626, 1
      %v3634 = vsel %vm655, %v3631, %v3633
      %v3635 = vrot.slane %v3627, 1
      %v3636 = vsel %vm655, %v3633, %v3635
      %v3637 = vrot.slane %v3628, 1
      %v3638 = vsel %vm655, %v3635, %v3637
      %v3639 = vrot.slane %v3629, 1
      %v3640 = vsel %vm655, %v3637, %v3639
      %v3662 = vunpack.c.l.b16 %v3586
      %v3663 = vunpack.c.l.b16 %v3587
      %v3664 = vunpack.c.l.b16 %v3588
      %v3665 = vunpack.c.l.b16 %v3589
      %v3666 = vunpack.c.l.b16 %v3590
      %v3667 = vunpack.c.l.b16 %v3591
      %v3668 = vunpack.c.l.b16 %v3592
      %v3669 = vunpack.c.l.b16 %v3593
      %v3670 = vunpack.c.l.b16 %v3594
      %v3671 = vunpack.c.l.b16 %v3595
      %v3672 = vunpack.c.l.b16 %v3596
      %v3673 = vunpack.c.l.b16 %v3597
      %v3674 = vunpack.c.l.b16 %v3598
      %v3675 = vunpack.c.l.b16 %v3599
      %v3676 = vunpack.c.l.b16 %v3600
      %v3677 = vunpack.c.l.b16 %v3601
      %v3678 = vpack.c.b16 %v3663, %v3662
      %v3679 = vpack.c.b16 %v3665, %v3664
      %v3680 = vpack.c.b16 %v3667, %v3666
      %v3681 = vpack.c.b16 %v3669, %v3668
      %v3682 = vpack.c.b16 %v3671, %v3670
      %v3683 = vpack.c.b16 %v3673, %v3672
      %v3684 = vpack.c.b16 %v3675, %v3674
      %v3685 = vpack.c.b16 %v3677, %v3676
      %3694 = vmatpush.bf16.msra.mxu0 %v3685
      %3695 = vmatpush.bf16.msra.mxu0 %v3684
      %3696 = vmatpush.bf16.msra.mxu0 %v3683
      %3697 = vmatpush.bf16.msra.mxu0 %v3682
      %3698 = vmatpush.bf16.msra.mxu0 %v3681
      %3699 = vmatpush.bf16.msra.mxu0 %v3680
      %3700 = vmatpush.bf16.msra.mxu0 %v3679
      %3701 = vmatpush.bf16.msra.mxu0 %v3678
      %3702 = vmatmul.bf16.gmra.mxu0 %v3632
      %v3703 = vpop.f32.mrf.mxu0
      %v3704 = vadd.f32 0.0, %v3703
      %v3705 = vpop.f32.mrf.mxu0
      %v3706 = vadd.f32 0.0, %v3705
      %3707 = vmatmul.bf16.gmra.mxu0 %v3634
      %v3708 = vpop.f32.mrf.mxu0
      %v3709 = vadd.f32 0.0, %v3708
      %v3710 = vpop.f32.mrf.mxu0
      %v3711 = vadd.f32 0.0, %v3710
      %3712 = vmatmul.bf16.gmra.mxu0 %v3636
      %v3713 = vpop.f32.mrf.mxu0
      %v3714 = vadd.f32 0.0, %v3713
      %v3715 = vpop.f32.mrf.mxu0
      %v3716 = vadd.f32 0.0, %v3715
      %3717 = vmatmul.bf16.gmra.mxu0 %v3638
      %v3718 = vpop.f32.mrf.mxu0
      %v3719 = vadd.f32 0.0, %v3718
      %v3720 = vpop.f32.mrf.mxu0
      %v3721 = vadd.f32 0.0, %v3720
      %3722 = vmatmul.bf16.gmra.mxu0 %v3640
      %v3723 = vpop.f32.mrf.mxu0
      %v3724 = vadd.f32 0.0, %v3723
      %v3725 = vpop.f32.mrf.mxu0
      %v3726 = vadd.f32 0.0, %v3725
      %3727 = vdwg.mxu0
      %v3728 = vadd.f32 %v3564, %v3704
      %v3729 = vadd.f32 %v3565, %v3706
      %v3730 = vadd.f32 %v3566, %v3709
      %v3731 = vadd.f32 %v3567, %v3711
      %v3732 = vadd.f32 %v3568, %v3714
      %v3733 = vadd.f32 %v3569, %v3716
      %v3734 = vadd.f32 %v3570, %v3719
      %v3735 = vadd.f32 %v3571, %v3721
      %v3736 = vadd.f32 %v3572, %v3724
      %v3737 = vadd.f32 %v3573, %v3726
      %v3738 = vld [vmem:[%s332 + $0x2c] sm:$0x3]
      %s3739 = scalar_lea.vmem %s3, 1408
      %v3740 = vld [vmem:[%s3739] sm:$0xf]
      %v3741 = vld [vmem:[%s3739 + $0x4] sm:$0xf]
      %v3742 = vld [vmem:[%s3739 + $0x8] sm:$0xf]
      %v3743 = vld [vmem:[%s3739 + $0xc] sm:$0xf]
      %v3744 = vld [vmem:[%s3739 + $0x10] sm:$0xf]
      %v3745 = vld [vmem:[%s3739 + $0x14] sm:$0xf]
      %v3746 = vld [vmem:[%s3739 + $0x18] sm:$0xf]
      %v3747 = vld [vmem:[%s3739 + $0x1c] sm:$0xf]
      %v3748 = vld [vmem:[%s3739 + $0x20] sm:$0xf]
      %v3749 = vld [vmem:[%s3739 + $0x24] sm:$0xf]
      %v3750 = vld [vmem:[%s3739 + $0x28] sm:$0xf]
      %v3751 = vld [vmem:[%s3739 + $0x2c] sm:$0xf]
      %v3752 = vld [vmem:[%s3739 + $0x30] sm:$0xf]
      %v3753 = vld [vmem:[%s3739 + $0x34] sm:$0xf]
      %v3754 = vld [vmem:[%s3739 + $0x38] sm:$0xf]
      %v3755 = vld [vmem:[%s3739 + $0x3c] sm:$0xf]
      %v3757 = vunpack.c.l.b16 %v3738
      %v3758 = vpack.c.b16 %v3757, %v3757
      %v3760 = vshrl.u32 %v3624, 16
      %v3762 = vrot.slane %v3760, 1
      %v3763 = vshll.u32 %v3624, 16
      %v3765 = vrot.slane %v3763, 2
      %v3766 = vor.u32 %v3762, %v3765
      %v3768 = vshrl.u32 %v3625, 16
      %v3770 = vrot.slane %v3768, 1
      %v3771 = vshll.u32 %v3625, 16
      %v3773 = vrot.slane %v3771, 2
      %v3774 = vor.u32 %v3770, %v3773
      %v3775 = vsel %vm949, %v3766, %v3774
      %v3777 = vshrl.u32 %v3626, 16
      %v3779 = vrot.slane %v3777, 1
      %v3780 = vshll.u32 %v3626, 16
      %v3782 = vrot.slane %v3780, 2
      %v3783 = vor.u32 %v3779, %v3782
      %v3784 = vsel %vm949, %v3774, %v3783
      %v3786 = vshrl.u32 %v3627, 16
      %v3788 = vrot.slane %v3786, 1
      %v3789 = vshll.u32 %v3627, 16
      %v3791 = vrot.slane %v3789, 2
      %v3792 = vor.u32 %v3788, %v3791
      %v3793 = vsel %vm949, %v3783, %v3792
      %v3795 = vshrl.u32 %v3628, 16
      %v3797 = vrot.slane %v3795, 1
      %v3798 = vshll.u32 %v3628, 16
      %v3800 = vrot.slane %v3798, 2
      %v3801 = vor.u32 %v3797, %v3800
      %v3802 = vsel %vm949, %v3792, %v3801
      %v3804 = vshrl.u32 %v3758, 16
      %v3806 = vrot.slane %v3804, 1
      %v3807 = vshll.u32 %v3758, 16
      %v3809 = vrot.slane %v3807, 2
      %v3810 = vor.u32 %v3806, %v3809
      %v3811 = vsel %vm949, %v3801, %v3810
      %v3833 = vunpack.c.l.b16 %v3740
      %v3834 = vunpack.c.l.b16 %v3741
      %v3835 = vunpack.c.l.b16 %v3742
      %v3836 = vunpack.c.l.b16 %v3743
      %v3837 = vunpack.c.l.b16 %v3744
      %v3838 = vunpack.c.l.b16 %v3745
      %v3839 = vunpack.c.l.b16 %v3746
      %v3840 = vunpack.c.l.b16 %v3747
      %v3841 = vunpack.c.l.b16 %v3748
      %v3842 = vunpack.c.l.b16 %v3749
      %v3843 = vunpack.c.l.b16 %v3750
      %v3844 = vunpack.c.l.b16 %v3751
      %v3845 = vunpack.c.l.b16 %v3752
      %v3846 = vunpack.c.l.b16 %v3753
      %v3847 = vunpack.c.l.b16 %v3754
      %v3848 = vunpack.c.l.b16 %v3755
      %v3849 = vpack.c.b16 %v3834, %v3833
      %v3850 = vpack.c.b16 %v3836, %v3835
      %v3851 = vpack.c.b16 %v3838, %v3837
      %v3852 = vpack.c.b16 %v3840, %v3839
      %v3853 = vpack.c.b16 %v3842, %v3841
      %v3854 = vpack.c.b16 %v3844, %v3843
      %v3855 = vpack.c.b16 %v3846, %v3845
      %v3856 = vpack.c.b16 %v3848, %v3847
      %3865 = vmatpush.bf16.msra.mxu0 %v3856
      %3866 = vmatpush.bf16.msra.mxu0 %v3855
      %3867 = vmatpush.bf16.msra.mxu0 %v3854
      %3868 = vmatpush.bf16.msra.mxu0 %v3853
      %3869 = vmatpush.bf16.msra.mxu0 %v3852
      %3870 = vmatpush.bf16.msra.mxu0 %v3851
      %3871 = vmatpush.bf16.msra.mxu0 %v3850
      %3872 = vmatpush.bf16.msra.mxu0 %v3849
      %3873 = vmatmul.bf16.gmra.mxu0 %v3775
      %v3874 = vpop.f32.mrf.mxu0
      %v3875 = vadd.f32 0.0, %v3874
      %v3876 = vpop.f32.mrf.mxu0
      %v3877 = vadd.f32 0.0, %v3876
      %3878 = vmatmul.bf16.gmra.mxu0 %v3784
      %v3879 = vpop.f32.mrf.mxu0
      %v3880 = vadd.f32 0.0, %v3879
      %v3881 = vpop.f32.mrf.mxu0
      %v3882 = vadd.f32 0.0, %v3881
      %3883 = vmatmul.bf16.gmra.mxu0 %v3793
      %v3884 = vpop.f32.mrf.mxu0
      %v3885 = vadd.f32 0.0, %v3884
      %v3886 = vpop.f32.mrf.mxu0
      %v3887 = vadd.f32 0.0, %v3886
      %3888 = vmatmul.bf16.gmra.mxu0 %v3802
      %v3889 = vpop.f32.mrf.mxu0
      %v3890 = vadd.f32 0.0, %v3889
      %v3891 = vpop.f32.mrf.mxu0
      %v3892 = vadd.f32 0.0, %v3891
      %3893 = vmatmul.bf16.gmra.mxu0 %v3811
      %v3894 = vpop.f32.mrf.mxu0
      %v3895 = vadd.f32 0.0, %v3894
      %v3896 = vpop.f32.mrf.mxu0
      %v3897 = vadd.f32 0.0, %v3896
      %3898 = vdwg.mxu0
      %v3899 = vadd.f32 %v3728, %v3875
      %v3900 = vadd.f32 %v3729, %v3877
      %v3901 = vadd.f32 %v3730, %v3880
      %v3902 = vadd.f32 %v3731, %v3882
      %v3903 = vadd.f32 %v3732, %v3885
      %v3904 = vadd.f32 %v3733, %v3887
      %v3905 = vadd.f32 %v3734, %v3890
      %v3906 = vadd.f32 %v3735, %v3892
      %v3907 = vadd.f32 %v3736, %v3895
      %v3908 = vadd.f32 %v3737, %v3897
      %v3909 = vld [vmem:[%s332 + $0x4] sm:$0xc]
      %s3910 = scalar_lea.vmem %s3, 1472
      %v3911 = vld [vmem:[%s3910] sm:$0xf]
      %v3912 = vld [vmem:[%s3910 + $0x4] sm:$0xf]
      %v3913 = vld [vmem:[%s3910 + $0x8] sm:$0xf]
      %v3914 = vld [vmem:[%s3910 + $0xc] sm:$0xf]
      %v3915 = vld [vmem:[%s3910 + $0x10] sm:$0xf]
      %v3916 = vld [vmem:[%s3910 + $0x14] sm:$0xf]
      %v3917 = vld [vmem:[%s3910 + $0x18] sm:$0xf]
      %v3918 = vld [vmem:[%s3910 + $0x1c] sm:$0xf]
      %v3919 = vld [vmem:[%s3910 + $0x20] sm:$0xf]
      %v3920 = vld [vmem:[%s3910 + $0x24] sm:$0xf]
      %v3921 = vld [vmem:[%s3910 + $0x28] sm:$0xf]
      %v3922 = vld [vmem:[%s3910 + $0x2c] sm:$0xf]
      %v3923 = vld [vmem:[%s3910 + $0x30] sm:$0xf]
      %v3924 = vld [vmem:[%s3910 + $0x34] sm:$0xf]
      %v3925 = vld [vmem:[%s3910 + $0x38] sm:$0xf]
      %v3926 = vld [vmem:[%s3910 + $0x3c] sm:$0xf]
      %v3928 = vunpack.c.l.b16 %v3909
      %v3929 = vpack.c.b16 %v3614, %v3928
      %v3930 = vrot.slane %v3929, 2
      %v3931 = vrot.slane %v3625, 2
      %v3932 = vsel %vm1121, %v3930, %v3931
      %v3933 = vrot.slane %v3626, 2
      %v3934 = vsel %vm1121, %v3931, %v3933
      %v3935 = vrot.slane %v3627, 2
      %v3936 = vsel %vm1121, %v3933, %v3935
      %v3937 = vrot.slane %v3628, 2
      %v3938 = vsel %vm1121, %v3935, %v3937
      %v3939 = vrot.slane %v3758, 2
      %v3940 = vsel %vm1121, %v3937, %v3939
      %v3962 = vunpack.c.l.b16 %v3911
      %v3963 = vunpack.c.l.b16 %v3912
      %v3964 = vunpack.c.l.b16 %v3913
      %v3965 = vunpack.c.l.b16 %v3914
      %v3966 = vunpack.c.l.b16 %v3915
      %v3967 = vunpack.c.l.b16 %v3916
      %v3968 = vunpack.c.l.b16 %v3917
      %v3969 = vunpack.c.l.b16 %v3918
      %v3970 = vunpack.c.l.b16 %v3919
      %v3971 = vunpack.c.l.b16 %v3920
      %v3972 = vunpack.c.l.b16 %v3921
      %v3973 = vunpack.c.l.b16 %v3922
      %v3974 = vunpack.c.l.b16 %v3923
      %v3975 = vunpack.c.l.b16 %v3924
      %v3976 = vunpack.c.l.b16 %v3925
      %v3977 = vunpack.c.l.b16 %v3926
      %v3978 = vpack.c.b16 %v3963, %v3962
      %v3979 = vpack.c.b16 %v3965, %v3964
      %v3980 = vpack.c.b16 %v3967, %v3966
      %v3981 = vpack.c.b16 %v3969, %v3968
      %v3982 = vpack.c.b16 %v3971, %v3970
      %v3983 = vpack.c.b16 %v3973, %v3972
      %v3984 = vpack.c.b16 %v3975, %v3974
      %v3985 = vpack.c.b16 %v3977, %v3976
      %3994 = vmatpush.bf16.msra.mxu0 %v3985
      %3995 = vmatpush.bf16.msra.mxu0 %v3984
      %3996 = vmatpush.bf16.msra.mxu0 %v3983
      %3997 = vmatpush.bf16.msra.mxu0 %v3982
      %3998 = vmatpush.bf16.msra.mxu0 %v3981
      %3999 = vmatpush.bf16.msra.mxu0 %v3980
      %4000 = vmatpush.bf16.msra.mxu0 %v3979
      %4001 = vmatpush.bf16.msra.mxu0 %v3978
      %4002 = vmatmul.bf16.gmra.mxu0 %v3932
      %v4003 = vpop.f32.mrf.mxu0
      %v4004 = vadd.f32 0.0, %v4003
      %v4005 = vpop.f32.mrf.mxu0
      %v4006 = vadd.f32 0.0, %v4005
      %4007 = vmatmul.bf16.gmra.mxu0 %v3934
      %v4008 = vpop.f32.mrf.mxu0
      %v4009 = vadd.f32 0.0, %v4008
      %v4010 = vpop.f32.mrf.mxu0
      %v4011 = vadd.f32 0.0, %v4010
      %4012 = vmatmul.bf16.gmra.mxu0 %v3936
      %v4013 = vpop.f32.mrf.mxu0
      %v4014 = vadd.f32 0.0, %v4013
      %v4015 = vpop.f32.mrf.mxu0
      %v4016 = vadd.f32 0.0, %v4015
      %4017 = vmatmul.bf16.gmra.mxu0 %v3938
      %v4018 = vpop.f32.mrf.mxu0
      %v4019 = vadd.f32 0.0, %v4018
      %v4020 = vpop.f32.mrf.mxu0
      %v4021 = vadd.f32 0.0, %v4020
      %4022 = vmatmul.bf16.gmra.mxu0 %v3940
      %v4023 = vpop.f32.mrf.mxu0
      %v4024 = vadd.f32 0.0, %v4023
      %v4025 = vpop.f32.mrf.mxu0
      %v4026 = vadd.f32 0.0, %v4025
      %4027 = vdwg.mxu0
      %v4028 = vadd.f32 %v3899, %v4004
      %v4029 = vadd.f32 %v3900, %v4006
      %v4030 = vadd.f32 %v3901, %v4009
      %v4031 = vadd.f32 %v3902, %v4011
      %v4032 = vadd.f32 %v3903, %v4014
      %v4033 = vadd.f32 %v3904, %v4016
      %v4034 = vadd.f32 %v3905, %v4019
      %v4035 = vadd.f32 %v3906, %v4021
      %v4036 = vadd.f32 %v3907, %v4024
      %v4037 = vadd.f32 %v3908, %v4026
      %v4038 = vld [vmem:[%s332 + $0x8] sm:$0xc]
      %v4039 = vld [vmem:[%s332 + $0xc] sm:$0xf]
      %v4040 = vld [vmem:[%s332 + $0x10] sm:$0xf]
      %v4041 = vld [vmem:[%s332 + $0x14] sm:$0xf]
      %v4042 = vld [vmem:[%s332 + $0x18] sm:$0xf]
      %v4043 = vld [vmem:[%s332 + $0x1c] sm:$0xf]
      %v4044 = vld [vmem:[%s332 + $0x20] sm:$0xf]
      %v4045 = vld [vmem:[%s332 + $0x24] sm:$0xf]
      %v4046 = vld [vmem:[%s332 + $0x28] sm:$0xf]
      %v4047 = vld [vmem:[%s332 + $0x2c] sm:$0xf]
      %v4048 = vld [vmem:[%s332 + $0x30] sm:$0x3]
      %s4049 = scalar_lea.vmem %s3, 1536
      %v4050 = vld [vmem:[%s4049] sm:$0xf]
      %v4051 = vld [vmem:[%s4049 + $0x4] sm:$0xf]
      %v4052 = vld [vmem:[%s4049 + $0x8] sm:$0xf]
      %v4053 = vld [vmem:[%s4049 + $0xc] sm:$0xf]
      %v4054 = vld [vmem:[%s4049 + $0x10] sm:$0xf]
      %v4055 = vld [vmem:[%s4049 + $0x14] sm:$0xf]
      %v4056 = vld [vmem:[%s4049 + $0x18] sm:$0xf]
      %v4057 = vld [vmem:[%s4049 + $0x1c] sm:$0xf]
      %v4058 = vld [vmem:[%s4049 + $0x20] sm:$0xf]
      %v4059 = vld [vmem:[%s4049 + $0x24] sm:$0xf]
      %v4060 = vld [vmem:[%s4049 + $0x28] sm:$0xf]
      %v4061 = vld [vmem:[%s4049 + $0x2c] sm:$0xf]
      %v4062 = vld [vmem:[%s4049 + $0x30] sm:$0xf]
      %v4063 = vld [vmem:[%s4049 + $0x34] sm:$0xf]
      %v4064 = vld [vmem:[%s4049 + $0x38] sm:$0xf]
      %v4065 = vld [vmem:[%s4049 + $0x3c] sm:$0xf]
      %v4077 = vunpack.c.l.b16 %v4038
      %v4078 = vunpack.c.l.b16 %v4039
      %v4079 = vunpack.c.l.b16 %v4040
      %v4080 = vunpack.c.l.b16 %v4041
      %v4081 = vunpack.c.l.b16 %v4042
      %v4082 = vunpack.c.l.b16 %v4043
      %v4083 = vunpack.c.l.b16 %v4044
      %v4084 = vunpack.c.l.b16 %v4045
      %v4085 = vunpack.c.l.b16 %v4046
      %v4086 = vunpack.c.l.b16 %v4047
      %v4087 = vunpack.c.l.b16 %v4048
      %v4088 = vpack.c.b16 %v4078, %v4077
      %v4089 = vpack.c.b16 %v4080, %v4079
      %v4090 = vpack.c.b16 %v4082, %v4081
      %v4091 = vpack.c.b16 %v4084, %v4083
      %v4092 = vpack.c.b16 %v4086, %v4085
      %v4093 = vpack.c.b16 %v4087, %v4087
      %v4094 = vrot.slane %v4088, 2
      %v4095 = vrot.slane %v4089, 2
      %v4096 = vsel %vm1121, %v4094, %v4095
      %v4097 = vrot.slane %v4090, 2
      %v4098 = vsel %vm1121, %v4095, %v4097
      %v4099 = vrot.slane %v4091, 2
      %v4100 = vsel %vm1121, %v4097, %v4099
      %v4101 = vrot.slane %v4092, 2
      %v4102 = vsel %vm1121, %v4099, %v4101
      %v4103 = vrot.slane %v4093, 2
      %v4104 = vsel %vm1121, %v4101, %v4103
      %v4126 = vunpack.c.l.b16 %v4050
      %v4127 = vunpack.c.l.b16 %v4051
      %v4128 = vunpack.c.l.b16 %v4052
      %v4129 = vunpack.c.l.b16 %v4053
      %v4130 = vunpack.c.l.b16 %v4054
      %v4131 = vunpack.c.l.b16 %v4055
      %v4132 = vunpack.c.l.b16 %v4056
      %v4133 = vunpack.c.l.b16 %v4057
      %v4134 = vunpack.c.l.b16 %v4058
      %v4135 = vunpack.c.l.b16 %v4059
      %v4136 = vunpack.c.l.b16 %v4060
      %v4137 = vunpack.c.l.b16 %v4061
      %v4138 = vunpack.c.l.b16 %v4062
      %v4139 = vunpack.c.l.b16 %v4063
      %v4140 = vunpack.c.l.b16 %v4064
      %v4141 = vunpack.c.l.b16 %v4065
      %v4142 = vpack.c.b16 %v4127, %v4126
      %v4143 = vpack.c.b16 %v4129, %v4128
      %v4144 = vpack.c.b16 %v4131, %v4130
      %v4145 = vpack.c.b16 %v4133, %v4132
      %v4146 = vpack.c.b16 %v4135, %v4134
      %v4147 = vpack.c.b16 %v4137, %v4136
      %v4148 = vpack.c.b16 %v4139, %v4138
      %v4149 = vpack.c.b16 %v4141, %v4140
      %4158 = vmatpush.bf16.msra.mxu0 %v4149
      %4159 = vmatpush.bf16.msra.mxu0 %v4148
      %4160 = vmatpush.bf16.msra.mxu0 %v4147
      %4161 = vmatpush.bf16.msra.mxu0 %v4146
      %4162 = vmatpush.bf16.msra.mxu0 %v4145
      %4163 = vmatpush.bf16.msra.mxu0 %v4144
      %4164 = vmatpush.bf16.msra.mxu0 %v4143
      %4165 = vmatpush.bf16.msra.mxu0 %v4142
      %4166 = vmatmul.bf16.gmra.mxu0 %v4096
      %v4167 = vpop.f32.mrf.mxu0
      %v4168 = vadd.f32 0.0, %v4167
      %v4169 = vpop.f32.mrf.mxu0
      %v4170 = vadd.f32 0.0, %v4169
      %4171 = vmatmul.bf16.gmra.mxu0 %v4098
      %v4172 = vpop.f32.mrf.mxu0
      %v4173 = vadd.f32 0.0, %v4172
      %v4174 = vpop.f32.mrf.mxu0
      %v4175 = vadd.f32 0.0, %v4174
      %4176 = vmatmul.bf16.gmra.mxu0 %v4100
      %v4177 = vpop.f32.mrf.mxu0
      %v4178 = vadd.f32 0.0, %v4177
      %v4179 = vpop.f32.mrf.mxu0
      %v4180 = vadd.f32 0.0, %v4179
      %4181 = vmatmul.bf16.gmra.mxu0 %v4102
      %v4182 = vpop.f32.mrf.mxu0
      %v4183 = vadd.f32 0.0, %v4182
      %v4184 = vpop.f32.mrf.mxu0
      %v4185 = vadd.f32 0.0, %v4184
      %4186 = vmatmul.bf16.gmra.mxu0 %v4104
      %v4187 = vpop.f32.mrf.mxu0
      %v4188 = vadd.f32 0.0, %v4187
      %v4189 = vpop.f32.mrf.mxu0
      %v4190 = vadd.f32 0.0, %v4189
      %4191 = vdwg.mxu0
      %v4192 = vadd.f32 %v4028, %v4168
      %v4193 = vadd.f32 %v4029, %v4170
      %v4194 = vadd.f32 %v4030, %v4173
      %v4195 = vadd.f32 %v4031, %v4175
      %v4196 = vadd.f32 %v4032, %v4178
      %v4197 = vadd.f32 %v4033, %v4180
      %v4198 = vadd.f32 %v4034, %v4183
      %v4199 = vadd.f32 %v4035, %v4185
      %v4200 = vadd.f32 %v4036, %v4188
      %v4201 = vadd.f32 %v4037, %v4190
      %v4202 = vld [vmem:[%s332 + $0x30] sm:$0x7]
      %s4203 = scalar_lea.vmem %s3, 1600
      %v4204 = vld [vmem:[%s4203] sm:$0xf]
      %v4205 = vld [vmem:[%s4203 + $0x4] sm:$0xf]
      %v4206 = vld [vmem:[%s4203 + $0x8] sm:$0xf]
      %v4207 = vld [vmem:[%s4203 + $0xc] sm:$0xf]
      %v4208 = vld [vmem:[%s4203 + $0x10] sm:$0xf]
      %v4209 = vld [vmem:[%s4203 + $0x14] sm:$0xf]
      %v4210 = vld [vmem:[%s4203 + $0x18] sm:$0xf]
      %v4211 = vld [vmem:[%s4203 + $0x1c] sm:$0xf]
      %v4212 = vld [vmem:[%s4203 + $0x20] sm:$0xf]
      %v4213 = vld [vmem:[%s4203 + $0x24] sm:$0xf]
      %v4214 = vld [vmem:[%s4203 + $0x28] sm:$0xf]
      %v4215 = vld [vmem:[%s4203 + $0x2c] sm:$0xf]
      %v4216 = vld [vmem:[%s4203 + $0x30] sm:$0xf]
      %v4217 = vld [vmem:[%s4203 + $0x34] sm:$0xf]
      %v4218 = vld [vmem:[%s4203 + $0x38] sm:$0xf]
      %v4219 = vld [vmem:[%s4203 + $0x3c] sm:$0xf]
      %v4221 = vunpack.c.l.b16 %v4202
      %v4222 = vpack.c.b16 %v4221, %v4221
      %v4224 = vshrl.u32 %v4088, 16
      %v4226 = vrot.slane %v4224, 2
      %v4227 = vshll.u32 %v4088, 16
      %v4229 = vrot.slane %v4227, 3
      %v4230 = vor.u32 %v4226, %v4229
      %v4232 = vshrl.u32 %v4089, 16
      %v4234 = vrot.slane %v4232, 2
      %v4235 = vshll.u32 %v4089, 16
      %v4237 = vrot.slane %v4235, 3
      %v4238 = vor.u32 %v4234, %v4237
      %v4239 = vsel %vm1415, %v4230, %v4238
      %v4241 = vshrl.u32 %v4090, 16
      %v4243 = vrot.slane %v4241, 2
      %v4244 = vshll.u32 %v4090, 16
      %v4246 = vrot.slane %v4244, 3
      %v4247 = vor.u32 %v4243, %v4246
      %v4248 = vsel %vm1415, %v4238, %v4247
      %v4250 = vshrl.u32 %v4091, 16
      %v4252 = vrot.slane %v4250, 2
      %v4253 = vshll.u32 %v4091, 16
      %v4255 = vrot.slane %v4253, 3
      %v4256 = vor.u32 %v4252, %v4255
      %v4257 = vsel %vm1415, %v4247, %v4256
      %v4259 = vshrl.u32 %v4092, 16
      %v4261 = vrot.slane %v4259, 2
      %v4262 = vshll.u32 %v4092, 16
      %v4264 = vrot.slane %v4262, 3
      %v4265 = vor.u32 %v4261, %v4264
      %v4266 = vsel %vm1415, %v4256, %v4265
      %v4268 = vshrl.u32 %v4222, 16
      %v4270 = vrot.slane %v4268, 2
      %v4271 = vshll.u32 %v4222, 16
      %v4273 = vrot.slane %v4271, 3
      %v4274 = vor.u32 %v4270, %v4273
      %v4275 = vsel %vm1415, %v4265, %v4274
      %v4297 = vunpack.c.l.b16 %v4204
      %v4298 = vunpack.c.l.b16 %v4205
      %v4299 = vunpack.c.l.b16 %v4206
      %v4300 = vunpack.c.l.b16 %v4207
      %v4301 = vunpack.c.l.b16 %v4208
      %v4302 = vunpack.c.l.b16 %v4209
      %v4303 = vunpack.c.l.b16 %v4210
      %v4304 = vunpack.c.l.b16 %v4211
      %v4305 = vunpack.c.l.b16 %v4212
      %v4306 = vunpack.c.l.b16 %v4213
      %v4307 = vunpack.c.l.b16 %v4214
      %v4308 = vunpack.c.l.b16 %v4215
      %v4309 = vunpack.c.l.b16 %v4216
      %v4310 = vunpack.c.l.b16 %v4217
      %v4311 = vunpack.c.l.b16 %v4218
      %v4312 = vunpack.c.l.b16 %v4219
      %v4313 = vpack.c.b16 %v4298, %v4297
      %v4314 = vpack.c.b16 %v4300, %v4299
      %v4315 = vpack.c.b16 %v4302, %v4301
      %v4316 = vpack.c.b16 %v4304, %v4303
      %v4317 = vpack.c.b16 %v4306, %v4305
      %v4318 = vpack.c.b16 %v4308, %v4307
      %v4319 = vpack.c.b16 %v4310, %v4309
      %v4320 = vpack.c.b16 %v4312, %v4311
      %4329 = vmatpush.bf16.msra.mxu0 %v4320
      %4330 = vmatpush.bf16.msra.mxu0 %v4319
      %4331 = vmatpush.bf16.msra.mxu0 %v4318
      %4332 = vmatpush.bf16.msra.mxu0 %v4317
      %4333 = vmatpush.bf16.msra.mxu0 %v4316
      %4334 = vmatpush.bf16.msra.mxu0 %v4315
      %4335 = vmatpush.bf16.msra.mxu0 %v4314
      %4336 = vmatpush.bf16.msra.mxu0 %v4313
      %4337 = vmatmul.bf16.gmra.mxu0 %v4239
      %v4338 = vpop.f32.mrf.mxu0
      %v4339 = vadd.f32 0.0, %v4338
      %v4340 = vpop.f32.mrf.mxu0
      %v4341 = vadd.f32 0.0, %v4340
      %4342 = vmatmul.bf16.gmra.mxu0 %v4248
      %v4343 = vpop.f32.mrf.mxu0
      %v4344 = vadd.f32 0.0, %v4343
      %v4345 = vpop.f32.mrf.mxu0
      %v4346 = vadd.f32 0.0, %v4345
      %4347 = vmatmul.bf16.gmra.mxu0 %v4257
      %v4348 = vpop.f32.mrf.mxu0
      %v4349 = vadd.f32 0.0, %v4348
      %v4350 = vpop.f32.mrf.mxu0
      %v4351 = vadd.f32 0.0, %v4350
      %4352 = vmatmul.bf16.gmra.mxu0 %v4266
      %v4353 = vpop.f32.mrf.mxu0
      %v4354 = vadd.f32 0.0, %v4353
      %v4355 = vpop.f32.mrf.mxu0
      %v4356 = vadd.f32 0.0, %v4355
      %4357 = vmatmul.bf16.gmra.mxu0 %v4275
      %v4358 = vpop.f32.mrf.mxu0
      %v4359 = vadd.f32 0.0, %v4358
      %v4360 = vpop.f32.mrf.mxu0
      %v4361 = vadd.f32 0.0, %v4360
      %4362 = vdwg.mxu0
      %v4363 = vadd.f32 %v4192, %v4339
      %v4364 = vadd.f32 %v4193, %v4341
      %v4365 = vadd.f32 %v4194, %v4344
      %v4366 = vadd.f32 %v4195, %v4346
      %v4367 = vadd.f32 %v4196, %v4349
      %v4368 = vadd.f32 %v4197, %v4351
      %v4369 = vadd.f32 %v4198, %v4354
      %v4370 = vadd.f32 %v4199, %v4356
      %v4371 = vadd.f32 %v4200, %v4359
      %v4372 = vadd.f32 %v4201, %v4361
      %v4373 = vld [vmem:[%s332 + $0x8] sm:$0x8]
      %s4374 = scalar_lea.vmem %s3, 1664
      %v4375 = vld [vmem:[%s4374] sm:$0xf]
      %v4376 = vld [vmem:[%s4374 + $0x4] sm:$0xf]
      %v4377 = vld [vmem:[%s4374 + $0x8] sm:$0xf]
      %v4378 = vld [vmem:[%s4374 + $0xc] sm:$0xf]
      %v4379 = vld [vmem:[%s4374 + $0x10] sm:$0xf]
      %v4380 = vld [vmem:[%s4374 + $0x14] sm:$0xf]
      %v4381 = vld [vmem:[%s4374 + $0x18] sm:$0xf]
      %v4382 = vld [vmem:[%s4374 + $0x1c] sm:$0xf]
      %v4383 = vld [vmem:[%s4374 + $0x20] sm:$0xf]
      %v4384 = vld [vmem:[%s4374 + $0x24] sm:$0xf]
      %v4385 = vld [vmem:[%s4374 + $0x28] sm:$0xf]
      %v4386 = vld [vmem:[%s4374 + $0x2c] sm:$0xf]
      %v4387 = vld [vmem:[%s4374 + $0x30] sm:$0xf]
      %v4388 = vld [vmem:[%s4374 + $0x34] sm:$0xf]
      %v4389 = vld [vmem:[%s4374 + $0x38] sm:$0xf]
      %v4390 = vld [vmem:[%s4374 + $0x3c] sm:$0xf]
      %v4392 = vunpack.c.l.b16 %v4373
      %v4393 = vpack.c.b16 %v4078, %v4392
      %v4394 = vrot.slane %v4393, 3
      %v4395 = vrot.slane %v4089, 3
      %v4396 = vsel %vm1587, %v4394, %v4395
      %v4397 = vrot.slane %v4090, 3
      %v4398 = vsel %vm1587, %v4395, %v4397
      %v4399 = vrot.slane %v4091, 3
      %v4400 = vsel %vm1587, %v4397, %v4399
      %v4401 = vrot.slane %v4092, 3
      %v4402 = vsel %vm1587, %v4399, %v4401
      %v4403 = vrot.slane %v4222, 3
      %v4404 = vsel %vm1587, %v4401, %v4403
      %v4426 = vunpack.c.l.b16 %v4375
      %v4427 = vunpack.c.l.b16 %v4376
      %v4428 = vunpack.c.l.b16 %v4377
      %v4429 = vunpack.c.l.b16 %v4378
      %v4430 = vunpack.c.l.b16 %v4379
      %v4431 = vunpack.c.l.b16 %v4380
      %v4432 = vunpack.c.l.b16 %v4381
      %v4433 = vunpack.c.l.b16 %v4382
      %v4434 = vunpack.c.l.b16 %v4383
      %v4435 = vunpack.c.l.b16 %v4384
      %v4436 = vunpack.c.l.b16 %v4385
      %v4437 = vunpack.c.l.b16 %v4386
      %v4438 = vunpack.c.l.b16 %v4387
      %v4439 = vunpack.c.l.b16 %v4388
      %v4440 = vunpack.c.l.b16 %v4389
      %v4441 = vunpack.c.l.b16 %v4390
      %v4442 = vpack.c.b16 %v4427, %v4426
      %v4443 = vpack.c.b16 %v4429, %v4428
      %v4444 = vpack.c.b16 %v4431, %v4430
      %v4445 = vpack.c.b16 %v4433, %v4432
      %v4446 = vpack.c.b16 %v4435, %v4434
      %v4447 = vpack.c.b16 %v4437, %v4436
      %v4448 = vpack.c.b16 %v4439, %v4438
      %v4449 = vpack.c.b16 %v4441, %v4440
      %4458 = vmatpush.bf16.msra.mxu0 %v4449
      %4459 = vmatpush.bf16.msra.mxu0 %v4448
      %4460 = vmatpush.bf16.msra.mxu0 %v4447
      %4461 = vmatpush.bf16.msra.mxu0 %v4446
      %4462 = vmatpush.bf16.msra.mxu0 %v4445
      %4463 = vmatpush.bf16.msra.mxu0 %v4444
      %4464 = vmatpush.bf16.msra.mxu0 %v4443
      %4465 = vmatpush.bf16.msra.mxu0 %v4442
      %4466 = vmatmul.bf16.gmra.mxu0 %v4396
      %v4467 = vpop.f32.mrf.mxu0
      %v4468 = vadd.f32 0.0, %v4467
      %v4469 = vpop.f32.mrf.mxu0
      %v4470 = vadd.f32 0.0, %v4469
      %4471 = vmatmul.bf16.gmra.mxu0 %v4398
      %v4472 = vpop.f32.mrf.mxu0
      %v4473 = vadd.f32 0.0, %v4472
      %v4474 = vpop.f32.mrf.mxu0
      %v4475 = vadd.f32 0.0, %v4474
      %4476 = vmatmul.bf16.gmra.mxu0 %v4400
      %v4477 = vpop.f32.mrf.mxu0
      %v4478 = vadd.f32 0.0, %v4477
      %v4479 = vpop.f32.mrf.mxu0
      %v4480 = vadd.f32 0.0, %v4479
      %4481 = vmatmul.bf16.gmra.mxu0 %v4402
      %v4482 = vpop.f32.mrf.mxu0
      %v4483 = vadd.f32 0.0, %v4482
      %v4484 = vpop.f32.mrf.mxu0
      %v4485 = vadd.f32 0.0, %v4484
      %4486 = vmatmul.bf16.gmra.mxu0 %v4404
      %v4487 = vpop.f32.mrf.mxu0
      %v4488 = vadd.f32 0.0, %v4487
      %v4489 = vpop.f32.mrf.mxu0
      %v4490 = vadd.f32 0.0, %v4489
      %4491 = vdwg.mxu0
      %v4492 = vadd.f32 %v4363, %v4468
      %v4493 = vadd.f32 %v4364, %v4470
      %v4494 = vadd.f32 %v4365, %v4473
      %v4495 = vadd.f32 %v4366, %v4475
      %v4496 = vadd.f32 %v4367, %v4478
      %v4497 = vadd.f32 %v4368, %v4480
      %v4498 = vadd.f32 %v4369, %v4483
      %v4499 = vadd.f32 %v4370, %v4485
      %v4500 = vadd.f32 %v4371, %v4488
      %v4501 = vadd.f32 %v4372, %v4490
      %v4502 = vld [vmem:[%s4] sm:$0x1]
      %v4504 = vperm.slane %v4502, 0
      %v4506 = vadd.f32 %v4492, %v4504
      %v4507 = vadd.f32 %v4493, %v4504
      %v4508 = vadd.f32 %v4494, %v4504
      %v4509 = vadd.f32 %v4495, %v4504
      %v4510 = vadd.f32 %v4496, %v4504
      %v4511 = vadd.f32 %v4497, %v4504
      %v4512 = vadd.f32 %v4498, %v4504
      %v4513 = vadd.f32 %v4499, %v4504
      %v4514 = vadd.f32 %v4500, %v4504
      %v4515 = vadd.f32 %v4501, %v4504
      %v4516 = vmax.f32 %v4506, 0.0
      %v4517 = vmax.f32 %v4507, 0.0
      %v4518 = vmax.f32 %v4508, 0.0
      %v4519 = vmax.f32 %v4509, 0.0
      %v4520 = vmax.f32 %v4510, 0.0
      %v4521 = vmax.f32 %v4511, 0.0
      %v4522 = vmax.f32 %v4512, 0.0
      %v4523 = vmax.f32 %v4513, 0.0
      %v4524 = vmax.f32 %v4514, 0.0
      %v4525 = vmax.f32 %v4515, 0.0
      %4526 = vst [vmem:[%s342] sm:$0xff] %v4516
      %4527 = vst [vmem:[%s342 + $0x8] sm:$0xff] %v4517
      %4528 = vst [vmem:[%s342 + $0x10] sm:$0xff] %v4518
      %4529 = vst [vmem:[%s342 + $0x18] sm:$0xff] %v4519
      %4530 = vst [vmem:[%s342 + $0x20] sm:$0xff] %v4520
      %4531 = vst [vmem:[%s342 + $0x28] sm:$0xff] %v4521
      %4532 = vst [vmem:[%s342 + $0x30] sm:$0xff] %v4522
      %4533 = vst [vmem:[%s342 + $0x38] sm:$0xff] %v4523
      %4534 = vst [vmem:[%s342 + $0x40] sm:$0xff] %v4524
      %4535 = vst [vmem:[%s342 + $0x48] sm:$0xff] %v4525
      %p4536 = scmp.lt.s32.totalorder %s20, 1
      %s4537 = scalar_select %p4536, %s20, 1
      %p4538 = scmp.lt.s32.totalorder %s21, 7
      %s4539 = scalar_select %p4538, %s21, 7
      %s4540 = smul.addr %s4539, 10
      %s4541 = smul.addr %s4537, 80
      %s4542 = sadd.s32 %s4540, %s4541
      %s4543 = smul.addr %s4542, 8
      %s4544 = scalar_lea.vmem %s5, %s4543
      // Predicated region
      $region41: #{deconv_forward.5} parent=39 // pred_check
        %p4545 = pneg %p178
      $region42: #{deconv_forward.5} parent=39 // pred_check_branch
        %4547 = sbr.rel (%p4545) target = $region44
      $region43: #{deconv_forward.5} parent=39 // pred_region
        _
      $region44: #{deconv_forward.5} parent=39 // pred_fallthru
        _
    $region40: #{deconv_forward.5} parent=5 // pred_fallthru
      _
    %p4548 = scmp.le.s32.totalorder 2, %s11
    // Predicated region
    $region45: #{deconv_forward.5} parent=5 // pred_check
      %p4549 = pneg %p4548
    $region46: #{deconv_forward.5} parent=5 // pred_check_branch
      %4551 = sbr.rel (%p4549) target = $region48
    $region47: #{deconv_forward.5} parent=5 // pred_region
      %s4552 = ssub.s32 %s11, 2
      // Predicated region
      $region49: #{deconv_forward.5} parent=47 // pred_check
        %p4553 = pneg %p184
      $region50: #{deconv_forward.5} parent=47 // pred_check_branch
        %4555 = sbr.rel (%p4553) target = $region52
      $region51: #{deconv_forward.5} parent=47 // pred_region
        %p4556 = scmp.lt.s32.totalorder %s22, 1
        %s4557 = scalar_select %p4556, %s22, 1
        %p4558 = scmp.lt.s32.totalorder %s23, 7
        %s4559 = scalar_select %p4558, %s23, 7
        %s4560 = smul.addr %s4559, 10
        %s4561 = smul.addr %s4557, 80
        %s4562 = sadd.s32 %s4560, %s4561
        %s4563 = smul.addr %s4562, 8
        %s4564 = scalar_lea.vmem %s5, %s4563
      $region52: #{deconv_forward.5} parent=47 // pred_fallthru
        _
    $region48: #{deconv_forward.5} parent=5 // pred_fallthru
      _
  $region6: #{deconv_forward.5} parent=0 // loop_footer
    %s15 = sadd.s32 1, %s11
  $region7: #{deconv_forward.5} parent=0 // loop_footer_branch
    %10 = sbr.rel target = $region3
  $region8: #{deconv_forward.5} parent=0 // loop_exit
    _

</llo_original>
